<compile_context>
chip_gen: v7x
topology: tpu7x:2x2x1
jax: 0.10.0
libtpu: 0.0.40
codegen_flags: <defaults>
</compile_context>

<pallas_src>
import math
from functools import partial

import jax
import jax.numpy as jnp
from jax.experimental import pallas as pl
from jax.experimental.pallas import tpu as pltpu

EPS = 1e-6     # LayerNorm eps (partial(nn.LayerNorm, eps=1e-06))
TN = 256       # token tile (rows per grid step) for token-parallel kernels


# ----------------------------- in-kernel helpers -----------------------------

def _ln(x, gamma, beta):
    mu = jnp.mean(x, axis=-1, keepdims=True)
    var = jnp.mean(jnp.square(x - mu), axis=-1, keepdims=True)
    return (x - mu) * jax.lax.rsqrt(var + EPS) * gamma + beta


def _gelu_exact(x):
    # torch nn.GELU() default = exact erf formulation
    return 0.5 * x * (1.0 + jax.lax.erf(x * (1.0 / math.sqrt(2.0))))


# --------------------------------- kernels -----------------------------------

def _attn_kernel(x_ref, g1_ref, b1_ref, wqkv_ref, bqkv_ref, wproj_ref, bproj_ref,
                 o_ref, acc_ref, *, heads, scale, n_valid):
    """Fused LN1 + grouped self-attention + output projection for one (b, g)."""
    g = pl.program_id(1)
    S = x_ref.shape[2]
    C = wqkv_ref.shape[0]
    hd = C // heads

    x = x_ref[0, 0].astype(jnp.float32)                      # (S, C)
    x_ln = _ln(x, g1_ref[...], b1_ref[...])
    # torch pads the LN output with zeros up to Np before the QKV linear (the
    # padded rows then carry qkv == bias and participate in softmax).  Zero the
    # rows whose global token index >= n_valid so the fused LN reproduces that
    # exactly (this also neutralizes garbage in partial edge blocks).
    row = jax.lax.broadcasted_iota(jnp.int32, (S, C), 0)
    x_ln = jnp.where(g * S + row < n_valid, x_ln, 0.0)

    qkv = jnp.dot(x_ln, wqkv_ref[...],
                  preferred_element_type=jnp.float32) + bqkv_ref[...]

    # static per-head unroll; head results written into scratch lane slices
    # (no jnp.concatenate, no extra VMEM copies).
    for h in range(heads):
        qh = qkv[:, h * hd:(h + 1) * hd]
        kh = qkv[:, C + h * hd:C + (h + 1) * hd]
        vh = qkv[:, 2 * C + h * hd:2 * C + (h + 1) * hd]
        s = jax.lax.dot_general(qh, kh, (((1,), (1,)), ((), ())),
                                preferred_element_type=jnp.float32) * scale
        s = s - jnp.max(s, axis=-1, keepdims=True)
        e = jnp.exp(s)
        p = e * pl.reciprocal(jnp.sum(e, axis=-1, keepdims=True), approx=True)
        acc_ref[:, h * hd:(h + 1) * hd] = jnp.dot(
            p, vh, preferred_element_type=jnp.float32)

    # fused output projection (per-token linear commutes with the later
    # inverse-permutation / :N slice, so doing it here is exact).
    y = jnp.dot(acc_ref[...], wproj_ref[...],
                preferred_element_type=jnp.float32) + bproj_ref[...]
    o_ref[0, 0] = y.astype(o_ref.dtype)


def _post_attn_kernel(x_ref, a_ref,
                      g2_ref, b2_ref, w1_ref, b1_ref, w2_ref, b2m_ref,
                      gn_ref, bn_ref, wn1_ref, bn1_ref, wn2_ref, bn2_ref,
                      c_ref, o_ref):
    # Transformer_Block epilogue + the following Non_proj, fused per token tile:
    #   x1  = c1*x + c2*attn_out
    #   x2  = c3*x1 + c4*(GELU(LN2(x1) @ W1 + b1) @ W2 + b2)
    #   out = d1*x2 + d2*(GELU(LNnp(x2) @ Wn1 + bn1) @ Wn2 + bn2)
    x = x_ref[0].astype(jnp.float32)
    a = a_ref[0].astype(jnp.float32)

    x1 = c_ref[0] * x + c_ref[1] * a
    h = _ln(x1, g2_ref[...], b2_ref[...])
    h = jnp.dot(h, w1_ref[...], preferred_element_type=jnp.float32) + b1_ref[...]
    h = _gelu_exact(h)
    y = jnp.dot(h, w2_ref[...], preferred_element_type=jnp.float32) + b2m_ref[...]
    x2 = c_ref[2] * x1 + c_ref[3] * y

    hn = _ln(x2, gn_ref[...], bn_ref[...])
    hn = jnp.dot(hn, wn1_ref[...], preferred_element_type=jnp.float32) + bn1_ref[...]
    hn = _gelu_exact(hn)
    yn = jnp.dot(hn, wn2_ref[...], preferred_element_type=jnp.float32) + bn2_ref[...]

    o_ref[0] = (c_ref[4] * x2 + c_ref[5] * yn).astype(o_ref.dtype)


# ------------------------------- kernel wrappers ------------------------------

def grouped_attention(xg, p, heads, scale, n_valid):
    """xg: (B, G, S, C) possibly-permuted raw tokens (zero pad past n_valid)."""
    B, G, S, C = xg.shape
    kern = partial(_attn_kernel, heads=heads, scale=scale, n_valid=n_valid)
    return pl.pallas_call(
        kern,
        out_shape=jax.ShapeDtypeStruct((B, G, S, C), xg.dtype),
        grid=(B, G),
        in_specs=[pl.BlockSpec((1, 1, S, C), lambda b, g: (b, g, 0, 0)),
                  pl.BlockSpec((1, C), lambda b, g: (0, 0)),
                  pl.BlockSpec((1, C), lambda b, g: (0, 0)),
                  pl.BlockSpec((C, 3 * C), lambda b, g: (0, 0)),
                  pl.BlockSpec((1, 3 * C), lambda b, g: (0, 0)),
                  pl.BlockSpec((C, C), lambda b, g: (0, 0)),
                  pl.BlockSpec((1, C), lambda b, g: (0, 0))],
        out_specs=pl.BlockSpec((1, 1, S, C), lambda b, g: (b, g, 0, 0)),
        scratch_shapes=[pltpu.VMEM((S, C), jnp.float32)],
        compiler_params=pltpu.CompilerParams(
            dimension_semantics=("parallel", "parallel")),
    )(xg, p['ln1_g'].reshape(1, C), p['ln1_b'].reshape(1, C),
      p['w_qkv'], p['b_qkv'].reshape(1, 3 * C),
      p['w_proj'], p['b_proj'].reshape(1, C))


def attn_res_ffn_np(x, a, pb, pn):
    """Fused (residual + LN2 + MLP + residual) + Non_proj (LN + MLP + residual).

    x: (B, N, C) residual stream; a: (B, >=N, C) projected attention output
    (only the first N rows per batch are read through the BlockSpec).
    """
    B, N, C = x.shape
    H = pb['mlp_w1'].shape[1]
    Hn = pn['w1'].shape[1]
    c = jnp.concatenate([pb['c1'], pb['c2'], pb['c3'], pb['c4'],
                         pn['c1'], pn['c2']]).astype(jnp.float32)
    return pl.pallas_call(
        _post_attn_kernel,
        out_shape=jax.ShapeDtypeStruct((B, N, C), x.dtype),
        grid=(B, pl.cdiv(N, TN)),
        in_specs=[pl.BlockSpec((1, TN, C), lambda b, i: (b, i, 0)),
                  pl.BlockSpec((1, TN, C), lambda b, i: (b, i, 0)),
                  pl.BlockSpec((1, C), lambda b, i: (0, 0)),
                  pl.BlockSpec((1, C), lambda b, i: (0, 0)),
                  pl.BlockSpec((C, H), lambda b, i: (0, 0)),
                  pl.BlockSpec((1, H), lambda b, i: (0, 0)),
                  pl.BlockSpec((H, C), lambda b, i: (0, 0)),
                  pl.BlockSpec((1, C), lambda b, i: (0, 0)),
                  pl.BlockSpec((1, C), lambda b, i: (0, 0)),
                  pl.BlockSpec((1, C), lambda b, i: (0, 0)),
                  pl.BlockSpec((C, Hn), lambda b, i: (0, 0)),
                  pl.BlockSpec((1, Hn), lambda b, i: (0, 0)),
                  pl.BlockSpec((Hn, C), lambda b, i: (0, 0)),
                  pl.BlockSpec((1, C), lambda b, i: (0, 0)),
                  pl.BlockSpec(memory_space=pltpu.MemorySpace.SMEM)],
        out_specs=pl.BlockSpec((1, TN, C), lambda b, i: (b, i, 0)),
        compiler_params=pltpu.CompilerParams(
            dimension_semantics=("parallel", "parallel")),
    )(x, a,
      pb['ln2_g'].reshape(1, C), pb['ln2_b'].reshape(1, C),
      pb['mlp_w1'], pb['mlp_b1'].reshape(1, H),
      pb['mlp_w2'], pb['mlp_b2'].reshape(1, C),
      pn['ln_g'].reshape(1, C), pn['ln_b'].reshape(1, C),
      pn['w1'], pn['b1'].reshape(1, Hn),
      pn['w2'], pn['b2'].reshape(1, C), c)


# ------------------------------ module-level glue -----------------------------

def transformer_block_pair(x, pb, pn, heads, groups1, groups2,
                           recursive_index, perm_key):
    """One shared Transformer_Block followed by its Non_proj block."""
    B, N, C = x.shape
    head_dim = math.ceil(C / heads)
    scale = head_dim ** (-0.5)

    if not recursive_index:
        G, inv = groups1, None
        xp = x
    else:
        G = groups2
        if G != 1:
            # TODO(synk): reference uses an unseeded torch.randperm; we use a
            # deterministic jax.random.permutation instead.
            idx = jax.random.permutation(perm_key, N)
            inv = jnp.argsort(idx)
            xp = x[:, idx, :]   # LN is per-token: permuting raw x == permuting LN(x)
        else:
            inv = None
            xp = x

    S = int(math.ceil(N / G))
    Np = S * G
    if Np != N:
        xp = jnp.pad(xp, ((0, 0), (0, Np - N), (0, 0)))

    og = grouped_attention(xp.reshape(B, G, S, C), pb, heads, scale, N)
    o = og.reshape(B, Np, C)
    if recursive_index and G != 1:
        o = o[:, inv, :]          # inverse permutation (gathers back the N real rows)
    # else: o keeps its Np rows; the fused kernel below only reads the first N
    # rows per batch through its BlockSpec, so no slice copy is needed.

    # fused: attn residual + LN2 + MLP + residual + Non_proj (LN + MLP + residual)
    return attn_res_ffn_np(x, o, pb, pn)


def transformer_forward(x_bcl, params, cfg, key):
    # rearrange 'b c l -> b l c'
    x = jnp.transpose(x_bcl, (0, 2, 1))
    recursive_loops = cfg['depth'] // cfg['recursive_num']
    # schedule is [block(rn), nonproj(rn*loops+rl)] pairs, exactly as in torch
    pairs = []
    for rn in range(cfg['recursive_num']):
        for rl in range(recursive_loops):
            pairs.append((rn, rn * recursive_loops + rl))
    keys = jax.random.split(key, len(pairs))
    for j, (b_idx, np_idx) in enumerate(pairs):
        # the block sits at schedule index i = 2*j; recursive_index=((i+2)%4==0)
        recursive_index = ((2 * j + 2) % 4 == 0)
        x = transformer_block_pair(x, params['blocks'][b_idx],
                                   params['nonprojs'][np_idx],
                                   cfg['heads'], cfg['groups1'], cfg['groups2'],
                                   recursive_index, keys[j])
    # rearrange 'b l c -> b c l'
    return jnp.transpose(x, (0, 2, 1))


# --------------------------------- parameters ---------------------------------

def init_params(key, cfg):
    C = cfg['base_dim'] * cfg['heads']
    mlp_hidden = int(C * cfg['mlp_ratio'])
    np_hidden = int(C * cfg['np_mlp_ratio'])

    def nrm(k, shape):
        return (0.02 * jax.random.normal(k, shape)).astype(jnp.float32)

    blocks, nonprojs = [], []
    keys = jax.random.split(key, cfg['recursive_num'] + cfg['depth'])
    for rn in range(cfg['recursive_num']):
        ks = jax.random.split(keys[rn], 8)
        blocks.append(dict(
            ln1_g=jnp.ones((C,), jnp.float32), ln1_b=jnp.zeros((C,), jnp.float32),
            w_qkv=nrm(ks[0], (C, 3 * C)), b_qkv=nrm(ks[1], (3 * C,)),   # qkv_bias=True
            w_proj=nrm(ks[2], (C, C)), b_proj=nrm(ks[3], (C,)),
            ln2_g=jnp.ones((C,), jnp.float32), ln2_b=jnp.zeros((C,), jnp.float32),
            mlp_w1=nrm(ks[4], (C, mlp_hidden)), mlp_b1=nrm(ks[5], (mlp_hidden,)),
            mlp_w2=nrm(ks[6], (mlp_hidden, C)), mlp_b2=nrm(ks[7], (C,)),
            c1=jnp.ones((1,), jnp.float32), c2=jnp.ones((1,), jnp.float32),
            c3=jnp.ones((1,), jnp.float32), c4=jnp.ones((1,), jnp.float32),
        ))
    for d in range(cfg['depth']):
        ks = jax.random.split(keys[cfg['recursive_num'] + d], 4)
        nonprojs.append(dict(
            ln_g=jnp.ones((C,), jnp.float32), ln_b=jnp.zeros((C,), jnp.float32),
            w1=nrm(ks[0], (C, np_hidden)), b1=nrm(ks[1], (np_hidden,)),
            w2=nrm(ks[2], (np_hidden, C)), b2=nrm(ks[3], (C,)),
            c1=jnp.ones((1,), jnp.float32), c2=jnp.ones((1,), jnp.float32),
        ))
    return dict(blocks=blocks, nonprojs=nonprojs)


# ------------------------------------ main -------------------------------------

if __name__ == "__main__":
    cfg = dict(base_dim=8, heads=4, depth=2, recursive_num=1,
               groups1=4, groups2=2, mlp_ratio=4.0, np_mlp_ratio=1.0)
    B, L = 2, 14                        # L=14 exercises the seq-padding path
    C = cfg['base_dim'] * cfg['heads']  # embed_dim = 32

    key = jax.random.PRNGKey(0)
    k_x, k_p, k_perm = jax.random.split(key, 3)
    x = jax.random.normal(k_x, (B, C, L), jnp.float32)   # (b, c, l) like torch
    params = init_params(k_p, cfg)

    fwd = jax.jit(lambda xx, pp, kk: transformer_forward(xx, pp, cfg, kk))
    out = fwd(x, params, k_perm)
    out = jax.block_until_ready(out)

    assert out.shape == (B, C, L), out.shape
    assert bool(jnp.all(jnp.isfinite(out)))
    print("KERNEL_OK")
</pallas_src>

<mosaic_0001>
module attributes {stable_mosaic.version = 11 : i64} {
  func.func @_attn_kernel(%arg0: i32, %arg1: i32, %arg2: memref<1x1x4x32xf32, #tpu.memory_space<vmem>>, %arg3: memref<1x32xf32, #tpu.memory_space<vmem>>, %arg4: memref<1x32xf32, #tpu.memory_space<vmem>>, %arg5: memref<32x96xf32, #tpu.memory_space<vmem>>, %arg6: memref<1x96xf32, #tpu.memory_space<vmem>>, %arg7: memref<32x32xf32, #tpu.memory_space<vmem>>, %arg8: memref<1x32xf32, #tpu.memory_space<vmem>>, %arg9: memref<1x1x4x32xf32, #tpu.memory_space<vmem>>, %arg10: memref<4x32xf32, #tpu.memory_space<vmem>>) attributes {dimension_semantics = [#tpu.dimension_semantics<parallel>, #tpu.dimension_semantics<parallel>], iteration_bounds = array<i64: 2, 4>, scalar_prefetch = 0 : i64, scratch_operands = 1 : i64, tpu.core_type = #tpu.core_type<tc>, window_params = [{transform_indices = @transform_0, window_bounds = array<i64: 1, 1, 4, 32>}, {pipeline_mode = #tpu.pipeline_mode<synchronous>, transform_indices = @transform_1, window_bounds = array<i64: 1, 32>}, {pipeline_mode = #tpu.pipeline_mode<synchronous>, transform_indices = @transform_2, window_bounds = array<i64: 1, 32>}, {pipeline_mode = #tpu.pipeline_mode<synchronous>, transform_indices = @transform_3, window_bounds = array<i64: 32, 96>}, {pipeline_mode = #tpu.pipeline_mode<synchronous>, transform_indices = @transform_4, window_bounds = array<i64: 1, 96>}, {pipeline_mode = #tpu.pipeline_mode<synchronous>, transform_indices = @transform_5, window_bounds = array<i64: 32, 32>}, {pipeline_mode = #tpu.pipeline_mode<synchronous>, transform_indices = @transform_6, window_bounds = array<i64: 1, 32>}, {transform_indices = @transform_7, window_bounds = array<i64: 1, 1, 4, 32>}]} {
    %c0 = arith.constant 0 : index
    %c0_0 = arith.constant 0 : index
    %c0_1 = arith.constant 0 : index
    %c0_2 = arith.constant 0 : index
    %0 = vector.load %arg2[%c0, %c0_0, %c0_1, %c0_2] : memref<1x1x4x32xf32, #tpu.memory_space<vmem>>, vector<1x1x4x32xf32>
    %1 = vector.shape_cast %0 : vector<1x1x4x32xf32> to vector<4x32xf32>
    %c0_3 = arith.constant 0 : index
    %c0_4 = arith.constant 0 : index
    %2 = vector.load %arg3[%c0_3, %c0_4] : memref<1x32xf32, #tpu.memory_space<vmem>>, vector<1x32xf32>
    %c0_5 = arith.constant 0 : index
    %c0_6 = arith.constant 0 : index
    %3 = vector.load %arg4[%c0_5, %c0_6] : memref<1x32xf32, #tpu.memory_space<vmem>>, vector<1x32xf32>
    %cst = arith.constant dense<0.000000e+00> : vector<4xf32>
    %4 = vector.multi_reduction <add>, %1, %cst [1] : vector<4x32xf32> to vector<4xf32>
    %5 = vector.shape_cast %4 : vector<4xf32> to vector<4x1xf32>
    %cst_7 = arith.constant 3.200000e+01 : f32
    %6 = vector.broadcast %cst_7 : f32 to vector<4x1xf32>
    %7 = arith.divf %5, %6 : vector<4x1xf32>
    %8 = vector.broadcast %7 : vector<4x1xf32> to vector<4x32xf32>
    %9 = arith.subf %1, %8 : vector<4x32xf32>
    %10 = arith.mulf %9, %9 : vector<4x32xf32>
    %cst_8 = arith.constant dense<0.000000e+00> : vector<4xf32>
    %11 = vector.multi_reduction <add>, %10, %cst_8 [1] : vector<4x32xf32> to vector<4xf32>
    %12 = vector.shape_cast %11 : vector<4xf32> to vector<4x1xf32>
    %cst_9 = arith.constant 3.200000e+01 : f32
    %13 = vector.broadcast %cst_9 : f32 to vector<4x1xf32>
    %14 = arith.divf %12, %13 : vector<4x1xf32>
    %15 = vector.broadcast %7 : vector<4x1xf32> to vector<4x32xf32>
    %16 = arith.subf %1, %15 : vector<4x32xf32>
    %cst_10 = arith.constant 9.99999997E-7 : f32
    %17 = vector.broadcast %cst_10 : f32 to vector<4x1xf32>
    %18 = arith.addf %14, %17 : vector<4x1xf32>
    %19 = math.rsqrt %18 : vector<4x1xf32>
    %20 = vector.broadcast %19 : vector<4x1xf32> to vector<4x32xf32>
    %21 = arith.mulf %16, %20 : vector<4x32xf32>
    %22 = vector.broadcast %2 : vector<1x32xf32> to vector<4x32xf32>
    %23 = arith.mulf %21, %22 : vector<4x32xf32>
    %24 = vector.broadcast %3 : vector<1x32xf32> to vector<4x32xf32>
    %25 = arith.addf %23, %24 : vector<4x32xf32>
    %26 = tpu.iota {dimensions = array<i32: 0>} : vector<4x32xi32>
    %c4_i32 = arith.constant 4 : i32
    %27 = arith.muli %arg1, %c4_i32 : i32
    %28 = vector.broadcast %27 : i32 to vector<4x32xi32>
    %29 = arith.addi %28, %26 : vector<4x32xi32>
    %c14_i32 = arith.constant 14 : i32
    %30 = vector.broadcast %c14_i32 : i32 to vector<4x32xi32>
    %31 = arith.cmpi slt, %29, %30 : vector<4x32xi32>
    %cst_11 = arith.constant 0.000000e+00 : f32
    %32 = vector.broadcast %cst_11 : f32 to vector<4x32xf32>
    %33 = arith.select %31, %25, %32 : vector<4x32xi1>, vector<4x32xf32>
    %c0_12 = arith.constant 0 : index
    %c0_13 = arith.constant 0 : index
    %34 = vector.load %arg5[%c0_12, %c0_13] : memref<32x96xf32, #tpu.memory_space<vmem>>, vector<32x96xf32>
    %cst_14 = arith.constant dense<0.000000e+00> : vector<4x96xf32>
    %35 = tpu.matmul %33, %34, %cst_14 {dimension_numbers = #tpu.dot_dimension_numbers<[1], [0], [0], [1], [0, 0, 1, 1], [], []>} : vector<4x32xf32>, vector<32x96xf32>, vector<4x96xf32> -> vector<4x96xf32>
    %c0_15 = arith.constant 0 : index
    %c0_16 = arith.constant 0 : index
    %36 = vector.load %arg6[%c0_15, %c0_16] : memref<1x96xf32, #tpu.memory_space<vmem>>, vector<1x96xf32>
    %37 = vector.broadcast %36 : vector<1x96xf32> to vector<4x96xf32>
    %38 = arith.addf %35, %37 : vector<4x96xf32>
    %39 = vector.extract_strided_slice %38 {offsets = [0, 0], sizes = [4, 8], strides = [1, 1]} : vector<4x96xf32> to vector<4x8xf32>
    %40 = vector.extract_strided_slice %38 {offsets = [0, 32], sizes = [4, 8], strides = [1, 1]} : vector<4x96xf32> to vector<4x8xf32>
    %41 = vector.extract_strided_slice %38 {offsets = [0, 64], sizes = [4, 8], strides = [1, 1]} : vector<4x96xf32> to vector<4x8xf32>
    %cst_17 = arith.constant dense<0.000000e+00> : vector<4x4xf32>
    %42 = tpu.matmul %39, %40, %cst_17 {dimension_numbers = #tpu.dot_dimension_numbers<[1], [1], [0], [0], [0, 0, 1, 0], [], []>} : vector<4x8xf32>, vector<4x8xf32>, vector<4x4xf32> -> vector<4x4xf32>
    %cst_18 = arith.constant 0.353553385 : f32
    %43 = vector.broadcast %cst_18 : f32 to vector<4x4xf32>
    %44 = arith.mulf %42, %43 : vector<4x4xf32>
    %cst_19 = arith.constant dense<0xFF800000> : vector<4xf32>
    %45 = vector.multi_reduction <maximumf>, %44, %cst_19 [1] : vector<4x4xf32> to vector<4xf32>
    %46 = vector.shape_cast %45 : vector<4xf32> to vector<4x1xf32>
    %47 = vector.broadcast %46 : vector<4x1xf32> to vector<4x4xf32>
    %48 = arith.subf %44, %47 : vector<4x4xf32>
    %49 = math.exp %48 : vector<4x4xf32>
    %cst_20 = arith.constant dense<0.000000e+00> : vector<4xf32>
    %50 = vector.multi_reduction <add>, %49, %cst_20 [1] : vector<4x4xf32> to vector<4xf32>
    %51 = vector.shape_cast %50 : vector<4xf32> to vector<4x1xf32>
    %52 = tpu.reciprocal %51 {approx = true} : vector<4x1xf32> -> vector<4x1xf32>
    %53 = vector.broadcast %52 : vector<4x1xf32> to vector<4x4xf32>
    %54 = arith.mulf %49, %53 : vector<4x4xf32>
    %cst_21 = arith.constant dense<0.000000e+00> : vector<4x8xf32>
    %55 = tpu.matmul %54, %41, %cst_21 {dimension_numbers = #tpu.dot_dimension_numbers<[1], [0], [0], [1], [0, 0, 1, 1], [], []>} : vector<4x4xf32>, vector<4x8xf32>, vector<4x8xf32> -> vector<4x8xf32>
    %c0_22 = arith.constant 0 : index
    %c0_23 = arith.constant 0 : index
    %56 = vector.load %arg10[%c0_22, %c0_23] : memref<4x32xf32, #tpu.memory_space<vmem>>, vector<4x8xf32>
    tpu.vector_store %arg10[%c0_22, %c0_23], %55 {strides = array<i32>} : memref<4x32xf32, #tpu.memory_space<vmem>>, vector<4x8xf32>,
    %57 = vector.extract_strided_slice %38 {offsets = [0, 8], sizes = [4, 8], strides = [1, 1]} : vector<4x96xf32> to vector<4x8xf32>
    %58 = vector.extract_strided_slice %38 {offsets = [0, 40], sizes = [4, 8], strides = [1, 1]} : vector<4x96xf32> to vector<4x8xf32>
    %59 = vector.extract_strided_slice %38 {offsets = [0, 72], sizes = [4, 8], strides = [1, 1]} : vector<4x96xf32> to vector<4x8xf32>
    %cst_24 = arith.constant dense<0.000000e+00> : vector<4x4xf32>
    %60 = tpu.matmul %57, %58, %cst_24 {dimension_numbers = #tpu.dot_dimension_numbers<[1], [1], [0], [0], [0, 0, 1, 0], [], []>} : vector<4x8xf32>, vector<4x8xf32>, vector<4x4xf32> -> vector<4x4xf32>
    %cst_25 = arith.constant 0.353553385 : f32
    %61 = vector.broadcast %cst_25 : f32 to vector<4x4xf32>
    %62 = arith.mulf %60, %61 : vector<4x4xf32>
    %cst_26 = arith.constant dense<0xFF800000> : vector<4xf32>
    %63 = vector.multi_reduction <maximumf>, %62, %cst_26 [1] : vector<4x4xf32> to vector<4xf32>
    %64 = vector.shape_cast %63 : vector<4xf32> to vector<4x1xf32>
    %65 = vector.broadcast %64 : vector<4x1xf32> to vector<4x4xf32>
    %66 = arith.subf %62, %65 : vector<4x4xf32>
    %67 = math.exp %66 : vector<4x4xf32>
    %cst_27 = arith.constant dense<0.000000e+00> : vector<4xf32>
    %68 = vector.multi_reduction <add>, %67, %cst_27 [1] : vector<4x4xf32> to vector<4xf32>
    %69 = vector.shape_cast %68 : vector<4xf32> to vector<4x1xf32>
    %70 = tpu.reciprocal %69 {approx = true} : vector<4x1xf32> -> vector<4x1xf32>
    %71 = vector.broadcast %70 : vector<4x1xf32> to vector<4x4xf32>
    %72 = arith.mulf %67, %71 : vector<4x4xf32>
    %cst_28 = arith.constant dense<0.000000e+00> : vector<4x8xf32>
    %73 = tpu.matmul %72, %59, %cst_28 {dimension_numbers = #tpu.dot_dimension_numbers<[1], [0], [0], [1], [0, 0, 1, 1], [], []>} : vector<4x4xf32>, vector<4x8xf32>, vector<4x8xf32> -> vector<4x8xf32>
    %c0_29 = arith.constant 0 : index
    %c8 = arith.constant 8 : index
    %74 = vector.load %arg10[%c0_29, %c8] : memref<4x32xf32, #tpu.memory_space<vmem>>, vector<4x8xf32>
    tpu.vector_store %arg10[%c0_29, %c8], %73 {strides = array<i32>} : memref<4x32xf32, #tpu.memory_space<vmem>>, vector<4x8xf32>,
    %75 = vector.extract_strided_slice %38 {offsets = [0, 16], sizes = [4, 8], strides = [1, 1]} : vector<4x96xf32> to vector<4x8xf32>
    %76 = vector.extract_strided_slice %38 {offsets = [0, 48], sizes = [4, 8], strides = [1, 1]} : vector<4x96xf32> to vector<4x8xf32>
    %77 = vector.extract_strided_slice %38 {offsets = [0, 80], sizes = [4, 8], strides = [1, 1]} : vector<4x96xf32> to vector<4x8xf32>
    %cst_30 = arith.constant dense<0.000000e+00> : vector<4x4xf32>
    %78 = tpu.matmul %75, %76, %cst_30 {dimension_numbers = #tpu.dot_dimension_numbers<[1], [1], [0], [0], [0, 0, 1, 0], [], []>} : vector<4x8xf32>, vector<4x8xf32>, vector<4x4xf32> -> vector<4x4xf32>
    %cst_31 = arith.constant 0.353553385 : f32
    %79 = vector.broadcast %cst_31 : f32 to vector<4x4xf32>
    %80 = arith.mulf %78, %79 : vector<4x4xf32>
    %cst_32 = arith.constant dense<0xFF800000> : vector<4xf32>
    %81 = vector.multi_reduction <maximumf>, %80, %cst_32 [1] : vector<4x4xf32> to vector<4xf32>
    %82 = vector.shape_cast %81 : vector<4xf32> to vector<4x1xf32>
    %83 = vector.broadcast %82 : vector<4x1xf32> to vector<4x4xf32>
    %84 = arith.subf %80, %83 : vector<4x4xf32>
    %85 = math.exp %84 : vector<4x4xf32>
    %cst_33 = arith.constant dense<0.000000e+00> : vector<4xf32>
    %86 = vector.multi_reduction <add>, %85, %cst_33 [1] : vector<4x4xf32> to vector<4xf32>
    %87 = vector.shape_cast %86 : vector<4xf32> to vector<4x1xf32>
    %88 = tpu.reciprocal %87 {approx = true} : vector<4x1xf32> -> vector<4x1xf32>
    %89 = vector.broadcast %88 : vector<4x1xf32> to vector<4x4xf32>
    %90 = arith.mulf %85, %89 : vector<4x4xf32>
    %cst_34 = arith.constant dense<0.000000e+00> : vector<4x8xf32>
    %91 = tpu.matmul %90, %77, %cst_34 {dimension_numbers = #tpu.dot_dimension_numbers<[1], [0], [0], [1], [0, 0, 1, 1], [], []>} : vector<4x4xf32>, vector<4x8xf32>, vector<4x8xf32> -> vector<4x8xf32>
    %c0_35 = arith.constant 0 : index
    %c16 = arith.constant 16 : index
    %92 = vector.load %arg10[%c0_35, %c16] : memref<4x32xf32, #tpu.memory_space<vmem>>, vector<4x8xf32>
    tpu.vector_store %arg10[%c0_35, %c16], %91 {strides = array<i32>} : memref<4x32xf32, #tpu.memory_space<vmem>>, vector<4x8xf32>,
    %93 = vector.extract_strided_slice %38 {offsets = [0, 24], sizes = [4, 8], strides = [1, 1]} : vector<4x96xf32> to vector<4x8xf32>
    %94 = vector.extract_strided_slice %38 {offsets = [0, 56], sizes = [4, 8], strides = [1, 1]} : vector<4x96xf32> to vector<4x8xf32>
    %95 = vector.extract_strided_slice %38 {offsets = [0, 88], sizes = [4, 8], strides = [1, 1]} : vector<4x96xf32> to vector<4x8xf32>
    %cst_36 = arith.constant dense<0.000000e+00> : vector<4x4xf32>
    %96 = tpu.matmul %93, %94, %cst_36 {dimension_numbers = #tpu.dot_dimension_numbers<[1], [1], [0], [0], [0, 0, 1, 0], [], []>} : vector<4x8xf32>, vector<4x8xf32>, vector<4x4xf32> -> vector<4x4xf32>
    %cst_37 = arith.constant 0.353553385 : f32
    %97 = vector.broadcast %cst_37 : f32 to vector<4x4xf32>
    %98 = arith.mulf %96, %97 : vector<4x4xf32>
    %cst_38 = arith.constant dense<0xFF800000> : vector<4xf32>
    %99 = vector.multi_reduction <maximumf>, %98, %cst_38 [1] : vector<4x4xf32> to vector<4xf32>
    %100 = vector.shape_cast %99 : vector<4xf32> to vector<4x1xf32>
    %101 = vector.broadcast %100 : vector<4x1xf32> to vector<4x4xf32>
    %102 = arith.subf %98, %101 : vector<4x4xf32>
    %103 = math.exp %102 : vector<4x4xf32>
    %cst_39 = arith.constant dense<0.000000e+00> : vector<4xf32>
    %104 = vector.multi_reduction <add>, %103, %cst_39 [1] : vector<4x4xf32> to vector<4xf32>
    %105 = vector.shape_cast %104 : vector<4xf32> to vector<4x1xf32>
    %106 = tpu.reciprocal %105 {approx = true} : vector<4x1xf32> -> vector<4x1xf32>
    %107 = vector.broadcast %106 : vector<4x1xf32> to vector<4x4xf32>
    %108 = arith.mulf %103, %107 : vector<4x4xf32>
    %cst_40 = arith.constant dense<0.000000e+00> : vector<4x8xf32>
    %109 = tpu.matmul %108, %95, %cst_40 {dimension_numbers = #tpu.dot_dimension_numbers<[1], [0], [0], [1], [0, 0, 1, 1], [], []>} : vector<4x4xf32>, vector<4x8xf32>, vector<4x8xf32> -> vector<4x8xf32>
    %c0_41 = arith.constant 0 : index
    %c24 = arith.constant 24 : index
    %110 = vector.load %arg10[%c0_41, %c24] : memref<4x32xf32, #tpu.memory_space<vmem>>, vector<4x8xf32>
    tpu.vector_store %arg10[%c0_41, %c24], %109 {strides = array<i32>} : memref<4x32xf32, #tpu.memory_space<vmem>>, vector<4x8xf32>,
    %c0_42 = arith.constant 0 : index
    %c0_43 = arith.constant 0 : index
    %111 = vector.load %arg10[%c0_42, %c0_43] : memref<4x32xf32, #tpu.memory_space<vmem>>, vector<4x32xf32>
    %c0_44 = arith.constant 0 : index
    %c0_45 = arith.constant 0 : index
    %112 = vector.load %arg7[%c0_44, %c0_45] : memref<32x32xf32, #tpu.memory_space<vmem>>, vector<32x32xf32>
    %cst_46 = arith.constant dense<0.000000e+00> : vector<4x32xf32>
    %113 = tpu.matmul %111, %112, %cst_46 {dimension_numbers = #tpu.dot_dimension_numbers<[1], [0], [0], [1], [0, 0, 1, 1], [], []>} : vector<4x32xf32>, vector<32x32xf32>, vector<4x32xf32> -> vector<4x32xf32>
    %c0_47 = arith.constant 0 : index
    %c0_48 = arith.constant 0 : index
    %114 = vector.load %arg8[%c0_47, %c0_48] : memref<1x32xf32, #tpu.memory_space<vmem>>, vector<1x32xf32>
    %115 = vector.broadcast %114 : vector<1x32xf32> to vector<4x32xf32>
    %116 = arith.addf %113, %115 : vector<4x32xf32>
    %c0_49 = arith.constant 0 : index
    %c0_50 = arith.constant 0 : index
    %c0_51 = arith.constant 0 : index
    %c0_52 = arith.constant 0 : index
    %117 = vector.load %arg9[%c0_49, %c0_50, %c0_51, %c0_52] : memref<1x1x4x32xf32, #tpu.memory_space<vmem>>, vector<1x1x4x32xf32>
    %118 = vector.shape_cast %117 : vector<1x1x4x32xf32> to vector<4x32xf32>
    %119 = vector.shape_cast %116 : vector<4x32xf32> to vector<1x1x4x32xf32>
    tpu.vector_store %arg9[%c0_49, %c0_50, %c0_51, %c0_52], %119 {strides = array<i32>} : memref<1x1x4x32xf32, #tpu.memory_space<vmem>>, vector<1x1x4x32xf32>,
    return
  }
  func.func @transform_0(%arg0: i32, %arg1: i32) -> (i32, i32, i32, i32) {
    %c0_i32 = arith.constant 0 : i32
    %c0_i32_0 = arith.constant 0 : i32
    %c0_i32_1 = arith.constant 0 : i32
    return %arg0, %arg1, %c0_i32, %c0_i32_0 : i32, i32, i32, i32
  }
  func.func @transform_1(%arg0: i32, %arg1: i32) -> (i32, i32) {
    %c0_i32 = arith.constant 0 : i32
    %c0_i32_0 = arith.constant 0 : i32
    %c0_i32_1 = arith.constant 0 : i32
    return %c0_i32, %c0_i32_0 : i32, i32
  }
  func.func @transform_2(%arg0: i32, %arg1: i32) -> (i32, i32) {
    %c0_i32 = arith.constant 0 : i32
    %c0_i32_0 = arith.constant 0 : i32
    %c0_i32_1 = arith.constant 0 : i32
    return %c0_i32, %c0_i32_0 : i32, i32
  }
  func.func @transform_3(%arg0: i32, %arg1: i32) -> (i32, i32) {
    %c0_i32 = arith.constant 0 : i32
    %c0_i32_0 = arith.constant 0 : i32
    %c0_i32_1 = arith.constant 0 : i32
    return %c0_i32, %c0_i32_0 : i32, i32
  }
  func.func @transform_4(%arg0: i32, %arg1: i32) -> (i32, i32) {
    %c0_i32 = arith.constant 0 : i32
    %c0_i32_0 = arith.constant 0 : i32
    %c0_i32_1 = arith.constant 0 : i32
    return %c0_i32, %c0_i32_0 : i32, i32
  }
  func.func @transform_5(%arg0: i32, %arg1: i32) -> (i32, i32) {
    %c0_i32 = arith.constant 0 : i32
    %c0_i32_0 = arith.constant 0 : i32
    %c0_i32_1 = arith.constant 0 : i32
    return %c0_i32, %c0_i32_0 : i32, i32
  }
  func.func @transform_6(%arg0: i32, %arg1: i32) -> (i32, i32) {
    %c0_i32 = arith.constant 0 : i32
    %c0_i32_0 = arith.constant 0 : i32
    %c0_i32_1 = arith.constant 0 : i32
    return %c0_i32, %c0_i32_0 : i32, i32
  }
  func.func @transform_7(%arg0: i32, %arg1: i32) -> (i32, i32, i32, i32) {
    %c0_i32 = arith.constant 0 : i32
    %c0_i32_0 = arith.constant 0 : i32
    %c0_i32_1 = arith.constant 0 : i32
    return %arg0, %arg1, %c0_i32, %c0_i32_0 : i32, i32, i32, i32
  }
}

module attributes {stable_mosaic.version = 11 : i64} {
  func.func @_post_attn_kernel(%arg0: i32, %arg1: i32, %arg2: memref<1x256x32xf32, #tpu.memory_space<vmem>>, %arg3: memref<1x256x32xf32, #tpu.memory_space<vmem>>, %arg4: memref<1x32xf32, #tpu.memory_space<vmem>>, %arg5: memref<1x32xf32, #tpu.memory_space<vmem>>, %arg6: memref<32x128xf32, #tpu.memory_space<vmem>>, %arg7: memref<1x128xf32, #tpu.memory_space<vmem>>, %arg8: memref<128x32xf32, #tpu.memory_space<vmem>>, %arg9: memref<1x32xf32, #tpu.memory_space<vmem>>, %arg10: memref<1x32xf32, #tpu.memory_space<vmem>>, %arg11: memref<1x32xf32, #tpu.memory_space<vmem>>, %arg12: memref<32x32xf32, #tpu.memory_space<vmem>>, %arg13: memref<1x32xf32, #tpu.memory_space<vmem>>, %arg14: memref<32x32xf32, #tpu.memory_space<vmem>>, %arg15: memref<1x32xf32, #tpu.memory_space<vmem>>, %arg16: memref<6xf32, #tpu.memory_space<smem>>, %arg17: memref<1x256x32xf32, #tpu.memory_space<vmem>>) attributes {dimension_semantics = [#tpu.dimension_semantics<parallel>, #tpu.dimension_semantics<parallel>], iteration_bounds = array<i64: 2, 1>, scalar_prefetch = 0 : i64, scratch_operands = 0 : i64, tpu.core_type = #tpu.core_type<tc>, window_params = [{transform_indices = @transform_0, window_bounds = array<i64: 1, 256, 32>}, {transform_indices = @transform_1, window_bounds = array<i64: 1, 256, 32>}, {pipeline_mode = #tpu.pipeline_mode<synchronous>, transform_indices = @transform_2, window_bounds = array<i64: 1, 32>}, {pipeline_mode = #tpu.pipeline_mode<synchronous>, transform_indices = @transform_3, window_bounds = array<i64: 1, 32>}, {pipeline_mode = #tpu.pipeline_mode<synchronous>, transform_indices = @transform_4, window_bounds = array<i64: 32, 128>}, {pipeline_mode = #tpu.pipeline_mode<synchronous>, transform_indices = @transform_5, window_bounds = array<i64: 1, 128>}, {pipeline_mode = #tpu.pipeline_mode<synchronous>, transform_indices = @transform_6, window_bounds = array<i64: 128, 32>}, {pipeline_mode = #tpu.pipeline_mode<synchronous>, transform_indices = @transform_7, window_bounds = array<i64: 1, 32>}, {pipeline_mode = #tpu.pipeline_mode<synchronous>, transform_indices = @transform_8, window_bounds = array<i64: 1, 32>}, {pipeline_mode = #tpu.pipeline_mode<synchronous>, transform_indices = @transform_9, window_bounds = array<i64: 1, 32>}, {pipeline_mode = #tpu.pipeline_mode<synchronous>, transform_indices = @transform_10, window_bounds = array<i64: 32, 32>}, {pipeline_mode = #tpu.pipeline_mode<synchronous>, transform_indices = @transform_11, window_bounds = array<i64: 1, 32>}, {pipeline_mode = #tpu.pipeline_mode<synchronous>, transform_indices = @transform_12, window_bounds = array<i64: 32, 32>}, {pipeline_mode = #tpu.pipeline_mode<synchronous>, transform_indices = @transform_13, window_bounds = array<i64: 1, 32>}, {transform_indices = @transform_14, window_bounds = array<i64: 6>}, {transform_indices = @transform_15, window_bounds = array<i64: 1, 256, 32>}]} {
    %c0 = arith.constant 0 : index
    %c0_0 = arith.constant 0 : index
    %c0_1 = arith.constant 0 : index
    %0 = vector.load %arg2[%c0, %c0_0, %c0_1] : memref<1x256x32xf32, #tpu.memory_space<vmem>>, vector<1x256x32xf32>
    %1 = vector.shape_cast %0 : vector<1x256x32xf32> to vector<256x32xf32>
    %c0_2 = arith.constant 0 : index
    %c0_3 = arith.constant 0 : index
    %c0_4 = arith.constant 0 : index
    %2 = vector.load %arg3[%c0_2, %c0_3, %c0_4] : memref<1x256x32xf32, #tpu.memory_space<vmem>>, vector<1x256x32xf32>
    %3 = vector.shape_cast %2 : vector<1x256x32xf32> to vector<256x32xf32>
    %c0_5 = arith.constant 0 : index
    %4 = memref.load %arg16[%c0_5] : memref<6xf32, #tpu.memory_space<smem>>
    %5 = vector.broadcast %4 : f32 to vector<256x32xf32>
    %6 = arith.mulf %5, %1 : vector<256x32xf32>
    %c1 = arith.constant 1 : index
    %7 = memref.load %arg16[%c1] : memref<6xf32, #tpu.memory_space<smem>>
    %8 = vector.broadcast %7 : f32 to vector<256x32xf32>
    %9 = arith.mulf %8, %3 : vector<256x32xf32>
    %10 = arith.addf %6, %9 : vector<256x32xf32>
    %c0_6 = arith.constant 0 : index
    %c0_7 = arith.constant 0 : index
    %11 = vector.load %arg4[%c0_6, %c0_7] : memref<1x32xf32, #tpu.memory_space<vmem>>, vector<1x32xf32>
    %c0_8 = arith.constant 0 : index
    %c0_9 = arith.constant 0 : index
    %12 = vector.load %arg5[%c0_8, %c0_9] : memref<1x32xf32, #tpu.memory_space<vmem>>, vector<1x32xf32>
    %cst = arith.constant dense<0.000000e+00> : vector<256xf32>
    %13 = vector.multi_reduction <add>, %10, %cst [1] : vector<256x32xf32> to vector<256xf32>
    %14 = vector.shape_cast %13 : vector<256xf32> to vector<256x1xf32>
    %cst_10 = arith.constant 3.200000e+01 : f32
    %15 = vector.broadcast %cst_10 : f32 to vector<256x1xf32>
    %16 = arith.divf %14, %15 : vector<256x1xf32>
    %17 = vector.broadcast %16 : vector<256x1xf32> to vector<256x32xf32>
    %18 = arith.subf %10, %17 : vector<256x32xf32>
    %19 = arith.mulf %18, %18 : vector<256x32xf32>
    %cst_11 = arith.constant dense<0.000000e+00> : vector<256xf32>
    %20 = vector.multi_reduction <add>, %19, %cst_11 [1] : vector<256x32xf32> to vector<256xf32>
    %21 = vector.shape_cast %20 : vector<256xf32> to vector<256x1xf32>
    %cst_12 = arith.constant 3.200000e+01 : f32
    %22 = vector.broadcast %cst_12 : f32 to vector<256x1xf32>
    %23 = arith.divf %21, %22 : vector<256x1xf32>
    %24 = vector.broadcast %16 : vector<256x1xf32> to vector<256x32xf32>
    %25 = arith.subf %10, %24 : vector<256x32xf32>
    %cst_13 = arith.constant 9.99999997E-7 : f32
    %26 = vector.broadcast %cst_13 : f32 to vector<256x1xf32>
    %27 = arith.addf %23, %26 : vector<256x1xf32>
    %28 = math.rsqrt %27 : vector<256x1xf32>
    %29 = vector.broadcast %28 : vector<256x1xf32> to vector<256x32xf32>
    %30 = arith.mulf %25, %29 : vector<256x32xf32>
    %31 = vector.broadcast %11 : vector<1x32xf32> to vector<256x32xf32>
    %32 = arith.mulf %30, %31 : vector<256x32xf32>
    %33 = vector.broadcast %12 : vector<1x32xf32> to vector<256x32xf32>
    %34 = arith.addf %32, %33 : vector<256x32xf32>
    %c0_14 = arith.constant 0 : index
    %c0_15 = arith.constant 0 : index
    %35 = vector.load %arg6[%c0_14, %c0_15] : memref<32x128xf32, #tpu.memory_space<vmem>>, vector<32x128xf32>
    %cst_16 = arith.constant dense<0.000000e+00> : vector<256x128xf32>
    %36 = tpu.matmul %34, %35, %cst_16 {dimension_numbers = #tpu.dot_dimension_numbers<[1], [0], [0], [1], [0, 0, 1, 1], [], []>} : vector<256x32xf32>, vector<32x128xf32>, vector<256x128xf32> -> vector<256x128xf32>
    %c0_17 = arith.constant 0 : index
    %c0_18 = arith.constant 0 : index
    %37 = vector.load %arg7[%c0_17, %c0_18] : memref<1x128xf32, #tpu.memory_space<vmem>>, vector<1x128xf32>
    %38 = vector.broadcast %37 : vector<1x128xf32> to vector<256x128xf32>
    %39 = arith.addf %36, %38 : vector<256x128xf32>
    %cst_19 = arith.constant 5.000000e-01 : f32
    %40 = vector.broadcast %cst_19 : f32 to vector<256x128xf32>
    %41 = arith.mulf %40, %39 : vector<256x128xf32>
    %cst_20 = arith.constant 0.707106769 : f32
    %42 = vector.broadcast %cst_20 : f32 to vector<256x128xf32>
    %43 = arith.mulf %39, %42 : vector<256x128xf32>
    %44 = math.erf %43 : vector<256x128xf32>
    %cst_21 = arith.constant 1.000000e+00 : f32
    %45 = vector.broadcast %cst_21 : f32 to vector<256x128xf32>
    %46 = arith.addf %45, %44 : vector<256x128xf32>
    %47 = arith.mulf %41, %46 : vector<256x128xf32>
    %c0_22 = arith.constant 0 : index
    %c0_23 = arith.constant 0 : index
    %48 = vector.load %arg8[%c0_22, %c0_23] : memref<128x32xf32, #tpu.memory_space<vmem>>, vector<128x32xf32>
    %cst_24 = arith.constant dense<0.000000e+00> : vector<256x32xf32>
    %49 = tpu.matmul %47, %48, %cst_24 {dimension_numbers = #tpu.dot_dimension_numbers<[1], [0], [0], [1], [0, 0, 1, 1], [], []>} : vector<256x128xf32>, vector<128x32xf32>, vector<256x32xf32> -> vector<256x32xf32>
    %c0_25 = arith.constant 0 : index
    %c0_26 = arith.constant 0 : index
    %50 = vector.load %arg9[%c0_25, %c0_26] : memref<1x32xf32, #tpu.memory_space<vmem>>, vector<1x32xf32>
    %51 = vector.broadcast %50 : vector<1x32xf32> to vector<256x32xf32>
    %52 = arith.addf %49, %51 : vector<256x32xf32>
    %c2 = arith.constant 2 : index
    %53 = memref.load %arg16[%c2] : memref<6xf32, #tpu.memory_space<smem>>
    %54 = vector.broadcast %53 : f32 to vector<256x32xf32>
    %55 = arith.mulf %54, %10 : vector<256x32xf32>
    %c3 = arith.constant 3 : index
    %56 = memref.load %arg16[%c3] : memref<6xf32, #tpu.memory_space<smem>>
    %57 = vector.broadcast %56 : f32 to vector<256x32xf32>
    %58 = arith.mulf %57, %52 : vector<256x32xf32>
    %59 = arith.addf %55, %58 : vector<256x32xf32>
    %c0_27 = arith.constant 0 : index
    %c0_28 = arith.constant 0 : index
    %60 = vector.load %arg10[%c0_27, %c0_28] : memref<1x32xf32, #tpu.memory_space<vmem>>, vector<1x32xf32>
    %c0_29 = arith.constant 0 : index
    %c0_30 = arith.constant 0 : index
    %61 = vector.load %arg11[%c0_29, %c0_30] : memref<1x32xf32, #tpu.memory_space<vmem>>, vector<1x32xf32>
    %cst_31 = arith.constant dense<0.000000e+00> : vector<256xf32>
    %62 = vector.multi_reduction <add>, %59, %cst_31 [1] : vector<256x32xf32> to vector<256xf32>
    %63 = vector.shape_cast %62 : vector<256xf32> to vector<256x1xf32>
    %cst_32 = arith.constant 3.200000e+01 : f32
    %64 = vector.broadcast %cst_32 : f32 to vector<256x1xf32>
    %65 = arith.divf %63, %64 : vector<256x1xf32>
    %66 = vector.broadcast %65 : vector<256x1xf32> to vector<256x32xf32>
    %67 = arith.subf %59, %66 : vector<256x32xf32>
    %68 = arith.mulf %67, %67 : vector<256x32xf32>
    %cst_33 = arith.constant dense<0.000000e+00> : vector<256xf32>
    %69 = vector.multi_reduction <add>, %68, %cst_33 [1] : vector<256x32xf32> to vector<256xf32>
    %70 = vector.shape_cast %69 : vector<256xf32> to vector<256x1xf32>
    %cst_34 = arith.constant 3.200000e+01 : f32
    %71 = vector.broadcast %cst_34 : f32 to vector<256x1xf32>
    %72 = arith.divf %70, %71 : vector<256x1xf32>
    %73 = vector.broadcast %65 : vector<256x1xf32> to vector<256x32xf32>
    %74 = arith.subf %59, %73 : vector<256x32xf32>
    %cst_35 = arith.constant 9.99999997E-7 : f32
    %75 = vector.broadcast %cst_35 : f32 to vector<256x1xf32>
    %76 = arith.addf %72, %75 : vector<256x1xf32>
    %77 = math.rsqrt %76 : vector<256x1xf32>
    %78 = vector.broadcast %77 : vector<256x1xf32> to vector<256x32xf32>
    %79 = arith.mulf %74, %78 : vector<256x32xf32>
    %80 = vector.broadcast %60 : vector<1x32xf32> to vector<256x32xf32>
    %81 = arith.mulf %79, %80 : vector<256x32xf32>
    %82 = vector.broadcast %61 : vector<1x32xf32> to vector<256x32xf32>
    %83 = arith.addf %81, %82 : vector<256x32xf32>
    %c0_36 = arith.constant 0 : index
    %c0_37 = arith.constant 0 : index
    %84 = vector.load %arg12[%c0_36, %c0_37] : memref<32x32xf32, #tpu.memory_space<vmem>>, vector<32x32xf32>
    %cst_38 = arith.constant dense<0.000000e+00> : vector<256x32xf32>
    %85 = tpu.matmul %83, %84, %cst_38 {dimension_numbers = #tpu.dot_dimension_numbers<[1], [0], [0], [1], [0, 0, 1, 1], [], []>} : vector<256x32xf32>, vector<32x32xf32>, vector<256x32xf32> -> vector<256x32xf32>
    %c0_39 = arith.constant 0 : index
    %c0_40 = arith.constant 0 : index
    %86 = vector.load %arg13[%c0_39, %c0_40] : memref<1x32xf32, #tpu.memory_space<vmem>>, vector<1x32xf32>
    %87 = vector.broadcast %86 : vector<1x32xf32> to vector<256x32xf32>
    %88 = arith.addf %85, %87 : vector<256x32xf32>
    %cst_41 = arith.constant 5.000000e-01 : f32
    %89 = vector.broadcast %cst_41 : f32 to vector<256x32xf32>
    %90 = arith.mulf %89, %88 : vector<256x32xf32>
    %cst_42 = arith.constant 0.707106769 : f32
    %91 = vector.broadcast %cst_42 : f32 to vector<256x32xf32>
    %92 = arith.mulf %88, %91 : vector<256x32xf32>
    %93 = math.erf %92 : vector<256x32xf32>
    %cst_43 = arith.constant 1.000000e+00 : f32
    %94 = vector.broadcast %cst_43 : f32 to vector<256x32xf32>
    %95 = arith.addf %94, %93 : vector<256x32xf32>
    %96 = arith.mulf %90, %95 : vector<256x32xf32>
    %c0_44 = arith.constant 0 : index
    %c0_45 = arith.constant 0 : index
    %97 = vector.load %arg14[%c0_44, %c0_45] : memref<32x32xf32, #tpu.memory_space<vmem>>, vector<32x32xf32>
    %cst_46 = arith.constant dense<0.000000e+00> : vector<256x32xf32>
    %98 = tpu.matmul %96, %97, %cst_46 {dimension_numbers = #tpu.dot_dimension_numbers<[1], [0], [0], [1], [0, 0, 1, 1], [], []>} : vector<256x32xf32>, vector<32x32xf32>, vector<256x32xf32> -> vector<256x32xf32>
    %c0_47 = arith.constant 0 : index
    %c0_48 = arith.constant 0 : index
    %99 = vector.load %arg15[%c0_47, %c0_48] : memref<1x32xf32, #tpu.memory_space<vmem>>, vector<1x32xf32>
    %100 = vector.broadcast %99 : vector<1x32xf32> to vector<256x32xf32>
    %101 = arith.addf %98, %100 : vector<256x32xf32>
    %c4 = arith.constant 4 : index
    %102 = memref.load %arg16[%c4] : memref<6xf32, #tpu.memory_space<smem>>
    %103 = vector.broadcast %102 : f32 to vector<256x32xf32>
    %104 = arith.mulf %103, %59 : vector<256x32xf32>
    %c5 = arith.constant 5 : index
    %105 = memref.load %arg16[%c5] : memref<6xf32, #tpu.memory_space<smem>>
    %106 = vector.broadcast %105 : f32 to vector<256x32xf32>
    %107 = arith.mulf %106, %101 : vector<256x32xf32>
    %108 = arith.addf %104, %107 : vector<256x32xf32>
    %c0_49 = arith.constant 0 : index
    %c0_50 = arith.constant 0 : index
    %c0_51 = arith.constant 0 : index
    %109 = vector.load %arg17[%c0_49, %c0_50, %c0_51] : memref<1x256x32xf32, #tpu.memory_space<vmem>>, vector<1x256x32xf32>
    %110 = vector.shape_cast %109 : vector<1x256x32xf32> to vector<256x32xf32>
    %111 = vector.shape_cast %108 : vector<256x32xf32> to vector<1x256x32xf32>
    tpu.vector_store %arg17[%c0_49, %c0_50, %c0_51], %111 {strides = array<i32>} : memref<1x256x32xf32, #tpu.memory_space<vmem>>, vector<1x256x32xf32>,
    return
  }
  func.func @transform_0(%arg0: i32, %arg1: i32) -> (i32, i32, i32) {
    %c0_i32 = arith.constant 0 : i32
    %c0_i32_0 = arith.constant 0 : i32
    return %arg0, %arg1, %c0_i32 : i32, i32, i32
  }
  func.func @transform_1(%arg0: i32, %arg1: i32) -> (i32, i32, i32) {
    %c0_i32 = arith.constant 0 : i32
    %c0_i32_0 = arith.constant 0 : i32
    return %arg0, %arg1, %c0_i32 : i32, i32, i32
  }
  func.func @transform_2(%arg0: i32, %arg1: i32) -> (i32, i32) {
    %c0_i32 = arith.constant 0 : i32
    %c0_i32_0 = arith.constant 0 : i32
    %c0_i32_1 = arith.constant 0 : i32
    return %c0_i32, %c0_i32_0 : i32, i32
  }
  func.func @transform_3(%arg0: i32, %arg1: i32) -> (i32, i32) {
    %c0_i32 = arith.constant 0 : i32
    %c0_i32_0 = arith.constant 0 : i32
    %c0_i32_1 = arith.constant 0 : i32
    return %c0_i32, %c0_i32_0 : i32, i32
  }
  func.func @transform_4(%arg0: i32, %arg1: i32) -> (i32, i32) {
    %c0_i32 = arith.constant 0 : i32
    %c0_i32_0 = arith.constant 0 : i32
    %c0_i32_1 = arith.constant 0 : i32
    return %c0_i32, %c0_i32_0 : i32, i32
  }
  func.func @transform_5(%arg0: i32, %arg1: i32) -> (i32, i32) {
    %c0_i32 = arith.constant 0 : i32
    %c0_i32_0 = arith.constant 0 : i32
    %c0_i32_1 = arith.constant 0 : i32
    return %c0_i32, %c0_i32_0 : i32, i32
  }
  func.func @transform_6(%arg0: i32, %arg1: i32) -> (i32, i32) {
    %c0_i32 = arith.constant 0 : i32
    %c0_i32_0 = arith.constant 0 : i32
    %c0_i32_1 = arith.constant 0 : i32
    return %c0_i32, %c0_i32_0 : i32, i32
  }
  func.func @transform_7(%arg0: i32, %arg1: i32) -> (i32, i32) {
    %c0_i32 = arith.constant 0 : i32
    %c0_i32_0 = arith.constant 0 : i32
    %c0_i32_1 = arith.constant 0 : i32
    return %c0_i32, %c0_i32_0 : i32, i32
  }
  func.func @transform_8(%arg0: i32, %arg1: i32) -> (i32, i32) {
    %c0_i32 = arith.constant 0 : i32
    %c0_i32_0 = arith.constant 0 : i32
    %c0_i32_1 = arith.constant 0 : i32
    return %c0_i32, %c0_i32_0 : i32, i32
  }
  func.func @transform_9(%arg0: i32, %arg1: i32) -> (i32, i32) {
    %c0_i32 = arith.constant 0 : i32
    %c0_i32_0 = arith.constant 0 : i32
    %c0_i32_1 = arith.constant 0 : i32
    return %c0_i32, %c0_i32_0 : i32, i32
  }
  func.func @transform_10(%arg0: i32, %arg1: i32) -> (i32, i32) {
    %c0_i32 = arith.constant 0 : i32
    %c0_i32_0 = arith.constant 0 : i32
    %c0_i32_1 = arith.constant 0 : i32
    return %c0_i32, %c0_i32_0 : i32, i32
  }
  func.func @transform_11(%arg0: i32, %arg1: i32) -> (i32, i32) {
    %c0_i32 = arith.constant 0 : i32
    %c0_i32_0 = arith.constant 0 : i32
    %c0_i32_1 = arith.constant 0 : i32
    return %c0_i32, %c0_i32_0 : i32, i32
  }
  func.func @transform_12(%arg0: i32, %arg1: i32) -> (i32, i32) {
    %c0_i32 = arith.constant 0 : i32
    %c0_i32_0 = arith.constant 0 : i32
    %c0_i32_1 = arith.constant 0 : i32
    return %c0_i32, %c0_i32_0 : i32, i32
  }
  func.func @transform_13(%arg0: i32, %arg1: i32) -> (i32, i32) {
    %c0_i32 = arith.constant 0 : i32
    %c0_i32_0 = arith.constant 0 : i32
    %c0_i32_1 = arith.constant 0 : i32
    return %c0_i32, %c0_i32_0 : i32, i32
  }
  func.func @transform_14(%arg0: i32, %arg1: i32) -> i32 {
    %c0_i32 = arith.constant 0 : i32
    %c0_i32_0 = arith.constant 0 : i32
    return %c0_i32 : i32
  }
  func.func @transform_15(%arg0: i32, %arg1: i32) -> (i32, i32, i32) {
    %c0_i32 = arith.constant 0 : i32
    %c0_i32_0 = arith.constant 0 : i32
    return %arg0, %arg1, %c0_i32 : i32, i32, i32
  }
}

module attributes {stable_mosaic.version = 11 : i64} {
  func.func @_attn_kernel(%arg0: i32, %arg1: i32, %arg2: memref<1x1x7x32xf32, #tpu.memory_space<vmem>>, %arg3: memref<1x32xf32, #tpu.memory_space<vmem>>, %arg4: memref<1x32xf32, #tpu.memory_space<vmem>>, %arg5: memref<32x96xf32, #tpu.memory_space<vmem>>, %arg6: memref<1x96xf32, #tpu.memory_space<vmem>>, %arg7: memref<32x32xf32, #tpu.memory_space<vmem>>, %arg8: memref<1x32xf32, #tpu.memory_space<vmem>>, %arg9: memref<1x1x7x32xf32, #tpu.memory_space<vmem>>, %arg10: memref<7x32xf32, #tpu.memory_space<vmem>>) attributes {dimension_semantics = [#tpu.dimension_semantics<parallel>, #tpu.dimension_semantics<parallel>], iteration_bounds = array<i64: 2, 2>, scalar_prefetch = 0 : i64, scratch_operands = 1 : i64, tpu.core_type = #tpu.core_type<tc>, window_params = [{transform_indices = @transform_0, window_bounds = array<i64: 1, 1, 7, 32>}, {pipeline_mode = #tpu.pipeline_mode<synchronous>, transform_indices = @transform_1, window_bounds = array<i64: 1, 32>}, {pipeline_mode = #tpu.pipeline_mode<synchronous>, transform_indices = @transform_2, window_bounds = array<i64: 1, 32>}, {pipeline_mode = #tpu.pipeline_mode<synchronous>, transform_indices = @transform_3, window_bounds = array<i64: 32, 96>}, {pipeline_mode = #tpu.pipeline_mode<synchronous>, transform_indices = @transform_4, window_bounds = array<i64: 1, 96>}, {pipeline_mode = #tpu.pipeline_mode<synchronous>, transform_indices = @transform_5, window_bounds = array<i64: 32, 32>}, {pipeline_mode = #tpu.pipeline_mode<synchronous>, transform_indices = @transform_6, window_bounds = array<i64: 1, 32>}, {transform_indices = @transform_7, window_bounds = array<i64: 1, 1, 7, 32>}]} {
    %c0 = arith.constant 0 : index
    %c0_0 = arith.constant 0 : index
    %c0_1 = arith.constant 0 : index
    %c0_2 = arith.constant 0 : index
    %0 = vector.load %arg2[%c0, %c0_0, %c0_1, %c0_2] : memref<1x1x7x32xf32, #tpu.memory_space<vmem>>, vector<1x1x7x32xf32>
    %1 = vector.shape_cast %0 : vector<1x1x7x32xf32> to vector<7x32xf32>
    %c0_3 = arith.constant 0 : index
    %c0_4 = arith.constant 0 : index
    %2 = vector.load %arg3[%c0_3, %c0_4] : memref<1x32xf32, #tpu.memory_space<vmem>>, vector<1x32xf32>
    %c0_5 = arith.constant 0 : index
    %c0_6 = arith.constant 0 : index
    %3 = vector.load %arg4[%c0_5, %c0_6] : memref<1x32xf32, #tpu.memory_space<vmem>>, vector<1x32xf32>
    %cst = arith.constant dense<0.000000e+00> : vector<7xf32>
    %4 = vector.multi_reduction <add>, %1, %cst [1] : vector<7x32xf32> to vector<7xf32>
    %5 = vector.shape_cast %4 : vector<7xf32> to vector<7x1xf32>
    %cst_7 = arith.constant 3.200000e+01 : f32
    %6 = vector.broadcast %cst_7 : f32 to vector<7x1xf32>
    %7 = arith.divf %5, %6 : vector<7x1xf32>
    %8 = vector.broadcast %7 : vector<7x1xf32> to vector<7x32xf32>
    %9 = arith.subf %1, %8 : vector<7x32xf32>
    %10 = arith.mulf %9, %9 : vector<7x32xf32>
    %cst_8 = arith.constant dense<0.000000e+00> : vector<7xf32>
    %11 = vector.multi_reduction <add>, %10, %cst_8 [1] : vector<7x32xf32> to vector<7xf32>
    %12 = vector.shape_cast %11 : vector<7xf32> to vector<7x1xf32>
    %cst_9 = arith.constant 3.200000e+01 : f32
    %13 = vector.broadcast %cst_9 : f32 to vector<7x1xf32>
    %14 = arith.divf %12, %13 : vector<7x1xf32>
    %15 = vector.broadcast %7 : vector<7x1xf32> to vector<7x32xf32>
    %16 = arith.subf %1, %15 : vector<7x32xf32>
    %cst_10 = arith.constant 9.99999997E-7 : f32
    %17 = vector.broadcast %cst_10 : f32 to vector<7x1xf32>
    %18 = arith.addf %14, %17 : vector<7x1xf32>
    %19 = math.rsqrt %18 : vector<7x1xf32>
    %20 = vector.broadcast %19 : vector<7x1xf32> to vector<7x32xf32>
    %21 = arith.mulf %16, %20 : vector<7x32xf32>
    %22 = vector.broadcast %2 : vector<1x32xf32> to vector<7x32xf32>
    %23 = arith.mulf %21, %22 : vector<7x32xf32>
    %24 = vector.broadcast %3 : vector<1x32xf32> to vector<7x32xf32>
    %25 = arith.addf %23, %24 : vector<7x32xf32>
    %26 = tpu.iota {dimensions = array<i32: 0>} : vector<7x32xi32>
    %c7_i32 = arith.constant 7 : i32
    %27 = arith.muli %arg1, %c7_i32 : i32
    %28 = vector.broadcast %27 : i32 to vector<7x32xi32>
    %29 = arith.addi %28, %26 : vector<7x32xi32>
    %c14_i32 = arith.constant 14 : i32
    %30 = vector.broadcast %c14_i32 : i32 to vector<7x32xi32>
    %31 = arith.cmpi slt, %29, %30 : vector<7x32xi32>
    %cst_11 = arith.constant 0.000000e+00 : f32
    %32 = vector.broadcast %cst_11 : f32 to vector<7x32xf32>
    %33 = arith.select %31, %25, %32 : vector<7x32xi1>, vector<7x32xf32>
    %c0_12 = arith.constant 0 : index
    %c0_13 = arith.constant 0 : index
    %34 = vector.load %arg5[%c0_12, %c0_13] : memref<32x96xf32, #tpu.memory_space<vmem>>, vector<32x96xf32>
    %cst_14 = arith.constant dense<0.000000e+00> : vector<7x96xf32>
    %35 = tpu.matmul %33, %34, %cst_14 {dimension_numbers = #tpu.dot_dimension_numbers<[1], [0], [0], [1], [0, 0, 1, 1], [], []>} : vector<7x32xf32>, vector<32x96xf32>, vector<7x96xf32> -> vector<7x96xf32>
    %c0_15 = arith.constant 0 : index
    %c0_16 = arith.constant 0 : index
    %36 = vector.load %arg6[%c0_15, %c0_16] : memref<1x96xf32, #tpu.memory_space<vmem>>, vector<1x96xf32>
    %37 = vector.broadcast %36 : vector<1x96xf32> to vector<7x96xf32>
    %38 = arith.addf %35, %37 : vector<7x96xf32>
    %39 = vector.extract_strided_slice %38 {offsets = [0, 0], sizes = [7, 8], strides = [1, 1]} : vector<7x96xf32> to vector<7x8xf32>
    %40 = vector.extract_strided_slice %38 {offsets = [0, 32], sizes = [7, 8], strides = [1, 1]} : vector<7x96xf32> to vector<7x8xf32>
    %41 = vector.extract_strided_slice %38 {offsets = [0, 64], sizes = [7, 8], strides = [1, 1]} : vector<7x96xf32> to vector<7x8xf32>
    %cst_17 = arith.constant dense<0.000000e+00> : vector<7x7xf32>
    %42 = tpu.matmul %39, %40, %cst_17 {dimension_numbers = #tpu.dot_dimension_numbers<[1], [1], [0], [0], [0, 0, 1, 0], [], []>} : vector<7x8xf32>, vector<7x8xf32>, vector<7x7xf32> -> vector<7x7xf32>
    %cst_18 = arith.constant 0.353553385 : f32
    %43 = vector.broadcast %cst_18 : f32 to vector<7x7xf32>
    %44 = arith.mulf %42, %43 : vector<7x7xf32>
    %cst_19 = arith.constant dense<0xFF800000> : vector<7xf32>
    %45 = vector.multi_reduction <maximumf>, %44, %cst_19 [1] : vector<7x7xf32> to vector<7xf32>
    %46 = vector.shape_cast %45 : vector<7xf32> to vector<7x1xf32>
    %47 = vector.broadcast %46 : vector<7x1xf32> to vector<7x7xf32>
    %48 = arith.subf %44, %47 : vector<7x7xf32>
    %49 = math.exp %48 : vector<7x7xf32>
    %cst_20 = arith.constant dense<0.000000e+00> : vector<7xf32>
    %50 = vector.multi_reduction <add>, %49, %cst_20 [1] : vector<7x7xf32> to vector<7xf32>
    %51 = vector.shape_cast %50 : vector<7xf32> to vector<7x1xf32>
    %52 = tpu.reciprocal %51 {approx = true} : vector<7x1xf32> -> vector<7x1xf32>
    %53 = vector.broadcast %52 : vector<7x1xf32> to vector<7x7xf32>
    %54 = arith.mulf %49, %53 : vector<7x7xf32>
    %cst_21 = arith.constant dense<0.000000e+00> : vector<7x8xf32>
    %55 = tpu.matmul %54, %41, %cst_21 {dimension_numbers = #tpu.dot_dimension_numbers<[1], [0], [0], [1], [0, 0, 1, 1], [], []>} : vector<7x7xf32>, vector<7x8xf32>, vector<7x8xf32> -> vector<7x8xf32>
    %c0_22 = arith.constant 0 : index
    %c0_23 = arith.constant 0 : index
    %56 = vector.load %arg10[%c0_22, %c0_23] : memref<7x32xf32, #tpu.memory_space<vmem>>, vector<7x8xf32>
    tpu.vector_store %arg10[%c0_22, %c0_23], %55 {strides = array<i32>} : memref<7x32xf32, #tpu.memory_space<vmem>>, vector<7x8xf32>,
    %57 = vector.extract_strided_slice %38 {offsets = [0, 8], sizes = [7, 8], strides = [1, 1]} : vector<7x96xf32> to vector<7x8xf32>
    %58 = vector.extract_strided_slice %38 {offsets = [0, 40], sizes = [7, 8], strides = [1, 1]} : vector<7x96xf32> to vector<7x8xf32>
    %59 = vector.extract_strided_slice %38 {offsets = [0, 72], sizes = [7, 8], strides = [1, 1]} : vector<7x96xf32> to vector<7x8xf32>
    %cst_24 = arith.constant dense<0.000000e+00> : vector<7x7xf32>
    %60 = tpu.matmul %57, %58, %cst_24 {dimension_numbers = #tpu.dot_dimension_numbers<[1], [1], [0], [0], [0, 0, 1, 0], [], []>} : vector<7x8xf32>, vector<7x8xf32>, vector<7x7xf32> -> vector<7x7xf32>
    %cst_25 = arith.constant 0.353553385 : f32
    %61 = vector.broadcast %cst_25 : f32 to vector<7x7xf32>
    %62 = arith.mulf %60, %61 : vector<7x7xf32>
    %cst_26 = arith.constant dense<0xFF800000> : vector<7xf32>
    %63 = vector.multi_reduction <maximumf>, %62, %cst_26 [1] : vector<7x7xf32> to vector<7xf32>
    %64 = vector.shape_cast %63 : vector<7xf32> to vector<7x1xf32>
    %65 = vector.broadcast %64 : vector<7x1xf32> to vector<7x7xf32>
    %66 = arith.subf %62, %65 : vector<7x7xf32>
    %67 = math.exp %66 : vector<7x7xf32>
    %cst_27 = arith.constant dense<0.000000e+00> : vector<7xf32>
    %68 = vector.multi_reduction <add>, %67, %cst_27 [1] : vector<7x7xf32> to vector<7xf32>
    %69 = vector.shape_cast %68 : vector<7xf32> to vector<7x1xf32>
    %70 = tpu.reciprocal %69 {approx = true} : vector<7x1xf32> -> vector<7x1xf32>
    %71 = vector.broadcast %70 : vector<7x1xf32> to vector<7x7xf32>
    %72 = arith.mulf %67, %71 : vector<7x7xf32>
    %cst_28 = arith.constant dense<0.000000e+00> : vector<7x8xf32>
    %73 = tpu.matmul %72, %59, %cst_28 {dimension_numbers = #tpu.dot_dimension_numbers<[1], [0], [0], [1], [0, 0, 1, 1], [], []>} : vector<7x7xf32>, vector<7x8xf32>, vector<7x8xf32> -> vector<7x8xf32>
    %c0_29 = arith.constant 0 : index
    %c8 = arith.constant 8 : index
    %74 = vector.load %arg10[%c0_29, %c8] : memref<7x32xf32, #tpu.memory_space<vmem>>, vector<7x8xf32>
    tpu.vector_store %arg10[%c0_29, %c8], %73 {strides = array<i32>} : memref<7x32xf32, #tpu.memory_space<vmem>>, vector<7x8xf32>,
    %75 = vector.extract_strided_slice %38 {offsets = [0, 16], sizes = [7, 8], strides = [1, 1]} : vector<7x96xf32> to vector<7x8xf32>
    %76 = vector.extract_strided_slice %38 {offsets = [0, 48], sizes = [7, 8], strides = [1, 1]} : vector<7x96xf32> to vector<7x8xf32>
    %77 = vector.extract_strided_slice %38 {offsets = [0, 80], sizes = [7, 8], strides = [1, 1]} : vector<7x96xf32> to vector<7x8xf32>
    %cst_30 = arith.constant dense<0.000000e+00> : vector<7x7xf32>
    %78 = tpu.matmul %75, %76, %cst_30 {dimension_numbers = #tpu.dot_dimension_numbers<[1], [1], [0], [0], [0, 0, 1, 0], [], []>} : vector<7x8xf32>, vector<7x8xf32>, vector<7x7xf32> -> vector<7x7xf32>
    %cst_31 = arith.constant 0.353553385 : f32
    %79 = vector.broadcast %cst_31 : f32 to vector<7x7xf32>
    %80 = arith.mulf %78, %79 : vector<7x7xf32>
    %cst_32 = arith.constant dense<0xFF800000> : vector<7xf32>
    %81 = vector.multi_reduction <maximumf>, %80, %cst_32 [1] : vector<7x7xf32> to vector<7xf32>
    %82 = vector.shape_cast %81 : vector<7xf32> to vector<7x1xf32>
    %83 = vector.broadcast %82 : vector<7x1xf32> to vector<7x7xf32>
    %84 = arith.subf %80, %83 : vector<7x7xf32>
    %85 = math.exp %84 : vector<7x7xf32>
    %cst_33 = arith.constant dense<0.000000e+00> : vector<7xf32>
    %86 = vector.multi_reduction <add>, %85, %cst_33 [1] : vector<7x7xf32> to vector<7xf32>
    %87 = vector.shape_cast %86 : vector<7xf32> to vector<7x1xf32>
    %88 = tpu.reciprocal %87 {approx = true} : vector<7x1xf32> -> vector<7x1xf32>
    %89 = vector.broadcast %88 : vector<7x1xf32> to vector<7x7xf32>
    %90 = arith.mulf %85, %89 : vector<7x7xf32>
    %cst_34 = arith.constant dense<0.000000e+00> : vector<7x8xf32>
    %91 = tpu.matmul %90, %77, %cst_34 {dimension_numbers = #tpu.dot_dimension_numbers<[1], [0], [0], [1], [0, 0, 1, 1], [], []>} : vector<7x7xf32>, vector<7x8xf32>, vector<7x8xf32> -> vector<7x8xf32>
    %c0_35 = arith.constant 0 : index
    %c16 = arith.constant 16 : index
    %92 = vector.load %arg10[%c0_35, %c16] : memref<7x32xf32, #tpu.memory_space<vmem>>, vector<7x8xf32>
    tpu.vector_store %arg10[%c0_35, %c16], %91 {strides = array<i32>} : memref<7x32xf32, #tpu.memory_space<vmem>>, vector<7x8xf32>,
    %93 = vector.extract_strided_slice %38 {offsets = [0, 24], sizes = [7, 8], strides = [1, 1]} : vector<7x96xf32> to vector<7x8xf32>
    %94 = vector.extract_strided_slice %38 {offsets = [0, 56], sizes = [7, 8], strides = [1, 1]} : vector<7x96xf32> to vector<7x8xf32>
    %95 = vector.extract_strided_slice %38 {offsets = [0, 88], sizes = [7, 8], strides = [1, 1]} : vector<7x96xf32> to vector<7x8xf32>
    %cst_36 = arith.constant dense<0.000000e+00> : vector<7x7xf32>
    %96 = tpu.matmul %93, %94, %cst_36 {dimension_numbers = #tpu.dot_dimension_numbers<[1], [1], [0], [0], [0, 0, 1, 0], [], []>} : vector<7x8xf32>, vector<7x8xf32>, vector<7x7xf32> -> vector<7x7xf32>
    %cst_37 = arith.constant 0.353553385 : f32
    %97 = vector.broadcast %cst_37 : f32 to vector<7x7xf32>
    %98 = arith.mulf %96, %97 : vector<7x7xf32>
    %cst_38 = arith.constant dense<0xFF800000> : vector<7xf32>
    %99 = vector.multi_reduction <maximumf>, %98, %cst_38 [1] : vector<7x7xf32> to vector<7xf32>
    %100 = vector.shape_cast %99 : vector<7xf32> to vector<7x1xf32>
    %101 = vector.broadcast %100 : vector<7x1xf32> to vector<7x7xf32>
    %102 = arith.subf %98, %101 : vector<7x7xf32>
    %103 = math.exp %102 : vector<7x7xf32>
    %cst_39 = arith.constant dense<0.000000e+00> : vector<7xf32>
    %104 = vector.multi_reduction <add>, %103, %cst_39 [1] : vector<7x7xf32> to vector<7xf32>
    %105 = vector.shape_cast %104 : vector<7xf32> to vector<7x1xf32>
    %106 = tpu.reciprocal %105 {approx = true} : vector<7x1xf32> -> vector<7x1xf32>
    %107 = vector.broadcast %106 : vector<7x1xf32> to vector<7x7xf32>
    %108 = arith.mulf %103, %107 : vector<7x7xf32>
    %cst_40 = arith.constant dense<0.000000e+00> : vector<7x8xf32>
    %109 = tpu.matmul %108, %95, %cst_40 {dimension_numbers = #tpu.dot_dimension_numbers<[1], [0], [0], [1], [0, 0, 1, 1], [], []>} : vector<7x7xf32>, vector<7x8xf32>, vector<7x8xf32> -> vector<7x8xf32>
    %c0_41 = arith.constant 0 : index
    %c24 = arith.constant 24 : index
    %110 = vector.load %arg10[%c0_41, %c24] : memref<7x32xf32, #tpu.memory_space<vmem>>, vector<7x8xf32>
    tpu.vector_store %arg10[%c0_41, %c24], %109 {strides = array<i32>} : memref<7x32xf32, #tpu.memory_space<vmem>>, vector<7x8xf32>,
    %c0_42 = arith.constant 0 : index
    %c0_43 = arith.constant 0 : index
    %111 = vector.load %arg10[%c0_42, %c0_43] : memref<7x32xf32, #tpu.memory_space<vmem>>, vector<7x32xf32>
    %c0_44 = arith.constant 0 : index
    %c0_45 = arith.constant 0 : index
    %112 = vector.load %arg7[%c0_44, %c0_45] : memref<32x32xf32, #tpu.memory_space<vmem>>, vector<32x32xf32>
    %cst_46 = arith.constant dense<0.000000e+00> : vector<7x32xf32>
    %113 = tpu.matmul %111, %112, %cst_46 {dimension_numbers = #tpu.dot_dimension_numbers<[1], [0], [0], [1], [0, 0, 1, 1], [], []>} : vector<7x32xf32>, vector<32x32xf32>, vector<7x32xf32> -> vector<7x32xf32>
    %c0_47 = arith.constant 0 : index
    %c0_48 = arith.constant 0 : index
    %114 = vector.load %arg8[%c0_47, %c0_48] : memref<1x32xf32, #tpu.memory_space<vmem>>, vector<1x32xf32>
    %115 = vector.broadcast %114 : vector<1x32xf32> to vector<7x32xf32>
    %116 = arith.addf %113, %115 : vector<7x32xf32>
    %c0_49 = arith.constant 0 : index
    %c0_50 = arith.constant 0 : index
    %c0_51 = arith.constant 0 : index
    %c0_52 = arith.constant 0 : index
    %117 = vector.load %arg9[%c0_49, %c0_50, %c0_51, %c0_52] : memref<1x1x7x32xf32, #tpu.memory_space<vmem>>, vector<1x1x7x32xf32>
    %118 = vector.shape_cast %117 : vector<1x1x7x32xf32> to vector<7x32xf32>
    %119 = vector.shape_cast %116 : vector<7x32xf32> to vector<1x1x7x32xf32>
    tpu.vector_store %arg9[%c0_49, %c0_50, %c0_51, %c0_52], %119 {strides = array<i32>} : memref<1x1x7x32xf32, #tpu.memory_space<vmem>>, vector<1x1x7x32xf32>,
    return
  }
  func.func @transform_0(%arg0: i32, %arg1: i32) -> (i32, i32, i32, i32) {
    %c0_i32 = arith.constant 0 : i32
    %c0_i32_0 = arith.constant 0 : i32
    %c0_i32_1 = arith.constant 0 : i32
    return %arg0, %arg1, %c0_i32, %c0_i32_0 : i32, i32, i32, i32
  }
  func.func @transform_1(%arg0: i32, %arg1: i32) -> (i32, i32) {
    %c0_i32 = arith.constant 0 : i32
    %c0_i32_0 = arith.constant 0 : i32
    %c0_i32_1 = arith.constant 0 : i32
    return %c0_i32, %c0_i32_0 : i32, i32
  }
  func.func @transform_2(%arg0: i32, %arg1: i32) -> (i32, i32) {
    %c0_i32 = arith.constant 0 : i32
    %c0_i32_0 = arith.constant 0 : i32
    %c0_i32_1 = arith.constant 0 : i32
    return %c0_i32, %c0_i32_0 : i32, i32
  }
  func.func @transform_3(%arg0: i32, %arg1: i32) -> (i32, i32) {
    %c0_i32 = arith.constant 0 : i32
    %c0_i32_0 = arith.constant 0 : i32
    %c0_i32_1 = arith.constant 0 : i32
    return %c0_i32, %c0_i32_0 : i32, i32
  }
  func.func @transform_4(%arg0: i32, %arg1: i32) -> (i32, i32) {
    %c0_i32 = arith.constant 0 : i32
    %c0_i32_0 = arith.constant 0 : i32
    %c0_i32_1 = arith.constant 0 : i32
    return %c0_i32, %c0_i32_0 : i32, i32
  }
  func.func @transform_5(%arg0: i32, %arg1: i32) -> (i32, i32) {
    %c0_i32 = arith.constant 0 : i32
    %c0_i32_0 = arith.constant 0 : i32
    %c0_i32_1 = arith.constant 0 : i32
    return %c0_i32, %c0_i32_0 : i32, i32
  }
  func.func @transform_6(%arg0: i32, %arg1: i32) -> (i32, i32) {
    %c0_i32 = arith.constant 0 : i32
    %c0_i32_0 = arith.constant 0 : i32
    %c0_i32_1 = arith.constant 0 : i32
    return %c0_i32, %c0_i32_0 : i32, i32
  }
  func.func @transform_7(%arg0: i32, %arg1: i32) -> (i32, i32, i32, i32) {
    %c0_i32 = arith.constant 0 : i32
    %c0_i32_0 = arith.constant 0 : i32
    %c0_i32_1 = arith.constant 0 : i32
    return %arg0, %arg1, %c0_i32, %c0_i32_0 : i32, i32, i32, i32
  }
}

module attributes {stable_mosaic.version = 11 : i64} {
  func.func @_post_attn_kernel(%arg0: i32, %arg1: i32, %arg2: memref<1x256x32xf32, #tpu.memory_space<vmem>>, %arg3: memref<1x256x32xf32, #tpu.memory_space<vmem>>, %arg4: memref<1x32xf32, #tpu.memory_space<vmem>>, %arg5: memref<1x32xf32, #tpu.memory_space<vmem>>, %arg6: memref<32x128xf32, #tpu.memory_space<vmem>>, %arg7: memref<1x128xf32, #tpu.memory_space<vmem>>, %arg8: memref<128x32xf32, #tpu.memory_space<vmem>>, %arg9: memref<1x32xf32, #tpu.memory_space<vmem>>, %arg10: memref<1x32xf32, #tpu.memory_space<vmem>>, %arg11: memref<1x32xf32, #tpu.memory_space<vmem>>, %arg12: memref<32x32xf32, #tpu.memory_space<vmem>>, %arg13: memref<1x32xf32, #tpu.memory_space<vmem>>, %arg14: memref<32x32xf32, #tpu.memory_space<vmem>>, %arg15: memref<1x32xf32, #tpu.memory_space<vmem>>, %arg16: memref<6xf32, #tpu.memory_space<smem>>, %arg17: memref<1x256x32xf32, #tpu.memory_space<vmem>>) attributes {dimension_semantics = [#tpu.dimension_semantics<parallel>, #tpu.dimension_semantics<parallel>], iteration_bounds = array<i64: 2, 1>, scalar_prefetch = 0 : i64, scratch_operands = 0 : i64, tpu.core_type = #tpu.core_type<tc>, window_params = [{transform_indices = @transform_0, window_bounds = array<i64: 1, 256, 32>}, {transform_indices = @transform_1, window_bounds = array<i64: 1, 256, 32>}, {pipeline_mode = #tpu.pipeline_mode<synchronous>, transform_indices = @transform_2, window_bounds = array<i64: 1, 32>}, {pipeline_mode = #tpu.pipeline_mode<synchronous>, transform_indices = @transform_3, window_bounds = array<i64: 1, 32>}, {pipeline_mode = #tpu.pipeline_mode<synchronous>, transform_indices = @transform_4, window_bounds = array<i64: 32, 128>}, {pipeline_mode = #tpu.pipeline_mode<synchronous>, transform_indices = @transform_5, window_bounds = array<i64: 1, 128>}, {pipeline_mode = #tpu.pipeline_mode<synchronous>, transform_indices = @transform_6, window_bounds = array<i64: 128, 32>}, {pipeline_mode = #tpu.pipeline_mode<synchronous>, transform_indices = @transform_7, window_bounds = array<i64: 1, 32>}, {pipeline_mode = #tpu.pipeline_mode<synchronous>, transform_indices = @transform_8, window_bounds = array<i64: 1, 32>}, {pipeline_mode = #tpu.pipeline_mode<synchronous>, transform_indices = @transform_9, window_bounds = array<i64: 1, 32>}, {pipeline_mode = #tpu.pipeline_mode<synchronous>, transform_indices = @transform_10, window_bounds = array<i64: 32, 32>}, {pipeline_mode = #tpu.pipeline_mode<synchronous>, transform_indices = @transform_11, window_bounds = array<i64: 1, 32>}, {pipeline_mode = #tpu.pipeline_mode<synchronous>, transform_indices = @transform_12, window_bounds = array<i64: 32, 32>}, {pipeline_mode = #tpu.pipeline_mode<synchronous>, transform_indices = @transform_13, window_bounds = array<i64: 1, 32>}, {transform_indices = @transform_14, window_bounds = array<i64: 6>}, {transform_indices = @transform_15, window_bounds = array<i64: 1, 256, 32>}]} {
    %c0 = arith.constant 0 : index
    %c0_0 = arith.constant 0 : index
    %c0_1 = arith.constant 0 : index
    %0 = vector.load %arg2[%c0, %c0_0, %c0_1] : memref<1x256x32xf32, #tpu.memory_space<vmem>>, vector<1x256x32xf32>
    %1 = vector.shape_cast %0 : vector<1x256x32xf32> to vector<256x32xf32>
    %c0_2 = arith.constant 0 : index
    %c0_3 = arith.constant 0 : index
    %c0_4 = arith.constant 0 : index
    %2 = vector.load %arg3[%c0_2, %c0_3, %c0_4] : memref<1x256x32xf32, #tpu.memory_space<vmem>>, vector<1x256x32xf32>
    %3 = vector.shape_cast %2 : vector<1x256x32xf32> to vector<256x32xf32>
    %c0_5 = arith.constant 0 : index
    %4 = memref.load %arg16[%c0_5] : memref<6xf32, #tpu.memory_space<smem>>
    %5 = vector.broadcast %4 : f32 to vector<256x32xf32>
    %6 = arith.mulf %5, %1 : vector<256x32xf32>
    %c1 = arith.constant 1 : index
    %7 = memref.load %arg16[%c1] : memref<6xf32, #tpu.memory_space<smem>>
    %8 = vector.broadcast %7 : f32 to vector<256x32xf32>
    %9 = arith.mulf %8, %3 : vector<256x32xf32>
    %10 = arith.addf %6, %9 : vector<256x32xf32>
    %c0_6 = arith.constant 0 : index
    %c0_7 = arith.constant 0 : index
    %11 = vector.load %arg4[%c0_6, %c0_7] : memref<1x32xf32, #tpu.memory_space<vmem>>, vector<1x32xf32>
    %c0_8 = arith.constant 0 : index
    %c0_9 = arith.constant 0 : index
    %12 = vector.load %arg5[%c0_8, %c0_9] : memref<1x32xf32, #tpu.memory_space<vmem>>, vector<1x32xf32>
    %cst = arith.constant dense<0.000000e+00> : vector<256xf32>
    %13 = vector.multi_reduction <add>, %10, %cst [1] : vector<256x32xf32> to vector<256xf32>
    %14 = vector.shape_cast %13 : vector<256xf32> to vector<256x1xf32>
    %cst_10 = arith.constant 3.200000e+01 : f32
    %15 = vector.broadcast %cst_10 : f32 to vector<256x1xf32>
    %16 = arith.divf %14, %15 : vector<256x1xf32>
    %17 = vector.broadcast %16 : vector<256x1xf32> to vector<256x32xf32>
    %18 = arith.subf %10, %17 : vector<256x32xf32>
    %19 = arith.mulf %18, %18 : vector<256x32xf32>
    %cst_11 = arith.constant dense<0.000000e+00> : vector<256xf32>
    %20 = vector.multi_reduction <add>, %19, %cst_11 [1] : vector<256x32xf32> to vector<256xf32>
    %21 = vector.shape_cast %20 : vector<256xf32> to vector<256x1xf32>
    %cst_12 = arith.constant 3.200000e+01 : f32
    %22 = vector.broadcast %cst_12 : f32 to vector<256x1xf32>
    %23 = arith.divf %21, %22 : vector<256x1xf32>
    %24 = vector.broadcast %16 : vector<256x1xf32> to vector<256x32xf32>
    %25 = arith.subf %10, %24 : vector<256x32xf32>
    %cst_13 = arith.constant 9.99999997E-7 : f32
    %26 = vector.broadcast %cst_13 : f32 to vector<256x1xf32>
    %27 = arith.addf %23, %26 : vector<256x1xf32>
    %28 = math.rsqrt %27 : vector<256x1xf32>
    %29 = vector.broadcast %28 : vector<256x1xf32> to vector<256x32xf32>
    %30 = arith.mulf %25, %29 : vector<256x32xf32>
    %31 = vector.broadcast %11 : vector<1x32xf32> to vector<256x32xf32>
    %32 = arith.mulf %30, %31 : vector<256x32xf32>
    %33 = vector.broadcast %12 : vector<1x32xf32> to vector<256x32xf32>
    %34 = arith.addf %32, %33 : vector<256x32xf32>
    %c0_14 = arith.constant 0 : index
    %c0_15 = arith.constant 0 : index
    %35 = vector.load %arg6[%c0_14, %c0_15] : memref<32x128xf32, #tpu.memory_space<vmem>>, vector<32x128xf32>
    %cst_16 = arith.constant dense<0.000000e+00> : vector<256x128xf32>
    %36 = tpu.matmul %34, %35, %cst_16 {dimension_numbers = #tpu.dot_dimension_numbers<[1], [0], [0], [1], [0, 0, 1, 1], [], []>} : vector<256x32xf32>, vector<32x128xf32>, vector<256x128xf32> -> vector<256x128xf32>
    %c0_17 = arith.constant 0 : index
    %c0_18 = arith.constant 0 : index
    %37 = vector.load %arg7[%c0_17, %c0_18] : memref<1x128xf32, #tpu.memory_space<vmem>>, vector<1x128xf32>
    %38 = vector.broadcast %37 : vector<1x128xf32> to vector<256x128xf32>
    %39 = arith.addf %36, %38 : vector<256x128xf32>
    %cst_19 = arith.constant 5.000000e-01 : f32
    %40 = vector.broadcast %cst_19 : f32 to vector<256x128xf32>
    %41 = arith.mulf %40, %39 : vector<256x128xf32>
    %cst_20 = arith.constant 0.707106769 : f32
    %42 = vector.broadcast %cst_20 : f32 to vector<256x128xf32>
    %43 = arith.mulf %39, %42 : vector<256x128xf32>
    %44 = math.erf %43 : vector<256x128xf32>
    %cst_21 = arith.constant 1.000000e+00 : f32
    %45 = vector.broadcast %cst_21 : f32 to vector<256x128xf32>
    %46 = arith.addf %45, %44 : vector<256x128xf32>
    %47 = arith.mulf %41, %46 : vector<256x128xf32>
    %c0_22 = arith.constant 0 : index
    %c0_23 = arith.constant 0 : index
    %48 = vector.load %arg8[%c0_22, %c0_23] : memref<128x32xf32, #tpu.memory_space<vmem>>, vector<128x32xf32>
    %cst_24 = arith.constant dense<0.000000e+00> : vector<256x32xf32>
    %49 = tpu.matmul %47, %48, %cst_24 {dimension_numbers = #tpu.dot_dimension_numbers<[1], [0], [0], [1], [0, 0, 1, 1], [], []>} : vector<256x128xf32>, vector<128x32xf32>, vector<256x32xf32> -> vector<256x32xf32>
    %c0_25 = arith.constant 0 : index
    %c0_26 = arith.constant 0 : index
    %50 = vector.load %arg9[%c0_25, %c0_26] : memref<1x32xf32, #tpu.memory_space<vmem>>, vector<1x32xf32>
    %51 = vector.broadcast %50 : vector<1x32xf32> to vector<256x32xf32>
    %52 = arith.addf %49, %51 : vector<256x32xf32>
    %c2 = arith.constant 2 : index
    %53 = memref.load %arg16[%c2] : memref<6xf32, #tpu.memory_space<smem>>
    %54 = vector.broadcast %53 : f32 to vector<256x32xf32>
    %55 = arith.mulf %54, %10 : vector<256x32xf32>
    %c3 = arith.constant 3 : index
    %56 = memref.load %arg16[%c3] : memref<6xf32, #tpu.memory_space<smem>>
    %57 = vector.broadcast %56 : f32 to vector<256x32xf32>
    %58 = arith.mulf %57, %52 : vector<256x32xf32>
    %59 = arith.addf %55, %58 : vector<256x32xf32>
    %c0_27 = arith.constant 0 : index
    %c0_28 = arith.constant 0 : index
    %60 = vector.load %arg10[%c0_27, %c0_28] : memref<1x32xf32, #tpu.memory_space<vmem>>, vector<1x32xf32>
    %c0_29 = arith.constant 0 : index
    %c0_30 = arith.constant 0 : index
    %61 = vector.load %arg11[%c0_29, %c0_30] : memref<1x32xf32, #tpu.memory_space<vmem>>, vector<1x32xf32>
    %cst_31 = arith.constant dense<0.000000e+00> : vector<256xf32>
    %62 = vector.multi_reduction <add>, %59, %cst_31 [1] : vector<256x32xf32> to vector<256xf32>
    %63 = vector.shape_cast %62 : vector<256xf32> to vector<256x1xf32>
    %cst_32 = arith.constant 3.200000e+01 : f32
    %64 = vector.broadcast %cst_32 : f32 to vector<256x1xf32>
    %65 = arith.divf %63, %64 : vector<256x1xf32>
    %66 = vector.broadcast %65 : vector<256x1xf32> to vector<256x32xf32>
    %67 = arith.subf %59, %66 : vector<256x32xf32>
    %68 = arith.mulf %67, %67 : vector<256x32xf32>
    %cst_33 = arith.constant dense<0.000000e+00> : vector<256xf32>
    %69 = vector.multi_reduction <add>, %68, %cst_33 [1] : vector<256x32xf32> to vector<256xf32>
    %70 = vector.shape_cast %69 : vector<256xf32> to vector<256x1xf32>
    %cst_34 = arith.constant 3.200000e+01 : f32
    %71 = vector.broadcast %cst_34 : f32 to vector<256x1xf32>
    %72 = arith.divf %70, %71 : vector<256x1xf32>
    %73 = vector.broadcast %65 : vector<256x1xf32> to vector<256x32xf32>
    %74 = arith.subf %59, %73 : vector<256x32xf32>
    %cst_35 = arith.constant 9.99999997E-7 : f32
    %75 = vector.broadcast %cst_35 : f32 to vector<256x1xf32>
    %76 = arith.addf %72, %75 : vector<256x1xf32>
    %77 = math.rsqrt %76 : vector<256x1xf32>
    %78 = vector.broadcast %77 : vector<256x1xf32> to vector<256x32xf32>
    %79 = arith.mulf %74, %78 : vector<256x32xf32>
    %80 = vector.broadcast %60 : vector<1x32xf32> to vector<256x32xf32>
    %81 = arith.mulf %79, %80 : vector<256x32xf32>
    %82 = vector.broadcast %61 : vector<1x32xf32> to vector<256x32xf32>
    %83 = arith.addf %81, %82 : vector<256x32xf32>
    %c0_36 = arith.constant 0 : index
    %c0_37 = arith.constant 0 : index
    %84 = vector.load %arg12[%c0_36, %c0_37] : memref<32x32xf32, #tpu.memory_space<vmem>>, vector<32x32xf32>
    %cst_38 = arith.constant dense<0.000000e+00> : vector<256x32xf32>
    %85 = tpu.matmul %83, %84, %cst_38 {dimension_numbers = #tpu.dot_dimension_numbers<[1], [0], [0], [1], [0, 0, 1, 1], [], []>} : vector<256x32xf32>, vector<32x32xf32>, vector<256x32xf32> -> vector<256x32xf32>
    %c0_39 = arith.constant 0 : index
    %c0_40 = arith.constant 0 : index
    %86 = vector.load %arg13[%c0_39, %c0_40] : memref<1x32xf32, #tpu.memory_space<vmem>>, vector<1x32xf32>
    %87 = vector.broadcast %86 : vector<1x32xf32> to vector<256x32xf32>
    %88 = arith.addf %85, %87 : vector<256x32xf32>
    %cst_41 = arith.constant 5.000000e-01 : f32
    %89 = vector.broadcast %cst_41 : f32 to vector<256x32xf32>
    %90 = arith.mulf %89, %88 : vector<256x32xf32>
    %cst_42 = arith.constant 0.707106769 : f32
    %91 = vector.broadcast %cst_42 : f32 to vector<256x32xf32>
    %92 = arith.mulf %88, %91 : vector<256x32xf32>
    %93 = math.erf %92 : vector<256x32xf32>
    %cst_43 = arith.constant 1.000000e+00 : f32
    %94 = vector.broadcast %cst_43 : f32 to vector<256x32xf32>
    %95 = arith.addf %94, %93 : vector<256x32xf32>
    %96 = arith.mulf %90, %95 : vector<256x32xf32>
    %c0_44 = arith.constant 0 : index
    %c0_45 = arith.constant 0 : index
    %97 = vector.load %arg14[%c0_44, %c0_45] : memref<32x32xf32, #tpu.memory_space<vmem>>, vector<32x32xf32>
    %cst_46 = arith.constant dense<0.000000e+00> : vector<256x32xf32>
    %98 = tpu.matmul %96, %97, %cst_46 {dimension_numbers = #tpu.dot_dimension_numbers<[1], [0], [0], [1], [0, 0, 1, 1], [], []>} : vector<256x32xf32>, vector<32x32xf32>, vector<256x32xf32> -> vector<256x32xf32>
    %c0_47 = arith.constant 0 : index
    %c0_48 = arith.constant 0 : index
    %99 = vector.load %arg15[%c0_47, %c0_48] : memref<1x32xf32, #tpu.memory_space<vmem>>, vector<1x32xf32>
    %100 = vector.broadcast %99 : vector<1x32xf32> to vector<256x32xf32>
    %101 = arith.addf %98, %100 : vector<256x32xf32>
    %c4 = arith.constant 4 : index
    %102 = memref.load %arg16[%c4] : memref<6xf32, #tpu.memory_space<smem>>
    %103 = vector.broadcast %102 : f32 to vector<256x32xf32>
    %104 = arith.mulf %103, %59 : vector<256x32xf32>
    %c5 = arith.constant 5 : index
    %105 = memref.load %arg16[%c5] : memref<6xf32, #tpu.memory_space<smem>>
    %106 = vector.broadcast %105 : f32 to vector<256x32xf32>
    %107 = arith.mulf %106, %101 : vector<256x32xf32>
    %108 = arith.addf %104, %107 : vector<256x32xf32>
    %c0_49 = arith.constant 0 : index
    %c0_50 = arith.constant 0 : index
    %c0_51 = arith.constant 0 : index
    %109 = vector.load %arg17[%c0_49, %c0_50, %c0_51] : memref<1x256x32xf32, #tpu.memory_space<vmem>>, vector<1x256x32xf32>
    %110 = vector.shape_cast %109 : vector<1x256x32xf32> to vector<256x32xf32>
    %111 = vector.shape_cast %108 : vector<256x32xf32> to vector<1x256x32xf32>
    tpu.vector_store %arg17[%c0_49, %c0_50, %c0_51], %111 {strides = array<i32>} : memref<1x256x32xf32, #tpu.memory_space<vmem>>, vector<1x256x32xf32>,
    return
  }
  func.func @transform_0(%arg0: i32, %arg1: i32) -> (i32, i32, i32) {
    %c0_i32 = arith.constant 0 : i32
    %c0_i32_0 = arith.constant 0 : i32
    return %arg0, %arg1, %c0_i32 : i32, i32, i32
  }
  func.func @transform_1(%arg0: i32, %arg1: i32) -> (i32, i32, i32) {
    %c0_i32 = arith.constant 0 : i32
    %c0_i32_0 = arith.constant 0 : i32
    return %arg0, %arg1, %c0_i32 : i32, i32, i32
  }
  func.func @transform_2(%arg0: i32, %arg1: i32) -> (i32, i32) {
    %c0_i32 = arith.constant 0 : i32
    %c0_i32_0 = arith.constant 0 : i32
    %c0_i32_1 = arith.constant 0 : i32
    return %c0_i32, %c0_i32_0 : i32, i32
  }
  func.func @transform_3(%arg0: i32, %arg1: i32) -> (i32, i32) {
    %c0_i32 = arith.constant 0 : i32
    %c0_i32_0 = arith.constant 0 : i32
    %c0_i32_1 = arith.constant 0 : i32
    return %c0_i32, %c0_i32_0 : i32, i32
  }
  func.func @transform_4(%arg0: i32, %arg1: i32) -> (i32, i32) {
    %c0_i32 = arith.constant 0 : i32
    %c0_i32_0 = arith.constant 0 : i32
    %c0_i32_1 = arith.constant 0 : i32
    return %c0_i32, %c0_i32_0 : i32, i32
  }
  func.func @transform_5(%arg0: i32, %arg1: i32) -> (i32, i32) {
    %c0_i32 = arith.constant 0 : i32
    %c0_i32_0 = arith.constant 0 : i32
    %c0_i32_1 = arith.constant 0 : i32
    return %c0_i32, %c0_i32_0 : i32, i32
  }
  func.func @transform_6(%arg0: i32, %arg1: i32) -> (i32, i32) {
    %c0_i32 = arith.constant 0 : i32
    %c0_i32_0 = arith.constant 0 : i32
    %c0_i32_1 = arith.constant 0 : i32
    return %c0_i32, %c0_i32_0 : i32, i32
  }
  func.func @transform_7(%arg0: i32, %arg1: i32) -> (i32, i32) {
    %c0_i32 = arith.constant 0 : i32
    %c0_i32_0 = arith.constant 0 : i32
    %c0_i32_1 = arith.constant 0 : i32
    return %c0_i32, %c0_i32_0 : i32, i32
  }
  func.func @transform_8(%arg0: i32, %arg1: i32) -> (i32, i32) {
    %c0_i32 = arith.constant 0 : i32
    %c0_i32_0 = arith.constant 0 : i32
    %c0_i32_1 = arith.constant 0 : i32
    return %c0_i32, %c0_i32_0 : i32, i32
  }
  func.func @transform_9(%arg0: i32, %arg1: i32) -> (i32, i32) {
    %c0_i32 = arith.constant 0 : i32
    %c0_i32_0 = arith.constant 0 : i32
    %c0_i32_1 = arith.constant 0 : i32
    return %c0_i32, %c0_i32_0 : i32, i32
  }
  func.func @transform_10(%arg0: i32, %arg1: i32) -> (i32, i32) {
    %c0_i32 = arith.constant 0 : i32
    %c0_i32_0 = arith.constant 0 : i32
    %c0_i32_1 = arith.constant 0 : i32
    return %c0_i32, %c0_i32_0 : i32, i32
  }
  func.func @transform_11(%arg0: i32, %arg1: i32) -> (i32, i32) {
    %c0_i32 = arith.constant 0 : i32
    %c0_i32_0 = arith.constant 0 : i32
    %c0_i32_1 = arith.constant 0 : i32
    return %c0_i32, %c0_i32_0 : i32, i32
  }
  func.func @transform_12(%arg0: i32, %arg1: i32) -> (i32, i32) {
    %c0_i32 = arith.constant 0 : i32
    %c0_i32_0 = arith.constant 0 : i32
    %c0_i32_1 = arith.constant 0 : i32
    return %c0_i32, %c0_i32_0 : i32, i32
  }
  func.func @transform_13(%arg0: i32, %arg1: i32) -> (i32, i32) {
    %c0_i32 = arith.constant 0 : i32
    %c0_i32_0 = arith.constant 0 : i32
    %c0_i32_1 = arith.constant 0 : i32
    return %c0_i32, %c0_i32_0 : i32, i32
  }
  func.func @transform_14(%arg0: i32, %arg1: i32) -> i32 {
    %c0_i32 = arith.constant 0 : i32
    %c0_i32_0 = arith.constant 0 : i32
    return %c0_i32 : i32
  }
  func.func @transform_15(%arg0: i32, %arg1: i32) -> (i32, i32, i32) {
    %c0_i32 = arith.constant 0 : i32
    %c0_i32_0 = arith.constant 0 : i32
    return %arg0, %arg1, %c0_i32 : i32, i32, i32
  }
}

</mosaic_0001>

<llo_original>
// kernel: _lambda_.4
$region0: #{_lambda_.4}
  #allocation0 [shape = 'u32[]', space=smem, size = 0x4, offset = 0x4, fixed_abs, tag = 'smem constant byte address 0x4 - core index']
  #allocation1 [shape = 'u32[144,128]{1,0:T(1,128)}', space=vmem, size = 0x12000, scoped, tag = 'internal scratch']
  #allocation2 [shape = 'f32[4,32]{1,0:T(4,128)}', space=vmem, size = 0x800, scoped, tag = 'scratch operand']
  %s0 = inlined_call_operand.vmem [shape: f32[2,4,4,32], index: 0, kind: input, shape index: {}]
  %s1 = inlined_call_operand.vmem [shape: f32[1,32], index: 1, kind: input, shape index: {}]
  %s2 = inlined_call_operand.vmem [shape: f32[1,32], index: 2, kind: input, shape index: {}]
  %s3 = inlined_call_operand.vmem [shape: f32[32,96], index: 3, kind: input, shape index: {}]
  %s4 = inlined_call_operand.vmem [shape: f32[1,96], index: 4, kind: input, shape index: {}]
  %s5 = inlined_call_operand.vmem [shape: f32[32,32], index: 5, kind: input, shape index: {}]
  %s6 = inlined_call_operand.vmem [shape: f32[1,32], index: 6, kind: input, shape index: {}]
  %s7 = inlined_call_operand.vmem [shape: f32[2,4,4,32], index: 7, kind: output, shape index: {}]
  %s8 = sld [smem:[#allocation0]]
  $region61: #{_lambda_.4} parent=0
    _
  %s10 = ssub.s32 1, %s8
  %s11 = scalar_select 0, %s10, %s8
  loop: start=0, step=1, limit=10
  $region2: #{_lambda_.4} parent=0 // loop_pre_header
    _
  $region3: #{_lambda_.4} parent=0 // loop_header
    %s13 = sphi 0, %s17
    %p14 = scmp.ge.s32.totalorder %s13, 10
    %s20 = sphi 0, %s32
    %s21 = sphi 0, %s28
    %s22 = sphi 0, %s20
    %s23 = sphi 0, %s21
    %s24 = sphi 0, %s22
    %s25 = sphi 0, %s23
    %s37 = sphi 0, %s39
    %s40 = sphi 0, %s37
    %s41 = sphi 0, %s40
    %s57 = sphi 0, %s41
    %s61 = sphi 0, %s61
    %s63 = sphi 0, %s61
    %s64 = sphi 0, %s63
    %s78 = sphi 0, %s64
    %s82 = sphi 0, %s82
    %s84 = sphi 0, %s82
    %s85 = sphi 0, %s84
    %s99 = sphi 0, %s85
    %s103 = sphi 0, %s103
    %s105 = sphi 0, %s103
    %s106 = sphi 0, %s105
    %s120 = sphi 0, %s106
    %s124 = sphi 0, %s124
    %s126 = sphi 0, %s124
    %s127 = sphi 0, %s126
    %s141 = sphi 0, %s127
    %s145 = sphi 0, %s145
    %s147 = sphi 0, %s145
    %s148 = sphi 0, %s147
    %s162 = sphi 0, %s148
    %s166 = sphi 0, %s166
    %s168 = sphi 0, %s166
    %s169 = sphi 0, %s168
    %s183 = sphi 0, %s169
    %s191 = sphi 0, %s193
    %s194 = sphi 0, %s191
    %s195 = sphi 0, %s194
    %s211 = sphi 0, %s195
  $region4: #{_lambda_.4} parent=0 // loop_header_branch
    %16 = sbr.rel (%p14) target = $region8
  $region5: #{_lambda_.4} parent=0 // loop_body
    %s18 = ssub.s32 %s13, 1
    %s19 = ssub.s32 %s13, 2
    %s26 = sadd.s32 1, %s21
    %p27 = scmp.ge.s32.totalorder %s26, 4
    %s28 = scalar_select %p27, 0, %s26
    %s29 = sadd.s32 1, %s20
    %s30 = scalar_select %p27, %s29, %s20
    %p31 = scmp.ge.s32.totalorder %s30, 2
    %s32 = scalar_select %p31, 0, %s30
    %s33 = ssub.s32 %s20, %s32
    %s34 = ssub.s32 %s21, %s28
    %s35 = sor.u32 %s33, %s34
    %p36 = scmp.eq.s32.totalorder %s35, 0
    %s38 = sadd.s32 %s37, 1
    %s39 = scalar_select %p36, %s37, %s38
    %p42 = pneg %p36
    %p43 = scmp.eq.s32.totalorder %s13, 7
    %p44 = por %p42, %p43
    %p45 = scmp.ne.s32.totalorder %s37, %s40
    %p46 = scmp.eq.s32.totalorder %s13, 0
    %p47 = por %p45, %p46
    %p48 = scmp.ne.s32.totalorder %s37, %s40
    %p49 = scmp.eq.s32.totalorder %s18, 7
    %p50 = por %p48, %p49
    %p51 = scmp.ne.s32.totalorder %s40, %s41
    %p52 = scmp.eq.s32.totalorder %s18, 0
    %p53 = por %p51, %p52
    %p54 = scmp.ne.s32.totalorder %s40, %s41
    %p55 = scmp.eq.s32.totalorder %s19, 7
    %p56 = por %p54, %p55
    %p58 = scmp.ne.s32.totalorder %s41, %s57
    %p59 = scmp.eq.s32.totalorder %s19, 0
    %p60 = por %p58, %p59
    %s62 = sadd.s32 %s61, 1
    %p65 = scmp.eq.s32.totalorder %s13, 7
    %p66 = scmp.ne.s32.totalorder %s61, %s63
    %p67 = scmp.eq.s32.totalorder %s13, 0
    %p68 = por %p66, %p67
    %p69 = scmp.ne.s32.totalorder %s61, %s63
    %p70 = scmp.eq.s32.totalorder %s18, 7
    %p71 = por %p69, %p70
    %p72 = scmp.ne.s32.totalorder %s63, %s64
    %p73 = scmp.eq.s32.totalorder %s18, 0
    %p74 = por %p72, %p73
    %p75 = scmp.ne.s32.totalorder %s63, %s64
    %p76 = scmp.eq.s32.totalorder %s19, 7
    %p77 = por %p75, %p76
    %p79 = scmp.ne.s32.totalorder %s64, %s78
    %p80 = scmp.eq.s32.totalorder %s19, 0
    %p81 = por %p79, %p80
    %s83 = sadd.s32 %s82, 1
    %p86 = scmp.eq.s32.totalorder %s13, 7
    %p87 = scmp.ne.s32.totalorder %s82, %s84
    %p88 = scmp.eq.s32.totalorder %s13, 0
    %p89 = por %p87, %p88
    %p90 = scmp.ne.s32.totalorder %s82, %s84
    %p91 = scmp.eq.s32.totalorder %s18, 7
    %p92 = por %p90, %p91
    %p93 = scmp.ne.s32.totalorder %s84, %s85
    %p94 = scmp.eq.s32.totalorder %s18, 0
    %p95 = por %p93, %p94
    %p96 = scmp.ne.s32.totalorder %s84, %s85
    %p97 = scmp.eq.s32.totalorder %s19, 7
    %p98 = por %p96, %p97
    %p100 = scmp.ne.s32.totalorder %s85, %s99
    %p101 = scmp.eq.s32.totalorder %s19, 0
    %p102 = por %p100, %p101
    %s104 = sadd.s32 %s103, 1
    %p107 = scmp.eq.s32.totalorder %s13, 7
    %p108 = scmp.ne.s32.totalorder %s103, %s105
    %p109 = scmp.eq.s32.totalorder %s13, 0
    %p110 = por %p108, %p109
    %p111 = scmp.ne.s32.totalorder %s103, %s105
    %p112 = scmp.eq.s32.totalorder %s18, 7
    %p113 = por %p111, %p112
    %p114 = scmp.ne.s32.totalorder %s105, %s106
    %p115 = scmp.eq.s32.totalorder %s18, 0
    %p116 = por %p114, %p115
    %p117 = scmp.ne.s32.totalorder %s105, %s106
    %p118 = scmp.eq.s32.totalorder %s19, 7
    %p119 = por %p117, %p118
    %p121 = scmp.ne.s32.totalorder %s106, %s120
    %p122 = scmp.eq.s32.totalorder %s19, 0
    %p123 = por %p121, %p122
    %s125 = sadd.s32 %s124, 1
    %p128 = scmp.eq.s32.totalorder %s13, 7
    %p129 = scmp.ne.s32.totalorder %s124, %s126
    %p130 = scmp.eq.s32.totalorder %s13, 0
    %p131 = por %p129, %p130
    %p132 = scmp.ne.s32.totalorder %s124, %s126
    %p133 = scmp.eq.s32.totalorder %s18, 7
    %p134 = por %p132, %p133
    %p135 = scmp.ne.s32.totalorder %s126, %s127
    %p136 = scmp.eq.s32.totalorder %s18, 0
    %p137 = por %p135, %p136
    %p138 = scmp.ne.s32.totalorder %s126, %s127
    %p139 = scmp.eq.s32.totalorder %s19, 7
    %p140 = por %p138, %p139
    %p142 = scmp.ne.s32.totalorder %s127, %s141
    %p143 = scmp.eq.s32.totalorder %s19, 0
    %p144 = por %p142, %p143
    %s146 = sadd.s32 %s145, 1
    %p149 = scmp.eq.s32.totalorder %s13, 7
    %p150 = scmp.ne.s32.totalorder %s145, %s147
    %p151 = scmp.eq.s32.totalorder %s13, 0
    %p152 = por %p150, %p151
    %p153 = scmp.ne.s32.totalorder %s145, %s147
    %p154 = scmp.eq.s32.totalorder %s18, 7
    %p155 = por %p153, %p154
    %p156 = scmp.ne.s32.totalorder %s147, %s148
    %p157 = scmp.eq.s32.totalorder %s18, 0
    %p158 = por %p156, %p157
    %p159 = scmp.ne.s32.totalorder %s147, %s148
    %p160 = scmp.eq.s32.totalorder %s19, 7
    %p161 = por %p159, %p160
    %p163 = scmp.ne.s32.totalorder %s148, %s162
    %p164 = scmp.eq.s32.totalorder %s19, 0
    %p165 = por %p163, %p164
    %s167 = sadd.s32 %s166, 1
    %p170 = scmp.eq.s32.totalorder %s13, 7
    %p171 = scmp.ne.s32.totalorder %s166, %s168
    %p172 = scmp.eq.s32.totalorder %s13, 0
    %p173 = por %p171, %p172
    %p174 = scmp.ne.s32.totalorder %s166, %s168
    %p175 = scmp.eq.s32.totalorder %s18, 7
    %p176 = por %p174, %p175
    %p177 = scmp.ne.s32.totalorder %s168, %s169
    %p178 = scmp.eq.s32.totalorder %s18, 0
    %p179 = por %p177, %p178
    %p180 = scmp.ne.s32.totalorder %s168, %s169
    %p181 = scmp.eq.s32.totalorder %s19, 7
    %p182 = por %p180, %p181
    %p184 = scmp.ne.s32.totalorder %s169, %s183
    %p185 = scmp.eq.s32.totalorder %s19, 0
    %p186 = por %p184, %p185
    %s187 = ssub.s32 %s20, %s32
    %s188 = ssub.s32 %s21, %s28
    %s189 = sor.u32 %s187, %s188
    %p190 = scmp.eq.s32.totalorder %s189, 0
    %s192 = sadd.s32 %s191, 1
    %s193 = scalar_select %p190, %s191, %s192
    %p196 = pneg %p190
    %p197 = scmp.eq.s32.totalorder %s13, 7
    %p198 = por %p196, %p197
    %p199 = scmp.ne.s32.totalorder %s191, %s194
    %p200 = scmp.eq.s32.totalorder %s13, 0
    %p201 = por %p199, %p200
    %p202 = scmp.ne.s32.totalorder %s191, %s194
    %p203 = scmp.eq.s32.totalorder %s18, 7
    %p204 = por %p202, %p203
    %p205 = scmp.ne.s32.totalorder %s194, %s195
    %p206 = scmp.eq.s32.totalorder %s18, 0
    %p207 = por %p205, %p206
    %p208 = scmp.ne.s32.totalorder %s194, %s195
    %p209 = scmp.eq.s32.totalorder %s19, 7
    %p210 = por %p208, %p209
    %p212 = scmp.ne.s32.totalorder %s195, %s211
    %p213 = scmp.eq.s32.totalorder %s19, 0
    %p214 = por %p212, %p213
    %p215 = scmp.le.s32.totalorder 1, %s13
    %p216 = scmp.lt.s32.totalorder %s13, 9
    %p217 = pnand %p215, %p216
    %p218 = pneg %p217
    // Predicated region
    $region9: #{_lambda_.4} parent=5 // pred_check
      _
    $region10: #{_lambda_.4} parent=5 // pred_check_branch
      %220 = sbr.rel (%p217) target = $region12
    $region11: #{_lambda_.4} parent=5 // pred_region
      %s221 = ssub.s32 %s13, 1
      // Predicated region
      $region13: #{_lambda_.4} parent=11 // pred_check
        %p222 = pneg %p74
      $region14: #{_lambda_.4} parent=11 // pred_check_branch
        %224 = sbr.rel (%p222) target = $region16
      $region15: #{_lambda_.4} parent=11 // pred_region
        _
      $region16: #{_lambda_.4} parent=11 // pred_fallthru
        _
      // Predicated region
      $region17: #{_lambda_.4} parent=11 // pred_check
        %p225 = pneg %p95
      $region18: #{_lambda_.4} parent=11 // pred_check_branch
        %227 = sbr.rel (%p225) target = $region20
      $region19: #{_lambda_.4} parent=11 // pred_region
        _
      $region20: #{_lambda_.4} parent=11 // pred_fallthru
        _
      // Predicated region
      $region21: #{_lambda_.4} parent=11 // pred_check
        %p228 = pneg %p116
      $region22: #{_lambda_.4} parent=11 // pred_check_branch
        %230 = sbr.rel (%p228) target = $region24
      $region23: #{_lambda_.4} parent=11 // pred_region
        _
      $region24: #{_lambda_.4} parent=11 // pred_fallthru
        _
      // Predicated region
      $region25: #{_lambda_.4} parent=11 // pred_check
        %p231 = pneg %p137
      $region26: #{_lambda_.4} parent=11 // pred_check_branch
        %233 = sbr.rel (%p231) target = $region28
      $region27: #{_lambda_.4} parent=11 // pred_region
        _
      $region28: #{_lambda_.4} parent=11 // pred_fallthru
        _
      // Predicated region
      $region29: #{_lambda_.4} parent=11 // pred_check
        %p234 = pneg %p158
      $region30: #{_lambda_.4} parent=11 // pred_check_branch
        %236 = sbr.rel (%p234) target = $region32
      $region31: #{_lambda_.4} parent=11 // pred_region
        _
      $region32: #{_lambda_.4} parent=11 // pred_fallthru
        _
      // Predicated region
      $region33: #{_lambda_.4} parent=11 // pred_check
        %p237 = pneg %p179
      $region34: #{_lambda_.4} parent=11 // pred_check_branch
        %239 = sbr.rel (%p237) target = $region36
      $region35: #{_lambda_.4} parent=11 // pred_region
        _
      $region36: #{_lambda_.4} parent=11 // pred_fallthru
        _
    $region12: #{_lambda_.4} parent=5 // pred_fallthru
      _
    %p240 = scmp.lt.s32.totalorder %s13, 8
    // Predicated region
    $region37: #{_lambda_.4} parent=5 // pred_check
      %p241 = pneg %p240
    $region38: #{_lambda_.4} parent=5 // pred_check_branch
      %243 = sbr.rel (%p241) target = $region40
    $region39: #{_lambda_.4} parent=5 // pred_region
      // Predicated region
      $region41: #{_lambda_.4} parent=39 // pred_check
        %p244 = pneg %p47
      $region42: #{_lambda_.4} parent=39 // pred_check_branch
        %246 = sbr.rel (%p244) target = $region44
      $region43: #{_lambda_.4} parent=39 // pred_region
        %p247 = scmp.lt.s32.totalorder %s20, 1
        %s248 = scalar_select %p247, %s20, 1
        %p249 = scmp.lt.s32.totalorder %s21, 3
        %s250 = scalar_select %p249, %s21, 3
        %s251 = smul.addr %s248, 4
        %s252 = sadd.s32 %s250, %s251
        %s253 = smul.addr %s252, 4
        %s254 = scalar_lea.vmem %s0, %s253
      $region44: #{_lambda_.4} parent=39 // pred_fallthru
        _
    $region40: #{_lambda_.4} parent=5 // pred_fallthru
      _
    %p255 = scmp.le.s32.totalorder 1, %s13
    %p256 = scmp.lt.s32.totalorder %s13, 9
    %p257 = pnand %p255, %p256
    %p258 = pneg %p257
    // Predicated region
    $region45: #{_lambda_.4} parent=5 // pred_check
      _
    $region46: #{_lambda_.4} parent=5 // pred_check_branch
      %260 = sbr.rel (%p257) target = $region48
    $region47: #{_lambda_.4} parent=5 // pred_region
      %s261 = ssub.s32 %s13, 1
      %p262 = scmp.lt.s32.totalorder %s22, 1
      %s263 = scalar_select %p262, %s22, 1
      %p264 = scmp.lt.s32.totalorder %s23, 3
      %s265 = scalar_select %p264, %s23, 3
      %s266 = smul.addr %s263, 4
      %s267 = sadd.s32 %s265, %s266
      %s268 = smul.addr %s267, 4
      %s269 = scalar_lea.vmem %s0, %s268
      %p270 = pneg %p53
      %p271 = pneg %p50
      %p272 = pneg %p74
      %p273 = pneg %p71
      %p274 = pneg %p95
      %p275 = pneg %p92
      %p276 = pneg %p116
      %p277 = pneg %p113
      %p278 = pneg %p137
      %p279 = pneg %p134
      %p280 = pneg %p158
      %p281 = pneg %p155
      %p282 = pneg %p179
      %p283 = pneg %p176
      %p284 = pneg %p207
      %p285 = pneg %p204
      %p286 = scmp.lt.s32.totalorder %s22, 1
      %s287 = scalar_select %p286, %s22, 1
      %p288 = scmp.lt.s32.totalorder %s23, 3
      %s289 = scalar_select %p288, %s23, 3
      %s290 = smul.addr %s287, 4
      %s291 = sadd.s32 %s289, %s290
      %s292 = smul.addr %s291, 4
      %s293 = scalar_lea.vmem %s7, %s292
      %p294 = scmp.lt.s32.totalorder %s22, 1
      %s295 = scalar_select %p294, %s22, 1
      %p296 = scmp.lt.s32.totalorder %s23, 3
      %s297 = scalar_select %p296, %s23, 3
      %s298 = smul.addr %s295, 4
      %s299 = sadd.s32 %s297, %s298
      %s300 = smul.addr %s299, 4
      %s301 = scalar_lea.vmem %s0, %s300
      %p302 = scmp.lt.s32.totalorder %s22, 1
      %s303 = scalar_select %p302, %s22, 1
      %p304 = scmp.lt.s32.totalorder %s23, 3
      %s305 = scalar_select %p304, %s23, 3
      %s306 = smul.addr %s303, 4
      %s307 = sadd.s32 %s305, %s306
      %s308 = smul.addr %s307, 4
      %s309 = scalar_lea.vmem %s7, %s308
      %v310 = vld [vmem:[%s301] sm:$0xf]
      %v311 = vld [vmem:[%s1] sm:$0x1]
      %v312 = vld [vmem:[%s2] sm:$0x1]
      %vm313 = vcmask 257024
      %v314 = vsel %vm313, %v310, 0.0
      %315 = vadd.xlane.f32.xlu0 %v314
      %v316 = vpop.xlane.xlu0 %315
      %v317 = vrcp.pop 32.0
      %v318 = vmul.f32 %v316, %v317
      %v319 = vsub.f32 %v310, %v318
      %v320 = vmul.f32 %v319, %v319
      %v321 = vsel %vm313, %v320, 0.0
      %322 = vadd.xlane.f32.xlu0 %v321
      %v323 = vpop.xlane.xlu0 %322
      %v324 = vmul.f32 %v323, %v317
      %v325 = vadd.f32 %v324, 1e-06
      %v326 = vrsqrt.pop %v325
      %v327 = vmul.f32 %v319, %v326
      %v329 = vlaneseq
      %v330 = vshrl.u32 %v329, 7
      %v331 = vsub.s32 0, %v330
      %v332 = vrot.slane %v311, %v331
      %v334 = vmul.f32 %v327, %v332
      %v336 = vlaneseq
      %v337 = vshrl.u32 %v336, 7
      %v338 = vsub.s32 0, %v337
      %v339 = vrot.slane %v312, %v338
      %v341 = vadd.f32 %v334, %v339
      %v342 = vlaneseq
      %v343 = vshrl.u32 %v342, 7
      %s344 = smul.u32 %s23, 4
      %v345 = vstv %s344
      %v346 = vadd.s32 %v345, %v343
      %vm347 = vcmp.lt.s32.totalorder %v346, 14
      %v348 = vsel %vm347, %v341, 0.0
      %v349 = vld [vmem:[%s3] sm:$0xff]
      %v350 = vld [vmem:[%s3 + $0x8] sm:$0xff]
      %v351 = vld [vmem:[%s3 + $0x10] sm:$0xff]
      %v352 = vld [vmem:[%s3 + $0x18] sm:$0xff]
      %v353 = vld [vmem:[%s4] sm:$0x1]
      %v355 = vlaneseq
      %v356 = vshrl.u32 %v355, 7
      %v357 = vsub.s32 0, %v356
      %v358 = vrot.slane %v353, %v357
      %vm360 = vcmask 261120
      %v362 = vsel %vm360, %v348, 0
      %364 = vmatprep.subr.mxu0 0.0
      %365 = vmatpush1.msra.mxu0 %v349
      %366 = vmatprep.subr.mxu0 0.0
      %367 = vmatpush1.msra.mxu0 %v350
      %368 = vmatprep.subr.mxu0 0.0
      %369 = vmatpush1.msra.mxu0 %v351
      %370 = vmatprep.subr.mxu0 0.0
      %371 = vmatpush1.msra.mxu0 %v352
      %372 = vmatprep.subr.mxu0 0.0
      %373 = vmatpush1.msra.mxu0 0.0
      %374 = vmatprep.subr.mxu0 0.0
      %375 = vmatpush1.msra.mxu0 0.0
      %376 = vmatprep.subr.mxu0 0.0
      %377 = vmatpush1.msra.mxu0 0.0
      %378 = vmatprep.subr.mxu0 0.0
      %379 = vmatpush1.msra.mxu0 0.0
      %380 = vmatprep.subr.mxu0 0.0
      %381 = vmatpush1.msra.mxu0 0.0
      %382 = vmatprep.subr.mxu0 0.0
      %383 = vmatpush1.msra.mxu0 0.0
      %384 = vmatprep.subr.mxu0 0.0
      %385 = vmatpush1.msra.mxu0 0.0
      %386 = vmatprep.subr.mxu0 0.0
      %387 = vmatpush1.msra.mxu0 0.0
      %388 = vmatprep.subr.mxu0 0.0
      %389 = vmatpush1.msra.mxu0 0.0
      %390 = vmatprep.subr.mxu0 0.0
      %391 = vmatpush1.msra.mxu0 0.0
      %392 = vmatprep.subr.mxu0 0.0
      %393 = vmatpush1.msra.mxu0 0.0
      %394 = vmatprep.subr.mxu0 0.0
      %395 = vmatpush1.msra.mxu0 0.0
      %396 = vmatprep.subr.mxu0 0.0
      %397 = vmatpush1.msra.mxu0 0.0
      %398 = vmatprep.subr.mxu0 0.0
      %399 = vmatpush1.msra.mxu0 0.0
      %400 = vmatprep.subr.mxu0 0.0
      %401 = vmatpush1.msra.mxu0 0.0
      %402 = vmatprep.subr.mxu0 0.0
      %403 = vmatpush1.msra.mxu0 0.0
      %404 = vmatprep.subr.mxu0 0.0
      %405 = vmatpush1.msra.mxu0 0.0
      %406 = vmatprep.subr.mxu0 0.0
      %407 = vmatpush1.msra.mxu0 0.0
      %408 = vmatprep.subr.mxu0 0.0
      %409 = vmatpush1.msra.mxu0 0.0
      %410 = vmatprep.subr.mxu0 0.0
      %411 = vmatpush1.msra.mxu0 0.0
      %412 = vmatprep.subr.mxu0 0.0
      %413 = vmatpush1.msra.mxu0 0.0
      %414 = vmatprep.subr.mxu0 0.0
      %415 = vmatpush1.msra.mxu0 0.0
      %416 = vmatprep.subr.mxu0 0.0
      %417 = vmatpush1.msra.mxu0 0.0
      %418 = vmatprep.subr.mxu0 0.0
      %419 = vmatpush1.msra.mxu0 0.0
      %420 = vmatprep.subr.mxu0 0.0
      %421 = vmatpush1.msra.mxu0 0.0
      %422 = vmatprep.subr.mxu0 0.0
      %423 = vmatpush1.msra.mxu0 0.0
      %424 = vmatprep.subr.mxu0 0.0
      %425 = vmatpush1.msra.mxu0 0.0
      %426 = vmatprep.subr.mxu0 0.0
      %427 = vmatpush1.msra.mxu0 0.0
      %428 = vmatprep.mubr.f32.mxu0 0.0
      %429 = vmatmul.mubr.f32.gmra.mrb[0].mxu0 %v362
      %v430 = vpop.f32.mrb[0].mxu0
      %v431 = vadd.f32 %v358, %v430
      %v432 = vpop.f32.mrb[0].mxu0
      %433 = vdwg.mxu0
      %435 = vrot.lane.b32.xlu0 %v431, 96
      %v436 = vpop.permute.xlu0 %435
      %vm437 = vcmask 64512
      %v438 = vsel %vm437, %v431, 0
      %v440 = vsel %vm437, %v436, 0
      %442 = vmatprep.subr.mxu0 0.0
      %443 = vmatpush1.xpose.msra.mxu0 %v440
      %444 = vmatprep.subr.mxu0 0.0
      %445 = vmatpush1.xpose.msra.mxu0 0.0
      %446 = vmatprep.subr.mxu0 0.0
      %447 = vmatpush1.xpose.msra.mxu0 0.0
      %448 = vmatprep.subr.mxu0 0.0
      %449 = vmatpush1.xpose.msra.mxu0 0.0
      %450 = vmatprep.subr.mxu0 0.0
      %451 = vmatpush1.xpose.msra.mxu0 0.0
      %452 = vmatprep.subr.mxu0 0.0
      %453 = vmatpush1.xpose.msra.mxu0 0.0
      %454 = vmatprep.subr.mxu0 0.0
      %455 = vmatpush1.xpose.msra.mxu0 0.0
      %456 = vmatprep.subr.mxu0 0.0
      %457 = vmatpush1.xpose.msra.mxu0 0.0
      %458 = vmatprep.subr.mxu0 0.0
      %459 = vmatpush1.xpose.msra.mxu0 0.0
      %460 = vmatprep.subr.mxu0 0.0
      %461 = vmatpush1.xpose.msra.mxu0 0.0
      %462 = vmatprep.subr.mxu0 0.0
      %463 = vmatpush1.xpose.msra.mxu0 0.0
      %464 = vmatprep.subr.mxu0 0.0
      %465 = vmatpush1.xpose.msra.mxu0 0.0
      %466 = vmatprep.subr.mxu0 0.0
      %467 = vmatpush1.xpose.msra.mxu0 0.0
      %468 = vmatprep.subr.mxu0 0.0
      %469 = vmatpush1.xpose.msra.mxu0 0.0
      %470 = vmatprep.subr.mxu0 0.0
      %471 = vmatpush1.xpose.msra.mxu0 0.0
      %472 = vmatprep.subr.mxu0 0.0
      %473 = vmatpush1.xpose.msra.mxu0 0.0
      %474 = vmatprep.subr.mxu0 0.0
      %475 = vmatpush1.xpose.msra.mxu0 0.0
      %476 = vmatprep.subr.mxu0 0.0
      %477 = vmatpush1.xpose.msra.mxu0 0.0
      %478 = vmatprep.subr.mxu0 0.0
      %479 = vmatpush1.xpose.msra.mxu0 0.0
      %480 = vmatprep.subr.mxu0 0.0
      %481 = vmatpush1.xpose.msra.mxu0 0.0
      %482 = vmatprep.subr.mxu0 0.0
      %483 = vmatpush1.xpose.msra.mxu0 0.0
      %484 = vmatprep.subr.mxu0 0.0
      %485 = vmatpush1.xpose.msra.mxu0 0.0
      %486 = vmatprep.subr.mxu0 0.0
      %487 = vmatpush1.xpose.msra.mxu0 0.0
      %488 = vmatprep.subr.mxu0 0.0
      %489 = vmatpush1.xpose.msra.mxu0 0.0
      %490 = vmatprep.subr.mxu0 0.0
      %491 = vmatpush1.xpose.msra.mxu0 0.0
      %492 = vmatprep.subr.mxu0 0.0
      %493 = vmatpush1.xpose.msra.mxu0 0.0
      %494 = vmatprep.subr.mxu0 0.0
      %495 = vmatpush1.xpose.msra.mxu0 0.0
      %496 = vmatprep.subr.mxu0 0.0
      %497 = vmatpush1.xpose.msra.mxu0 0.0
      %498 = vmatprep.subr.mxu0 0.0
      %499 = vmatpush1.xpose.msra.mxu0 0.0
      %500 = vmatprep.subr.mxu0 0.0
      %501 = vmatpush1.xpose.msra.mxu0 0.0
      %502 = vmatprep.subr.mxu0 0.0
      %503 = vmatpush1.xpose.msra.mxu0 0.0
      %504 = vmatprep.subr.mxu0 0.0
      %505 = vmatpush1.xpose.msra.mxu0 0.0
      %506 = vmatprep.mubr.f32.mxu0 0.0
      %507 = vmatmul.mubr.f32.gmra.mrb[0].mxu0 %v438
      %v508 = vpop.f32.mrb[0].mxu0
      %v509 = vadd.f32 0.0, %v508
      %v510 = vpop.f32.mrb[0].mxu0
      %511 = vdwg.mxu0
      %v512 = vmul.f32 %v509, 0.35355338
      %vm513 = vcmask 27648
      %v514 = vsel %vm513, %v512, -inf
      %515 = vmax.xlane.f32.xlu0 %v514
      %v516 = vpop.xlane.xlu0 %515
      %v517 = vsub.f32 %v512, %v516
      %v518 = vmul.f32 %v517, 1.442695
      %v519 = vpow.pop %v518
      %v520 = vsel %vm513, %v519, 0.0
      %521 = vadd.xlane.f32.xlu0 %v520
      %v522 = vpop.xlane.xlu0 %521
      %v523 = vrcp.pop %v522
      %v524 = vmul.f32 %v519, %v523
      %525 = vrot.lane.b32.xlu0 %v431, 64
      %v526 = vpop.permute.xlu0 %525
      %vm527 = vcmask 31744
      %v529 = vsel %vm527, %v524, 0
      %vm531 = vcmask 1043456
      %v532 = vsel %vm531, %v526, 0
      %534 = vmatprep.subr.mxu0 0.0
      %535 = vmatpush1.msra.mxu0 %v532
      %536 = vmatprep.subr.mxu0 0.0
      %537 = vmatpush1.msra.mxu0 0.0
      %538 = vmatprep.subr.mxu0 0.0
      %539 = vmatpush1.msra.mxu0 0.0
      %540 = vmatprep.subr.mxu0 0.0
      %541 = vmatpush1.msra.mxu0 0.0
      %542 = vmatprep.subr.mxu0 0.0
      %543 = vmatpush1.msra.mxu0 0.0
      %544 = vmatprep.subr.mxu0 0.0
      %545 = vmatpush1.msra.mxu0 0.0
      %546 = vmatprep.subr.mxu0 0.0
      %547 = vmatpush1.msra.mxu0 0.0
      %548 = vmatprep.subr.mxu0 0.0
      %549 = vmatpush1.msra.mxu0 0.0
      %550 = vmatprep.subr.mxu0 0.0
      %551 = vmatpush1.msra.mxu0 0.0
      %552 = vmatprep.subr.mxu0 0.0
      %553 = vmatpush1.msra.mxu0 0.0
      %554 = vmatprep.subr.mxu0 0.0
      %555 = vmatpush1.msra.mxu0 0.0
      %556 = vmatprep.subr.mxu0 0.0
      %557 = vmatpush1.msra.mxu0 0.0
      %558 = vmatprep.subr.mxu0 0.0
      %559 = vmatpush1.msra.mxu0 0.0
      %560 = vmatprep.subr.mxu0 0.0
      %561 = vmatpush1.msra.mxu0 0.0
      %562 = vmatprep.subr.mxu0 0.0
      %563 = vmatpush1.msra.mxu0 0.0
      %564 = vmatprep.subr.mxu0 0.0
      %565 = vmatpush1.msra.mxu0 0.0
      %566 = vmatprep.subr.mxu0 0.0
      %567 = vmatpush1.msra.mxu0 0.0
      %568 = vmatprep.subr.mxu0 0.0
      %569 = vmatpush1.msra.mxu0 0.0
      %570 = vmatprep.subr.mxu0 0.0
      %571 = vmatpush1.msra.mxu0 0.0
      %572 = vmatprep.subr.mxu0 0.0
      %573 = vmatpush1.msra.mxu0 0.0
      %574 = vmatprep.subr.mxu0 0.0
      %575 = vmatpush1.msra.mxu0 0.0
      %576 = vmatprep.subr.mxu0 0.0
      %577 = vmatpush1.msra.mxu0 0.0
      %578 = vmatprep.subr.mxu0 0.0
      %579 = vmatpush1.msra.mxu0 0.0
      %580 = vmatprep.subr.mxu0 0.0
      %581 = vmatpush1.msra.mxu0 0.0
      %582 = vmatprep.subr.mxu0 0.0
      %583 = vmatpush1.msra.mxu0 0.0
      %584 = vmatprep.subr.mxu0 0.0
      %585 = vmatpush1.msra.mxu0 0.0
      %586 = vmatprep.subr.mxu0 0.0
      %587 = vmatpush1.msra.mxu0 0.0
      %588 = vmatprep.subr.mxu0 0.0
      %589 = vmatpush1.msra.mxu0 0.0
      %590 = vmatprep.subr.mxu0 0.0
      %591 = vmatpush1.msra.mxu0 0.0
      %592 = vmatprep.subr.mxu0 0.0
      %593 = vmatpush1.msra.mxu0 0.0
      %594 = vmatprep.subr.mxu0 0.0
      %595 = vmatpush1.msra.mxu0 0.0
      %596 = vmatprep.subr.mxu0 0.0
      %597 = vmatpush1.msra.mxu0 0.0
      %598 = vmatprep.mubr.f32.mxu0 0.0
      %599 = vmatmul.mubr.f32.gmra.mrb[0].mxu0 %v529
      %v600 = vpop.f32.mrb[0].mxu0
      %v601 = vadd.f32 0.0, %v600
      %v602 = vpop.f32.mrb[0].mxu0
      %603 = vdwg.mxu0
      %vm604 = vcmask 60416
      %605 = vst.msk [vmem:[#allocation2] sm:$0xf] %vm604, %v601
      %606 = vrot.lane.b32.xlu0 %v431, 120
      %v607 = vpop.permute.xlu0 %606
      %608 = vrot.lane.b32.xlu0 %v431, 88
      %v609 = vpop.permute.xlu0 %608
      %v610 = vsel %vm437, %v607, 0
      %v612 = vsel %vm437, %v609, 0
      %614 = vmatprep.subr.mxu0 0.0
      %615 = vmatpush1.xpose.msra.mxu0 %v612
      %616 = vmatprep.subr.mxu0 0.0
      %617 = vmatpush1.xpose.msra.mxu0 0.0
      %618 = vmatprep.subr.mxu0 0.0
      %619 = vmatpush1.xpose.msra.mxu0 0.0
      %620 = vmatprep.subr.mxu0 0.0
      %621 = vmatpush1.xpose.msra.mxu0 0.0
      %622 = vmatprep.subr.mxu0 0.0
      %623 = vmatpush1.xpose.msra.mxu0 0.0
      %624 = vmatprep.subr.mxu0 0.0
      %625 = vmatpush1.xpose.msra.mxu0 0.0
      %626 = vmatprep.subr.mxu0 0.0
      %627 = vmatpush1.xpose.msra.mxu0 0.0
      %628 = vmatprep.subr.mxu0 0.0
      %629 = vmatpush1.xpose.msra.mxu0 0.0
      %630 = vmatprep.subr.mxu0 0.0
      %631 = vmatpush1.xpose.msra.mxu0 0.0
      %632 = vmatprep.subr.mxu0 0.0
      %633 = vmatpush1.xpose.msra.mxu0 0.0
      %634 = vmatprep.subr.mxu0 0.0
      %635 = vmatpush1.xpose.msra.mxu0 0.0
      %636 = vmatprep.subr.mxu0 0.0
      %637 = vmatpush1.xpose.msra.mxu0 0.0
      %638 = vmatprep.subr.mxu0 0.0
      %639 = vmatpush1.xpose.msra.mxu0 0.0
      %640 = vmatprep.subr.mxu0 0.0
      %641 = vmatpush1.xpose.msra.mxu0 0.0
      %642 = vmatprep.subr.mxu0 0.0
      %643 = vmatpush1.xpose.msra.mxu0 0.0
      %644 = vmatprep.subr.mxu0 0.0
      %645 = vmatpush1.xpose.msra.mxu0 0.0
      %646 = vmatprep.subr.mxu0 0.0
      %647 = vmatpush1.xpose.msra.mxu0 0.0
      %648 = vmatprep.subr.mxu0 0.0
      %649 = vmatpush1.xpose.msra.mxu0 0.0
      %650 = vmatprep.subr.mxu0 0.0
      %651 = vmatpush1.xpose.msra.mxu0 0.0
      %652 = vmatprep.subr.mxu0 0.0
      %653 = vmatpush1.xpose.msra.mxu0 0.0
      %654 = vmatprep.subr.mxu0 0.0
      %655 = vmatpush1.xpose.msra.mxu0 0.0
      %656 = vmatprep.subr.mxu0 0.0
      %657 = vmatpush1.xpose.msra.mxu0 0.0
      %658 = vmatprep.subr.mxu0 0.0
      %659 = vmatpush1.xpose.msra.mxu0 0.0
      %660 = vmatprep.subr.mxu0 0.0
      %661 = vmatpush1.xpose.msra.mxu0 0.0
      %662 = vmatprep.subr.mxu0 0.0
      %663 = vmatpush1.xpose.msra.mxu0 0.0
      %664 = vmatprep.subr.mxu0 0.0
      %665 = vmatpush1.xpose.msra.mxu0 0.0
      %666 = vmatprep.subr.mxu0 0.0
      %667 = vmatpush1.xpose.msra.mxu0 0.0
      %668 = vmatprep.subr.mxu0 0.0
      %669 = vmatpush1.xpose.msra.mxu0 0.0
      %670 = vmatprep.subr.mxu0 0.0
      %671 = vmatpush1.xpose.msra.mxu0 0.0
      %672 = vmatprep.subr.mxu0 0.0
      %673 = vmatpush1.xpose.msra.mxu0 0.0
      %674 = vmatprep.subr.mxu0 0.0
      %675 = vmatpush1.xpose.msra.mxu0 0.0
      %676 = vmatprep.subr.mxu0 0.0
      %677 = vmatpush1.xpose.msra.mxu0 0.0
      %678 = vmatprep.mubr.f32.mxu0 0.0
      %679 = vmatmul.mubr.f32.gmra.mrb[0].mxu0 %v610
      %v680 = vpop.f32.mrb[0].mxu0
      %v681 = vadd.f32 0.0, %v680
      %v682 = vpop.f32.mrb[0].mxu0
      %683 = vdwg.mxu0
      %v684 = vmul.f32 %v681, 0.35355338
      %v685 = vsel %vm513, %v684, -inf
      %686 = vmax.xlane.f32.xlu0 %v685
      %v687 = vpop.xlane.xlu0 %686
      %v688 = vsub.f32 %v684, %v687
      %v689 = vmul.f32 %v688, 1.442695
      %v690 = vpow.pop %v689
      %v691 = vsel %vm513, %v690, 0.0
      %692 = vadd.xlane.f32.xlu0 %v691
      %v693 = vpop.xlane.xlu0 %692
      %v694 = vrcp.pop %v693
      %v695 = vmul.f32 %v690, %v694
      %696 = vrot.lane.b32.xlu0 %v431, 56
      %v697 = vpop.permute.xlu0 %696
      %v699 = vsel %vm527, %v695, 0
      %v701 = vsel %vm531, %v697, 0
      %703 = vmatprep.subr.mxu0 0.0
      %704 = vmatpush1.msra.mxu0 %v701
      %705 = vmatprep.subr.mxu0 0.0
      %706 = vmatpush1.msra.mxu0 0.0
      %707 = vmatprep.subr.mxu0 0.0
      %708 = vmatpush1.msra.mxu0 0.0
      %709 = vmatprep.subr.mxu0 0.0
      %710 = vmatpush1.msra.mxu0 0.0
      %711 = vmatprep.subr.mxu0 0.0
      %712 = vmatpush1.msra.mxu0 0.0
      %713 = vmatprep.subr.mxu0 0.0
      %714 = vmatpush1.msra.mxu0 0.0
      %715 = vmatprep.subr.mxu0 0.0
      %716 = vmatpush1.msra.mxu0 0.0
      %717 = vmatprep.subr.mxu0 0.0
      %718 = vmatpush1.msra.mxu0 0.0
      %719 = vmatprep.subr.mxu0 0.0
      %720 = vmatpush1.msra.mxu0 0.0
      %721 = vmatprep.subr.mxu0 0.0
      %722 = vmatpush1.msra.mxu0 0.0
      %723 = vmatprep.subr.mxu0 0.0
      %724 = vmatpush1.msra.mxu0 0.0
      %725 = vmatprep.subr.mxu0 0.0
      %726 = vmatpush1.msra.mxu0 0.0
      %727 = vmatprep.subr.mxu0 0.0
      %728 = vmatpush1.msra.mxu0 0.0
      %729 = vmatprep.subr.mxu0 0.0
      %730 = vmatpush1.msra.mxu0 0.0
      %731 = vmatprep.subr.mxu0 0.0
      %732 = vmatpush1.msra.mxu0 0.0
      %733 = vmatprep.subr.mxu0 0.0
      %734 = vmatpush1.msra.mxu0 0.0
      %735 = vmatprep.subr.mxu0 0.0
      %736 = vmatpush1.msra.mxu0 0.0
      %737 = vmatprep.subr.mxu0 0.0
      %738 = vmatpush1.msra.mxu0 0.0
      %739 = vmatprep.subr.mxu0 0.0
      %740 = vmatpush1.msra.mxu0 0.0
      %741 = vmatprep.subr.mxu0 0.0
      %742 = vmatpush1.msra.mxu0 0.0
      %743 = vmatprep.subr.mxu0 0.0
      %744 = vmatpush1.msra.mxu0 0.0
      %745 = vmatprep.subr.mxu0 0.0
      %746 = vmatpush1.msra.mxu0 0.0
      %747 = vmatprep.subr.mxu0 0.0
      %748 = vmatpush1.msra.mxu0 0.0
      %749 = vmatprep.subr.mxu0 0.0
      %750 = vmatpush1.msra.mxu0 0.0
      %751 = vmatprep.subr.mxu0 0.0
      %752 = vmatpush1.msra.mxu0 0.0
      %753 = vmatprep.subr.mxu0 0.0
      %754 = vmatpush1.msra.mxu0 0.0
      %755 = vmatprep.subr.mxu0 0.0
      %756 = vmatpush1.msra.mxu0 0.0
      %757 = vmatprep.subr.mxu0 0.0
      %758 = vmatpush1.msra.mxu0 0.0
      %759 = vmatprep.subr.mxu0 0.0
      %760 = vmatpush1.msra.mxu0 0.0
      %761 = vmatprep.subr.mxu0 0.0
      %762 = vmatpush1.msra.mxu0 0.0
      %763 = vmatprep.subr.mxu0 0.0
      %764 = vmatpush1.msra.mxu0 0.0
      %765 = vmatprep.subr.mxu0 0.0
      %766 = vmatpush1.msra.mxu0 0.0
      %767 = vmatprep.mubr.f32.mxu0 0.0
      %768 = vmatmul.mubr.f32.gmra.mrb[0].mxu0 %v699
      %v769 = vpop.f32.mrb[0].mxu0
      %v770 = vadd.f32 0.0, %v769
      %v771 = vpop.f32.mrb[0].mxu0
      %772 = vdwg.mxu0
      %774 = vrot.lane.b32.xlu0 %v770, 8
      %v775 = vpop.permute.xlu0 %774
      %vm777 = vcmask 126016
      %778 = vst.msk [vmem:[#allocation2] sm:$0xf] %vm777, %v775
      %779 = vrot.lane.b32.xlu0 %v431, 112
      %v780 = vpop.permute.xlu0 %779
      %781 = vrot.lane.b32.xlu0 %v431, 80
      %v782 = vpop.permute.xlu0 %781
      %v783 = vsel %vm437, %v780, 0
      %v785 = vsel %vm437, %v782, 0
      %787 = vmatprep.subr.mxu0 0.0
      %788 = vmatpush1.xpose.msra.mxu0 %v785
      %789 = vmatprep.subr.mxu0 0.0
      %790 = vmatpush1.xpose.msra.mxu0 0.0
      %791 = vmatprep.subr.mxu0 0.0
      %792 = vmatpush1.xpose.msra.mxu0 0.0
      %793 = vmatprep.subr.mxu0 0.0
      %794 = vmatpush1.xpose.msra.mxu0 0.0
      %795 = vmatprep.subr.mxu0 0.0
      %796 = vmatpush1.xpose.msra.mxu0 0.0
      %797 = vmatprep.subr.mxu0 0.0
      %798 = vmatpush1.xpose.msra.mxu0 0.0
      %799 = vmatprep.subr.mxu0 0.0
      %800 = vmatpush1.xpose.msra.mxu0 0.0
      %801 = vmatprep.subr.mxu0 0.0
      %802 = vmatpush1.xpose.msra.mxu0 0.0
      %803 = vmatprep.subr.mxu0 0.0
      %804 = vmatpush1.xpose.msra.mxu0 0.0
      %805 = vmatprep.subr.mxu0 0.0
      %806 = vmatpush1.xpose.msra.mxu0 0.0
      %807 = vmatprep.subr.mxu0 0.0
      %808 = vmatpush1.xpose.msra.mxu0 0.0
      %809 = vmatprep.subr.mxu0 0.0
      %810 = vmatpush1.xpose.msra.mxu0 0.0
      %811 = vmatprep.subr.mxu0 0.0
      %812 = vmatpush1.xpose.msra.mxu0 0.0
      %813 = vmatprep.subr.mxu0 0.0
      %814 = vmatpush1.xpose.msra.mxu0 0.0
      %815 = vmatprep.subr.mxu0 0.0
      %816 = vmatpush1.xpose.msra.mxu0 0.0
      %817 = vmatprep.subr.mxu0 0.0
      %818 = vmatpush1.xpose.msra.mxu0 0.0
      %819 = vmatprep.subr.mxu0 0.0
      %820 = vmatpush1.xpose.msra.mxu0 0.0
      %821 = vmatprep.subr.mxu0 0.0
      %822 = vmatpush1.xpose.msra.mxu0 0.0
      %823 = vmatprep.subr.mxu0 0.0
      %824 = vmatpush1.xpose.msra.mxu0 0.0
      %825 = vmatprep.subr.mxu0 0.0
      %826 = vmatpush1.xpose.msra.mxu0 0.0
      %827 = vmatprep.subr.mxu0 0.0
      %828 = vmatpush1.xpose.msra.mxu0 0.0
      %829 = vmatprep.subr.mxu0 0.0
      %830 = vmatpush1.xpose.msra.mxu0 0.0
      %831 = vmatprep.subr.mxu0 0.0
      %832 = vmatpush1.xpose.msra.mxu0 0.0
      %833 = vmatprep.subr.mxu0 0.0
      %834 = vmatpush1.xpose.msra.mxu0 0.0
      %835 = vmatprep.subr.mxu0 0.0
      %836 = vmatpush1.xpose.msra.mxu0 0.0
      %837 = vmatprep.subr.mxu0 0.0
      %838 = vmatpush1.xpose.msra.mxu0 0.0
      %839 = vmatprep.subr.mxu0 0.0
      %840 = vmatpush1.xpose.msra.mxu0 0.0
      %841 = vmatprep.subr.mxu0 0.0
      %842 = vmatpush1.xpose.msra.mxu0 0.0
      %843 = vmatprep.subr.mxu0 0.0
      %844 = vmatpush1.xpose.msra.mxu0 0.0
      %845 = vmatprep.subr.mxu0 0.0
      %846 = vmatpush1.xpose.msra.mxu0 0.0
      %847 = vmatprep.subr.mxu0 0.0
      %848 = vmatpush1.xpose.msra.mxu0 0.0
      %849 = vmatprep.subr.mxu0 0.0
      %850 = vmatpush1.xpose.msra.mxu0 0.0
      %851 = vmatprep.mubr.f32.mxu0 0.0
      %852 = vmatmul.mubr.f32.gmra.mrb[0].mxu0 %v783
      %v853 = vpop.f32.mrb[0].mxu0
      %v854 = vadd.f32 0.0, %v853
      %v855 = vpop.f32.mrb[0].mxu0
      %856 = vdwg.mxu0
      %v857 = vmul.f32 %v854, 0.35355338
      %v858 = vsel %vm513, %v857, -inf
      %859 = vmax.xlane.f32.xlu0 %v858
      %v860 = vpop.xlane.xlu0 %859
      %v861 = vsub.f32 %v857, %v860
      %v862 = vmul.f32 %v861, 1.442695
      %v863 = vpow.pop %v862
      %v864 = vsel %vm513, %v863, 0.0
      %865 = vadd.xlane.f32.xlu0 %v864
      %v866 = vpop.xlane.xlu0 %865
      %v867 = vrcp.pop %v866
      %v868 = vmul.f32 %v863, %v867
      %869 = vrot.lane.b32.xlu0 %v431, 48
      %v870 = vpop.permute.xlu0 %869
      %v872 = vsel %vm527, %v868, 0
      %v874 = vsel %vm531, %v870, 0
      %876 = vmatprep.subr.mxu0 0.0
      %877 = vmatpush1.msra.mxu0 %v874
      %878 = vmatprep.subr.mxu0 0.0
      %879 = vmatpush1.msra.mxu0 0.0
      %880 = vmatprep.subr.mxu0 0.0
      %881 = vmatpush1.msra.mxu0 0.0
      %882 = vmatprep.subr.mxu0 0.0
      %883 = vmatpush1.msra.mxu0 0.0
      %884 = vmatprep.subr.mxu0 0.0
      %885 = vmatpush1.msra.mxu0 0.0
      %886 = vmatprep.subr.mxu0 0.0
      %887 = vmatpush1.msra.mxu0 0.0
      %888 = vmatprep.subr.mxu0 0.0
      %889 = vmatpush1.msra.mxu0 0.0
      %890 = vmatprep.subr.mxu0 0.0
      %891 = vmatpush1.msra.mxu0 0.0
      %892 = vmatprep.subr.mxu0 0.0
      %893 = vmatpush1.msra.mxu0 0.0
      %894 = vmatprep.subr.mxu0 0.0
      %895 = vmatpush1.msra.mxu0 0.0
      %896 = vmatprep.subr.mxu0 0.0
      %897 = vmatpush1.msra.mxu0 0.0
      %898 = vmatprep.subr.mxu0 0.0
      %899 = vmatpush1.msra.mxu0 0.0
      %900 = vmatprep.subr.mxu0 0.0
      %901 = vmatpush1.msra.mxu0 0.0
      %902 = vmatprep.subr.mxu0 0.0
      %903 = vmatpush1.msra.mxu0 0.0
      %904 = vmatprep.subr.mxu0 0.0
      %905 = vmatpush1.msra.mxu0 0.0
      %906 = vmatprep.subr.mxu0 0.0
      %907 = vmatpush1.msra.mxu0 0.0
      %908 = vmatprep.subr.mxu0 0.0
      %909 = vmatpush1.msra.mxu0 0.0
      %910 = vmatprep.subr.mxu0 0.0
      %911 = vmatpush1.msra.mxu0 0.0
      %912 = vmatprep.subr.mxu0 0.0
      %913 = vmatpush1.msra.mxu0 0.0
      %914 = vmatprep.subr.mxu0 0.0
      %915 = vmatpush1.msra.mxu0 0.0
      %916 = vmatprep.subr.mxu0 0.0
      %917 = vmatpush1.msra.mxu0 0.0
      %918 = vmatprep.subr.mxu0 0.0
      %919 = vmatpush1.msra.mxu0 0.0
      %920 = vmatprep.subr.mxu0 0.0
      %921 = vmatpush1.msra.mxu0 0.0
      %922 = vmatprep.subr.mxu0 0.0
      %923 = vmatpush1.msra.mxu0 0.0
      %924 = vmatprep.subr.mxu0 0.0
      %925 = vmatpush1.msra.mxu0 0.0
      %926 = vmatprep.subr.mxu0 0.0
      %927 = vmatpush1.msra.mxu0 0.0
      %928 = vmatprep.subr.mxu0 0.0
      %929 = vmatpush1.msra.mxu0 0.0
      %930 = vmatprep.subr.mxu0 0.0
      %931 = vmatpush1.msra.mxu0 0.0
      %932 = vmatprep.subr.mxu0 0.0
      %933 = vmatpush1.msra.mxu0 0.0
      %934 = vmatprep.subr.mxu0 0.0
      %935 = vmatpush1.msra.mxu0 0.0
      %936 = vmatprep.subr.mxu0 0.0
      %937 = vmatpush1.msra.mxu0 0.0
      %938 = vmatprep.subr.mxu0 0.0
      %939 = vmatpush1.msra.mxu0 0.0
      %940 = vmatprep.mubr.f32.mxu0 0.0
      %941 = vmatmul.mubr.f32.gmra.mrb[0].mxu0 %v872
      %v942 = vpop.f32.mrb[0].mxu0
      %v943 = vadd.f32 0.0, %v942
      %v944 = vpop.f32.mrb[0].mxu0
      %945 = vdwg.mxu0
      %947 = vrot.lane.b32.xlu0 %v943, 16
      %v948 = vpop.permute.xlu0 %947
      %vm950 = vcmask 191616
      %951 = vst.msk [vmem:[#allocation2] sm:$0xf] %vm950, %v948
      %952 = vrot.lane.b32.xlu0 %v431, 104
      %v953 = vpop.permute.xlu0 %952
      %954 = vrot.lane.b32.xlu0 %v431, 72
      %v955 = vpop.permute.xlu0 %954
      %v956 = vsel %vm437, %v953, 0
      %v958 = vsel %vm437, %v955, 0
      %960 = vmatprep.subr.mxu0 0.0
      %961 = vmatpush1.xpose.msra.mxu0 %v958
      %962 = vmatprep.subr.mxu0 0.0
      %963 = vmatpush1.xpose.msra.mxu0 0.0
      %964 = vmatprep.subr.mxu0 0.0
      %965 = vmatpush1.xpose.msra.mxu0 0.0
      %966 = vmatprep.subr.mxu0 0.0
      %967 = vmatpush1.xpose.msra.mxu0 0.0
      %968 = vmatprep.subr.mxu0 0.0
      %969 = vmatpush1.xpose.msra.mxu0 0.0
      %970 = vmatprep.subr.mxu0 0.0
      %971 = vmatpush1.xpose.msra.mxu0 0.0
      %972 = vmatprep.subr.mxu0 0.0
      %973 = vmatpush1.xpose.msra.mxu0 0.0
      %974 = vmatprep.subr.mxu0 0.0
      %975 = vmatpush1.xpose.msra.mxu0 0.0
      %976 = vmatprep.subr.mxu0 0.0
      %977 = vmatpush1.xpose.msra.mxu0 0.0
      %978 = vmatprep.subr.mxu0 0.0
      %979 = vmatpush1.xpose.msra.mxu0 0.0
      %980 = vmatprep.subr.mxu0 0.0
      %981 = vmatpush1.xpose.msra.mxu0 0.0
      %982 = vmatprep.subr.mxu0 0.0
      %983 = vmatpush1.xpose.msra.mxu0 0.0
      %984 = vmatprep.subr.mxu0 0.0
      %985 = vmatpush1.xpose.msra.mxu0 0.0
      %986 = vmatprep.subr.mxu0 0.0
      %987 = vmatpush1.xpose.msra.mxu0 0.0
      %988 = vmatprep.subr.mxu0 0.0
      %989 = vmatpush1.xpose.msra.mxu0 0.0
      %990 = vmatprep.subr.mxu0 0.0
      %991 = vmatpush1.xpose.msra.mxu0 0.0
      %992 = vmatprep.subr.mxu0 0.0
      %993 = vmatpush1.xpose.msra.mxu0 0.0
      %994 = vmatprep.subr.mxu0 0.0
      %995 = vmatpush1.xpose.msra.mxu0 0.0
      %996 = vmatprep.subr.mxu0 0.0
      %997 = vmatpush1.xpose.msra.mxu0 0.0
      %998 = vmatprep.subr.mxu0 0.0
      %999 = vmatpush1.xpose.msra.mxu0 0.0
      %1000 = vmatprep.subr.mxu0 0.0
      %1001 = vmatpush1.xpose.msra.mxu0 0.0
      %1002 = vmatprep.subr.mxu0 0.0
      %1003 = vmatpush1.xpose.msra.mxu0 0.0
      %1004 = vmatprep.subr.mxu0 0.0
      %1005 = vmatpush1.xpose.msra.mxu0 0.0
      %1006 = vmatprep.subr.mxu0 0.0
      %1007 = vmatpush1.xpose.msra.mxu0 0.0
      %1008 = vmatprep.subr.mxu0 0.0
      %1009 = vmatpush1.xpose.msra.mxu0 0.0
      %1010 = vmatprep.subr.mxu0 0.0
      %1011 = vmatpush1.xpose.msra.mxu0 0.0
      %1012 = vmatprep.subr.mxu0 0.0
      %1013 = vmatpush1.xpose.msra.mxu0 0.0
      %1014 = vmatprep.subr.mxu0 0.0
      %1015 = vmatpush1.xpose.msra.mxu0 0.0
      %1016 = vmatprep.subr.mxu0 0.0
      %1017 = vmatpush1.xpose.msra.mxu0 0.0
      %1018 = vmatprep.subr.mxu0 0.0
      %1019 = vmatpush1.xpose.msra.mxu0 0.0
      %1020 = vmatprep.subr.mxu0 0.0
      %1021 = vmatpush1.xpose.msra.mxu0 0.0
      %1022 = vmatprep.subr.mxu0 0.0
      %1023 = vmatpush1.xpose.msra.mxu0 0.0
      %1024 = vmatprep.mubr.f32.mxu0 0.0
      %1025 = vmatmul.mubr.f32.gmra.mrb[0].mxu0 %v956
      %v1026 = vpop.f32.mrb[0].mxu0
      %v1027 = vadd.f32 0.0, %v1026
      %v1028 = vpop.f32.mrb[0].mxu0
      %1029 = vdwg.mxu0
      %v1030 = vmul.f32 %v1027, 0.35355338
      %v1031 = vsel %vm513, %v1030, -inf
      %1032 = vmax.xlane.f32.xlu0 %v1031
      %v1033 = vpop.xlane.xlu0 %1032
      %v1034 = vsub.f32 %v1030, %v1033
      %v1035 = vmul.f32 %v1034, 1.442695
      %v1036 = vpow.pop %v1035
      %v1037 = vsel %vm513, %v1036, 0.0
      %1038 = vadd.xlane.f32.xlu0 %v1037
      %v1039 = vpop.xlane.xlu0 %1038
      %v1040 = vrcp.pop %v1039
      %v1041 = vmul.f32 %v1036, %v1040
      %1042 = vrot.lane.b32.xlu0 %v431, 40
      %v1043 = vpop.permute.xlu0 %1042
      %v1045 = vsel %vm527, %v1041, 0
      %v1047 = vsel %vm531, %v1043, 0
      %1049 = vmatprep.subr.mxu0 0.0
      %1050 = vmatpush1.msra.mxu0 %v1047
      %1051 = vmatprep.subr.mxu0 0.0
      %1052 = vmatpush1.msra.mxu0 0.0
      %1053 = vmatprep.subr.mxu0 0.0
      %1054 = vmatpush1.msra.mxu0 0.0
      %1055 = vmatprep.subr.mxu0 0.0
      %1056 = vmatpush1.msra.mxu0 0.0
      %1057 = vmatprep.subr.mxu0 0.0
      %1058 = vmatpush1.msra.mxu0 0.0
      %1059 = vmatprep.subr.mxu0 0.0
      %1060 = vmatpush1.msra.mxu0 0.0
      %1061 = vmatprep.subr.mxu0 0.0
      %1062 = vmatpush1.msra.mxu0 0.0
      %1063 = vmatprep.subr.mxu0 0.0
      %1064 = vmatpush1.msra.mxu0 0.0
      %1065 = vmatprep.subr.mxu0 0.0
      %1066 = vmatpush1.msra.mxu0 0.0
      %1067 = vmatprep.subr.mxu0 0.0
      %1068 = vmatpush1.msra.mxu0 0.0
      %1069 = vmatprep.subr.mxu0 0.0
      %1070 = vmatpush1.msra.mxu0 0.0
      %1071 = vmatprep.subr.mxu0 0.0
      %1072 = vmatpush1.msra.mxu0 0.0
      %1073 = vmatprep.subr.mxu0 0.0
      %1074 = vmatpush1.msra.mxu0 0.0
      %1075 = vmatprep.subr.mxu0 0.0
      %1076 = vmatpush1.msra.mxu0 0.0
      %1077 = vmatprep.subr.mxu0 0.0
      %1078 = vmatpush1.msra.mxu0 0.0
      %1079 = vmatprep.subr.mxu0 0.0
      %1080 = vmatpush1.msra.mxu0 0.0
      %1081 = vmatprep.subr.mxu0 0.0
      %1082 = vmatpush1.msra.mxu0 0.0
      %1083 = vmatprep.subr.mxu0 0.0
      %1084 = vmatpush1.msra.mxu0 0.0
      %1085 = vmatprep.subr.mxu0 0.0
      %1086 = vmatpush1.msra.mxu0 0.0
      %1087 = vmatprep.subr.mxu0 0.0
      %1088 = vmatpush1.msra.mxu0 0.0
      %1089 = vmatprep.subr.mxu0 0.0
      %1090 = vmatpush1.msra.mxu0 0.0
      %1091 = vmatprep.subr.mxu0 0.0
      %1092 = vmatpush1.msra.mxu0 0.0
      %1093 = vmatprep.subr.mxu0 0.0
      %1094 = vmatpush1.msra.mxu0 0.0
      %1095 = vmatprep.subr.mxu0 0.0
      %1096 = vmatpush1.msra.mxu0 0.0
      %1097 = vmatprep.subr.mxu0 0.0
      %1098 = vmatpush1.msra.mxu0 0.0
      %1099 = vmatprep.subr.mxu0 0.0
      %1100 = vmatpush1.msra.mxu0 0.0
      %1101 = vmatprep.subr.mxu0 0.0
      %1102 = vmatpush1.msra.mxu0 0.0
      %1103 = vmatprep.subr.mxu0 0.0
      %1104 = vmatpush1.msra.mxu0 0.0
      %1105 = vmatprep.subr.mxu0 0.0
      %1106 = vmatpush1.msra.mxu0 0.0
      %1107 = vmatprep.subr.mxu0 0.0
      %1108 = vmatpush1.msra.mxu0 0.0
      %1109 = vmatprep.subr.mxu0 0.0
      %1110 = vmatpush1.msra.mxu0 0.0
      %1111 = vmatprep.subr.mxu0 0.0
      %1112 = vmatpush1.msra.mxu0 0.0
      %1113 = vmatprep.mubr.f32.mxu0 0.0
      %1114 = vmatmul.mubr.f32.gmra.mrb[0].mxu0 %v1045
      %v1115 = vpop.f32.mrb[0].mxu0
      %v1116 = vadd.f32 0.0, %v1115
      %v1117 = vpop.f32.mrb[0].mxu0
      %1118 = vdwg.mxu0
      %1120 = vrot.lane.b32.xlu0 %v1116, 24
      %v1121 = vpop.permute.xlu0 %1120
      %vm1123 = vcmask 257216
      %1124 = vst.msk [vmem:[#allocation2] sm:$0xf] %vm1123, %v1121
      %v1125 = vld [vmem:[#allocation2] sm:$0xf]
      %v1126 = vld [vmem:[%s5] sm:$0xff]
      %v1127 = vld [vmem:[%s5 + $0x8] sm:$0xff]
      %v1128 = vld [vmem:[%s5 + $0x10] sm:$0xff]
      %v1129 = vld [vmem:[%s5 + $0x18] sm:$0xff]
      %v1130 = vld [vmem:[%s6] sm:$0x1]
      %v1132 = vlaneseq
      %v1133 = vshrl.u32 %v1132, 7
      %v1134 = vsub.s32 0, %v1133
      %v1135 = vrot.slane %v1130, %v1134
      %v1138 = vsel %vm360, %v1125, 0
      %1140 = vmatprep.subr.mxu0 0.0
      %1141 = vmatpush1.msra.mxu0 %v1126
      %1142 = vmatprep.subr.mxu0 0.0
      %1143 = vmatpush1.msra.mxu0 %v1127
      %1144 = vmatprep.subr.mxu0 0.0
      %1145 = vmatpush1.msra.mxu0 %v1128
      %1146 = vmatprep.subr.mxu0 0.0
      %1147 = vmatpush1.msra.mxu0 %v1129
      %1148 = vmatprep.subr.mxu0 0.0
      %1149 = vmatpush1.msra.mxu0 0.0
      %1150 = vmatprep.subr.mxu0 0.0
      %1151 = vmatpush1.msra.mxu0 0.0
      %1152 = vmatprep.subr.mxu0 0.0
      %1153 = vmatpush1.msra.mxu0 0.0
      %1154 = vmatprep.subr.mxu0 0.0
      %1155 = vmatpush1.msra.mxu0 0.0
      %1156 = vmatprep.subr.mxu0 0.0
      %1157 = vmatpush1.msra.mxu0 0.0
      %1158 = vmatprep.subr.mxu0 0.0
      %1159 = vmatpush1.msra.mxu0 0.0
      %1160 = vmatprep.subr.mxu0 0.0
      %1161 = vmatpush1.msra.mxu0 0.0
      %1162 = vmatprep.subr.mxu0 0.0
      %1163 = vmatpush1.msra.mxu0 0.0
      %1164 = vmatprep.subr.mxu0 0.0
      %1165 = vmatpush1.msra.mxu0 0.0
      %1166 = vmatprep.subr.mxu0 0.0
      %1167 = vmatpush1.msra.mxu0 0.0
      %1168 = vmatprep.subr.mxu0 0.0
      %1169 = vmatpush1.msra.mxu0 0.0
      %1170 = vmatprep.subr.mxu0 0.0
      %1171 = vmatpush1.msra.mxu0 0.0
      %1172 = vmatprep.subr.mxu0 0.0
      %1173 = vmatpush1.msra.mxu0 0.0
      %1174 = vmatprep.subr.mxu0 0.0
      %1175 = vmatpush1.msra.mxu0 0.0
      %1176 = vmatprep.subr.mxu0 0.0
      %1177 = vmatpush1.msra.mxu0 0.0
      %1178 = vmatprep.subr.mxu0 0.0
      %1179 = vmatpush1.msra.mxu0 0.0
      %1180 = vmatprep.subr.mxu0 0.0
      %1181 = vmatpush1.msra.mxu0 0.0
      %1182 = vmatprep.subr.mxu0 0.0
      %1183 = vmatpush1.msra.mxu0 0.0
      %1184 = vmatprep.subr.mxu0 0.0
      %1185 = vmatpush1.msra.mxu0 0.0
      %1186 = vmatprep.subr.mxu0 0.0
      %1187 = vmatpush1.msra.mxu0 0.0
      %1188 = vmatprep.subr.mxu0 0.0
      %1189 = vmatpush1.msra.mxu0 0.0
      %1190 = vmatprep.subr.mxu0 0.0
      %1191 = vmatpush1.msra.mxu0 0.0
      %1192 = vmatprep.subr.mxu0 0.0
      %1193 = vmatpush1.msra.mxu0 0.0
      %1194 = vmatprep.subr.mxu0 0.0
      %1195 = vmatpush1.msra.mxu0 0.0
      %1196 = vmatprep.subr.mxu0 0.0
      %1197 = vmatpush1.msra.mxu0 0.0
      %1198 = vmatprep.subr.mxu0 0.0
      %1199 = vmatpush1.msra.mxu0 0.0
      %1200 = vmatprep.subr.mxu0 0.0
      %1201 = vmatpush1.msra.mxu0 0.0
      %1202 = vmatprep.subr.mxu0 0.0
      %1203 = vmatpush1.msra.mxu0 0.0
      %1204 = vmatprep.mubr.f32.mxu0 0.0
      %1205 = vmatmul.mubr.f32.gmra.mrb[0].mxu0 %v1138
      %v1206 = vpop.f32.mrb[0].mxu0
      %v1207 = vadd.f32 %v1135, %v1206
      %v1208 = vpop.f32.mrb[0].mxu0
      %1209 = vdwg.mxu0
      %1210 = vst.msk [vmem:[%s309] sm:$0xf] %vm313, %v1207
      %p1211 = scmp.lt.s32.totalorder %s22, 1
      %s1212 = scalar_select %p1211, %s22, 1
      %p1213 = scmp.lt.s32.totalorder %s23, 3
      %s1214 = scalar_select %p1213, %s23, 3
      %s1215 = smul.addr %s1212, 4
      %s1216 = sadd.s32 %s1214, %s1215
      %s1217 = smul.addr %s1216, 4
      %s1218 = scalar_lea.vmem %s7, %s1217
      // Predicated region
      $region49: #{_lambda_.4} parent=47 // pred_check
        %p1219 = pneg %p204
      $region50: #{_lambda_.4} parent=47 // pred_check_branch
        %1221 = sbr.rel (%p1219) target = $region52
      $region51: #{_lambda_.4} parent=47 // pred_region
        _
      $region52: #{_lambda_.4} parent=47 // pred_fallthru
        _
    $region48: #{_lambda_.4} parent=5 // pred_fallthru
      _
    %p1222 = scmp.le.s32.totalorder 2, %s13
    // Predicated region
    $region53: #{_lambda_.4} parent=5 // pred_check
      %p1223 = pneg %p1222
    $region54: #{_lambda_.4} parent=5 // pred_check_branch
      %1225 = sbr.rel (%p1223) target = $region56
    $region55: #{_lambda_.4} parent=5 // pred_region
      %s1226 = ssub.s32 %s13, 2
      // Predicated region
      $region57: #{_lambda_.4} parent=55 // pred_check
        %p1227 = pneg %p210
      $region58: #{_lambda_.4} parent=55 // pred_check_branch
        %1229 = sbr.rel (%p1227) target = $region60
      $region59: #{_lambda_.4} parent=55 // pred_region
        %p1230 = scmp.lt.s32.totalorder %s24, 1
        %s1231 = scalar_select %p1230, %s24, 1
        %p1232 = scmp.lt.s32.totalorder %s25, 3
        %s1233 = scalar_select %p1232, %s25, 3
        %s1234 = smul.addr %s1231, 4
        %s1235 = sadd.s32 %s1233, %s1234
        %s1236 = smul.addr %s1235, 4
        %s1237 = scalar_lea.vmem %s7, %s1236
      $region60: #{_lambda_.4} parent=55 // pred_fallthru
        _
    $region56: #{_lambda_.4} parent=5 // pred_fallthru
      _
  $region6: #{_lambda_.4} parent=0 // loop_footer
    %s17 = sadd.s32 1, %s13
  $region7: #{_lambda_.4} parent=0 // loop_footer_branch
    %12 = sbr.rel target = $region3
  $region8: #{_lambda_.4} parent=0 // loop_exit
    _

// kernel: _lambda_.6
$region0: #{_lambda_.6}
  #allocation0 [shape = 'u32[]', space=smem, size = 0x4, offset = 0x4, fixed_abs, tag = 'smem constant byte address 0x4 - core index']
  #allocation1 [shape = 'u32[144,128]{1,0:T(1,128)}', space=vmem, size = 0x12000, scoped, tag = 'internal scratch']
  #allocation2 [shape = 'f32[7,32]{1,0:T(8,128)}', space=vmem, size = 0x1000, scoped, tag = 'scratch operand']
  %s0 = inlined_call_operand.vmem [shape: f32[2,2,7,32], index: 0, kind: input, shape index: {}]
  %s1 = inlined_call_operand.vmem [shape: f32[1,32], index: 1, kind: input, shape index: {}]
  %s2 = inlined_call_operand.vmem [shape: f32[1,32], index: 2, kind: input, shape index: {}]
  %s3 = inlined_call_operand.vmem [shape: f32[32,96], index: 3, kind: input, shape index: {}]
  %s4 = inlined_call_operand.vmem [shape: f32[1,96], index: 4, kind: input, shape index: {}]
  %s5 = inlined_call_operand.vmem [shape: f32[32,32], index: 5, kind: input, shape index: {}]
  %s6 = inlined_call_operand.vmem [shape: f32[1,32], index: 6, kind: input, shape index: {}]
  %s7 = inlined_call_operand.vmem [shape: f32[2,2,7,32], index: 7, kind: output, shape index: {}]
  %s8 = sld [smem:[#allocation0]]
  $region61: #{_lambda_.6} parent=0
    _
  %s10 = ssub.s32 1, %s8
  %s11 = scalar_select 0, %s10, %s8
  loop: start=0, step=1, limit=6
  $region2: #{_lambda_.6} parent=0 // loop_pre_header
    _
  $region3: #{_lambda_.6} parent=0 // loop_header
    %s13 = sphi 0, %s17
    %p14 = scmp.ge.s32.totalorder %s13, 6
    %s20 = sphi 0, %s32
    %s21 = sphi 0, %s28
    %s22 = sphi 0, %s20
    %s23 = sphi 0, %s21
    %s24 = sphi 0, %s22
    %s25 = sphi 0, %s23
    %s37 = sphi 0, %s39
    %s40 = sphi 0, %s37
    %s41 = sphi 0, %s40
    %s57 = sphi 0, %s41
    %s61 = sphi 0, %s61
    %s63 = sphi 0, %s61
    %s64 = sphi 0, %s63
    %s78 = sphi 0, %s64
    %s82 = sphi 0, %s82
    %s84 = sphi 0, %s82
    %s85 = sphi 0, %s84
    %s99 = sphi 0, %s85
    %s103 = sphi 0, %s103
    %s105 = sphi 0, %s103
    %s106 = sphi 0, %s105
    %s120 = sphi 0, %s106
    %s124 = sphi 0, %s124
    %s126 = sphi 0, %s124
    %s127 = sphi 0, %s126
    %s141 = sphi 0, %s127
    %s145 = sphi 0, %s145
    %s147 = sphi 0, %s145
    %s148 = sphi 0, %s147
    %s162 = sphi 0, %s148
    %s166 = sphi 0, %s166
    %s168 = sphi 0, %s166
    %s169 = sphi 0, %s168
    %s183 = sphi 0, %s169
    %s191 = sphi 0, %s193
    %s194 = sphi 0, %s191
    %s195 = sphi 0, %s194
    %s211 = sphi 0, %s195
  $region4: #{_lambda_.6} parent=0 // loop_header_branch
    %16 = sbr.rel (%p14) target = $region8
  $region5: #{_lambda_.6} parent=0 // loop_body
    %s18 = ssub.s32 %s13, 1
    %s19 = ssub.s32 %s13, 2
    %s26 = sadd.s32 1, %s21
    %p27 = scmp.ge.s32.totalorder %s26, 2
    %s28 = scalar_select %p27, 0, %s26
    %s29 = sadd.s32 1, %s20
    %s30 = scalar_select %p27, %s29, %s20
    %p31 = scmp.ge.s32.totalorder %s30, 2
    %s32 = scalar_select %p31, 0, %s30
    %s33 = ssub.s32 %s20, %s32
    %s34 = ssub.s32 %s21, %s28
    %s35 = sor.u32 %s33, %s34
    %p36 = scmp.eq.s32.totalorder %s35, 0
    %s38 = sadd.s32 %s37, 1
    %s39 = scalar_select %p36, %s37, %s38
    %p42 = pneg %p36
    %p43 = scmp.eq.s32.totalorder %s13, 3
    %p44 = por %p42, %p43
    %p45 = scmp.ne.s32.totalorder %s37, %s40
    %p46 = scmp.eq.s32.totalorder %s13, 0
    %p47 = por %p45, %p46
    %p48 = scmp.ne.s32.totalorder %s37, %s40
    %p49 = scmp.eq.s32.totalorder %s18, 3
    %p50 = por %p48, %p49
    %p51 = scmp.ne.s32.totalorder %s40, %s41
    %p52 = scmp.eq.s32.totalorder %s18, 0
    %p53 = por %p51, %p52
    %p54 = scmp.ne.s32.totalorder %s40, %s41
    %p55 = scmp.eq.s32.totalorder %s19, 3
    %p56 = por %p54, %p55
    %p58 = scmp.ne.s32.totalorder %s41, %s57
    %p59 = scmp.eq.s32.totalorder %s19, 0
    %p60 = por %p58, %p59
    %s62 = sadd.s32 %s61, 1
    %p65 = scmp.eq.s32.totalorder %s13, 3
    %p66 = scmp.ne.s32.totalorder %s61, %s63
    %p67 = scmp.eq.s32.totalorder %s13, 0
    %p68 = por %p66, %p67
    %p69 = scmp.ne.s32.totalorder %s61, %s63
    %p70 = scmp.eq.s32.totalorder %s18, 3
    %p71 = por %p69, %p70
    %p72 = scmp.ne.s32.totalorder %s63, %s64
    %p73 = scmp.eq.s32.totalorder %s18, 0
    %p74 = por %p72, %p73
    %p75 = scmp.ne.s32.totalorder %s63, %s64
    %p76 = scmp.eq.s32.totalorder %s19, 3
    %p77 = por %p75, %p76
    %p79 = scmp.ne.s32.totalorder %s64, %s78
    %p80 = scmp.eq.s32.totalorder %s19, 0
    %p81 = por %p79, %p80
    %s83 = sadd.s32 %s82, 1
    %p86 = scmp.eq.s32.totalorder %s13, 3
    %p87 = scmp.ne.s32.totalorder %s82, %s84
    %p88 = scmp.eq.s32.totalorder %s13, 0
    %p89 = por %p87, %p88
    %p90 = scmp.ne.s32.totalorder %s82, %s84
    %p91 = scmp.eq.s32.totalorder %s18, 3
    %p92 = por %p90, %p91
    %p93 = scmp.ne.s32.totalorder %s84, %s85
    %p94 = scmp.eq.s32.totalorder %s18, 0
    %p95 = por %p93, %p94
    %p96 = scmp.ne.s32.totalorder %s84, %s85
    %p97 = scmp.eq.s32.totalorder %s19, 3
    %p98 = por %p96, %p97
    %p100 = scmp.ne.s32.totalorder %s85, %s99
    %p101 = scmp.eq.s32.totalorder %s19, 0
    %p102 = por %p100, %p101
    %s104 = sadd.s32 %s103, 1
    %p107 = scmp.eq.s32.totalorder %s13, 3
    %p108 = scmp.ne.s32.totalorder %s103, %s105
    %p109 = scmp.eq.s32.totalorder %s13, 0
    %p110 = por %p108, %p109
    %p111 = scmp.ne.s32.totalorder %s103, %s105
    %p112 = scmp.eq.s32.totalorder %s18, 3
    %p113 = por %p111, %p112
    %p114 = scmp.ne.s32.totalorder %s105, %s106
    %p115 = scmp.eq.s32.totalorder %s18, 0
    %p116 = por %p114, %p115
    %p117 = scmp.ne.s32.totalorder %s105, %s106
    %p118 = scmp.eq.s32.totalorder %s19, 3
    %p119 = por %p117, %p118
    %p121 = scmp.ne.s32.totalorder %s106, %s120
    %p122 = scmp.eq.s32.totalorder %s19, 0
    %p123 = por %p121, %p122
    %s125 = sadd.s32 %s124, 1
    %p128 = scmp.eq.s32.totalorder %s13, 3
    %p129 = scmp.ne.s32.totalorder %s124, %s126
    %p130 = scmp.eq.s32.totalorder %s13, 0
    %p131 = por %p129, %p130
    %p132 = scmp.ne.s32.totalorder %s124, %s126
    %p133 = scmp.eq.s32.totalorder %s18, 3
    %p134 = por %p132, %p133
    %p135 = scmp.ne.s32.totalorder %s126, %s127
    %p136 = scmp.eq.s32.totalorder %s18, 0
    %p137 = por %p135, %p136
    %p138 = scmp.ne.s32.totalorder %s126, %s127
    %p139 = scmp.eq.s32.totalorder %s19, 3
    %p140 = por %p138, %p139
    %p142 = scmp.ne.s32.totalorder %s127, %s141
    %p143 = scmp.eq.s32.totalorder %s19, 0
    %p144 = por %p142, %p143
    %s146 = sadd.s32 %s145, 1
    %p149 = scmp.eq.s32.totalorder %s13, 3
    %p150 = scmp.ne.s32.totalorder %s145, %s147
    %p151 = scmp.eq.s32.totalorder %s13, 0
    %p152 = por %p150, %p151
    %p153 = scmp.ne.s32.totalorder %s145, %s147
    %p154 = scmp.eq.s32.totalorder %s18, 3
    %p155 = por %p153, %p154
    %p156 = scmp.ne.s32.totalorder %s147, %s148
    %p157 = scmp.eq.s32.totalorder %s18, 0
    %p158 = por %p156, %p157
    %p159 = scmp.ne.s32.totalorder %s147, %s148
    %p160 = scmp.eq.s32.totalorder %s19, 3
    %p161 = por %p159, %p160
    %p163 = scmp.ne.s32.totalorder %s148, %s162
    %p164 = scmp.eq.s32.totalorder %s19, 0
    %p165 = por %p163, %p164
    %s167 = sadd.s32 %s166, 1
    %p170 = scmp.eq.s32.totalorder %s13, 3
    %p171 = scmp.ne.s32.totalorder %s166, %s168
    %p172 = scmp.eq.s32.totalorder %s13, 0
    %p173 = por %p171, %p172
    %p174 = scmp.ne.s32.totalorder %s166, %s168
    %p175 = scmp.eq.s32.totalorder %s18, 3
    %p176 = por %p174, %p175
    %p177 = scmp.ne.s32.totalorder %s168, %s169
    %p178 = scmp.eq.s32.totalorder %s18, 0
    %p179 = por %p177, %p178
    %p180 = scmp.ne.s32.totalorder %s168, %s169
    %p181 = scmp.eq.s32.totalorder %s19, 3
    %p182 = por %p180, %p181
    %p184 = scmp.ne.s32.totalorder %s169, %s183
    %p185 = scmp.eq.s32.totalorder %s19, 0
    %p186 = por %p184, %p185
    %s187 = ssub.s32 %s20, %s32
    %s188 = ssub.s32 %s21, %s28
    %s189 = sor.u32 %s187, %s188
    %p190 = scmp.eq.s32.totalorder %s189, 0
    %s192 = sadd.s32 %s191, 1
    %s193 = scalar_select %p190, %s191, %s192
    %p196 = pneg %p190
    %p197 = scmp.eq.s32.totalorder %s13, 3
    %p198 = por %p196, %p197
    %p199 = scmp.ne.s32.totalorder %s191, %s194
    %p200 = scmp.eq.s32.totalorder %s13, 0
    %p201 = por %p199, %p200
    %p202 = scmp.ne.s32.totalorder %s191, %s194
    %p203 = scmp.eq.s32.totalorder %s18, 3
    %p204 = por %p202, %p203
    %p205 = scmp.ne.s32.totalorder %s194, %s195
    %p206 = scmp.eq.s32.totalorder %s18, 0
    %p207 = por %p205, %p206
    %p208 = scmp.ne.s32.totalorder %s194, %s195
    %p209 = scmp.eq.s32.totalorder %s19, 3
    %p210 = por %p208, %p209
    %p212 = scmp.ne.s32.totalorder %s195, %s211
    %p213 = scmp.eq.s32.totalorder %s19, 0
    %p214 = por %p212, %p213
    %p215 = scmp.le.s32.totalorder 1, %s13
    %p216 = scmp.lt.s32.totalorder %s13, 5
    %p217 = pnand %p215, %p216
    %p218 = pneg %p217
    // Predicated region
    $region9: #{_lambda_.6} parent=5 // pred_check
      _
    $region10: #{_lambda_.6} parent=5 // pred_check_branch
      %220 = sbr.rel (%p217) target = $region12
    $region11: #{_lambda_.6} parent=5 // pred_region
      %s221 = ssub.s32 %s13, 1
      // Predicated region
      $region13: #{_lambda_.6} parent=11 // pred_check
        %p222 = pneg %p74
      $region14: #{_lambda_.6} parent=11 // pred_check_branch
        %224 = sbr.rel (%p222) target = $region16
      $region15: #{_lambda_.6} parent=11 // pred_region
        _
      $region16: #{_lambda_.6} parent=11 // pred_fallthru
        _
      // Predicated region
      $region17: #{_lambda_.6} parent=11 // pred_check
        %p225 = pneg %p95
      $region18: #{_lambda_.6} parent=11 // pred_check_branch
        %227 = sbr.rel (%p225) target = $region20
      $region19: #{_lambda_.6} parent=11 // pred_region
        _
      $region20: #{_lambda_.6} parent=11 // pred_fallthru
        _
      // Predicated region
      $region21: #{_lambda_.6} parent=11 // pred_check
        %p228 = pneg %p116
      $region22: #{_lambda_.6} parent=11 // pred_check_branch
        %230 = sbr.rel (%p228) target = $region24
      $region23: #{_lambda_.6} parent=11 // pred_region
        _
      $region24: #{_lambda_.6} parent=11 // pred_fallthru
        _
      // Predicated region
      $region25: #{_lambda_.6} parent=11 // pred_check
        %p231 = pneg %p137
      $region26: #{_lambda_.6} parent=11 // pred_check_branch
        %233 = sbr.rel (%p231) target = $region28
      $region27: #{_lambda_.6} parent=11 // pred_region
        _
      $region28: #{_lambda_.6} parent=11 // pred_fallthru
        _
      // Predicated region
      $region29: #{_lambda_.6} parent=11 // pred_check
        %p234 = pneg %p158
      $region30: #{_lambda_.6} parent=11 // pred_check_branch
        %236 = sbr.rel (%p234) target = $region32
      $region31: #{_lambda_.6} parent=11 // pred_region
        _
      $region32: #{_lambda_.6} parent=11 // pred_fallthru
        _
      // Predicated region
      $region33: #{_lambda_.6} parent=11 // pred_check
        %p237 = pneg %p179
      $region34: #{_lambda_.6} parent=11 // pred_check_branch
        %239 = sbr.rel (%p237) target = $region36
      $region35: #{_lambda_.6} parent=11 // pred_region
        _
      $region36: #{_lambda_.6} parent=11 // pred_fallthru
        _
    $region12: #{_lambda_.6} parent=5 // pred_fallthru
      _
    %p240 = scmp.lt.s32.totalorder %s13, 4
    // Predicated region
    $region37: #{_lambda_.6} parent=5 // pred_check
      %p241 = pneg %p240
    $region38: #{_lambda_.6} parent=5 // pred_check_branch
      %243 = sbr.rel (%p241) target = $region40
    $region39: #{_lambda_.6} parent=5 // pred_region
      // Predicated region
      $region41: #{_lambda_.6} parent=39 // pred_check
        %p244 = pneg %p47
      $region42: #{_lambda_.6} parent=39 // pred_check_branch
        %246 = sbr.rel (%p244) target = $region44
      $region43: #{_lambda_.6} parent=39 // pred_region
        %p247 = scmp.lt.s32.totalorder %s20, 1
        %s248 = scalar_select %p247, %s20, 1
        %p249 = scmp.lt.s32.totalorder %s21, 1
        %s250 = scalar_select %p249, %s21, 1
        %s251 = smul.addr %s248, 2
        %s252 = sadd.s32 %s250, %s251
        %s253 = smul.addr %s252, 8
        %s254 = scalar_lea.vmem %s0, %s253
      $region44: #{_lambda_.6} parent=39 // pred_fallthru
        _
    $region40: #{_lambda_.6} parent=5 // pred_fallthru
      _
    %p255 = scmp.le.s32.totalorder 1, %s13
    %p256 = scmp.lt.s32.totalorder %s13, 5
    %p257 = pnand %p255, %p256
    %p258 = pneg %p257
    // Predicated region
    $region45: #{_lambda_.6} parent=5 // pred_check
      _
    $region46: #{_lambda_.6} parent=5 // pred_check_branch
      %260 = sbr.rel (%p257) target = $region48
    $region47: #{_lambda_.6} parent=5 // pred_region
      %s261 = ssub.s32 %s13, 1
      %p262 = scmp.lt.s32.totalorder %s22, 1
      %s263 = scalar_select %p262, %s22, 1
      %p264 = scmp.lt.s32.totalorder %s23, 1
      %s265 = scalar_select %p264, %s23, 1
      %s266 = smul.addr %s263, 2
      %s267 = sadd.s32 %s265, %s266
      %s268 = smul.addr %s267, 8
      %s269 = scalar_lea.vmem %s0, %s268
      %p270 = pneg %p53
      %p271 = pneg %p50
      %p272 = pneg %p74
      %p273 = pneg %p71
      %p274 = pneg %p95
      %p275 = pneg %p92
      %p276 = pneg %p116
      %p277 = pneg %p113
      %p278 = pneg %p137
      %p279 = pneg %p134
      %p280 = pneg %p158
      %p281 = pneg %p155
      %p282 = pneg %p179
      %p283 = pneg %p176
      %p284 = pneg %p207
      %p285 = pneg %p204
      %p286 = scmp.lt.s32.totalorder %s22, 1
      %s287 = scalar_select %p286, %s22, 1
      %p288 = scmp.lt.s32.totalorder %s23, 1
      %s289 = scalar_select %p288, %s23, 1
      %s290 = smul.addr %s287, 2
      %s291 = sadd.s32 %s289, %s290
      %s292 = smul.addr %s291, 8
      %s293 = scalar_lea.vmem %s7, %s292
      %p294 = scmp.lt.s32.totalorder %s22, 1
      %s295 = scalar_select %p294, %s22, 1
      %p296 = scmp.lt.s32.totalorder %s23, 1
      %s297 = scalar_select %p296, %s23, 1
      %s298 = smul.addr %s295, 2
      %s299 = sadd.s32 %s297, %s298
      %s300 = smul.addr %s299, 8
      %s301 = scalar_lea.vmem %s0, %s300
      %p302 = scmp.lt.s32.totalorder %s22, 1
      %s303 = scalar_select %p302, %s22, 1
      %p304 = scmp.lt.s32.totalorder %s23, 1
      %s305 = scalar_select %p304, %s23, 1
      %s306 = smul.addr %s303, 2
      %s307 = sadd.s32 %s305, %s306
      %s308 = smul.addr %s307, 8
      %s309 = scalar_lea.vmem %s7, %s308
      %v310 = vld [vmem:[%s301] sm:$0x7f]
      %v311 = vld [vmem:[%s1] sm:$0x1]
      %v312 = vld [vmem:[%s2] sm:$0x1]
      %vm313 = vcmask 260096
      %v314 = vsel %vm313, %v310, 0.0
      %315 = vadd.xlane.f32.xlu0 %v314
      %v316 = vpop.xlane.xlu0 %315
      %v317 = vrcp.pop 32.0
      %v318 = vmul.f32 %v316, %v317
      %v319 = vsub.f32 %v310, %v318
      %v320 = vmul.f32 %v319, %v319
      %v321 = vsel %vm313, %v320, 0.0
      %322 = vadd.xlane.f32.xlu0 %v321
      %v323 = vpop.xlane.xlu0 %322
      %v324 = vmul.f32 %v323, %v317
      %v325 = vadd.f32 %v324, 1e-06
      %v326 = vrsqrt.pop %v325
      %v327 = vmul.f32 %v319, %v326
      %v329 = vlaneseq
      %v330 = vshrl.u32 %v329, 7
      %v331 = vsub.s32 0, %v330
      %v332 = vrot.slane %v311, %v331
      %v334 = vmul.f32 %v327, %v332
      %v336 = vlaneseq
      %v337 = vshrl.u32 %v336, 7
      %v338 = vsub.s32 0, %v337
      %v339 = vrot.slane %v312, %v338
      %v341 = vadd.f32 %v334, %v339
      %v342 = vlaneseq
      %v343 = vshrl.u32 %v342, 7
      %s344 = smul.u32 %s23, 7
      %v345 = vstv %s344
      %v346 = vadd.s32 %v345, %v343
      %vm347 = vcmp.lt.s32.totalorder %v346, 14
      %v348 = vsel %vm347, %v341, 0.0
      %v349 = vld [vmem:[%s3] sm:$0xff]
      %v350 = vld [vmem:[%s3 + $0x8] sm:$0xff]
      %v351 = vld [vmem:[%s3 + $0x10] sm:$0xff]
      %v352 = vld [vmem:[%s3 + $0x18] sm:$0xff]
      %v353 = vld [vmem:[%s4] sm:$0x1]
      %v355 = vlaneseq
      %v356 = vshrl.u32 %v355, 7
      %v357 = vsub.s32 0, %v356
      %v358 = vrot.slane %v353, %v357
      %vm360 = vcmask 261120
      %v362 = vsel %vm360, %v348, 0
      %364 = vmatprep.subr.mxu0 0.0
      %365 = vmatpush1.msra.mxu0 %v349
      %366 = vmatprep.subr.mxu0 0.0
      %367 = vmatpush1.msra.mxu0 %v350
      %368 = vmatprep.subr.mxu0 0.0
      %369 = vmatpush1.msra.mxu0 %v351
      %370 = vmatprep.subr.mxu0 0.0
      %371 = vmatpush1.msra.mxu0 %v352
      %372 = vmatprep.subr.mxu0 0.0
      %373 = vmatpush1.msra.mxu0 0.0
      %374 = vmatprep.subr.mxu0 0.0
      %375 = vmatpush1.msra.mxu0 0.0
      %376 = vmatprep.subr.mxu0 0.0
      %377 = vmatpush1.msra.mxu0 0.0
      %378 = vmatprep.subr.mxu0 0.0
      %379 = vmatpush1.msra.mxu0 0.0
      %380 = vmatprep.subr.mxu0 0.0
      %381 = vmatpush1.msra.mxu0 0.0
      %382 = vmatprep.subr.mxu0 0.0
      %383 = vmatpush1.msra.mxu0 0.0
      %384 = vmatprep.subr.mxu0 0.0
      %385 = vmatpush1.msra.mxu0 0.0
      %386 = vmatprep.subr.mxu0 0.0
      %387 = vmatpush1.msra.mxu0 0.0
      %388 = vmatprep.subr.mxu0 0.0
      %389 = vmatpush1.msra.mxu0 0.0
      %390 = vmatprep.subr.mxu0 0.0
      %391 = vmatpush1.msra.mxu0 0.0
      %392 = vmatprep.subr.mxu0 0.0
      %393 = vmatpush1.msra.mxu0 0.0
      %394 = vmatprep.subr.mxu0 0.0
      %395 = vmatpush1.msra.mxu0 0.0
      %396 = vmatprep.subr.mxu0 0.0
      %397 = vmatpush1.msra.mxu0 0.0
      %398 = vmatprep.subr.mxu0 0.0
      %399 = vmatpush1.msra.mxu0 0.0
      %400 = vmatprep.subr.mxu0 0.0
      %401 = vmatpush1.msra.mxu0 0.0
      %402 = vmatprep.subr.mxu0 0.0
      %403 = vmatpush1.msra.mxu0 0.0
      %404 = vmatprep.subr.mxu0 0.0
      %405 = vmatpush1.msra.mxu0 0.0
      %406 = vmatprep.subr.mxu0 0.0
      %407 = vmatpush1.msra.mxu0 0.0
      %408 = vmatprep.subr.mxu0 0.0
      %409 = vmatpush1.msra.mxu0 0.0
      %410 = vmatprep.subr.mxu0 0.0
      %411 = vmatpush1.msra.mxu0 0.0
      %412 = vmatprep.subr.mxu0 0.0
      %413 = vmatpush1.msra.mxu0 0.0
      %414 = vmatprep.subr.mxu0 0.0
      %415 = vmatpush1.msra.mxu0 0.0
      %416 = vmatprep.subr.mxu0 0.0
      %417 = vmatpush1.msra.mxu0 0.0
      %418 = vmatprep.subr.mxu0 0.0
      %419 = vmatpush1.msra.mxu0 0.0
      %420 = vmatprep.subr.mxu0 0.0
      %421 = vmatpush1.msra.mxu0 0.0
      %422 = vmatprep.subr.mxu0 0.0
      %423 = vmatpush1.msra.mxu0 0.0
      %424 = vmatprep.subr.mxu0 0.0
      %425 = vmatpush1.msra.mxu0 0.0
      %426 = vmatprep.subr.mxu0 0.0
      %427 = vmatpush1.msra.mxu0 0.0
      %428 = vmatprep.mubr.f32.mxu0 0.0
      %429 = vmatmul.mubr.f32.gmra.mrb[0].mxu0 %v362
      %v430 = vpop.f32.mrb[0].mxu0
      %v431 = vadd.f32 %v358, %v430
      %v432 = vpop.f32.mrb[0].mxu0
      %433 = vdwg.mxu0
      %435 = vrot.lane.b32.xlu0 %v431, 96
      %v436 = vpop.permute.xlu0 %435
      %vm437 = vcmask 64512
      %v438 = vsel %vm437, %v431, 0
      %v440 = vsel %vm437, %v436, 0
      %442 = vmatprep.subr.mxu0 0.0
      %443 = vmatpush1.xpose.msra.mxu0 %v440
      %444 = vmatprep.subr.mxu0 0.0
      %445 = vmatpush1.xpose.msra.mxu0 0.0
      %446 = vmatprep.subr.mxu0 0.0
      %447 = vmatpush1.xpose.msra.mxu0 0.0
      %448 = vmatprep.subr.mxu0 0.0
      %449 = vmatpush1.xpose.msra.mxu0 0.0
      %450 = vmatprep.subr.mxu0 0.0
      %451 = vmatpush1.xpose.msra.mxu0 0.0
      %452 = vmatprep.subr.mxu0 0.0
      %453 = vmatpush1.xpose.msra.mxu0 0.0
      %454 = vmatprep.subr.mxu0 0.0
      %455 = vmatpush1.xpose.msra.mxu0 0.0
      %456 = vmatprep.subr.mxu0 0.0
      %457 = vmatpush1.xpose.msra.mxu0 0.0
      %458 = vmatprep.subr.mxu0 0.0
      %459 = vmatpush1.xpose.msra.mxu0 0.0
      %460 = vmatprep.subr.mxu0 0.0
      %461 = vmatpush1.xpose.msra.mxu0 0.0
      %462 = vmatprep.subr.mxu0 0.0
      %463 = vmatpush1.xpose.msra.mxu0 0.0
      %464 = vmatprep.subr.mxu0 0.0
      %465 = vmatpush1.xpose.msra.mxu0 0.0
      %466 = vmatprep.subr.mxu0 0.0
      %467 = vmatpush1.xpose.msra.mxu0 0.0
      %468 = vmatprep.subr.mxu0 0.0
      %469 = vmatpush1.xpose.msra.mxu0 0.0
      %470 = vmatprep.subr.mxu0 0.0
      %471 = vmatpush1.xpose.msra.mxu0 0.0
      %472 = vmatprep.subr.mxu0 0.0
      %473 = vmatpush1.xpose.msra.mxu0 0.0
      %474 = vmatprep.subr.mxu0 0.0
      %475 = vmatpush1.xpose.msra.mxu0 0.0
      %476 = vmatprep.subr.mxu0 0.0
      %477 = vmatpush1.xpose.msra.mxu0 0.0
      %478 = vmatprep.subr.mxu0 0.0
      %479 = vmatpush1.xpose.msra.mxu0 0.0
      %480 = vmatprep.subr.mxu0 0.0
      %481 = vmatpush1.xpose.msra.mxu0 0.0
      %482 = vmatprep.subr.mxu0 0.0
      %483 = vmatpush1.xpose.msra.mxu0 0.0
      %484 = vmatprep.subr.mxu0 0.0
      %485 = vmatpush1.xpose.msra.mxu0 0.0
      %486 = vmatprep.subr.mxu0 0.0
      %487 = vmatpush1.xpose.msra.mxu0 0.0
      %488 = vmatprep.subr.mxu0 0.0
      %489 = vmatpush1.xpose.msra.mxu0 0.0
      %490 = vmatprep.subr.mxu0 0.0
      %491 = vmatpush1.xpose.msra.mxu0 0.0
      %492 = vmatprep.subr.mxu0 0.0
      %493 = vmatpush1.xpose.msra.mxu0 0.0
      %494 = vmatprep.subr.mxu0 0.0
      %495 = vmatpush1.xpose.msra.mxu0 0.0
      %496 = vmatprep.subr.mxu0 0.0
      %497 = vmatpush1.xpose.msra.mxu0 0.0
      %498 = vmatprep.subr.mxu0 0.0
      %499 = vmatpush1.xpose.msra.mxu0 0.0
      %500 = vmatprep.subr.mxu0 0.0
      %501 = vmatpush1.xpose.msra.mxu0 0.0
      %502 = vmatprep.subr.mxu0 0.0
      %503 = vmatpush1.xpose.msra.mxu0 0.0
      %504 = vmatprep.subr.mxu0 0.0
      %505 = vmatpush1.xpose.msra.mxu0 0.0
      %506 = vmatprep.mubr.f32.mxu0 0.0
      %507 = vmatmul.mubr.f32.gmra.mrb[0].mxu0 %v438
      %v508 = vpop.f32.mrb[0].mxu0
      %v509 = vadd.f32 0.0, %v508
      %v510 = vpop.f32.mrb[0].mxu0
      %511 = vdwg.mxu0
      %v512 = vmul.f32 %v509, 0.35355338
      %vm513 = vcmask 55296
      %v514 = vsel %vm513, %v512, -inf
      %515 = vmax.xlane.f32.xlu0 %v514
      %v516 = vpop.xlane.xlu0 %515
      %v517 = vsub.f32 %v512, %v516
      %v518 = vmul.f32 %v517, 1.442695
      %v519 = vpow.pop %v518
      %v520 = vsel %vm513, %v519, 0.0
      %521 = vadd.xlane.f32.xlu0 %v520
      %v522 = vpop.xlane.xlu0 %521
      %v523 = vrcp.pop %v522
      %v524 = vmul.f32 %v519, %v523
      %525 = vrot.lane.b32.xlu0 %v431, 64
      %v526 = vpop.permute.xlu0 %525
      %vm527 = vcmask 56320
      %v529 = vsel %vm527, %v524, 0
      %vm531 = vcmask 1046528
      %v532 = vsel %vm531, %v526, 0
      %534 = vmatprep.subr.mxu0 0.0
      %535 = vmatpush1.msra.mxu0 %v532
      %536 = vmatprep.subr.mxu0 0.0
      %537 = vmatpush1.msra.mxu0 0.0
      %538 = vmatprep.subr.mxu0 0.0
      %539 = vmatpush1.msra.mxu0 0.0
      %540 = vmatprep.subr.mxu0 0.0
      %541 = vmatpush1.msra.mxu0 0.0
      %542 = vmatprep.subr.mxu0 0.0
      %543 = vmatpush1.msra.mxu0 0.0
      %544 = vmatprep.subr.mxu0 0.0
      %545 = vmatpush1.msra.mxu0 0.0
      %546 = vmatprep.subr.mxu0 0.0
      %547 = vmatpush1.msra.mxu0 0.0
      %548 = vmatprep.subr.mxu0 0.0
      %549 = vmatpush1.msra.mxu0 0.0
      %550 = vmatprep.subr.mxu0 0.0
      %551 = vmatpush1.msra.mxu0 0.0
      %552 = vmatprep.subr.mxu0 0.0
      %553 = vmatpush1.msra.mxu0 0.0
      %554 = vmatprep.subr.mxu0 0.0
      %555 = vmatpush1.msra.mxu0 0.0
      %556 = vmatprep.subr.mxu0 0.0
      %557 = vmatpush1.msra.mxu0 0.0
      %558 = vmatprep.subr.mxu0 0.0
      %559 = vmatpush1.msra.mxu0 0.0
      %560 = vmatprep.subr.mxu0 0.0
      %561 = vmatpush1.msra.mxu0 0.0
      %562 = vmatprep.subr.mxu0 0.0
      %563 = vmatpush1.msra.mxu0 0.0
      %564 = vmatprep.subr.mxu0 0.0
      %565 = vmatpush1.msra.mxu0 0.0
      %566 = vmatprep.subr.mxu0 0.0
      %567 = vmatpush1.msra.mxu0 0.0
      %568 = vmatprep.subr.mxu0 0.0
      %569 = vmatpush1.msra.mxu0 0.0
      %570 = vmatprep.subr.mxu0 0.0
      %571 = vmatpush1.msra.mxu0 0.0
      %572 = vmatprep.subr.mxu0 0.0
      %573 = vmatpush1.msra.mxu0 0.0
      %574 = vmatprep.subr.mxu0 0.0
      %575 = vmatpush1.msra.mxu0 0.0
      %576 = vmatprep.subr.mxu0 0.0
      %577 = vmatpush1.msra.mxu0 0.0
      %578 = vmatprep.subr.mxu0 0.0
      %579 = vmatpush1.msra.mxu0 0.0
      %580 = vmatprep.subr.mxu0 0.0
      %581 = vmatpush1.msra.mxu0 0.0
      %582 = vmatprep.subr.mxu0 0.0
      %583 = vmatpush1.msra.mxu0 0.0
      %584 = vmatprep.subr.mxu0 0.0
      %585 = vmatpush1.msra.mxu0 0.0
      %586 = vmatprep.subr.mxu0 0.0
      %587 = vmatpush1.msra.mxu0 0.0
      %588 = vmatprep.subr.mxu0 0.0
      %589 = vmatpush1.msra.mxu0 0.0
      %590 = vmatprep.subr.mxu0 0.0
      %591 = vmatpush1.msra.mxu0 0.0
      %592 = vmatprep.subr.mxu0 0.0
      %593 = vmatpush1.msra.mxu0 0.0
      %594 = vmatprep.subr.mxu0 0.0
      %595 = vmatpush1.msra.mxu0 0.0
      %596 = vmatprep.subr.mxu0 0.0
      %597 = vmatpush1.msra.mxu0 0.0
      %598 = vmatprep.mubr.f32.mxu0 0.0
      %599 = vmatmul.mubr.f32.gmra.mrb[0].mxu0 %v529
      %v600 = vpop.f32.mrb[0].mxu0
      %v601 = vadd.f32 0.0, %v600
      %v602 = vpop.f32.mrb[0].mxu0
      %603 = vdwg.mxu0
      %vm604 = vcmask 63488
      %605 = vst.msk [vmem:[#allocation2] sm:$0x7f] %vm604, %v601
      %606 = vrot.lane.b32.xlu0 %v431, 120
      %v607 = vpop.permute.xlu0 %606
      %608 = vrot.lane.b32.xlu0 %v431, 88
      %v609 = vpop.permute.xlu0 %608
      %v610 = vsel %vm437, %v607, 0
      %v612 = vsel %vm437, %v609, 0
      %614 = vmatprep.subr.mxu0 0.0
      %615 = vmatpush1.xpose.msra.mxu0 %v612
      %616 = vmatprep.subr.mxu0 0.0
      %617 = vmatpush1.xpose.msra.mxu0 0.0
      %618 = vmatprep.subr.mxu0 0.0
      %619 = vmatpush1.xpose.msra.mxu0 0.0
      %620 = vmatprep.subr.mxu0 0.0
      %621 = vmatpush1.xpose.msra.mxu0 0.0
      %622 = vmatprep.subr.mxu0 0.0
      %623 = vmatpush1.xpose.msra.mxu0 0.0
      %624 = vmatprep.subr.mxu0 0.0
      %625 = vmatpush1.xpose.msra.mxu0 0.0
      %626 = vmatprep.subr.mxu0 0.0
      %627 = vmatpush1.xpose.msra.mxu0 0.0
      %628 = vmatprep.subr.mxu0 0.0
      %629 = vmatpush1.xpose.msra.mxu0 0.0
      %630 = vmatprep.subr.mxu0 0.0
      %631 = vmatpush1.xpose.msra.mxu0 0.0
      %632 = vmatprep.subr.mxu0 0.0
      %633 = vmatpush1.xpose.msra.mxu0 0.0
      %634 = vmatprep.subr.mxu0 0.0
      %635 = vmatpush1.xpose.msra.mxu0 0.0
      %636 = vmatprep.subr.mxu0 0.0
      %637 = vmatpush1.xpose.msra.mxu0 0.0
      %638 = vmatprep.subr.mxu0 0.0
      %639 = vmatpush1.xpose.msra.mxu0 0.0
      %640 = vmatprep.subr.mxu0 0.0
      %641 = vmatpush1.xpose.msra.mxu0 0.0
      %642 = vmatprep.subr.mxu0 0.0
      %643 = vmatpush1.xpose.msra.mxu0 0.0
      %644 = vmatprep.subr.mxu0 0.0
      %645 = vmatpush1.xpose.msra.mxu0 0.0
      %646 = vmatprep.subr.mxu0 0.0
      %647 = vmatpush1.xpose.msra.mxu0 0.0
      %648 = vmatprep.subr.mxu0 0.0
      %649 = vmatpush1.xpose.msra.mxu0 0.0
      %650 = vmatprep.subr.mxu0 0.0
      %651 = vmatpush1.xpose.msra.mxu0 0.0
      %652 = vmatprep.subr.mxu0 0.0
      %653 = vmatpush1.xpose.msra.mxu0 0.0
      %654 = vmatprep.subr.mxu0 0.0
      %655 = vmatpush1.xpose.msra.mxu0 0.0
      %656 = vmatprep.subr.mxu0 0.0
      %657 = vmatpush1.xpose.msra.mxu0 0.0
      %658 = vmatprep.subr.mxu0 0.0
      %659 = vmatpush1.xpose.msra.mxu0 0.0
      %660 = vmatprep.subr.mxu0 0.0
      %661 = vmatpush1.xpose.msra.mxu0 0.0
      %662 = vmatprep.subr.mxu0 0.0
      %663 = vmatpush1.xpose.msra.mxu0 0.0
      %664 = vmatprep.subr.mxu0 0.0
      %665 = vmatpush1.xpose.msra.mxu0 0.0
      %666 = vmatprep.subr.mxu0 0.0
      %667 = vmatpush1.xpose.msra.mxu0 0.0
      %668 = vmatprep.subr.mxu0 0.0
      %669 = vmatpush1.xpose.msra.mxu0 0.0
      %670 = vmatprep.subr.mxu0 0.0
      %671 = vmatpush1.xpose.msra.mxu0 0.0
      %672 = vmatprep.subr.mxu0 0.0
      %673 = vmatpush1.xpose.msra.mxu0 0.0
      %674 = vmatprep.subr.mxu0 0.0
      %675 = vmatpush1.xpose.msra.mxu0 0.0
      %676 = vmatprep.subr.mxu0 0.0
      %677 = vmatpush1.xpose.msra.mxu0 0.0
      %678 = vmatprep.mubr.f32.mxu0 0.0
      %679 = vmatmul.mubr.f32.gmra.mrb[0].mxu0 %v610
      %v680 = vpop.f32.mrb[0].mxu0
      %v681 = vadd.f32 0.0, %v680
      %v682 = vpop.f32.mrb[0].mxu0
      %683 = vdwg.mxu0
      %v684 = vmul.f32 %v681, 0.35355338
      %v685 = vsel %vm513, %v684, -inf
      %686 = vmax.xlane.f32.xlu0 %v685
      %v687 = vpop.xlane.xlu0 %686
      %v688 = vsub.f32 %v684, %v687
      %v689 = vmul.f32 %v688, 1.442695
      %v690 = vpow.pop %v689
      %v691 = vsel %vm513, %v690, 0.0
      %692 = vadd.xlane.f32.xlu0 %v691
      %v693 = vpop.xlane.xlu0 %692
      %v694 = vrcp.pop %v693
      %v695 = vmul.f32 %v690, %v694
      %696 = vrot.lane.b32.xlu0 %v431, 56
      %v697 = vpop.permute.xlu0 %696
      %v699 = vsel %vm527, %v695, 0
      %v701 = vsel %vm531, %v697, 0
      %703 = vmatprep.subr.mxu0 0.0
      %704 = vmatpush1.msra.mxu0 %v701
      %705 = vmatprep.subr.mxu0 0.0
      %706 = vmatpush1.msra.mxu0 0.0
      %707 = vmatprep.subr.mxu0 0.0
      %708 = vmatpush1.msra.mxu0 0.0
      %709 = vmatprep.subr.mxu0 0.0
      %710 = vmatpush1.msra.mxu0 0.0
      %711 = vmatprep.subr.mxu0 0.0
      %712 = vmatpush1.msra.mxu0 0.0
      %713 = vmatprep.subr.mxu0 0.0
      %714 = vmatpush1.msra.mxu0 0.0
      %715 = vmatprep.subr.mxu0 0.0
      %716 = vmatpush1.msra.mxu0 0.0
      %717 = vmatprep.subr.mxu0 0.0
      %718 = vmatpush1.msra.mxu0 0.0
      %719 = vmatprep.subr.mxu0 0.0
      %720 = vmatpush1.msra.mxu0 0.0
      %721 = vmatprep.subr.mxu0 0.0
      %722 = vmatpush1.msra.mxu0 0.0
      %723 = vmatprep.subr.mxu0 0.0
      %724 = vmatpush1.msra.mxu0 0.0
      %725 = vmatprep.subr.mxu0 0.0
      %726 = vmatpush1.msra.mxu0 0.0
      %727 = vmatprep.subr.mxu0 0.0
      %728 = vmatpush1.msra.mxu0 0.0
      %729 = vmatprep.subr.mxu0 0.0
      %730 = vmatpush1.msra.mxu0 0.0
      %731 = vmatprep.subr.mxu0 0.0
      %732 = vmatpush1.msra.mxu0 0.0
      %733 = vmatprep.subr.mxu0 0.0
      %734 = vmatpush1.msra.mxu0 0.0
      %735 = vmatprep.subr.mxu0 0.0
      %736 = vmatpush1.msra.mxu0 0.0
      %737 = vmatprep.subr.mxu0 0.0
      %738 = vmatpush1.msra.mxu0 0.0
      %739 = vmatprep.subr.mxu0 0.0
      %740 = vmatpush1.msra.mxu0 0.0
      %741 = vmatprep.subr.mxu0 0.0
      %742 = vmatpush1.msra.mxu0 0.0
      %743 = vmatprep.subr.mxu0 0.0
      %744 = vmatpush1.msra.mxu0 0.0
      %745 = vmatprep.subr.mxu0 0.0
      %746 = vmatpush1.msra.mxu0 0.0
      %747 = vmatprep.subr.mxu0 0.0
      %748 = vmatpush1.msra.mxu0 0.0
      %749 = vmatprep.subr.mxu0 0.0
      %750 = vmatpush1.msra.mxu0 0.0
      %751 = vmatprep.subr.mxu0 0.0
      %752 = vmatpush1.msra.mxu0 0.0
      %753 = vmatprep.subr.mxu0 0.0
      %754 = vmatpush1.msra.mxu0 0.0
      %755 = vmatprep.subr.mxu0 0.0
      %756 = vmatpush1.msra.mxu0 0.0
      %757 = vmatprep.subr.mxu0 0.0
      %758 = vmatpush1.msra.mxu0 0.0
      %759 = vmatprep.subr.mxu0 0.0
      %760 = vmatpush1.msra.mxu0 0.0
      %761 = vmatprep.subr.mxu0 0.0
      %762 = vmatpush1.msra.mxu0 0.0
      %763 = vmatprep.subr.mxu0 0.0
      %764 = vmatpush1.msra.mxu0 0.0
      %765 = vmatprep.subr.mxu0 0.0
      %766 = vmatpush1.msra.mxu0 0.0
      %767 = vmatprep.mubr.f32.mxu0 0.0
      %768 = vmatmul.mubr.f32.gmra.mrb[0].mxu0 %v699
      %v769 = vpop.f32.mrb[0].mxu0
      %v770 = vadd.f32 0.0, %v769
      %v771 = vpop.f32.mrb[0].mxu0
      %772 = vdwg.mxu0
      %774 = vrot.lane.b32.xlu0 %v770, 8
      %v775 = vpop.permute.xlu0 %774
      %vm777 = vcmask 129088
      %778 = vst.msk [vmem:[#allocation2] sm:$0x7f] %vm777, %v775
      %779 = vrot.lane.b32.xlu0 %v431, 112
      %v780 = vpop.permute.xlu0 %779
      %781 = vrot.lane.b32.xlu0 %v431, 80
      %v782 = vpop.permute.xlu0 %781
      %v783 = vsel %vm437, %v780, 0
      %v785 = vsel %vm437, %v782, 0
      %787 = vmatprep.subr.mxu0 0.0
      %788 = vmatpush1.xpose.msra.mxu0 %v785
      %789 = vmatprep.subr.mxu0 0.0
      %790 = vmatpush1.xpose.msra.mxu0 0.0
      %791 = vmatprep.subr.mxu0 0.0
      %792 = vmatpush1.xpose.msra.mxu0 0.0
      %793 = vmatprep.subr.mxu0 0.0
      %794 = vmatpush1.xpose.msra.mxu0 0.0
      %795 = vmatprep.subr.mxu0 0.0
      %796 = vmatpush1.xpose.msra.mxu0 0.0
      %797 = vmatprep.subr.mxu0 0.0
      %798 = vmatpush1.xpose.msra.mxu0 0.0
      %799 = vmatprep.subr.mxu0 0.0
      %800 = vmatpush1.xpose.msra.mxu0 0.0
      %801 = vmatprep.subr.mxu0 0.0
      %802 = vmatpush1.xpose.msra.mxu0 0.0
      %803 = vmatprep.subr.mxu0 0.0
      %804 = vmatpush1.xpose.msra.mxu0 0.0
      %805 = vmatprep.subr.mxu0 0.0
      %806 = vmatpush1.xpose.msra.mxu0 0.0
      %807 = vmatprep.subr.mxu0 0.0
      %808 = vmatpush1.xpose.msra.mxu0 0.0
      %809 = vmatprep.subr.mxu0 0.0
      %810 = vmatpush1.xpose.msra.mxu0 0.0
      %811 = vmatprep.subr.mxu0 0.0
      %812 = vmatpush1.xpose.msra.mxu0 0.0
      %813 = vmatprep.subr.mxu0 0.0
      %814 = vmatpush1.xpose.msra.mxu0 0.0
      %815 = vmatprep.subr.mxu0 0.0
      %816 = vmatpush1.xpose.msra.mxu0 0.0
      %817 = vmatprep.subr.mxu0 0.0
      %818 = vmatpush1.xpose.msra.mxu0 0.0
      %819 = vmatprep.subr.mxu0 0.0
      %820 = vmatpush1.xpose.msra.mxu0 0.0
      %821 = vmatprep.subr.mxu0 0.0
      %822 = vmatpush1.xpose.msra.mxu0 0.0
      %823 = vmatprep.subr.mxu0 0.0
      %824 = vmatpush1.xpose.msra.mxu0 0.0
      %825 = vmatprep.subr.mxu0 0.0
      %826 = vmatpush1.xpose.msra.mxu0 0.0
      %827 = vmatprep.subr.mxu0 0.0
      %828 = vmatpush1.xpose.msra.mxu0 0.0
      %829 = vmatprep.subr.mxu0 0.0
      %830 = vmatpush1.xpose.msra.mxu0 0.0
      %831 = vmatprep.subr.mxu0 0.0
      %832 = vmatpush1.xpose.msra.mxu0 0.0
      %833 = vmatprep.subr.mxu0 0.0
      %834 = vmatpush1.xpose.msra.mxu0 0.0
      %835 = vmatprep.subr.mxu0 0.0
      %836 = vmatpush1.xpose.msra.mxu0 0.0
      %837 = vmatprep.subr.mxu0 0.0
      %838 = vmatpush1.xpose.msra.mxu0 0.0
      %839 = vmatprep.subr.mxu0 0.0
      %840 = vmatpush1.xpose.msra.mxu0 0.0
      %841 = vmatprep.subr.mxu0 0.0
      %842 = vmatpush1.xpose.msra.mxu0 0.0
      %843 = vmatprep.subr.mxu0 0.0
      %844 = vmatpush1.xpose.msra.mxu0 0.0
      %845 = vmatprep.subr.mxu0 0.0
      %846 = vmatpush1.xpose.msra.mxu0 0.0
      %847 = vmatprep.subr.mxu0 0.0
      %848 = vmatpush1.xpose.msra.mxu0 0.0
      %849 = vmatprep.subr.mxu0 0.0
      %850 = vmatpush1.xpose.msra.mxu0 0.0
      %851 = vmatprep.mubr.f32.mxu0 0.0
      %852 = vmatmul.mubr.f32.gmra.mrb[0].mxu0 %v783
      %v853 = vpop.f32.mrb[0].mxu0
      %v854 = vadd.f32 0.0, %v853
      %v855 = vpop.f32.mrb[0].mxu0
      %856 = vdwg.mxu0
      %v857 = vmul.f32 %v854, 0.35355338
      %v858 = vsel %vm513, %v857, -inf
      %859 = vmax.xlane.f32.xlu0 %v858
      %v860 = vpop.xlane.xlu0 %859
      %v861 = vsub.f32 %v857, %v860
      %v862 = vmul.f32 %v861, 1.442695
      %v863 = vpow.pop %v862
      %v864 = vsel %vm513, %v863, 0.0
      %865 = vadd.xlane.f32.xlu0 %v864
      %v866 = vpop.xlane.xlu0 %865
      %v867 = vrcp.pop %v866
      %v868 = vmul.f32 %v863, %v867
      %869 = vrot.lane.b32.xlu0 %v431, 48
      %v870 = vpop.permute.xlu0 %869
      %v872 = vsel %vm527, %v868, 0
      %v874 = vsel %vm531, %v870, 0
      %876 = vmatprep.subr.mxu0 0.0
      %877 = vmatpush1.msra.mxu0 %v874
      %878 = vmatprep.subr.mxu0 0.0
      %879 = vmatpush1.msra.mxu0 0.0
      %880 = vmatprep.subr.mxu0 0.0
      %881 = vmatpush1.msra.mxu0 0.0
      %882 = vmatprep.subr.mxu0 0.0
      %883 = vmatpush1.msra.mxu0 0.0
      %884 = vmatprep.subr.mxu0 0.0
      %885 = vmatpush1.msra.mxu0 0.0
      %886 = vmatprep.subr.mxu0 0.0
      %887 = vmatpush1.msra.mxu0 0.0
      %888 = vmatprep.subr.mxu0 0.0
      %889 = vmatpush1.msra.mxu0 0.0
      %890 = vmatprep.subr.mxu0 0.0
      %891 = vmatpush1.msra.mxu0 0.0
      %892 = vmatprep.subr.mxu0 0.0
      %893 = vmatpush1.msra.mxu0 0.0
      %894 = vmatprep.subr.mxu0 0.0
      %895 = vmatpush1.msra.mxu0 0.0
      %896 = vmatprep.subr.mxu0 0.0
      %897 = vmatpush1.msra.mxu0 0.0
      %898 = vmatprep.subr.mxu0 0.0
      %899 = vmatpush1.msra.mxu0 0.0
      %900 = vmatprep.subr.mxu0 0.0
      %901 = vmatpush1.msra.mxu0 0.0
      %902 = vmatprep.subr.mxu0 0.0
      %903 = vmatpush1.msra.mxu0 0.0
      %904 = vmatprep.subr.mxu0 0.0
      %905 = vmatpush1.msra.mxu0 0.0
      %906 = vmatprep.subr.mxu0 0.0
      %907 = vmatpush1.msra.mxu0 0.0
      %908 = vmatprep.subr.mxu0 0.0
      %909 = vmatpush1.msra.mxu0 0.0
      %910 = vmatprep.subr.mxu0 0.0
      %911 = vmatpush1.msra.mxu0 0.0
      %912 = vmatprep.subr.mxu0 0.0
      %913 = vmatpush1.msra.mxu0 0.0
      %914 = vmatprep.subr.mxu0 0.0
      %915 = vmatpush1.msra.mxu0 0.0
      %916 = vmatprep.subr.mxu0 0.0
      %917 = vmatpush1.msra.mxu0 0.0
      %918 = vmatprep.subr.mxu0 0.0
      %919 = vmatpush1.msra.mxu0 0.0
      %920 = vmatprep.subr.mxu0 0.0
      %921 = vmatpush1.msra.mxu0 0.0
      %922 = vmatprep.subr.mxu0 0.0
      %923 = vmatpush1.msra.mxu0 0.0
      %924 = vmatprep.subr.mxu0 0.0
      %925 = vmatpush1.msra.mxu0 0.0
      %926 = vmatprep.subr.mxu0 0.0
      %927 = vmatpush1.msra.mxu0 0.0
      %928 = vmatprep.subr.mxu0 0.0
      %929 = vmatpush1.msra.mxu0 0.0
      %930 = vmatprep.subr.mxu0 0.0
      %931 = vmatpush1.msra.mxu0 0.0
      %932 = vmatprep.subr.mxu0 0.0
      %933 = vmatpush1.msra.mxu0 0.0
      %934 = vmatprep.subr.mxu0 0.0
      %935 = vmatpush1.msra.mxu0 0.0
      %936 = vmatprep.subr.mxu0 0.0
      %937 = vmatpush1.msra.mxu0 0.0
      %938 = vmatprep.subr.mxu0 0.0
      %939 = vmatpush1.msra.mxu0 0.0
      %940 = vmatprep.mubr.f32.mxu0 0.0
      %941 = vmatmul.mubr.f32.gmra.mrb[0].mxu0 %v872
      %v942 = vpop.f32.mrb[0].mxu0
      %v943 = vadd.f32 0.0, %v942
      %v944 = vpop.f32.mrb[0].mxu0
      %945 = vdwg.mxu0
      %947 = vrot.lane.b32.xlu0 %v943, 16
      %v948 = vpop.permute.xlu0 %947
      %vm950 = vcmask 194688
      %951 = vst.msk [vmem:[#allocation2] sm:$0x7f] %vm950, %v948
      %952 = vrot.lane.b32.xlu0 %v431, 104
      %v953 = vpop.permute.xlu0 %952
      %954 = vrot.lane.b32.xlu0 %v431, 72
      %v955 = vpop.permute.xlu0 %954
      %v956 = vsel %vm437, %v953, 0
      %v958 = vsel %vm437, %v955, 0
      %960 = vmatprep.subr.mxu0 0.0
      %961 = vmatpush1.xpose.msra.mxu0 %v958
      %962 = vmatprep.subr.mxu0 0.0
      %963 = vmatpush1.xpose.msra.mxu0 0.0
      %964 = vmatprep.subr.mxu0 0.0
      %965 = vmatpush1.xpose.msra.mxu0 0.0
      %966 = vmatprep.subr.mxu0 0.0
      %967 = vmatpush1.xpose.msra.mxu0 0.0
      %968 = vmatprep.subr.mxu0 0.0
      %969 = vmatpush1.xpose.msra.mxu0 0.0
      %970 = vmatprep.subr.mxu0 0.0
      %971 = vmatpush1.xpose.msra.mxu0 0.0
      %972 = vmatprep.subr.mxu0 0.0
      %973 = vmatpush1.xpose.msra.mxu0 0.0
      %974 = vmatprep.subr.mxu0 0.0
      %975 = vmatpush1.xpose.msra.mxu0 0.0
      %976 = vmatprep.subr.mxu0 0.0
      %977 = vmatpush1.xpose.msra.mxu0 0.0
      %978 = vmatprep.subr.mxu0 0.0
      %979 = vmatpush1.xpose.msra.mxu0 0.0
      %980 = vmatprep.subr.mxu0 0.0
      %981 = vmatpush1.xpose.msra.mxu0 0.0
      %982 = vmatprep.subr.mxu0 0.0
      %983 = vmatpush1.xpose.msra.mxu0 0.0
      %984 = vmatprep.subr.mxu0 0.0
      %985 = vmatpush1.xpose.msra.mxu0 0.0
      %986 = vmatprep.subr.mxu0 0.0
      %987 = vmatpush1.xpose.msra.mxu0 0.0
      %988 = vmatprep.subr.mxu0 0.0
      %989 = vmatpush1.xpose.msra.mxu0 0.0
      %990 = vmatprep.subr.mxu0 0.0
      %991 = vmatpush1.xpose.msra.mxu0 0.0
      %992 = vmatprep.subr.mxu0 0.0
      %993 = vmatpush1.xpose.msra.mxu0 0.0
      %994 = vmatprep.subr.mxu0 0.0
      %995 = vmatpush1.xpose.msra.mxu0 0.0
      %996 = vmatprep.subr.mxu0 0.0
      %997 = vmatpush1.xpose.msra.mxu0 0.0
      %998 = vmatprep.subr.mxu0 0.0
      %999 = vmatpush1.xpose.msra.mxu0 0.0
      %1000 = vmatprep.subr.mxu0 0.0
      %1001 = vmatpush1.xpose.msra.mxu0 0.0
      %1002 = vmatprep.subr.mxu0 0.0
      %1003 = vmatpush1.xpose.msra.mxu0 0.0
      %1004 = vmatprep.subr.mxu0 0.0
      %1005 = vmatpush1.xpose.msra.mxu0 0.0
      %1006 = vmatprep.subr.mxu0 0.0
      %1007 = vmatpush1.xpose.msra.mxu0 0.0
      %1008 = vmatprep.subr.mxu0 0.0
      %1009 = vmatpush1.xpose.msra.mxu0 0.0
      %1010 = vmatprep.subr.mxu0 0.0
      %1011 = vmatpush1.xpose.msra.mxu0 0.0
      %1012 = vmatprep.subr.mxu0 0.0
      %1013 = vmatpush1.xpose.msra.mxu0 0.0
      %1014 = vmatprep.subr.mxu0 0.0
      %1015 = vmatpush1.xpose.msra.mxu0 0.0
      %1016 = vmatprep.subr.mxu0 0.0
      %1017 = vmatpush1.xpose.msra.mxu0 0.0
      %1018 = vmatprep.subr.mxu0 0.0
      %1019 = vmatpush1.xpose.msra.mxu0 0.0
      %1020 = vmatprep.subr.mxu0 0.0
      %1021 = vmatpush1.xpose.msra.mxu0 0.0
      %1022 = vmatprep.subr.mxu0 0.0
      %1023 = vmatpush1.xpose.msra.mxu0 0.0
      %1024 = vmatprep.mubr.f32.mxu0 0.0
      %1025 = vmatmul.mubr.f32.gmra.mrb[0].mxu0 %v956
      %v1026 = vpop.f32.mrb[0].mxu0
      %v1027 = vadd.f32 0.0, %v1026
      %v1028 = vpop.f32.mrb[0].mxu0
      %1029 = vdwg.mxu0
      %v1030 = vmul.f32 %v1027, 0.35355338
      %v1031 = vsel %vm513, %v1030, -inf
      %1032 = vmax.xlane.f32.xlu0 %v1031
      %v1033 = vpop.xlane.xlu0 %1032
      %v1034 = vsub.f32 %v1030, %v1033
      %v1035 = vmul.f32 %v1034, 1.442695
      %v1036 = vpow.pop %v1035
      %v1037 = vsel %vm513, %v1036, 0.0
      %1038 = vadd.xlane.f32.xlu0 %v1037
      %v1039 = vpop.xlane.xlu0 %1038
      %v1040 = vrcp.pop %v1039
      %v1041 = vmul.f32 %v1036, %v1040
      %1042 = vrot.lane.b32.xlu0 %v431, 40
      %v1043 = vpop.permute.xlu0 %1042
      %v1045 = vsel %vm527, %v1041, 0
      %v1047 = vsel %vm531, %v1043, 0
      %1049 = vmatprep.subr.mxu0 0.0
      %1050 = vmatpush1.msra.mxu0 %v1047
      %1051 = vmatprep.subr.mxu0 0.0
      %1052 = vmatpush1.msra.mxu0 0.0
      %1053 = vmatprep.subr.mxu0 0.0
      %1054 = vmatpush1.msra.mxu0 0.0
      %1055 = vmatprep.subr.mxu0 0.0
      %1056 = vmatpush1.msra.mxu0 0.0
      %1057 = vmatprep.subr.mxu0 0.0
      %1058 = vmatpush1.msra.mxu0 0.0
      %1059 = vmatprep.subr.mxu0 0.0
      %1060 = vmatpush1.msra.mxu0 0.0
      %1061 = vmatprep.subr.mxu0 0.0
      %1062 = vmatpush1.msra.mxu0 0.0
      %1063 = vmatprep.subr.mxu0 0.0
      %1064 = vmatpush1.msra.mxu0 0.0
      %1065 = vmatprep.subr.mxu0 0.0
      %1066 = vmatpush1.msra.mxu0 0.0
      %1067 = vmatprep.subr.mxu0 0.0
      %1068 = vmatpush1.msra.mxu0 0.0
      %1069 = vmatprep.subr.mxu0 0.0
      %1070 = vmatpush1.msra.mxu0 0.0
      %1071 = vmatprep.subr.mxu0 0.0
      %1072 = vmatpush1.msra.mxu0 0.0
      %1073 = vmatprep.subr.mxu0 0.0
      %1074 = vmatpush1.msra.mxu0 0.0
      %1075 = vmatprep.subr.mxu0 0.0
      %1076 = vmatpush1.msra.mxu0 0.0
      %1077 = vmatprep.subr.mxu0 0.0
      %1078 = vmatpush1.msra.mxu0 0.0
      %1079 = vmatprep.subr.mxu0 0.0
      %1080 = vmatpush1.msra.mxu0 0.0
      %1081 = vmatprep.subr.mxu0 0.0
      %1082 = vmatpush1.msra.mxu0 0.0
      %1083 = vmatprep.subr.mxu0 0.0
      %1084 = vmatpush1.msra.mxu0 0.0
      %1085 = vmatprep.subr.mxu0 0.0
      %1086 = vmatpush1.msra.mxu0 0.0
      %1087 = vmatprep.subr.mxu0 0.0
      %1088 = vmatpush1.msra.mxu0 0.0
      %1089 = vmatprep.subr.mxu0 0.0
      %1090 = vmatpush1.msra.mxu0 0.0
      %1091 = vmatprep.subr.mxu0 0.0
      %1092 = vmatpush1.msra.mxu0 0.0
      %1093 = vmatprep.subr.mxu0 0.0
      %1094 = vmatpush1.msra.mxu0 0.0
      %1095 = vmatprep.subr.mxu0 0.0
      %1096 = vmatpush1.msra.mxu0 0.0
      %1097 = vmatprep.subr.mxu0 0.0
      %1098 = vmatpush1.msra.mxu0 0.0
      %1099 = vmatprep.subr.mxu0 0.0
      %1100 = vmatpush1.msra.mxu0 0.0
      %1101 = vmatprep.subr.mxu0 0.0
      %1102 = vmatpush1.msra.mxu0 0.0
      %1103 = vmatprep.subr.mxu0 0.0
      %1104 = vmatpush1.msra.mxu0 0.0
      %1105 = vmatprep.subr.mxu0 0.0
      %1106 = vmatpush1.msra.mxu0 0.0
      %1107 = vmatprep.subr.mxu0 0.0
      %1108 = vmatpush1.msra.mxu0 0.0
      %1109 = vmatprep.subr.mxu0 0.0
      %1110 = vmatpush1.msra.mxu0 0.0
      %1111 = vmatprep.subr.mxu0 0.0
      %1112 = vmatpush1.msra.mxu0 0.0
      %1113 = vmatprep.mubr.f32.mxu0 0.0
      %1114 = vmatmul.mubr.f32.gmra.mrb[0].mxu0 %v1045
      %v1115 = vpop.f32.mrb[0].mxu0
      %v1116 = vadd.f32 0.0, %v1115
      %v1117 = vpop.f32.mrb[0].mxu0
      %1118 = vdwg.mxu0
      %1120 = vrot.lane.b32.xlu0 %v1116, 24
      %v1121 = vpop.permute.xlu0 %1120
      %vm1123 = vcmask 260288
      %1124 = vst.msk [vmem:[#allocation2] sm:$0x7f] %vm1123, %v1121
      %v1125 = vld [vmem:[#allocation2] sm:$0x7f]
      %v1126 = vld [vmem:[%s5] sm:$0xff]
      %v1127 = vld [vmem:[%s5 + $0x8] sm:$0xff]
      %v1128 = vld [vmem:[%s5 + $0x10] sm:$0xff]
      %v1129 = vld [vmem:[%s5 + $0x18] sm:$0xff]
      %v1130 = vld [vmem:[%s6] sm:$0x1]
      %v1132 = vlaneseq
      %v1133 = vshrl.u32 %v1132, 7
      %v1134 = vsub.s32 0, %v1133
      %v1135 = vrot.slane %v1130, %v1134
      %v1138 = vsel %vm360, %v1125, 0
      %1140 = vmatprep.subr.mxu0 0.0
      %1141 = vmatpush1.msra.mxu0 %v1126
      %1142 = vmatprep.subr.mxu0 0.0
      %1143 = vmatpush1.msra.mxu0 %v1127
      %1144 = vmatprep.subr.mxu0 0.0
      %1145 = vmatpush1.msra.mxu0 %v1128
      %1146 = vmatprep.subr.mxu0 0.0
      %1147 = vmatpush1.msra.mxu0 %v1129
      %1148 = vmatprep.subr.mxu0 0.0
      %1149 = vmatpush1.msra.mxu0 0.0
      %1150 = vmatprep.subr.mxu0 0.0
      %1151 = vmatpush1.msra.mxu0 0.0
      %1152 = vmatprep.subr.mxu0 0.0
      %1153 = vmatpush1.msra.mxu0 0.0
      %1154 = vmatprep.subr.mxu0 0.0
      %1155 = vmatpush1.msra.mxu0 0.0
      %1156 = vmatprep.subr.mxu0 0.0
      %1157 = vmatpush1.msra.mxu0 0.0
      %1158 = vmatprep.subr.mxu0 0.0
      %1159 = vmatpush1.msra.mxu0 0.0
      %1160 = vmatprep.subr.mxu0 0.0
      %1161 = vmatpush1.msra.mxu0 0.0
      %1162 = vmatprep.subr.mxu0 0.0
      %1163 = vmatpush1.msra.mxu0 0.0
      %1164 = vmatprep.subr.mxu0 0.0
      %1165 = vmatpush1.msra.mxu0 0.0
      %1166 = vmatprep.subr.mxu0 0.0
      %1167 = vmatpush1.msra.mxu0 0.0
      %1168 = vmatprep.subr.mxu0 0.0
      %1169 = vmatpush1.msra.mxu0 0.0
      %1170 = vmatprep.subr.mxu0 0.0
      %1171 = vmatpush1.msra.mxu0 0.0
      %1172 = vmatprep.subr.mxu0 0.0
      %1173 = vmatpush1.msra.mxu0 0.0
      %1174 = vmatprep.subr.mxu0 0.0
      %1175 = vmatpush1.msra.mxu0 0.0
      %1176 = vmatprep.subr.mxu0 0.0
      %1177 = vmatpush1.msra.mxu0 0.0
      %1178 = vmatprep.subr.mxu0 0.0
      %1179 = vmatpush1.msra.mxu0 0.0
      %1180 = vmatprep.subr.mxu0 0.0
      %1181 = vmatpush1.msra.mxu0 0.0
      %1182 = vmatprep.subr.mxu0 0.0
      %1183 = vmatpush1.msra.mxu0 0.0
      %1184 = vmatprep.subr.mxu0 0.0
      %1185 = vmatpush1.msra.mxu0 0.0
      %1186 = vmatprep.subr.mxu0 0.0
      %1187 = vmatpush1.msra.mxu0 0.0
      %1188 = vmatprep.subr.mxu0 0.0
      %1189 = vmatpush1.msra.mxu0 0.0
      %1190 = vmatprep.subr.mxu0 0.0
      %1191 = vmatpush1.msra.mxu0 0.0
      %1192 = vmatprep.subr.mxu0 0.0
      %1193 = vmatpush1.msra.mxu0 0.0
      %1194 = vmatprep.subr.mxu0 0.0
      %1195 = vmatpush1.msra.mxu0 0.0
      %1196 = vmatprep.subr.mxu0 0.0
      %1197 = vmatpush1.msra.mxu0 0.0
      %1198 = vmatprep.subr.mxu0 0.0
      %1199 = vmatpush1.msra.mxu0 0.0
      %1200 = vmatprep.subr.mxu0 0.0
      %1201 = vmatpush1.msra.mxu0 0.0
      %1202 = vmatprep.subr.mxu0 0.0
      %1203 = vmatpush1.msra.mxu0 0.0
      %1204 = vmatprep.mubr.f32.mxu0 0.0
      %1205 = vmatmul.mubr.f32.gmra.mrb[0].mxu0 %v1138
      %v1206 = vpop.f32.mrb[0].mxu0
      %v1207 = vadd.f32 %v1135, %v1206
      %v1208 = vpop.f32.mrb[0].mxu0
      %1209 = vdwg.mxu0
      %1210 = vst.msk [vmem:[%s309] sm:$0x7f] %vm313, %v1207
      %p1211 = scmp.lt.s32.totalorder %s22, 1
      %s1212 = scalar_select %p1211, %s22, 1
      %p1213 = scmp.lt.s32.totalorder %s23, 1
      %s1214 = scalar_select %p1213, %s23, 1
      %s1215 = smul.addr %s1212, 2
      %s1216 = sadd.s32 %s1214, %s1215
      %s1217 = smul.addr %s1216, 8
      %s1218 = scalar_lea.vmem %s7, %s1217
      // Predicated region
      $region49: #{_lambda_.6} parent=47 // pred_check
        %p1219 = pneg %p204
      $region50: #{_lambda_.6} parent=47 // pred_check_branch
        %1221 = sbr.rel (%p1219) target = $region52
      $region51: #{_lambda_.6} parent=47 // pred_region
        _
      $region52: #{_lambda_.6} parent=47 // pred_fallthru
        _
    $region48: #{_lambda_.6} parent=5 // pred_fallthru
      _
    %p1222 = scmp.le.s32.totalorder 2, %s13
    // Predicated region
    $region53: #{_lambda_.6} parent=5 // pred_check
      %p1223 = pneg %p1222
    $region54: #{_lambda_.6} parent=5 // pred_check_branch
      %1225 = sbr.rel (%p1223) target = $region56
    $region55: #{_lambda_.6} parent=5 // pred_region
      %s1226 = ssub.s32 %s13, 2
      // Predicated region
      $region57: #{_lambda_.6} parent=55 // pred_check
        %p1227 = pneg %p210
      $region58: #{_lambda_.6} parent=55 // pred_check_branch
        %1229 = sbr.rel (%p1227) target = $region60
      $region59: #{_lambda_.6} parent=55 // pred_region
        %p1230 = scmp.lt.s32.totalorder %s24, 1
        %s1231 = scalar_select %p1230, %s24, 1
        %p1232 = scmp.lt.s32.totalorder %s25, 1
        %s1233 = scalar_select %p1232, %s25, 1
        %s1234 = smul.addr %s1231, 2
        %s1235 = sadd.s32 %s1233, %s1234
        %s1236 = smul.addr %s1235, 8
        %s1237 = scalar_lea.vmem %s7, %s1236
      $region60: #{_lambda_.6} parent=55 // pred_fallthru
        _
    $region56: #{_lambda_.6} parent=5 // pred_fallthru
      _
  $region6: #{_lambda_.6} parent=0 // loop_footer
    %s17 = sadd.s32 1, %s13
  $region7: #{_lambda_.6} parent=0 // loop_footer_branch
    %12 = sbr.rel target = $region3
  $region8: #{_lambda_.6} parent=0 // loop_exit
    _

// kernel: _lambda_.5
$region0: #{_lambda_.5}
  #allocation0 [shape = 'u32[]', space=smem, size = 0x4, offset = 0x4, fixed_abs, tag = 'smem constant byte address 0x4 - core index']
  #allocation1 [shape = 'u32[144,128]{1,0:T(1,128)}', space=vmem, size = 0x12000, scoped, tag = 'internal scratch']
  %s0 = inlined_call_operand.vmem [shape: f32[2,14,32], index: 0, kind: input, shape index: {}]
  %s1 = inlined_call_operand.vmem [shape: f32[2,16,32], index: 1, kind: input, shape index: {}]
  %s2 = inlined_call_operand.vmem [shape: f32[1,32], index: 2, kind: input, shape index: {}]
  %s3 = inlined_call_operand.vmem [shape: f32[1,32], index: 3, kind: input, shape index: {}]
  %s4 = inlined_call_operand.vmem [shape: f32[32,128], index: 4, kind: input, shape index: {}]
  %s5 = inlined_call_operand.vmem [shape: f32[1,128], index: 5, kind: input, shape index: {}]
  %s6 = inlined_call_operand.vmem [shape: f32[128,32], index: 6, kind: input, shape index: {}]
  %s7 = inlined_call_operand.vmem [shape: f32[1,32], index: 7, kind: input, shape index: {}]
  %s8 = inlined_call_operand.vmem [shape: f32[1,32], index: 8, kind: input, shape index: {}]
  %s9 = inlined_call_operand.vmem [shape: f32[1,32], index: 9, kind: input, shape index: {}]
  %s10 = inlined_call_operand.vmem [shape: f32[32,32], index: 10, kind: input, shape index: {}]
  %s11 = inlined_call_operand.vmem [shape: f32[1,32], index: 11, kind: input, shape index: {}]
  %s12 = inlined_call_operand.vmem [shape: f32[32,32], index: 12, kind: input, shape index: {}]
  %s13 = inlined_call_operand.vmem [shape: f32[1,32], index: 13, kind: input, shape index: {}]
  %s14 = inlined_call_operand.vmem [shape: f32[6], index: 14, kind: input, shape index: {}]
  %s15 = inlined_call_operand.vmem [shape: f32[2,14,32], index: 15, kind: output, shape index: {}]
  %s16 = sld [smem:[#allocation0]]
  $region145: #{_lambda_.5} parent=0
    _
  %s18 = ssub.s32 1, %s16
  %s19 = scalar_select 0, %s18, %s16
  $region1: #{_lambda_.5} parent=0
    #allocation2 [shape = 'u8[512]{0}', space=smem, size = 0x200, scoped, tag = 'input window, operand 14, single buffered']
    #allocation3 [shape = 's32[2]{0}', space=sflag, size = 0x8, scoped, tag = 'scoped memory for _lambda_.5']
    #allocation4 [shape = 'u8[262144]{0}', space=vmem, size = 0x40000, scoped, tag = 'output window, operand 0']
    %20 = vsyncpa [#allocation3], 0
    loop: start=0, step=1, limit=4
    $region2: #{_lambda_.5} parent=1 // loop_pre_header
      _
    $region3: #{_lambda_.5} parent=1 // loop_header
      %s22 = sphi 0, %s26
      %p23 = scmp.ge.s32.totalorder %s22, 4
      %s29 = sphi 0, %s41
      %s30 = sphi 0, %s37
      %s31 = sphi 0, %s29
      %s32 = sphi 0, %s30
      %s33 = sphi 0, %s31
      %s34 = sphi 0, %s32
      %s46 = sphi 0, %s48
      %s49 = sphi 0, %s46
      %s50 = sphi 0, %s49
      %s66 = sphi 0, %s50
      %s74 = sphi 0, %s76
      %s77 = sphi 0, %s74
      %s78 = sphi 0, %s77
      %s94 = sphi 0, %s78
      %s98 = sphi 0, %s98
      %s100 = sphi 0, %s98
      %s101 = sphi 0, %s100
      %s115 = sphi 0, %s101
      %s119 = sphi 0, %s119
      %s121 = sphi 0, %s119
      %s122 = sphi 0, %s121
      %s136 = sphi 0, %s122
      %s140 = sphi 0, %s140
      %s142 = sphi 0, %s140
      %s143 = sphi 0, %s142
      %s157 = sphi 0, %s143
      %s161 = sphi 0, %s161
      %s163 = sphi 0, %s161
      %s164 = sphi 0, %s163
      %s178 = sphi 0, %s164
      %s182 = sphi 0, %s182
      %s184 = sphi 0, %s182
      %s185 = sphi 0, %s184
      %s199 = sphi 0, %s185
      %s203 = sphi 0, %s203
      %s205 = sphi 0, %s203
      %s206 = sphi 0, %s205
      %s220 = sphi 0, %s206
      %s224 = sphi 0, %s224
      %s226 = sphi 0, %s224
      %s227 = sphi 0, %s226
      %s241 = sphi 0, %s227
      %s245 = sphi 0, %s245
      %s247 = sphi 0, %s245
      %s248 = sphi 0, %s247
      %s262 = sphi 0, %s248
      %s266 = sphi 0, %s266
      %s268 = sphi 0, %s266
      %s269 = sphi 0, %s268
      %s283 = sphi 0, %s269
      %s287 = sphi 0, %s287
      %s289 = sphi 0, %s287
      %s290 = sphi 0, %s289
      %s304 = sphi 0, %s290
      %s308 = sphi 0, %s308
      %s310 = sphi 0, %s308
      %s311 = sphi 0, %s310
      %s325 = sphi 0, %s311
      %s329 = sphi 0, %s329
      %s331 = sphi 0, %s329
      %s332 = sphi 0, %s331
      %s346 = sphi 0, %s332
      %s350 = sphi 0, %s350
      %s352 = sphi 0, %s350
      %s353 = sphi 0, %s352
      %s367 = sphi 0, %s353
      %s375 = sphi 0, %s377
      %s378 = sphi 0, %s375
      %s379 = sphi 0, %s378
      %s395 = sphi 0, %s379
    $region4: #{_lambda_.5} parent=1 // loop_header_branch
      %25 = sbr.rel (%p23) target = $region8
    $region5: #{_lambda_.5} parent=1 // loop_body
      %s27 = ssub.s32 %s22, 1
      %s28 = ssub.s32 %s22, 2
      %s35 = sadd.s32 1, %s30
      %p36 = scmp.ge.s32.totalorder %s35, 1
      %s37 = scalar_select %p36, 0, %s35
      %s38 = sadd.s32 1, %s29
      %s39 = scalar_select %p36, %s38, %s29
      %p40 = scmp.ge.s32.totalorder %s39, 2
      %s41 = scalar_select %p40, 0, %s39
      %s42 = ssub.s32 %s29, %s41
      %s43 = ssub.s32 %s30, %s37
      %s44 = sor.u32 %s42, %s43
      %p45 = scmp.eq.s32.totalorder %s44, 0
      %s47 = sadd.s32 %s46, 1
      %s48 = scalar_select %p45, %s46, %s47
      %p51 = pneg %p45
      %p52 = scmp.eq.s32.totalorder %s22, 1
      %p53 = por %p51, %p52
      %p54 = scmp.ne.s32.totalorder %s46, %s49
      %p55 = scmp.eq.s32.totalorder %s22, 0
      %p56 = por %p54, %p55
      %p57 = scmp.ne.s32.totalorder %s46, %s49
      %p58 = scmp.eq.s32.totalorder %s27, 1
      %p59 = por %p57, %p58
      %p60 = scmp.ne.s32.totalorder %s49, %s50
      %p61 = scmp.eq.s32.totalorder %s27, 0
      %p62 = por %p60, %p61
      %p63 = scmp.ne.s32.totalorder %s49, %s50
      %p64 = scmp.eq.s32.totalorder %s28, 1
      %p65 = por %p63, %p64
      %p67 = scmp.ne.s32.totalorder %s50, %s66
      %p68 = scmp.eq.s32.totalorder %s28, 0
      %p69 = por %p67, %p68
      %s70 = ssub.s32 %s29, %s41
      %s71 = ssub.s32 %s30, %s37
      %s72 = sor.u32 %s70, %s71
      %p73 = scmp.eq.s32.totalorder %s72, 0
      %s75 = sadd.s32 %s74, 1
      %s76 = scalar_select %p73, %s74, %s75
      %p79 = pneg %p73
      %p80 = scmp.eq.s32.totalorder %s22, 1
      %p81 = por %p79, %p80
      %p82 = scmp.ne.s32.totalorder %s74, %s77
      %p83 = scmp.eq.s32.totalorder %s22, 0
      %p84 = por %p82, %p83
      %p85 = scmp.ne.s32.totalorder %s74, %s77
      %p86 = scmp.eq.s32.totalorder %s27, 1
      %p87 = por %p85, %p86
      %p88 = scmp.ne.s32.totalorder %s77, %s78
      %p89 = scmp.eq.s32.totalorder %s27, 0
      %p90 = por %p88, %p89
      %p91 = scmp.ne.s32.totalorder %s77, %s78
      %p92 = scmp.eq.s32.totalorder %s28, 1
      %p93 = por %p91, %p92
      %p95 = scmp.ne.s32.totalorder %s78, %s94
      %p96 = scmp.eq.s32.totalorder %s28, 0
      %p97 = por %p95, %p96
      %s99 = sadd.s32 %s98, 1
      %p102 = scmp.eq.s32.totalorder %s22, 1
      %p103 = scmp.ne.s32.totalorder %s98, %s100
      %p104 = scmp.eq.s32.totalorder %s22, 0
      %p105 = por %p103, %p104
      %p106 = scmp.ne.s32.totalorder %s98, %s100
      %p107 = scmp.eq.s32.totalorder %s27, 1
      %p108 = por %p106, %p107
      %p109 = scmp.ne.s32.totalorder %s100, %s101
      %p110 = scmp.eq.s32.totalorder %s27, 0
      %p111 = por %p109, %p110
      %p112 = scmp.ne.s32.totalorder %s100, %s101
      %p113 = scmp.eq.s32.totalorder %s28, 1
      %p114 = por %p112, %p113
      %p116 = scmp.ne.s32.totalorder %s101, %s115
      %p117 = scmp.eq.s32.totalorder %s28, 0
      %p118 = por %p116, %p117
      %s120 = sadd.s32 %s119, 1
      %p123 = scmp.eq.s32.totalorder %s22, 1
      %p124 = scmp.ne.s32.totalorder %s119, %s121
      %p125 = scmp.eq.s32.totalorder %s22, 0
      %p126 = por %p124, %p125
      %p127 = scmp.ne.s32.totalorder %s119, %s121
      %p128 = scmp.eq.s32.totalorder %s27, 1
      %p129 = por %p127, %p128
      %p130 = scmp.ne.s32.totalorder %s121, %s122
      %p131 = scmp.eq.s32.totalorder %s27, 0
      %p132 = por %p130, %p131
      %p133 = scmp.ne.s32.totalorder %s121, %s122
      %p134 = scmp.eq.s32.totalorder %s28, 1
      %p135 = por %p133, %p134
      %p137 = scmp.ne.s32.totalorder %s122, %s136
      %p138 = scmp.eq.s32.totalorder %s28, 0
      %p139 = por %p137, %p138
      %s141 = sadd.s32 %s140, 1
      %p144 = scmp.eq.s32.totalorder %s22, 1
      %p145 = scmp.ne.s32.totalorder %s140, %s142
      %p146 = scmp.eq.s32.totalorder %s22, 0
      %p147 = por %p145, %p146
      %p148 = scmp.ne.s32.totalorder %s140, %s142
      %p149 = scmp.eq.s32.totalorder %s27, 1
      %p150 = por %p148, %p149
      %p151 = scmp.ne.s32.totalorder %s142, %s143
      %p152 = scmp.eq.s32.totalorder %s27, 0
      %p153 = por %p151, %p152
      %p154 = scmp.ne.s32.totalorder %s142, %s143
      %p155 = scmp.eq.s32.totalorder %s28, 1
      %p156 = por %p154, %p155
      %p158 = scmp.ne.s32.totalorder %s143, %s157
      %p159 = scmp.eq.s32.totalorder %s28, 0
      %p160 = por %p158, %p159
      %s162 = sadd.s32 %s161, 1
      %p165 = scmp.eq.s32.totalorder %s22, 1
      %p166 = scmp.ne.s32.totalorder %s161, %s163
      %p167 = scmp.eq.s32.totalorder %s22, 0
      %p168 = por %p166, %p167
      %p169 = scmp.ne.s32.totalorder %s161, %s163
      %p170 = scmp.eq.s32.totalorder %s27, 1
      %p171 = por %p169, %p170
      %p172 = scmp.ne.s32.totalorder %s163, %s164
      %p173 = scmp.eq.s32.totalorder %s27, 0
      %p174 = por %p172, %p173
      %p175 = scmp.ne.s32.totalorder %s163, %s164
      %p176 = scmp.eq.s32.totalorder %s28, 1
      %p177 = por %p175, %p176
      %p179 = scmp.ne.s32.totalorder %s164, %s178
      %p180 = scmp.eq.s32.totalorder %s28, 0
      %p181 = por %p179, %p180
      %s183 = sadd.s32 %s182, 1
      %p186 = scmp.eq.s32.totalorder %s22, 1
      %p187 = scmp.ne.s32.totalorder %s182, %s184
      %p188 = scmp.eq.s32.totalorder %s22, 0
      %p189 = por %p187, %p188
      %p190 = scmp.ne.s32.totalorder %s182, %s184
      %p191 = scmp.eq.s32.totalorder %s27, 1
      %p192 = por %p190, %p191
      %p193 = scmp.ne.s32.totalorder %s184, %s185
      %p194 = scmp.eq.s32.totalorder %s27, 0
      %p195 = por %p193, %p194
      %p196 = scmp.ne.s32.totalorder %s184, %s185
      %p197 = scmp.eq.s32.totalorder %s28, 1
      %p198 = por %p196, %p197
      %p200 = scmp.ne.s32.totalorder %s185, %s199
      %p201 = scmp.eq.s32.totalorder %s28, 0
      %p202 = por %p200, %p201
      %s204 = sadd.s32 %s203, 1
      %p207 = scmp.eq.s32.totalorder %s22, 1
      %p208 = scmp.ne.s32.totalorder %s203, %s205
      %p209 = scmp.eq.s32.totalorder %s22, 0
      %p210 = por %p208, %p209
      %p211 = scmp.ne.s32.totalorder %s203, %s205
      %p212 = scmp.eq.s32.totalorder %s27, 1
      %p213 = por %p211, %p212
      %p214 = scmp.ne.s32.totalorder %s205, %s206
      %p215 = scmp.eq.s32.totalorder %s27, 0
      %p216 = por %p214, %p215
      %p217 = scmp.ne.s32.totalorder %s205, %s206
      %p218 = scmp.eq.s32.totalorder %s28, 1
      %p219 = por %p217, %p218
      %p221 = scmp.ne.s32.totalorder %s206, %s220
      %p222 = scmp.eq.s32.totalorder %s28, 0
      %p223 = por %p221, %p222
      %s225 = sadd.s32 %s224, 1
      %p228 = scmp.eq.s32.totalorder %s22, 1
      %p229 = scmp.ne.s32.totalorder %s224, %s226
      %p230 = scmp.eq.s32.totalorder %s22, 0
      %p231 = por %p229, %p230
      %p232 = scmp.ne.s32.totalorder %s224, %s226
      %p233 = scmp.eq.s32.totalorder %s27, 1
      %p234 = por %p232, %p233
      %p235 = scmp.ne.s32.totalorder %s226, %s227
      %p236 = scmp.eq.s32.totalorder %s27, 0
      %p237 = por %p235, %p236
      %p238 = scmp.ne.s32.totalorder %s226, %s227
      %p239 = scmp.eq.s32.totalorder %s28, 1
      %p240 = por %p238, %p239
      %p242 = scmp.ne.s32.totalorder %s227, %s241
      %p243 = scmp.eq.s32.totalorder %s28, 0
      %p244 = por %p242, %p243
      %s246 = sadd.s32 %s245, 1
      %p249 = scmp.eq.s32.totalorder %s22, 1
      %p250 = scmp.ne.s32.totalorder %s245, %s247
      %p251 = scmp.eq.s32.totalorder %s22, 0
      %p252 = por %p250, %p251
      %p253 = scmp.ne.s32.totalorder %s245, %s247
      %p254 = scmp.eq.s32.totalorder %s27, 1
      %p255 = por %p253, %p254
      %p256 = scmp.ne.s32.totalorder %s247, %s248
      %p257 = scmp.eq.s32.totalorder %s27, 0
      %p258 = por %p256, %p257
      %p259 = scmp.ne.s32.totalorder %s247, %s248
      %p260 = scmp.eq.s32.totalorder %s28, 1
      %p261 = por %p259, %p260
      %p263 = scmp.ne.s32.totalorder %s248, %s262
      %p264 = scmp.eq.s32.totalorder %s28, 0
      %p265 = por %p263, %p264
      %s267 = sadd.s32 %s266, 1
      %p270 = scmp.eq.s32.totalorder %s22, 1
      %p271 = scmp.ne.s32.totalorder %s266, %s268
      %p272 = scmp.eq.s32.totalorder %s22, 0
      %p273 = por %p271, %p272
      %p274 = scmp.ne.s32.totalorder %s266, %s268
      %p275 = scmp.eq.s32.totalorder %s27, 1
      %p276 = por %p274, %p275
      %p277 = scmp.ne.s32.totalorder %s268, %s269
      %p278 = scmp.eq.s32.totalorder %s27, 0
      %p279 = por %p277, %p278
      %p280 = scmp.ne.s32.totalorder %s268, %s269
      %p281 = scmp.eq.s32.totalorder %s28, 1
      %p282 = por %p280, %p281
      %p284 = scmp.ne.s32.totalorder %s269, %s283
      %p285 = scmp.eq.s32.totalorder %s28, 0
      %p286 = por %p284, %p285
      %s288 = sadd.s32 %s287, 1
      %p291 = scmp.eq.s32.totalorder %s22, 1
      %p292 = scmp.ne.s32.totalorder %s287, %s289
      %p293 = scmp.eq.s32.totalorder %s22, 0
      %p294 = por %p292, %p293
      %p295 = scmp.ne.s32.totalorder %s287, %s289
      %p296 = scmp.eq.s32.totalorder %s27, 1
      %p297 = por %p295, %p296
      %p298 = scmp.ne.s32.totalorder %s289, %s290
      %p299 = scmp.eq.s32.totalorder %s27, 0
      %p300 = por %p298, %p299
      %p301 = scmp.ne.s32.totalorder %s289, %s290
      %p302 = scmp.eq.s32.totalorder %s28, 1
      %p303 = por %p301, %p302
      %p305 = scmp.ne.s32.totalorder %s290, %s304
      %p306 = scmp.eq.s32.totalorder %s28, 0
      %p307 = por %p305, %p306
      %s309 = sadd.s32 %s308, 1
      %p312 = scmp.eq.s32.totalorder %s22, 1
      %p313 = scmp.ne.s32.totalorder %s308, %s310
      %p314 = scmp.eq.s32.totalorder %s22, 0
      %p315 = por %p313, %p314
      %p316 = scmp.ne.s32.totalorder %s308, %s310
      %p317 = scmp.eq.s32.totalorder %s27, 1
      %p318 = por %p316, %p317
      %p319 = scmp.ne.s32.totalorder %s310, %s311
      %p320 = scmp.eq.s32.totalorder %s27, 0
      %p321 = por %p319, %p320
      %p322 = scmp.ne.s32.totalorder %s310, %s311
      %p323 = scmp.eq.s32.totalorder %s28, 1
      %p324 = por %p322, %p323
      %p326 = scmp.ne.s32.totalorder %s311, %s325
      %p327 = scmp.eq.s32.totalorder %s28, 0
      %p328 = por %p326, %p327
      %s330 = sadd.s32 %s329, 1
      %p333 = scmp.eq.s32.totalorder %s22, 1
      %p334 = scmp.ne.s32.totalorder %s329, %s331
      %p335 = scmp.eq.s32.totalorder %s22, 0
      %p336 = por %p334, %p335
      %p337 = scmp.ne.s32.totalorder %s329, %s331
      %p338 = scmp.eq.s32.totalorder %s27, 1
      %p339 = por %p337, %p338
      %p340 = scmp.ne.s32.totalorder %s331, %s332
      %p341 = scmp.eq.s32.totalorder %s27, 0
      %p342 = por %p340, %p341
      %p343 = scmp.ne.s32.totalorder %s331, %s332
      %p344 = scmp.eq.s32.totalorder %s28, 1
      %p345 = por %p343, %p344
      %p347 = scmp.ne.s32.totalorder %s332, %s346
      %p348 = scmp.eq.s32.totalorder %s28, 0
      %p349 = por %p347, %p348
      %s351 = sadd.s32 %s350, 1
      %p354 = scmp.eq.s32.totalorder %s22, 1
      %p355 = scmp.ne.s32.totalorder %s350, %s352
      %p356 = scmp.eq.s32.totalorder %s22, 0
      %p357 = por %p355, %p356
      %p358 = scmp.ne.s32.totalorder %s350, %s352
      %p359 = scmp.eq.s32.totalorder %s27, 1
      %p360 = por %p358, %p359
      %p361 = scmp.ne.s32.totalorder %s352, %s353
      %p362 = scmp.eq.s32.totalorder %s27, 0
      %p363 = por %p361, %p362
      %p364 = scmp.ne.s32.totalorder %s352, %s353
      %p365 = scmp.eq.s32.totalorder %s28, 1
      %p366 = por %p364, %p365
      %p368 = scmp.ne.s32.totalorder %s353, %s367
      %p369 = scmp.eq.s32.totalorder %s28, 0
      %p370 = por %p368, %p369
      %s371 = ssub.s32 %s29, %s41
      %s372 = ssub.s32 %s30, %s37
      %s373 = sor.u32 %s371, %s372
      %p374 = scmp.eq.s32.totalorder %s373, 0
      %s376 = sadd.s32 %s375, 1
      %s377 = scalar_select %p374, %s375, %s376
      %p380 = pneg %p374
      %p381 = scmp.eq.s32.totalorder %s22, 1
      %p382 = por %p380, %p381
      %p383 = scmp.ne.s32.totalorder %s375, %s378
      %p384 = scmp.eq.s32.totalorder %s22, 0
      %p385 = por %p383, %p384
      %p386 = scmp.ne.s32.totalorder %s375, %s378
      %p387 = scmp.eq.s32.totalorder %s27, 1
      %p388 = por %p386, %p387
      %p389 = scmp.ne.s32.totalorder %s378, %s379
      %p390 = scmp.eq.s32.totalorder %s27, 0
      %p391 = por %p389, %p390
      %p392 = scmp.ne.s32.totalorder %s378, %s379
      %p393 = scmp.eq.s32.totalorder %s28, 1
      %p394 = por %p392, %p393
      %p396 = scmp.ne.s32.totalorder %s379, %s395
      %p397 = scmp.eq.s32.totalorder %s28, 0
      %p398 = por %p396, %p397
      %p399 = scmp.le.s32.totalorder 1, %s22
      %p400 = scmp.lt.s32.totalorder %s22, 3
      %p401 = pnand %p399, %p400
      %p402 = pneg %p401
      // Predicated region
      $region9: #{_lambda_.5} parent=5 // pred_check
        _
      $region10: #{_lambda_.5} parent=5 // pred_check_branch
        %404 = sbr.rel (%p401) target = $region12
      $region11: #{_lambda_.5} parent=5 // pred_region
        %s405 = ssub.s32 %s22, 1
        // Predicated region
        $region13: #{_lambda_.5} parent=11 // pred_check
          %p406 = pneg %p111
        $region14: #{_lambda_.5} parent=11 // pred_check_branch
          %408 = sbr.rel (%p406) target = $region16
        $region15: #{_lambda_.5} parent=11 // pred_region
          _
        $region16: #{_lambda_.5} parent=11 // pred_fallthru
          _
        // Predicated region
        $region17: #{_lambda_.5} parent=11 // pred_check
          %p409 = pneg %p132
        $region18: #{_lambda_.5} parent=11 // pred_check_branch
          %411 = sbr.rel (%p409) target = $region20
        $region19: #{_lambda_.5} parent=11 // pred_region
          _
        $region20: #{_lambda_.5} parent=11 // pred_fallthru
          _
        // Predicated region
        $region21: #{_lambda_.5} parent=11 // pred_check
          %p412 = pneg %p153
        $region22: #{_lambda_.5} parent=11 // pred_check_branch
          %414 = sbr.rel (%p412) target = $region24
        $region23: #{_lambda_.5} parent=11 // pred_region
          _
        $region24: #{_lambda_.5} parent=11 // pred_fallthru
          _
        // Predicated region
        $region25: #{_lambda_.5} parent=11 // pred_check
          %p415 = pneg %p174
        $region26: #{_lambda_.5} parent=11 // pred_check_branch
          %417 = sbr.rel (%p415) target = $region28
        $region27: #{_lambda_.5} parent=11 // pred_region
          _
        $region28: #{_lambda_.5} parent=11 // pred_fallthru
          _
        // Predicated region
        $region29: #{_lambda_.5} parent=11 // pred_check
          %p418 = pneg %p195
        $region30: #{_lambda_.5} parent=11 // pred_check_branch
          %420 = sbr.rel (%p418) target = $region32
        $region31: #{_lambda_.5} parent=11 // pred_region
          _
        $region32: #{_lambda_.5} parent=11 // pred_fallthru
          _
        // Predicated region
        $region33: #{_lambda_.5} parent=11 // pred_check
          %p421 = pneg %p216
        $region34: #{_lambda_.5} parent=11 // pred_check_branch
          %423 = sbr.rel (%p421) target = $region36
        $region35: #{_lambda_.5} parent=11 // pred_region
          _
        $region36: #{_lambda_.5} parent=11 // pred_fallthru
          _
        // Predicated region
        $region37: #{_lambda_.5} parent=11 // pred_check
          %p424 = pneg %p237
        $region38: #{_lambda_.5} parent=11 // pred_check_branch
          %426 = sbr.rel (%p424) target = $region40
        $region39: #{_lambda_.5} parent=11 // pred_region
          _
        $region40: #{_lambda_.5} parent=11 // pred_fallthru
          _
        // Predicated region
        $region41: #{_lambda_.5} parent=11 // pred_check
          %p427 = pneg %p258
        $region42: #{_lambda_.5} parent=11 // pred_check_branch
          %429 = sbr.rel (%p427) target = $region44
        $region43: #{_lambda_.5} parent=11 // pred_region
          _
        $region44: #{_lambda_.5} parent=11 // pred_fallthru
          _
        // Predicated region
        $region45: #{_lambda_.5} parent=11 // pred_check
          %p430 = pneg %p279
        $region46: #{_lambda_.5} parent=11 // pred_check_branch
          %432 = sbr.rel (%p430) target = $region48
        $region47: #{_lambda_.5} parent=11 // pred_region
          _
        $region48: #{_lambda_.5} parent=11 // pred_fallthru
          _
        // Predicated region
        $region49: #{_lambda_.5} parent=11 // pred_check
          %p433 = pneg %p300
        $region50: #{_lambda_.5} parent=11 // pred_check_branch
          %435 = sbr.rel (%p433) target = $region52
        $region51: #{_lambda_.5} parent=11 // pred_region
          _
        $region52: #{_lambda_.5} parent=11 // pred_fallthru
          _
        // Predicated region
        $region53: #{_lambda_.5} parent=11 // pred_check
          %p436 = pneg %p321
        $region54: #{_lambda_.5} parent=11 // pred_check_branch
          %438 = sbr.rel (%p436) target = $region56
        $region55: #{_lambda_.5} parent=11 // pred_region
          _
        $region56: #{_lambda_.5} parent=11 // pred_fallthru
          _
        // Predicated region
        $region57: #{_lambda_.5} parent=11 // pred_check
          %p439 = pneg %p342
        $region58: #{_lambda_.5} parent=11 // pred_check_branch
          %441 = sbr.rel (%p439) target = $region60
        $region59: #{_lambda_.5} parent=11 // pred_region
          _
        $region60: #{_lambda_.5} parent=11 // pred_fallthru
          _
        // Predicated region
        $region61: #{_lambda_.5} parent=11 // pred_check
          %p442 = pneg %p363
        $region62: #{_lambda_.5} parent=11 // pred_check_branch
          %444 = sbr.rel (%p442) target = $region64
        $region63: #{_lambda_.5} parent=11 // pred_region
          %s446 = ssub.s32 16, 16
          %447 = vsyncadd [#allocation3], %s446
          %s449 = sshll.u32 %s14, 4
          %s450 = int_to_ptr.vmem [resolvable:$true] %s449
          %452 = dma.vmem_to_smem %s450, 16, [#allocation2], [#allocation3]
        $region64: #{_lambda_.5} parent=11 // pred_fallthru
          _
      $region12: #{_lambda_.5} parent=5 // pred_fallthru
        _
      %p453 = scmp.lt.s32.totalorder %s22, 2
      // Predicated region
      $region65: #{_lambda_.5} parent=5 // pred_check
        %p454 = pneg %p453
      $region66: #{_lambda_.5} parent=5 // pred_check_branch
        %456 = sbr.rel (%p454) target = $region68
      $region67: #{_lambda_.5} parent=5 // pred_region
        // Predicated region
        $region69: #{_lambda_.5} parent=67 // pred_check
          %p457 = pneg %p56
        $region70: #{_lambda_.5} parent=67 // pred_check_branch
          %459 = sbr.rel (%p457) target = $region72
        $region71: #{_lambda_.5} parent=67 // pred_region
          %s460 = smul.u32 32, %s30
          %s461 = ssub.s32 2, %s460
          %s462 = smul.u32 128, %s461
          %p463 = scmp.lt.s32.totalorder %s29, 1
          %s464 = scalar_select %p463, %s29, 1
          %p465 = scmp.lt.s32.totalorder %s460, 1
          %s466 = scalar_select %p465, %s460, 1
          %s467 = smul.addr %s464, 2
          %s468 = sadd.s32 %s466, %s467
          %s469 = smul.addr %s468, 8
          %s470 = scalar_lea.vmem %s0, %s469
          %s471 = smul.u32 32, %s30
          %s472 = ssub.s32 2, %s471
          %s473 = smul.u32 128, %s472
        $region72: #{_lambda_.5} parent=67 // pred_fallthru
          _
        // Predicated region
        $region73: #{_lambda_.5} parent=67 // pred_check
          %p474 = pneg %p84
        $region74: #{_lambda_.5} parent=67 // pred_check_branch
          %476 = sbr.rel (%p474) target = $region76
        $region75: #{_lambda_.5} parent=67 // pred_region
          %s477 = smul.u32 32, %s30
          %s478 = ssub.s32 2, %s477
          %s479 = smul.u32 128, %s478
          %p480 = scmp.lt.s32.totalorder %s29, 1
          %s481 = scalar_select %p480, %s29, 1
          %p482 = scmp.lt.s32.totalorder %s477, 1
          %s483 = scalar_select %p482, %s477, 1
          %s484 = smul.addr %s481, 2
          %s485 = sadd.s32 %s483, %s484
          %s486 = smul.addr %s485, 8
          %s487 = scalar_lea.vmem %s1, %s486
          %s488 = smul.u32 32, %s30
          %s489 = ssub.s32 2, %s488
          %s490 = smul.u32 128, %s489
        $region76: #{_lambda_.5} parent=67 // pred_fallthru
          _
      $region68: #{_lambda_.5} parent=5 // pred_fallthru
        _
      %p491 = scmp.le.s32.totalorder 1, %s22
      %p492 = scmp.lt.s32.totalorder %s22, 3
      %p493 = pnand %p491, %p492
      %p494 = pneg %p493
      // Predicated region
      $region77: #{_lambda_.5} parent=5 // pred_check
        _
      $region78: #{_lambda_.5} parent=5 // pred_check_branch
        %496 = sbr.rel (%p493) target = $region80
      $region79: #{_lambda_.5} parent=5 // pred_region
        %s497 = ssub.s32 %s22, 1
        // Predicated region
        $region81: #{_lambda_.5} parent=79 // pred_check
          %p498 = pneg %p363
        $region82: #{_lambda_.5} parent=79 // pred_check_branch
          %500 = sbr.rel (%p498) target = $region84
        $region83: #{_lambda_.5} parent=79 // pred_region
          %501 = dma.done [#allocation3], 16
        $region84: #{_lambda_.5} parent=79 // pred_fallthru
          _
        %502 = sfence
        %s503 = smul.u32 32, %s32
        %s504 = ssub.s32 2, %s503
        %s505 = smul.u32 128, %s504
        %p506 = scmp.lt.s32.totalorder %s31, 1
        %s507 = scalar_select %p506, %s31, 1
        %p508 = scmp.lt.s32.totalorder %s503, 1
        %s509 = scalar_select %p508, %s503, 1
        %s510 = smul.addr %s507, 2
        %s511 = sadd.s32 %s509, %s510
        %s512 = smul.addr %s511, 8
        %s513 = scalar_lea.vmem %s0, %s512
        %p514 = pneg %p62
        %p515 = pneg %p59
        %s516 = smul.u32 32, %s32
        %s517 = ssub.s32 2, %s516
        %s518 = smul.u32 128, %s517
        %p519 = scmp.lt.s32.totalorder %s31, 1
        %s520 = scalar_select %p519, %s31, 1
        %p521 = scmp.lt.s32.totalorder %s516, 1
        %s522 = scalar_select %p521, %s516, 1
        %s523 = smul.addr %s520, 2
        %s524 = sadd.s32 %s522, %s523
        %s525 = smul.addr %s524, 8
        %s526 = scalar_lea.vmem %s1, %s525
        %p527 = pneg %p90
        %p528 = pneg %p87
        %p529 = pneg %p111
        %p530 = pneg %p108
        %p531 = pneg %p132
        %p532 = pneg %p129
        %p533 = pneg %p153
        %p534 = pneg %p150
        %p535 = pneg %p174
        %p536 = pneg %p171
        %p537 = pneg %p195
        %p538 = pneg %p192
        %p539 = pneg %p216
        %p540 = pneg %p213
        %p541 = pneg %p237
        %p542 = pneg %p234
        %p543 = pneg %p258
        %p544 = pneg %p255
        %p545 = pneg %p279
        %p546 = pneg %p276
        %p547 = pneg %p300
        %p548 = pneg %p297
        %p549 = pneg %p321
        %p550 = pneg %p318
        %p551 = pneg %p342
        %p552 = pneg %p339
        %p553 = pneg %p363
        %p554 = pneg %p360
        %p555 = pneg %p391
        %p556 = pneg %p388
        %s557 = sand.u32 %s378, 1
        %s558 = sand.u32 %s378, 1
        %s559 = smul.addr %s558, 256
        %s560 = scalar_lea.vmem [#allocation4], %s559
        %s561 = smul.u32 32, %s32
        %s562 = ssub.s32 2, %s561
        %s563 = smul.u32 128, %s562
        %p564 = scmp.lt.s32.totalorder %s31, 1
        %s565 = scalar_select %p564, %s31, 1
        %p566 = scmp.lt.s32.totalorder %s561, 1
        %s567 = scalar_select %p566, %s561, 1
        %s568 = smul.addr %s565, 2
        %s569 = sadd.s32 %s567, %s568
        %s570 = smul.addr %s569, 8
        %s571 = scalar_lea.vmem %s0, %s570
        %s572 = smul.u32 32, %s32
        %s573 = ssub.s32 2, %s572
        %s574 = smul.u32 128, %s573
        %s575 = smul.u32 32, %s32
        %s576 = ssub.s32 2, %s575
        %s577 = smul.u32 128, %s576
        %p578 = scmp.lt.s32.totalorder %s31, 1
        %s579 = scalar_select %p578, %s31, 1
        %p580 = scmp.lt.s32.totalorder %s575, 1
        %s581 = scalar_select %p580, %s575, 1
        %s582 = smul.addr %s579, 2
        %s583 = sadd.s32 %s581, %s582
        %s584 = smul.addr %s583, 8
        %s585 = scalar_lea.vmem %s1, %s584
        %s586 = smul.u32 32, %s32
        %s587 = ssub.s32 2, %s586
        %s588 = smul.u32 128, %s587
        %s589 = smul.u32 32, %s32
        %s590 = ssub.s32 2, %s589
        %s591 = smul.u32 128, %s590
        %v592 = vld [vmem:[%s571] sm:$0xff]
        %v593 = vld [vmem:[%s571 + $0x8] sm:$0xff]
        %v594 = vld [vmem:[%s571 + $0x10] sm:$0xff]
        %v595 = vld [vmem:[%s571 + $0x18] sm:$0xff]
        %v596 = vld [vmem:[%s571 + $0x20] sm:$0xff]
        %v597 = vld [vmem:[%s571 + $0x28] sm:$0xff]
        %v598 = vld [vmem:[%s571 + $0x30] sm:$0xff]
        %v599 = vld [vmem:[%s571 + $0x38] sm:$0xff]
        %v600 = vld [vmem:[%s571 + $0x40] sm:$0xff]
        %v601 = vld [vmem:[%s571 + $0x48] sm:$0xff]
        %v602 = vld [vmem:[%s571 + $0x50] sm:$0xff]
        %v603 = vld [vmem:[%s571 + $0x58] sm:$0xff]
        %v604 = vld [vmem:[%s571 + $0x60] sm:$0xff]
        %v605 = vld [vmem:[%s571 + $0x68] sm:$0xff]
        %v606 = vld [vmem:[%s571 + $0x70] sm:$0xff]
        %v607 = vld [vmem:[%s571 + $0x78] sm:$0xff]
        %v608 = vld [vmem:[%s571 + $0x80] sm:$0xff]
        %v609 = vld [vmem:[%s571 + $0x88] sm:$0xff]
        %v610 = vld [vmem:[%s571 + $0x90] sm:$0xff]
        %v611 = vld [vmem:[%s571 + $0x98] sm:$0xff]
        %v612 = vld [vmem:[%s571 + $0xa0] sm:$0xff]
        %v613 = vld [vmem:[%s571 + $0xa8] sm:$0xff]
        %v614 = vld [vmem:[%s571 + $0xb0] sm:$0xff]
        %v615 = vld [vmem:[%s571 + $0xb8] sm:$0xff]
        %v616 = vld [vmem:[%s571 + $0xc0] sm:$0xff]
        %v617 = vld [vmem:[%s571 + $0xc8] sm:$0xff]
        %v618 = vld [vmem:[%s571 + $0xd0] sm:$0xff]
        %v619 = vld [vmem:[%s571 + $0xd8] sm:$0xff]
        %v620 = vld [vmem:[%s571 + $0xe0] sm:$0xff]
        %v621 = vld [vmem:[%s571 + $0xe8] sm:$0xff]
        %v622 = vld [vmem:[%s571 + $0xf0] sm:$0xff]
        %v623 = vld [vmem:[%s571 + $0xf8] sm:$0xff]
        %v624 = vld [vmem:[%s585] sm:$0xff]
        %v625 = vld [vmem:[%s585 + $0x8] sm:$0xff]
        %v626 = vld [vmem:[%s585 + $0x10] sm:$0xff]
        %v627 = vld [vmem:[%s585 + $0x18] sm:$0xff]
        %v628 = vld [vmem:[%s585 + $0x20] sm:$0xff]
        %v629 = vld [vmem:[%s585 + $0x28] sm:$0xff]
        %v630 = vld [vmem:[%s585 + $0x30] sm:$0xff]
        %v631 = vld [vmem:[%s585 + $0x38] sm:$0xff]
        %v632 = vld [vmem:[%s585 + $0x40] sm:$0xff]
        %v633 = vld [vmem:[%s585 + $0x48] sm:$0xff]
        %v634 = vld [vmem:[%s585 + $0x50] sm:$0xff]
        %v635 = vld [vmem:[%s585 + $0x58] sm:$0xff]
        %v636 = vld [vmem:[%s585 + $0x60] sm:$0xff]
        %v637 = vld [vmem:[%s585 + $0x68] sm:$0xff]
        %v638 = vld [vmem:[%s585 + $0x70] sm:$0xff]
        %v639 = vld [vmem:[%s585 + $0x78] sm:$0xff]
        %v640 = vld [vmem:[%s585 + $0x80] sm:$0xff]
        %v641 = vld [vmem:[%s585 + $0x88] sm:$0xff]
        %v642 = vld [vmem:[%s585 + $0x90] sm:$0xff]
        %v643 = vld [vmem:[%s585 + $0x98] sm:$0xff]
        %v644 = vld [vmem:[%s585 + $0xa0] sm:$0xff]
        %v645 = vld [vmem:[%s585 + $0xa8] sm:$0xff]
        %v646 = vld [vmem:[%s585 + $0xb0] sm:$0xff]
        %v647 = vld [vmem:[%s585 + $0xb8] sm:$0xff]
        %v648 = vld [vmem:[%s585 + $0xc0] sm:$0xff]
        %v649 = vld [vmem:[%s585 + $0xc8] sm:$0xff]
        %v650 = vld [vmem:[%s585 + $0xd0] sm:$0xff]
        %v651 = vld [vmem:[%s585 + $0xd8] sm:$0xff]
        %v652 = vld [vmem:[%s585 + $0xe0] sm:$0xff]
        %v653 = vld [vmem:[%s585 + $0xe8] sm:$0xff]
        %v654 = vld [vmem:[%s585 + $0xf0] sm:$0xff]
        %v655 = vld [vmem:[%s585 + $0xf8] sm:$0xff]
        %s656 = sld [smem:[#allocation2]]
        %v657 = vstv %s656
        %v658 = vmul.f32 %v657, %v592
        %v659 = vmul.f32 %v657, %v593
        %v660 = vmul.f32 %v657, %v594
        %v661 = vmul.f32 %v657, %v595
        %v662 = vmul.f32 %v657, %v596
        %v663 = vmul.f32 %v657, %v597
        %v664 = vmul.f32 %v657, %v598
        %v665 = vmul.f32 %v657, %v599
        %v666 = vmul.f32 %v657, %v600
        %v667 = vmul.f32 %v657, %v601
        %v668 = vmul.f32 %v657, %v602
        %v669 = vmul.f32 %v657, %v603
        %v670 = vmul.f32 %v657, %v604
        %v671 = vmul.f32 %v657, %v605
        %v672 = vmul.f32 %v657, %v606
        %v673 = vmul.f32 %v657, %v607
        %v674 = vmul.f32 %v657, %v608
        %v675 = vmul.f32 %v657, %v609
        %v676 = vmul.f32 %v657, %v610
        %v677 = vmul.f32 %v657, %v611
        %v678 = vmul.f32 %v657, %v612
        %v679 = vmul.f32 %v657, %v613
        %v680 = vmul.f32 %v657, %v614
        %v681 = vmul.f32 %v657, %v615
        %v682 = vmul.f32 %v657, %v616
        %v683 = vmul.f32 %v657, %v617
        %v684 = vmul.f32 %v657, %v618
        %v685 = vmul.f32 %v657, %v619
        %v686 = vmul.f32 %v657, %v620
        %v687 = vmul.f32 %v657, %v621
        %v688 = vmul.f32 %v657, %v622
        %v689 = vmul.f32 %v657, %v623
        %s690 = sld [smem:[#allocation2 + $0x1]]
        %v691 = vstv %s690
        %v692 = vmul.f32 %v691, %v624
        %v693 = vmul.f32 %v691, %v625
        %v694 = vmul.f32 %v691, %v626
        %v695 = vmul.f32 %v691, %v627
        %v696 = vmul.f32 %v691, %v628
        %v697 = vmul.f32 %v691, %v629
        %v698 = vmul.f32 %v691, %v630
        %v699 = vmul.f32 %v691, %v631
        %v700 = vmul.f32 %v691, %v632
        %v701 = vmul.f32 %v691, %v633
        %v702 = vmul.f32 %v691, %v634
        %v703 = vmul.f32 %v691, %v635
        %v704 = vmul.f32 %v691, %v636
        %v705 = vmul.f32 %v691, %v637
        %v706 = vmul.f32 %v691, %v638
        %v707 = vmul.f32 %v691, %v639
        %v708 = vmul.f32 %v691, %v640
        %v709 = vmul.f32 %v691, %v641
        %v710 = vmul.f32 %v691, %v642
        %v711 = vmul.f32 %v691, %v643
        %v712 = vmul.f32 %v691, %v644
        %v713 = vmul.f32 %v691, %v645
        %v714 = vmul.f32 %v691, %v646
        %v715 = vmul.f32 %v691, %v647
        %v716 = vmul.f32 %v691, %v648
        %v717 = vmul.f32 %v691, %v649
        %v718 = vmul.f32 %v691, %v650
        %v719 = vmul.f32 %v691, %v651
        %v720 = vmul.f32 %v691, %v652
        %v721 = vmul.f32 %v691, %v653
        %v722 = vmul.f32 %v691, %v654
        %v723 = vmul.f32 %v691, %v655
        %v724 = vadd.f32 %v658, %v692
        %v725 = vadd.f32 %v659, %v693
        %v726 = vadd.f32 %v660, %v694
        %v727 = vadd.f32 %v661, %v695
        %v728 = vadd.f32 %v662, %v696
        %v729 = vadd.f32 %v663, %v697
        %v730 = vadd.f32 %v664, %v698
        %v731 = vadd.f32 %v665, %v699
        %v732 = vadd.f32 %v666, %v700
        %v733 = vadd.f32 %v667, %v701
        %v734 = vadd.f32 %v668, %v702
        %v735 = vadd.f32 %v669, %v703
        %v736 = vadd.f32 %v670, %v704
        %v737 = vadd.f32 %v671, %v705
        %v738 = vadd.f32 %v672, %v706
        %v739 = vadd.f32 %v673, %v707
        %v740 = vadd.f32 %v674, %v708
        %v741 = vadd.f32 %v675, %v709
        %v742 = vadd.f32 %v676, %v710
        %v743 = vadd.f32 %v677, %v711
        %v744 = vadd.f32 %v678, %v712
        %v745 = vadd.f32 %v679, %v713
        %v746 = vadd.f32 %v680, %v714
        %v747 = vadd.f32 %v681, %v715
        %v748 = vadd.f32 %v682, %v716
        %v749 = vadd.f32 %v683, %v717
        %v750 = vadd.f32 %v684, %v718
        %v751 = vadd.f32 %v685, %v719
        %v752 = vadd.f32 %v686, %v720
        %v753 = vadd.f32 %v687, %v721
        %v754 = vadd.f32 %v688, %v722
        %v755 = vadd.f32 %v689, %v723
        %v756 = vld [vmem:[%s2] sm:$0x1]
        %v757 = vld [vmem:[%s3] sm:$0x1]
        %vm758 = vcmask 261120
        %v759 = vsel %vm758, %v724, 0.0
        %760 = vadd.xlane.f32.xlu0 %v759
        %v761 = vpop.xlane.xlu0 %760
        %v762 = vsel %vm758, %v725, 0.0
        %763 = vadd.xlane.f32.xlu0 %v762
        %v764 = vpop.xlane.xlu0 %763
        %v765 = vsel %vm758, %v726, 0.0
        %766 = vadd.xlane.f32.xlu0 %v765
        %v767 = vpop.xlane.xlu0 %766
        %v768 = vsel %vm758, %v727, 0.0
        %769 = vadd.xlane.f32.xlu0 %v768
        %v770 = vpop.xlane.xlu0 %769
        %v771 = vsel %vm758, %v728, 0.0
        %772 = vadd.xlane.f32.xlu0 %v771
        %v773 = vpop.xlane.xlu0 %772
        %v774 = vsel %vm758, %v729, 0.0
        %775 = vadd.xlane.f32.xlu0 %v774
        %v776 = vpop.xlane.xlu0 %775
        %v777 = vsel %vm758, %v730, 0.0
        %778 = vadd.xlane.f32.xlu0 %v777
        %v779 = vpop.xlane.xlu0 %778
        %v780 = vsel %vm758, %v731, 0.0
        %781 = vadd.xlane.f32.xlu0 %v780
        %v782 = vpop.xlane.xlu0 %781
        %v783 = vsel %vm758, %v732, 0.0
        %784 = vadd.xlane.f32.xlu0 %v783
        %v785 = vpop.xlane.xlu0 %784
        %v786 = vsel %vm758, %v733, 0.0
        %787 = vadd.xlane.f32.xlu0 %v786
        %v788 = vpop.xlane.xlu0 %787
        %v789 = vsel %vm758, %v734, 0.0
        %790 = vadd.xlane.f32.xlu0 %v789
        %v791 = vpop.xlane.xlu0 %790
        %v792 = vsel %vm758, %v735, 0.0
        %793 = vadd.xlane.f32.xlu0 %v792
        %v794 = vpop.xlane.xlu0 %793
        %v795 = vsel %vm758, %v736, 0.0
        %796 = vadd.xlane.f32.xlu0 %v795
        %v797 = vpop.xlane.xlu0 %796
        %v798 = vsel %vm758, %v737, 0.0
        %799 = vadd.xlane.f32.xlu0 %v798
        %v800 = vpop.xlane.xlu0 %799
        %v801 = vsel %vm758, %v738, 0.0
        %802 = vadd.xlane.f32.xlu0 %v801
        %v803 = vpop.xlane.xlu0 %802
        %v804 = vsel %vm758, %v739, 0.0
        %805 = vadd.xlane.f32.xlu0 %v804
        %v806 = vpop.xlane.xlu0 %805
        %v807 = vsel %vm758, %v740, 0.0
        %808 = vadd.xlane.f32.xlu0 %v807
        %v809 = vpop.xlane.xlu0 %808
        %v810 = vsel %vm758, %v741, 0.0
        %811 = vadd.xlane.f32.xlu0 %v810
        %v812 = vpop.xlane.xlu0 %811
        %v813 = vsel %vm758, %v742, 0.0
        %814 = vadd.xlane.f32.xlu0 %v813
        %v815 = vpop.xlane.xlu0 %814
        %v816 = vsel %vm758, %v743, 0.0
        %817 = vadd.xlane.f32.xlu0 %v816
        %v818 = vpop.xlane.xlu0 %817
        %v819 = vsel %vm758, %v744, 0.0
        %820 = vadd.xlane.f32.xlu0 %v819
        %v821 = vpop.xlane.xlu0 %820
        %v822 = vsel %vm758, %v745, 0.0
        %823 = vadd.xlane.f32.xlu0 %v822
        %v824 = vpop.xlane.xlu0 %823
        %v825 = vsel %vm758, %v746, 0.0
        %826 = vadd.xlane.f32.xlu0 %v825
        %v827 = vpop.xlane.xlu0 %826
        %v828 = vsel %vm758, %v747, 0.0
        %829 = vadd.xlane.f32.xlu0 %v828
        %v830 = vpop.xlane.xlu0 %829
        %v831 = vsel %vm758, %v748, 0.0
        %832 = vadd.xlane.f32.xlu0 %v831
        %v833 = vpop.xlane.xlu0 %832
        %v834 = vsel %vm758, %v749, 0.0
        %835 = vadd.xlane.f32.xlu0 %v834
        %v836 = vpop.xlane.xlu0 %835
        %v837 = vsel %vm758, %v750, 0.0
        %838 = vadd.xlane.f32.xlu0 %v837
        %v839 = vpop.xlane.xlu0 %838
        %v840 = vsel %vm758, %v751, 0.0
        %841 = vadd.xlane.f32.xlu0 %v840
        %v842 = vpop.xlane.xlu0 %841
        %v843 = vsel %vm758, %v752, 0.0
        %844 = vadd.xlane.f32.xlu0 %v843
        %v845 = vpop.xlane.xlu0 %844
        %v846 = vsel %vm758, %v753, 0.0
        %847 = vadd.xlane.f32.xlu0 %v846
        %v848 = vpop.xlane.xlu0 %847
        %v849 = vsel %vm758, %v754, 0.0
        %850 = vadd.xlane.f32.xlu0 %v849
        %v851 = vpop.xlane.xlu0 %850
        %v852 = vsel %vm758, %v755, 0.0
        %853 = vadd.xlane.f32.xlu0 %v852
        %v854 = vpop.xlane.xlu0 %853
        %v855 = vrcp.pop 32.0
        %v856 = vmul.f32 %v761, %v855
        %v857 = vmul.f32 %v764, %v855
        %v858 = vmul.f32 %v767, %v855
        %v859 = vmul.f32 %v770, %v855
        %v860 = vmul.f32 %v773, %v855
        %v861 = vmul.f32 %v776, %v855
        %v862 = vmul.f32 %v779, %v855
        %v863 = vmul.f32 %v782, %v855
        %v864 = vmul.f32 %v785, %v855
        %v865 = vmul.f32 %v788, %v855
        %v866 = vmul.f32 %v791, %v855
        %v867 = vmul.f32 %v794, %v855
        %v868 = vmul.f32 %v797, %v855
        %v869 = vmul.f32 %v800, %v855
        %v870 = vmul.f32 %v803, %v855
        %v871 = vmul.f32 %v806, %v855
        %v872 = vmul.f32 %v809, %v855
        %v873 = vmul.f32 %v812, %v855
        %v874 = vmul.f32 %v815, %v855
        %v875 = vmul.f32 %v818, %v855
        %v876 = vmul.f32 %v821, %v855
        %v877 = vmul.f32 %v824, %v855
        %v878 = vmul.f32 %v827, %v855
        %v879 = vmul.f32 %v830, %v855
        %v880 = vmul.f32 %v833, %v855
        %v881 = vmul.f32 %v836, %v855
        %v882 = vmul.f32 %v839, %v855
        %v883 = vmul.f32 %v842, %v855
        %v884 = vmul.f32 %v845, %v855
        %v885 = vmul.f32 %v848, %v855
        %v886 = vmul.f32 %v851, %v855
        %v887 = vmul.f32 %v854, %v855
        %v888 = vsub.f32 %v724, %v856
        %v889 = vsub.f32 %v725, %v857
        %v890 = vsub.f32 %v726, %v858
        %v891 = vsub.f32 %v727, %v859
        %v892 = vsub.f32 %v728, %v860
        %v893 = vsub.f32 %v729, %v861
        %v894 = vsub.f32 %v730, %v862
        %v895 = vsub.f32 %v731, %v863
        %v896 = vsub.f32 %v732, %v864
        %v897 = vsub.f32 %v733, %v865
        %v898 = vsub.f32 %v734, %v866
        %v899 = vsub.f32 %v735, %v867
        %v900 = vsub.f32 %v736, %v868
        %v901 = vsub.f32 %v737, %v869
        %v902 = vsub.f32 %v738, %v870
        %v903 = vsub.f32 %v739, %v871
        %v904 = vsub.f32 %v740, %v872
        %v905 = vsub.f32 %v741, %v873
        %v906 = vsub.f32 %v742, %v874
        %v907 = vsub.f32 %v743, %v875
        %v908 = vsub.f32 %v744, %v876
        %v909 = vsub.f32 %v745, %v877
        %v910 = vsub.f32 %v746, %v878
        %v911 = vsub.f32 %v747, %v879
        %v912 = vsub.f32 %v748, %v880
        %v913 = vsub.f32 %v749, %v881
        %v914 = vsub.f32 %v750, %v882
        %v915 = vsub.f32 %v751, %v883
        %v916 = vsub.f32 %v752, %v884
        %v917 = vsub.f32 %v753, %v885
        %v918 = vsub.f32 %v754, %v886
        %v919 = vsub.f32 %v755, %v887
        %v920 = vmul.f32 %v888, %v888
        %v921 = vmul.f32 %v889, %v889
        %v922 = vmul.f32 %v890, %v890
        %v923 = vmul.f32 %v891, %v891
        %v924 = vmul.f32 %v892, %v892
        %v925 = vmul.f32 %v893, %v893
        %v926 = vmul.f32 %v894, %v894
        %v927 = vmul.f32 %v895, %v895
        %v928 = vmul.f32 %v896, %v896
        %v929 = vmul.f32 %v897, %v897
        %v930 = vmul.f32 %v898, %v898
        %v931 = vmul.f32 %v899, %v899
        %v932 = vmul.f32 %v900, %v900
        %v933 = vmul.f32 %v901, %v901
        %v934 = vmul.f32 %v902, %v902
        %v935 = vmul.f32 %v903, %v903
        %v936 = vmul.f32 %v904, %v904
        %v937 = vmul.f32 %v905, %v905
        %v938 = vmul.f32 %v906, %v906
        %v939 = vmul.f32 %v907, %v907
        %v940 = vmul.f32 %v908, %v908
        %v941 = vmul.f32 %v909, %v909
        %v942 = vmul.f32 %v910, %v910
        %v943 = vmul.f32 %v911, %v911
        %v944 = vmul.f32 %v912, %v912
        %v945 = vmul.f32 %v913, %v913
        %v946 = vmul.f32 %v914, %v914
        %v947 = vmul.f32 %v915, %v915
        %v948 = vmul.f32 %v916, %v916
        %v949 = vmul.f32 %v917, %v917
        %v950 = vmul.f32 %v918, %v918
        %v951 = vmul.f32 %v919, %v919
        %v952 = vsel %vm758, %v920, 0.0
        %953 = vadd.xlane.f32.xlu0 %v952
        %v954 = vpop.xlane.xlu0 %953
        %v955 = vsel %vm758, %v921, 0.0
        %956 = vadd.xlane.f32.xlu0 %v955
        %v957 = vpop.xlane.xlu0 %956
        %v958 = vsel %vm758, %v922, 0.0
        %959 = vadd.xlane.f32.xlu0 %v958
        %v960 = vpop.xlane.xlu0 %959
        %v961 = vsel %vm758, %v923, 0.0
        %962 = vadd.xlane.f32.xlu0 %v961
        %v963 = vpop.xlane.xlu0 %962
        %v964 = vsel %vm758, %v924, 0.0
        %965 = vadd.xlane.f32.xlu0 %v964
        %v966 = vpop.xlane.xlu0 %965
        %v967 = vsel %vm758, %v925, 0.0
        %968 = vadd.xlane.f32.xlu0 %v967
        %v969 = vpop.xlane.xlu0 %968
        %v970 = vsel %vm758, %v926, 0.0
        %971 = vadd.xlane.f32.xlu0 %v970
        %v972 = vpop.xlane.xlu0 %971
        %v973 = vsel %vm758, %v927, 0.0
        %974 = vadd.xlane.f32.xlu0 %v973
        %v975 = vpop.xlane.xlu0 %974
        %v976 = vsel %vm758, %v928, 0.0
        %977 = vadd.xlane.f32.xlu0 %v976
        %v978 = vpop.xlane.xlu0 %977
        %v979 = vsel %vm758, %v929, 0.0
        %980 = vadd.xlane.f32.xlu0 %v979
        %v981 = vpop.xlane.xlu0 %980
        %v982 = vsel %vm758, %v930, 0.0
        %983 = vadd.xlane.f32.xlu0 %v982
        %v984 = vpop.xlane.xlu0 %983
        %v985 = vsel %vm758, %v931, 0.0
        %986 = vadd.xlane.f32.xlu0 %v985
        %v987 = vpop.xlane.xlu0 %986
        %v988 = vsel %vm758, %v932, 0.0
        %989 = vadd.xlane.f32.xlu0 %v988
        %v990 = vpop.xlane.xlu0 %989
        %v991 = vsel %vm758, %v933, 0.0
        %992 = vadd.xlane.f32.xlu0 %v991
        %v993 = vpop.xlane.xlu0 %992
        %v994 = vsel %vm758, %v934, 0.0
        %995 = vadd.xlane.f32.xlu0 %v994
        %v996 = vpop.xlane.xlu0 %995
        %v997 = vsel %vm758, %v935, 0.0
        %998 = vadd.xlane.f32.xlu0 %v997
        %v999 = vpop.xlane.xlu0 %998
        %v1000 = vsel %vm758, %v936, 0.0
        %1001 = vadd.xlane.f32.xlu0 %v1000
        %v1002 = vpop.xlane.xlu0 %1001
        %v1003 = vsel %vm758, %v937, 0.0
        %1004 = vadd.xlane.f32.xlu0 %v1003
        %v1005 = vpop.xlane.xlu0 %1004
        %v1006 = vsel %vm758, %v938, 0.0
        %1007 = vadd.xlane.f32.xlu0 %v1006
        %v1008 = vpop.xlane.xlu0 %1007
        %v1009 = vsel %vm758, %v939, 0.0
        %1010 = vadd.xlane.f32.xlu0 %v1009
        %v1011 = vpop.xlane.xlu0 %1010
        %v1012 = vsel %vm758, %v940, 0.0
        %1013 = vadd.xlane.f32.xlu0 %v1012
        %v1014 = vpop.xlane.xlu0 %1013
        %v1015 = vsel %vm758, %v941, 0.0
        %1016 = vadd.xlane.f32.xlu0 %v1015
        %v1017 = vpop.xlane.xlu0 %1016
        %v1018 = vsel %vm758, %v942, 0.0
        %1019 = vadd.xlane.f32.xlu0 %v1018
        %v1020 = vpop.xlane.xlu0 %1019
        %v1021 = vsel %vm758, %v943, 0.0
        %1022 = vadd.xlane.f32.xlu0 %v1021
        %v1023 = vpop.xlane.xlu0 %1022
        %v1024 = vsel %vm758, %v944, 0.0
        %1025 = vadd.xlane.f32.xlu0 %v1024
        %v1026 = vpop.xlane.xlu0 %1025
        %v1027 = vsel %vm758, %v945, 0.0
        %1028 = vadd.xlane.f32.xlu0 %v1027
        %v1029 = vpop.xlane.xlu0 %1028
        %v1030 = vsel %vm758, %v946, 0.0
        %1031 = vadd.xlane.f32.xlu0 %v1030
        %v1032 = vpop.xlane.xlu0 %1031
        %v1033 = vsel %vm758, %v947, 0.0
        %1034 = vadd.xlane.f32.xlu0 %v1033
        %v1035 = vpop.xlane.xlu0 %1034
        %v1036 = vsel %vm758, %v948, 0.0
        %1037 = vadd.xlane.f32.xlu0 %v1036
        %v1038 = vpop.xlane.xlu0 %1037
        %v1039 = vsel %vm758, %v949, 0.0
        %1040 = vadd.xlane.f32.xlu0 %v1039
        %v1041 = vpop.xlane.xlu0 %1040
        %v1042 = vsel %vm758, %v950, 0.0
        %1043 = vadd.xlane.f32.xlu0 %v1042
        %v1044 = vpop.xlane.xlu0 %1043
        %v1045 = vsel %vm758, %v951, 0.0
        %1046 = vadd.xlane.f32.xlu0 %v1045
        %v1047 = vpop.xlane.xlu0 %1046
        %v1048 = vmul.f32 %v954, %v855
        %v1049 = vmul.f32 %v957, %v855
        %v1050 = vmul.f32 %v960, %v855
        %v1051 = vmul.f32 %v963, %v855
        %v1052 = vmul.f32 %v966, %v855
        %v1053 = vmul.f32 %v969, %v855
        %v1054 = vmul.f32 %v972, %v855
        %v1055 = vmul.f32 %v975, %v855
        %v1056 = vmul.f32 %v978, %v855
        %v1057 = vmul.f32 %v981, %v855
        %v1058 = vmul.f32 %v984, %v855
        %v1059 = vmul.f32 %v987, %v855
        %v1060 = vmul.f32 %v990, %v855
        %v1061 = vmul.f32 %v993, %v855
        %v1062 = vmul.f32 %v996, %v855
        %v1063 = vmul.f32 %v999, %v855
        %v1064 = vmul.f32 %v1002, %v855
        %v1065 = vmul.f32 %v1005, %v855
        %v1066 = vmul.f32 %v1008, %v855
        %v1067 = vmul.f32 %v1011, %v855
        %v1068 = vmul.f32 %v1014, %v855
        %v1069 = vmul.f32 %v1017, %v855
        %v1070 = vmul.f32 %v1020, %v855
        %v1071 = vmul.f32 %v1023, %v855
        %v1072 = vmul.f32 %v1026, %v855
        %v1073 = vmul.f32 %v1029, %v855
        %v1074 = vmul.f32 %v1032, %v855
        %v1075 = vmul.f32 %v1035, %v855
        %v1076 = vmul.f32 %v1038, %v855
        %v1077 = vmul.f32 %v1041, %v855
        %v1078 = vmul.f32 %v1044, %v855
        %v1079 = vmul.f32 %v1047, %v855
        %v1080 = vadd.f32 %v1048, 1e-06
        %v1081 = vadd.f32 %v1049, 1e-06
        %v1082 = vadd.f32 %v1050, 1e-06
        %v1083 = vadd.f32 %v1051, 1e-06
        %v1084 = vadd.f32 %v1052, 1e-06
        %v1085 = vadd.f32 %v1053, 1e-06
        %v1086 = vadd.f32 %v1054, 1e-06
        %v1087 = vadd.f32 %v1055, 1e-06
        %v1088 = vadd.f32 %v1056, 1e-06
        %v1089 = vadd.f32 %v1057, 1e-06
        %v1090 = vadd.f32 %v1058, 1e-06
        %v1091 = vadd.f32 %v1059, 1e-06
        %v1092 = vadd.f32 %v1060, 1e-06
        %v1093 = vadd.f32 %v1061, 1e-06
        %v1094 = vadd.f32 %v1062, 1e-06
        %v1095 = vadd.f32 %v1063, 1e-06
        %v1096 = vadd.f32 %v1064, 1e-06
        %v1097 = vadd.f32 %v1065, 1e-06
        %v1098 = vadd.f32 %v1066, 1e-06
        %v1099 = vadd.f32 %v1067, 1e-06
        %v1100 = vadd.f32 %v1068, 1e-06
        %v1101 = vadd.f32 %v1069, 1e-06
        %v1102 = vadd.f32 %v1070, 1e-06
        %v1103 = vadd.f32 %v1071, 1e-06
        %v1104 = vadd.f32 %v1072, 1e-06
        %v1105 = vadd.f32 %v1073, 1e-06
        %v1106 = vadd.f32 %v1074, 1e-06
        %v1107 = vadd.f32 %v1075, 1e-06
        %v1108 = vadd.f32 %v1076, 1e-06
        %v1109 = vadd.f32 %v1077, 1e-06
        %v1110 = vadd.f32 %v1078, 1e-06
        %v1111 = vadd.f32 %v1079, 1e-06
        %v1112 = vrsqrt.pop %v1080
        %v1113 = vrsqrt.pop %v1081
        %v1114 = vrsqrt.pop %v1082
        %v1115 = vrsqrt.pop %v1083
        %v1116 = vrsqrt.pop %v1084
        %v1117 = vrsqrt.pop %v1085
        %v1118 = vrsqrt.pop %v1086
        %v1119 = vrsqrt.pop %v1087
        %v1120 = vrsqrt.pop %v1088
        %v1121 = vrsqrt.pop %v1089
        %v1122 = vrsqrt.pop %v1090
        %v1123 = vrsqrt.pop %v1091
        %v1124 = vrsqrt.pop %v1092
        %v1125 = vrsqrt.pop %v1093
        %v1126 = vrsqrt.pop %v1094
        %v1127 = vrsqrt.pop %v1095
        %v1128 = vrsqrt.pop %v1096
        %v1129 = vrsqrt.pop %v1097
        %v1130 = vrsqrt.pop %v1098
        %v1131 = vrsqrt.pop %v1099
        %v1132 = vrsqrt.pop %v1100
        %v1133 = vrsqrt.pop %v1101
        %v1134 = vrsqrt.pop %v1102
        %v1135 = vrsqrt.pop %v1103
        %v1136 = vrsqrt.pop %v1104
        %v1137 = vrsqrt.pop %v1105
        %v1138 = vrsqrt.pop %v1106
        %v1139 = vrsqrt.pop %v1107
        %v1140 = vrsqrt.pop %v1108
        %v1141 = vrsqrt.pop %v1109
        %v1142 = vrsqrt.pop %v1110
        %v1143 = vrsqrt.pop %v1111
        %v1144 = vmul.f32 %v888, %v1112
        %v1145 = vmul.f32 %v889, %v1113
        %v1146 = vmul.f32 %v890, %v1114
        %v1147 = vmul.f32 %v891, %v1115
        %v1148 = vmul.f32 %v892, %v1116
        %v1149 = vmul.f32 %v893, %v1117
        %v1150 = vmul.f32 %v894, %v1118
        %v1151 = vmul.f32 %v895, %v1119
        %v1152 = vmul.f32 %v896, %v1120
        %v1153 = vmul.f32 %v897, %v1121
        %v1154 = vmul.f32 %v898, %v1122
        %v1155 = vmul.f32 %v899, %v1123
        %v1156 = vmul.f32 %v900, %v1124
        %v1157 = vmul.f32 %v901, %v1125
        %v1158 = vmul.f32 %v902, %v1126
        %v1159 = vmul.f32 %v903, %v1127
        %v1160 = vmul.f32 %v904, %v1128
        %v1161 = vmul.f32 %v905, %v1129
        %v1162 = vmul.f32 %v906, %v1130
        %v1163 = vmul.f32 %v907, %v1131
        %v1164 = vmul.f32 %v908, %v1132
        %v1165 = vmul.f32 %v909, %v1133
        %v1166 = vmul.f32 %v910, %v1134
        %v1167 = vmul.f32 %v911, %v1135
        %v1168 = vmul.f32 %v912, %v1136
        %v1169 = vmul.f32 %v913, %v1137
        %v1170 = vmul.f32 %v914, %v1138
        %v1171 = vmul.f32 %v915, %v1139
        %v1172 = vmul.f32 %v916, %v1140
        %v1173 = vmul.f32 %v917, %v1141
        %v1174 = vmul.f32 %v918, %v1142
        %v1175 = vmul.f32 %v919, %v1143
        %v1177 = vlaneseq
        %v1178 = vshrl.u32 %v1177, 7
        %v1179 = vsub.s32 0, %v1178
        %v1180 = vrot.slane %v756, %v1179
        %v1182 = vmul.f32 %v1144, %v1180
        %v1183 = vmul.f32 %v1145, %v1180
        %v1184 = vmul.f32 %v1146, %v1180
        %v1185 = vmul.f32 %v1147, %v1180
        %v1186 = vmul.f32 %v1148, %v1180
        %v1187 = vmul.f32 %v1149, %v1180
        %v1188 = vmul.f32 %v1150, %v1180
        %v1189 = vmul.f32 %v1151, %v1180
        %v1190 = vmul.f32 %v1152, %v1180
        %v1191 = vmul.f32 %v1153, %v1180
        %v1192 = vmul.f32 %v1154, %v1180
        %v1193 = vmul.f32 %v1155, %v1180
        %v1194 = vmul.f32 %v1156, %v1180
        %v1195 = vmul.f32 %v1157, %v1180
        %v1196 = vmul.f32 %v1158, %v1180
        %v1197 = vmul.f32 %v1159, %v1180
        %v1198 = vmul.f32 %v1160, %v1180
        %v1199 = vmul.f32 %v1161, %v1180
        %v1200 = vmul.f32 %v1162, %v1180
        %v1201 = vmul.f32 %v1163, %v1180
        %v1202 = vmul.f32 %v1164, %v1180
        %v1203 = vmul.f32 %v1165, %v1180
        %v1204 = vmul.f32 %v1166, %v1180
        %v1205 = vmul.f32 %v1167, %v1180
        %v1206 = vmul.f32 %v1168, %v1180
        %v1207 = vmul.f32 %v1169, %v1180
        %v1208 = vmul.f32 %v1170, %v1180
        %v1209 = vmul.f32 %v1171, %v1180
        %v1210 = vmul.f32 %v1172, %v1180
        %v1211 = vmul.f32 %v1173, %v1180
        %v1212 = vmul.f32 %v1174, %v1180
        %v1213 = vmul.f32 %v1175, %v1180
        %v1215 = vlaneseq
        %v1216 = vshrl.u32 %v1215, 7
        %v1217 = vsub.s32 0, %v1216
        %v1218 = vrot.slane %v757, %v1217
        %v1220 = vadd.f32 %v1182, %v1218
        %v1221 = vadd.f32 %v1183, %v1218
        %v1222 = vadd.f32 %v1184, %v1218
        %v1223 = vadd.f32 %v1185, %v1218
        %v1224 = vadd.f32 %v1186, %v1218
        %v1225 = vadd.f32 %v1187, %v1218
        %v1226 = vadd.f32 %v1188, %v1218
        %v1227 = vadd.f32 %v1189, %v1218
        %v1228 = vadd.f32 %v1190, %v1218
        %v1229 = vadd.f32 %v1191, %v1218
        %v1230 = vadd.f32 %v1192, %v1218
        %v1231 = vadd.f32 %v1193, %v1218
        %v1232 = vadd.f32 %v1194, %v1218
        %v1233 = vadd.f32 %v1195, %v1218
        %v1234 = vadd.f32 %v1196, %v1218
        %v1235 = vadd.f32 %v1197, %v1218
        %v1236 = vadd.f32 %v1198, %v1218
        %v1237 = vadd.f32 %v1199, %v1218
        %v1238 = vadd.f32 %v1200, %v1218
        %v1239 = vadd.f32 %v1201, %v1218
        %v1240 = vadd.f32 %v1202, %v1218
        %v1241 = vadd.f32 %v1203, %v1218
        %v1242 = vadd.f32 %v1204, %v1218
        %v1243 = vadd.f32 %v1205, %v1218
        %v1244 = vadd.f32 %v1206, %v1218
        %v1245 = vadd.f32 %v1207, %v1218
        %v1246 = vadd.f32 %v1208, %v1218
        %v1247 = vadd.f32 %v1209, %v1218
        %v1248 = vadd.f32 %v1210, %v1218
        %v1249 = vadd.f32 %v1211, %v1218
        %v1250 = vadd.f32 %v1212, %v1218
        %v1251 = vadd.f32 %v1213, %v1218
        %v1252 = vld [vmem:[%s4] sm:$0xff]
        %v1253 = vld [vmem:[%s4 + $0x8] sm:$0xff]
        %v1254 = vld [vmem:[%s4 + $0x10] sm:$0xff]
        %v1255 = vld [vmem:[%s4 + $0x18] sm:$0xff]
        %v1256 = vld [vmem:[%s5] sm:$0x1]
        %v1258 = vlaneseq
        %v1259 = vshrl.u32 %v1258, 7
        %v1260 = vsub.s32 0, %v1259
        %v1261 = vrot.slane %v1256, %v1260
        %v1264 = vsel %vm758, %v1220, 0
        %v1267 = vsel %vm758, %v1221, 0
        %v1270 = vsel %vm758, %v1222, 0
        %v1273 = vsel %vm758, %v1223, 0
        %v1276 = vsel %vm758, %v1224, 0
        %v1279 = vsel %vm758, %v1225, 0
        %v1282 = vsel %vm758, %v1226, 0
        %v1285 = vsel %vm758, %v1227, 0
        %v1288 = vsel %vm758, %v1228, 0
        %v1291 = vsel %vm758, %v1229, 0
        %v1294 = vsel %vm758, %v1230, 0
        %v1297 = vsel %vm758, %v1231, 0
        %v1300 = vsel %vm758, %v1232, 0
        %v1303 = vsel %vm758, %v1233, 0
        %v1306 = vsel %vm758, %v1234, 0
        %v1309 = vsel %vm758, %v1235, 0
        %v1312 = vsel %vm758, %v1236, 0
        %v1315 = vsel %vm758, %v1237, 0
        %v1318 = vsel %vm758, %v1238, 0
        %v1321 = vsel %vm758, %v1239, 0
        %v1324 = vsel %vm758, %v1240, 0
        %v1327 = vsel %vm758, %v1241, 0
        %v1330 = vsel %vm758, %v1242, 0
        %v1333 = vsel %vm758, %v1243, 0
        %v1336 = vsel %vm758, %v1244, 0
        %v1339 = vsel %vm758, %v1245, 0
        %v1342 = vsel %vm758, %v1246, 0
        %v1345 = vsel %vm758, %v1247, 0
        %v1348 = vsel %vm758, %v1248, 0
        %v1351 = vsel %vm758, %v1249, 0
        %v1354 = vsel %vm758, %v1250, 0
        %v1357 = vsel %vm758, %v1251, 0
        %1359 = vmatprep.subr.mxu0 0.0
        %1360 = vmatpush1.msra.mxu0 %v1252
        %1361 = vmatprep.subr.mxu0 0.0
        %1362 = vmatpush1.msra.mxu0 %v1253
        %1363 = vmatprep.subr.mxu0 0.0
        %1364 = vmatpush1.msra.mxu0 %v1254
        %1365 = vmatprep.subr.mxu0 0.0
        %1366 = vmatpush1.msra.mxu0 %v1255
        %1367 = vmatprep.subr.mxu0 0.0
        %1368 = vmatpush1.msra.mxu0 0.0
        %1369 = vmatprep.subr.mxu0 0.0
        %1370 = vmatpush1.msra.mxu0 0.0
        %1371 = vmatprep.subr.mxu0 0.0
        %1372 = vmatpush1.msra.mxu0 0.0
        %1373 = vmatprep.subr.mxu0 0.0
        %1374 = vmatpush1.msra.mxu0 0.0
        %1375 = vmatprep.subr.mxu0 0.0
        %1376 = vmatpush1.msra.mxu0 0.0
        %1377 = vmatprep.subr.mxu0 0.0
        %1378 = vmatpush1.msra.mxu0 0.0
        %1379 = vmatprep.subr.mxu0 0.0
        %1380 = vmatpush1.msra.mxu0 0.0
        %1381 = vmatprep.subr.mxu0 0.0
        %1382 = vmatpush1.msra.mxu0 0.0
        %1383 = vmatprep.subr.mxu0 0.0
        %1384 = vmatpush1.msra.mxu0 0.0
        %1385 = vmatprep.subr.mxu0 0.0
        %1386 = vmatpush1.msra.mxu0 0.0
        %1387 = vmatprep.subr.mxu0 0.0
        %1388 = vmatpush1.msra.mxu0 0.0
        %1389 = vmatprep.subr.mxu0 0.0
        %1390 = vmatpush1.msra.mxu0 0.0
        %1391 = vmatprep.subr.mxu0 0.0
        %1392 = vmatpush1.msra.mxu0 0.0
        %1393 = vmatprep.subr.mxu0 0.0
        %1394 = vmatpush1.msra.mxu0 0.0
        %1395 = vmatprep.subr.mxu0 0.0
        %1396 = vmatpush1.msra.mxu0 0.0
        %1397 = vmatprep.subr.mxu0 0.0
        %1398 = vmatpush1.msra.mxu0 0.0
        %1399 = vmatprep.subr.mxu0 0.0
        %1400 = vmatpush1.msra.mxu0 0.0
        %1401 = vmatprep.subr.mxu0 0.0
        %1402 = vmatpush1.msra.mxu0 0.0
        %1403 = vmatprep.subr.mxu0 0.0
        %1404 = vmatpush1.msra.mxu0 0.0
        %1405 = vmatprep.subr.mxu0 0.0
        %1406 = vmatpush1.msra.mxu0 0.0
        %1407 = vmatprep.subr.mxu0 0.0
        %1408 = vmatpush1.msra.mxu0 0.0
        %1409 = vmatprep.subr.mxu0 0.0
        %1410 = vmatpush1.msra.mxu0 0.0
        %1411 = vmatprep.subr.mxu0 0.0
        %1412 = vmatpush1.msra.mxu0 0.0
        %1413 = vmatprep.subr.mxu0 0.0
        %1414 = vmatpush1.msra.mxu0 0.0
        %1415 = vmatprep.subr.mxu0 0.0
        %1416 = vmatpush1.msra.mxu0 0.0
        %1417 = vmatprep.subr.mxu0 0.0
        %1418 = vmatpush1.msra.mxu0 0.0
        %1419 = vmatprep.subr.mxu0 0.0
        %1420 = vmatpush1.msra.mxu0 0.0
        %1421 = vmatprep.subr.mxu0 0.0
        %1422 = vmatpush1.msra.mxu0 0.0
        %1423 = vmatprep.mubr.f32.mxu0 0.0
        %1424 = vmatmul.mubr.f32.gmra.mrb[0].mxu0 %v1264
        %v1425 = vpop.f32.mrb[0].mxu0
        %v1426 = vadd.f32 %v1261, %v1425
        %v1427 = vpop.f32.mrb[0].mxu0
        %1428 = vmatprep.mubr.f32.mxu0 0.0
        %1429 = vmatmul.mubr.f32.gmra.mrb[0].mxu0 %v1267
        %v1430 = vpop.f32.mrb[0].mxu0
        %v1431 = vadd.f32 %v1261, %v1430
        %v1432 = vpop.f32.mrb[0].mxu0
        %1433 = vmatprep.mubr.f32.mxu0 0.0
        %1434 = vmatmul.mubr.f32.gmra.mrb[0].mxu0 %v1270
        %v1435 = vpop.f32.mrb[0].mxu0
        %v1436 = vadd.f32 %v1261, %v1435
        %v1437 = vpop.f32.mrb[0].mxu0
        %1438 = vmatprep.mubr.f32.mxu0 0.0
        %1439 = vmatmul.mubr.f32.gmra.mrb[0].mxu0 %v1273
        %v1440 = vpop.f32.mrb[0].mxu0
        %v1441 = vadd.f32 %v1261, %v1440
        %v1442 = vpop.f32.mrb[0].mxu0
        %1443 = vmatprep.mubr.f32.mxu0 0.0
        %1444 = vmatmul.mubr.f32.gmra.mrb[0].mxu0 %v1276
        %v1445 = vpop.f32.mrb[0].mxu0
        %v1446 = vadd.f32 %v1261, %v1445
        %v1447 = vpop.f32.mrb[0].mxu0
        %1448 = vmatprep.mubr.f32.mxu0 0.0
        %1449 = vmatmul.mubr.f32.gmra.mrb[0].mxu0 %v1279
        %v1450 = vpop.f32.mrb[0].mxu0
        %v1451 = vadd.f32 %v1261, %v1450
        %v1452 = vpop.f32.mrb[0].mxu0
        %1453 = vmatprep.mubr.f32.mxu0 0.0
        %1454 = vmatmul.mubr.f32.gmra.mrb[0].mxu0 %v1282
        %v1455 = vpop.f32.mrb[0].mxu0
        %v1456 = vadd.f32 %v1261, %v1455
        %v1457 = vpop.f32.mrb[0].mxu0
        %1458 = vmatprep.mubr.f32.mxu0 0.0
        %1459 = vmatmul.mubr.f32.gmra.mrb[0].mxu0 %v1285
        %v1460 = vpop.f32.mrb[0].mxu0
        %v1461 = vadd.f32 %v1261, %v1460
        %v1462 = vpop.f32.mrb[0].mxu0
        %1463 = vmatprep.mubr.f32.mxu0 0.0
        %1464 = vmatmul.mubr.f32.gmra.mrb[0].mxu0 %v1288
        %v1465 = vpop.f32.mrb[0].mxu0
        %v1466 = vadd.f32 %v1261, %v1465
        %v1467 = vpop.f32.mrb[0].mxu0
        %1468 = vmatprep.mubr.f32.mxu0 0.0
        %1469 = vmatmul.mubr.f32.gmra.mrb[0].mxu0 %v1291
        %v1470 = vpop.f32.mrb[0].mxu0
        %v1471 = vadd.f32 %v1261, %v1470
        %v1472 = vpop.f32.mrb[0].mxu0
        %1473 = vmatprep.mubr.f32.mxu0 0.0
        %1474 = vmatmul.mubr.f32.gmra.mrb[0].mxu0 %v1294
        %v1475 = vpop.f32.mrb[0].mxu0
        %v1476 = vadd.f32 %v1261, %v1475
        %v1477 = vpop.f32.mrb[0].mxu0
        %1478 = vmatprep.mubr.f32.mxu0 0.0
        %1479 = vmatmul.mubr.f32.gmra.mrb[0].mxu0 %v1297
        %v1480 = vpop.f32.mrb[0].mxu0
        %v1481 = vadd.f32 %v1261, %v1480
        %v1482 = vpop.f32.mrb[0].mxu0
        %1483 = vmatprep.mubr.f32.mxu0 0.0
        %1484 = vmatmul.mubr.f32.gmra.mrb[0].mxu0 %v1300
        %v1485 = vpop.f32.mrb[0].mxu0
        %v1486 = vadd.f32 %v1261, %v1485
        %v1487 = vpop.f32.mrb[0].mxu0
        %1488 = vmatprep.mubr.f32.mxu0 0.0
        %1489 = vmatmul.mubr.f32.gmra.mrb[0].mxu0 %v1303
        %v1490 = vpop.f32.mrb[0].mxu0
        %v1491 = vadd.f32 %v1261, %v1490
        %v1492 = vpop.f32.mrb[0].mxu0
        %1493 = vmatprep.mubr.f32.mxu0 0.0
        %1494 = vmatmul.mubr.f32.gmra.mrb[0].mxu0 %v1306
        %v1495 = vpop.f32.mrb[0].mxu0
        %v1496 = vadd.f32 %v1261, %v1495
        %v1497 = vpop.f32.mrb[0].mxu0
        %1498 = vmatprep.mubr.f32.mxu0 0.0
        %1499 = vmatmul.mubr.f32.gmra.mrb[0].mxu0 %v1309
        %v1500 = vpop.f32.mrb[0].mxu0
        %v1501 = vadd.f32 %v1261, %v1500
        %v1502 = vpop.f32.mrb[0].mxu0
        %1503 = vmatprep.mubr.f32.mxu0 0.0
        %1504 = vmatmul.mubr.f32.gmra.mrb[0].mxu0 %v1312
        %v1505 = vpop.f32.mrb[0].mxu0
        %v1506 = vadd.f32 %v1261, %v1505
        %v1507 = vpop.f32.mrb[0].mxu0
        %1508 = vmatprep.mubr.f32.mxu0 0.0
        %1509 = vmatmul.mubr.f32.gmra.mrb[0].mxu0 %v1315
        %v1510 = vpop.f32.mrb[0].mxu0
        %v1511 = vadd.f32 %v1261, %v1510
        %v1512 = vpop.f32.mrb[0].mxu0
        %1513 = vmatprep.mubr.f32.mxu0 0.0
        %1514 = vmatmul.mubr.f32.gmra.mrb[0].mxu0 %v1318
        %v1515 = vpop.f32.mrb[0].mxu0
        %v1516 = vadd.f32 %v1261, %v1515
        %v1517 = vpop.f32.mrb[0].mxu0
        %1518 = vmatprep.mubr.f32.mxu0 0.0
        %1519 = vmatmul.mubr.f32.gmra.mrb[0].mxu0 %v1321
        %v1520 = vpop.f32.mrb[0].mxu0
        %v1521 = vadd.f32 %v1261, %v1520
        %v1522 = vpop.f32.mrb[0].mxu0
        %1523 = vmatprep.mubr.f32.mxu0 0.0
        %1524 = vmatmul.mubr.f32.gmra.mrb[0].mxu0 %v1324
        %v1525 = vpop.f32.mrb[0].mxu0
        %v1526 = vadd.f32 %v1261, %v1525
        %v1527 = vpop.f32.mrb[0].mxu0
        %1528 = vmatprep.mubr.f32.mxu0 0.0
        %1529 = vmatmul.mubr.f32.gmra.mrb[0].mxu0 %v1327
        %v1530 = vpop.f32.mrb[0].mxu0
        %v1531 = vadd.f32 %v1261, %v1530
        %v1532 = vpop.f32.mrb[0].mxu0
        %1533 = vmatprep.mubr.f32.mxu0 0.0
        %1534 = vmatmul.mubr.f32.gmra.mrb[0].mxu0 %v1330
        %v1535 = vpop.f32.mrb[0].mxu0
        %v1536 = vadd.f32 %v1261, %v1535
        %v1537 = vpop.f32.mrb[0].mxu0
        %1538 = vmatprep.mubr.f32.mxu0 0.0
        %1539 = vmatmul.mubr.f32.gmra.mrb[0].mxu0 %v1333
        %v1540 = vpop.f32.mrb[0].mxu0
        %v1541 = vadd.f32 %v1261, %v1540
        %v1542 = vpop.f32.mrb[0].mxu0
        %1543 = vmatprep.mubr.f32.mxu0 0.0
        %1544 = vmatmul.mubr.f32.gmra.mrb[0].mxu0 %v1336
        %v1545 = vpop.f32.mrb[0].mxu0
        %v1546 = vadd.f32 %v1261, %v1545
        %v1547 = vpop.f32.mrb[0].mxu0
        %1548 = vmatprep.mubr.f32.mxu0 0.0
        %1549 = vmatmul.mubr.f32.gmra.mrb[0].mxu0 %v1339
        %v1550 = vpop.f32.mrb[0].mxu0
        %v1551 = vadd.f32 %v1261, %v1550
        %v1552 = vpop.f32.mrb[0].mxu0
        %1553 = vmatprep.mubr.f32.mxu0 0.0
        %1554 = vmatmul.mubr.f32.gmra.mrb[0].mxu0 %v1342
        %v1555 = vpop.f32.mrb[0].mxu0
        %v1556 = vadd.f32 %v1261, %v1555
        %v1557 = vpop.f32.mrb[0].mxu0
        %1558 = vmatprep.mubr.f32.mxu0 0.0
        %1559 = vmatmul.mubr.f32.gmra.mrb[0].mxu0 %v1345
        %v1560 = vpop.f32.mrb[0].mxu0
        %v1561 = vadd.f32 %v1261, %v1560
        %v1562 = vpop.f32.mrb[0].mxu0
        %1563 = vmatprep.mubr.f32.mxu0 0.0
        %1564 = vmatmul.mubr.f32.gmra.mrb[0].mxu0 %v1348
        %v1565 = vpop.f32.mrb[0].mxu0
        %v1566 = vadd.f32 %v1261, %v1565
        %v1567 = vpop.f32.mrb[0].mxu0
        %1568 = vmatprep.mubr.f32.mxu0 0.0
        %1569 = vmatmul.mubr.f32.gmra.mrb[0].mxu0 %v1351
        %v1570 = vpop.f32.mrb[0].mxu0
        %v1571 = vadd.f32 %v1261, %v1570
        %v1572 = vpop.f32.mrb[0].mxu0
        %1573 = vmatprep.mubr.f32.mxu0 0.0
        %1574 = vmatmul.mubr.f32.gmra.mrb[0].mxu0 %v1354
        %v1575 = vpop.f32.mrb[0].mxu0
        %v1576 = vadd.f32 %v1261, %v1575
        %v1577 = vpop.f32.mrb[0].mxu0
        %1578 = vmatprep.mubr.f32.mxu0 0.0
        %1579 = vmatmul.mubr.f32.gmra.mrb[0].mxu0 %v1357
        %v1580 = vpop.f32.mrb[0].mxu0
        %v1581 = vadd.f32 %v1261, %v1580
        %v1582 = vpop.f32.mrb[0].mxu0
        %1583 = vdwg.mxu0
        %v1584 = vmul.f32 %v1426, 0.5
        %v1585 = vmul.f32 %v1431, 0.5
        %v1586 = vmul.f32 %v1436, 0.5
        %v1587 = vmul.f32 %v1441, 0.5
        %v1588 = vmul.f32 %v1446, 0.5
        %v1589 = vmul.f32 %v1451, 0.5
        %v1590 = vmul.f32 %v1456, 0.5
        %v1591 = vmul.f32 %v1461, 0.5
        %v1592 = vmul.f32 %v1466, 0.5
        %v1593 = vmul.f32 %v1471, 0.5
        %v1594 = vmul.f32 %v1476, 0.5
        %v1595 = vmul.f32 %v1481, 0.5
        %v1596 = vmul.f32 %v1486, 0.5
        %v1597 = vmul.f32 %v1491, 0.5
        %v1598 = vmul.f32 %v1496, 0.5
        %v1599 = vmul.f32 %v1501, 0.5
        %v1600 = vmul.f32 %v1506, 0.5
        %v1601 = vmul.f32 %v1511, 0.5
        %v1602 = vmul.f32 %v1516, 0.5
        %v1603 = vmul.f32 %v1521, 0.5
        %v1604 = vmul.f32 %v1526, 0.5
        %v1605 = vmul.f32 %v1531, 0.5
        %v1606 = vmul.f32 %v1536, 0.5
        %v1607 = vmul.f32 %v1541, 0.5
        %v1608 = vmul.f32 %v1546, 0.5
        %v1609 = vmul.f32 %v1551, 0.5
        %v1610 = vmul.f32 %v1556, 0.5
        %v1611 = vmul.f32 %v1561, 0.5
        %v1612 = vmul.f32 %v1566, 0.5
        %v1613 = vmul.f32 %v1571, 0.5
        %v1614 = vmul.f32 %v1576, 0.5
        %v1615 = vmul.f32 %v1581, 0.5
        %v1616 = vmul.f32 %v1426, 0.70710677
        %v1617 = vmul.f32 %v1431, 0.70710677
        %v1618 = vmul.f32 %v1436, 0.70710677
        %v1619 = vmul.f32 %v1441, 0.70710677
        %v1620 = vmul.f32 %v1446, 0.70710677
        %v1621 = vmul.f32 %v1451, 0.70710677
        %v1622 = vmul.f32 %v1456, 0.70710677
        %v1623 = vmul.f32 %v1461, 0.70710677
        %v1624 = vmul.f32 %v1466, 0.70710677
        %v1625 = vmul.f32 %v1471, 0.70710677
        %v1626 = vmul.f32 %v1476, 0.70710677
        %v1627 = vmul.f32 %v1481, 0.70710677
        %v1628 = vmul.f32 %v1486, 0.70710677
        %v1629 = vmul.f32 %v1491, 0.70710677
        %v1630 = vmul.f32 %v1496, 0.70710677
        %v1631 = vmul.f32 %v1501, 0.70710677
        %v1632 = vmul.f32 %v1506, 0.70710677
        %v1633 = vmul.f32 %v1511, 0.70710677
        %v1634 = vmul.f32 %v1516, 0.70710677
        %v1635 = vmul.f32 %v1521, 0.70710677
        %v1636 = vmul.f32 %v1526, 0.70710677
        %v1637 = vmul.f32 %v1531, 0.70710677
        %v1638 = vmul.f32 %v1536, 0.70710677
        %v1639 = vmul.f32 %v1541, 0.70710677
        %v1640 = vmul.f32 %v1546, 0.70710677
        %v1641 = vmul.f32 %v1551, 0.70710677
        %v1642 = vmul.f32 %v1556, 0.70710677
        %v1643 = vmul.f32 %v1561, 0.70710677
        %v1644 = vmul.f32 %v1566, 0.70710677
        %v1645 = vmul.f32 %v1571, 0.70710677
        %v1646 = vmul.f32 %v1576, 0.70710677
        %v1647 = vmul.f32 %v1581, 0.70710677
        %v1648 = verf.f32.pop %v1616
        %v1649 = verf.f32.pop %v1617
        %v1650 = verf.f32.pop %v1618
        %v1651 = verf.f32.pop %v1619
        %v1652 = verf.f32.pop %v1620
        %v1653 = verf.f32.pop %v1621
        %v1654 = verf.f32.pop %v1622
        %v1655 = verf.f32.pop %v1623
        %v1656 = verf.f32.pop %v1624
        %v1657 = verf.f32.pop %v1625
        %v1658 = verf.f32.pop %v1626
        %v1659 = verf.f32.pop %v1627
        %v1660 = verf.f32.pop %v1628
        %v1661 = verf.f32.pop %v1629
        %v1662 = verf.f32.pop %v1630
        %v1663 = verf.f32.pop %v1631
        %v1664 = verf.f32.pop %v1632
        %v1665 = verf.f32.pop %v1633
        %v1666 = verf.f32.pop %v1634
        %v1667 = verf.f32.pop %v1635
        %v1668 = verf.f32.pop %v1636
        %v1669 = verf.f32.pop %v1637
        %v1670 = verf.f32.pop %v1638
        %v1671 = verf.f32.pop %v1639
        %v1672 = verf.f32.pop %v1640
        %v1673 = verf.f32.pop %v1641
        %v1674 = verf.f32.pop %v1642
        %v1675 = verf.f32.pop %v1643
        %v1676 = verf.f32.pop %v1644
        %v1677 = verf.f32.pop %v1645
        %v1678 = verf.f32.pop %v1646
        %v1679 = verf.f32.pop %v1647
        %v1680 = vadd.f32 %v1648, 1.0
        %v1681 = vadd.f32 %v1649, 1.0
        %v1682 = vadd.f32 %v1650, 1.0
        %v1683 = vadd.f32 %v1651, 1.0
        %v1684 = vadd.f32 %v1652, 1.0
        %v1685 = vadd.f32 %v1653, 1.0
        %v1686 = vadd.f32 %v1654, 1.0
        %v1687 = vadd.f32 %v1655, 1.0
        %v1688 = vadd.f32 %v1656, 1.0
        %v1689 = vadd.f32 %v1657, 1.0
        %v1690 = vadd.f32 %v1658, 1.0
        %v1691 = vadd.f32 %v1659, 1.0
        %v1692 = vadd.f32 %v1660, 1.0
        %v1693 = vadd.f32 %v1661, 1.0
        %v1694 = vadd.f32 %v1662, 1.0
        %v1695 = vadd.f32 %v1663, 1.0
        %v1696 = vadd.f32 %v1664, 1.0
        %v1697 = vadd.f32 %v1665, 1.0
        %v1698 = vadd.f32 %v1666, 1.0
        %v1699 = vadd.f32 %v1667, 1.0
        %v1700 = vadd.f32 %v1668, 1.0
        %v1701 = vadd.f32 %v1669, 1.0
        %v1702 = vadd.f32 %v1670, 1.0
        %v1703 = vadd.f32 %v1671, 1.0
        %v1704 = vadd.f32 %v1672, 1.0
        %v1705 = vadd.f32 %v1673, 1.0
        %v1706 = vadd.f32 %v1674, 1.0
        %v1707 = vadd.f32 %v1675, 1.0
        %v1708 = vadd.f32 %v1676, 1.0
        %v1709 = vadd.f32 %v1677, 1.0
        %v1710 = vadd.f32 %v1678, 1.0
        %v1711 = vadd.f32 %v1679, 1.0
        %v1712 = vmul.f32 %v1584, %v1680
        %v1713 = vmul.f32 %v1585, %v1681
        %v1714 = vmul.f32 %v1586, %v1682
        %v1715 = vmul.f32 %v1587, %v1683
        %v1716 = vmul.f32 %v1588, %v1684
        %v1717 = vmul.f32 %v1589, %v1685
        %v1718 = vmul.f32 %v1590, %v1686
        %v1719 = vmul.f32 %v1591, %v1687
        %v1720 = vmul.f32 %v1592, %v1688
        %v1721 = vmul.f32 %v1593, %v1689
        %v1722 = vmul.f32 %v1594, %v1690
        %v1723 = vmul.f32 %v1595, %v1691
        %v1724 = vmul.f32 %v1596, %v1692
        %v1725 = vmul.f32 %v1597, %v1693
        %v1726 = vmul.f32 %v1598, %v1694
        %v1727 = vmul.f32 %v1599, %v1695
        %v1728 = vmul.f32 %v1600, %v1696
        %v1729 = vmul.f32 %v1601, %v1697
        %v1730 = vmul.f32 %v1602, %v1698
        %v1731 = vmul.f32 %v1603, %v1699
        %v1732 = vmul.f32 %v1604, %v1700
        %v1733 = vmul.f32 %v1605, %v1701
        %v1734 = vmul.f32 %v1606, %v1702
        %v1735 = vmul.f32 %v1607, %v1703
        %v1736 = vmul.f32 %v1608, %v1704
        %v1737 = vmul.f32 %v1609, %v1705
        %v1738 = vmul.f32 %v1610, %v1706
        %v1739 = vmul.f32 %v1611, %v1707
        %v1740 = vmul.f32 %v1612, %v1708
        %v1741 = vmul.f32 %v1613, %v1709
        %v1742 = vmul.f32 %v1614, %v1710
        %v1743 = vmul.f32 %v1615, %v1711
        %v1744 = vld [vmem:[%s6] sm:$0xff]
        %v1745 = vld [vmem:[%s6 + $0x8] sm:$0xff]
        %v1746 = vld [vmem:[%s6 + $0x10] sm:$0xff]
        %v1747 = vld [vmem:[%s6 + $0x18] sm:$0xff]
        %v1748 = vld [vmem:[%s6 + $0x20] sm:$0xff]
        %v1749 = vld [vmem:[%s6 + $0x28] sm:$0xff]
        %v1750 = vld [vmem:[%s6 + $0x30] sm:$0xff]
        %v1751 = vld [vmem:[%s6 + $0x38] sm:$0xff]
        %v1752 = vld [vmem:[%s6 + $0x40] sm:$0xff]
        %v1753 = vld [vmem:[%s6 + $0x48] sm:$0xff]
        %v1754 = vld [vmem:[%s6 + $0x50] sm:$0xff]
        %v1755 = vld [vmem:[%s6 + $0x58] sm:$0xff]
        %v1756 = vld [vmem:[%s6 + $0x60] sm:$0xff]
        %v1757 = vld [vmem:[%s6 + $0x68] sm:$0xff]
        %v1758 = vld [vmem:[%s6 + $0x70] sm:$0xff]
        %v1759 = vld [vmem:[%s6 + $0x78] sm:$0xff]
        %v1760 = vld [vmem:[%s7] sm:$0x1]
        %v1762 = vlaneseq
        %v1763 = vshrl.u32 %v1762, 7
        %v1764 = vsub.s32 0, %v1763
        %v1765 = vrot.slane %v1760, %v1764
        %1767 = vmatprep.subr.mxu0 0.0
        %1768 = vmatpush1.msra.mxu0 %v1744
        %1769 = vmatprep.subr.mxu0 0.0
        %1770 = vmatpush1.msra.mxu0 %v1745
        %1771 = vmatprep.subr.mxu0 0.0
        %1772 = vmatpush1.msra.mxu0 %v1746
        %1773 = vmatprep.subr.mxu0 0.0
        %1774 = vmatpush1.msra.mxu0 %v1747
        %1775 = vmatprep.subr.mxu0 0.0
        %1776 = vmatpush1.msra.mxu0 %v1748
        %1777 = vmatprep.subr.mxu0 0.0
        %1778 = vmatpush1.msra.mxu0 %v1749
        %1779 = vmatprep.subr.mxu0 0.0
        %1780 = vmatpush1.msra.mxu0 %v1750
        %1781 = vmatprep.subr.mxu0 0.0
        %1782 = vmatpush1.msra.mxu0 %v1751
        %1783 = vmatprep.subr.mxu0 0.0
        %1784 = vmatpush1.msra.mxu0 %v1752
        %1785 = vmatprep.subr.mxu0 0.0
        %1786 = vmatpush1.msra.mxu0 %v1753
        %1787 = vmatprep.subr.mxu0 0.0
        %1788 = vmatpush1.msra.mxu0 %v1754
        %1789 = vmatprep.subr.mxu0 0.0
        %1790 = vmatpush1.msra.mxu0 %v1755
        %1791 = vmatprep.subr.mxu0 0.0
        %1792 = vmatpush1.msra.mxu0 %v1756
        %1793 = vmatprep.subr.mxu0 0.0
        %1794 = vmatpush1.msra.mxu0 %v1757
        %1795 = vmatprep.subr.mxu0 0.0
        %1796 = vmatpush1.msra.mxu0 %v1758
        %1797 = vmatprep.subr.mxu0 0.0
        %1798 = vmatpush1.msra.mxu0 %v1759
        %1799 = vmatprep.subr.mxu0 0.0
        %1800 = vmatpush1.msra.mxu0 0.0
        %1801 = vmatprep.subr.mxu0 0.0
        %1802 = vmatpush1.msra.mxu0 0.0
        %1803 = vmatprep.subr.mxu0 0.0
        %1804 = vmatpush1.msra.mxu0 0.0
        %1805 = vmatprep.subr.mxu0 0.0
        %1806 = vmatpush1.msra.mxu0 0.0
        %1807 = vmatprep.subr.mxu0 0.0
        %1808 = vmatpush1.msra.mxu0 0.0
        %1809 = vmatprep.subr.mxu0 0.0
        %1810 = vmatpush1.msra.mxu0 0.0
        %1811 = vmatprep.subr.mxu0 0.0
        %1812 = vmatpush1.msra.mxu0 0.0
        %1813 = vmatprep.subr.mxu0 0.0
        %1814 = vmatpush1.msra.mxu0 0.0
        %1815 = vmatprep.subr.mxu0 0.0
        %1816 = vmatpush1.msra.mxu0 0.0
        %1817 = vmatprep.subr.mxu0 0.0
        %1818 = vmatpush1.msra.mxu0 0.0
        %1819 = vmatprep.subr.mxu0 0.0
        %1820 = vmatpush1.msra.mxu0 0.0
        %1821 = vmatprep.subr.mxu0 0.0
        %1822 = vmatpush1.msra.mxu0 0.0
        %1823 = vmatprep.subr.mxu0 0.0
        %1824 = vmatpush1.msra.mxu0 0.0
        %1825 = vmatprep.subr.mxu0 0.0
        %1826 = vmatpush1.msra.mxu0 0.0
        %1827 = vmatprep.subr.mxu0 0.0
        %1828 = vmatpush1.msra.mxu0 0.0
        %1829 = vmatprep.subr.mxu0 0.0
        %1830 = vmatpush1.msra.mxu0 0.0
        %1831 = vmatprep.mubr.f32.mxu0 0.0
        %1832 = vmatmul.mubr.f32.gmra.mrb[0].mxu0 %v1712
        %v1833 = vpop.f32.mrb[0].mxu0
        %v1834 = vadd.f32 %v1765, %v1833
        %v1835 = vpop.f32.mrb[0].mxu0
        %1836 = vmatprep.mubr.f32.mxu0 0.0
        %1837 = vmatmul.mubr.f32.gmra.mrb[0].mxu0 %v1713
        %v1838 = vpop.f32.mrb[0].mxu0
        %v1839 = vadd.f32 %v1765, %v1838
        %v1840 = vpop.f32.mrb[0].mxu0
        %1841 = vmatprep.mubr.f32.mxu0 0.0
        %1842 = vmatmul.mubr.f32.gmra.mrb[0].mxu0 %v1714
        %v1843 = vpop.f32.mrb[0].mxu0
        %v1844 = vadd.f32 %v1765, %v1843
        %v1845 = vpop.f32.mrb[0].mxu0
        %1846 = vmatprep.mubr.f32.mxu0 0.0
        %1847 = vmatmul.mubr.f32.gmra.mrb[0].mxu0 %v1715
        %v1848 = vpop.f32.mrb[0].mxu0
        %v1849 = vadd.f32 %v1765, %v1848
        %v1850 = vpop.f32.mrb[0].mxu0
        %1851 = vmatprep.mubr.f32.mxu0 0.0
        %1852 = vmatmul.mubr.f32.gmra.mrb[0].mxu0 %v1716
        %v1853 = vpop.f32.mrb[0].mxu0
        %v1854 = vadd.f32 %v1765, %v1853
        %v1855 = vpop.f32.mrb[0].mxu0
        %1856 = vmatprep.mubr.f32.mxu0 0.0
        %1857 = vmatmul.mubr.f32.gmra.mrb[0].mxu0 %v1717
        %v1858 = vpop.f32.mrb[0].mxu0
        %v1859 = vadd.f32 %v1765, %v1858
        %v1860 = vpop.f32.mrb[0].mxu0
        %1861 = vmatprep.mubr.f32.mxu0 0.0
        %1862 = vmatmul.mubr.f32.gmra.mrb[0].mxu0 %v1718
        %v1863 = vpop.f32.mrb[0].mxu0
        %v1864 = vadd.f32 %v1765, %v1863
        %v1865 = vpop.f32.mrb[0].mxu0
        %1866 = vmatprep.mubr.f32.mxu0 0.0
        %1867 = vmatmul.mubr.f32.gmra.mrb[0].mxu0 %v1719
        %v1868 = vpop.f32.mrb[0].mxu0
        %v1869 = vadd.f32 %v1765, %v1868
        %v1870 = vpop.f32.mrb[0].mxu0
        %1871 = vmatprep.mubr.f32.mxu0 0.0
        %1872 = vmatmul.mubr.f32.gmra.mrb[0].mxu0 %v1720
        %v1873 = vpop.f32.mrb[0].mxu0
        %v1874 = vadd.f32 %v1765, %v1873
        %v1875 = vpop.f32.mrb[0].mxu0
        %1876 = vmatprep.mubr.f32.mxu0 0.0
        %1877 = vmatmul.mubr.f32.gmra.mrb[0].mxu0 %v1721
        %v1878 = vpop.f32.mrb[0].mxu0
        %v1879 = vadd.f32 %v1765, %v1878
        %v1880 = vpop.f32.mrb[0].mxu0
        %1881 = vmatprep.mubr.f32.mxu0 0.0
        %1882 = vmatmul.mubr.f32.gmra.mrb[0].mxu0 %v1722
        %v1883 = vpop.f32.mrb[0].mxu0
        %v1884 = vadd.f32 %v1765, %v1883
        %v1885 = vpop.f32.mrb[0].mxu0
        %1886 = vmatprep.mubr.f32.mxu0 0.0
        %1887 = vmatmul.mubr.f32.gmra.mrb[0].mxu0 %v1723
        %v1888 = vpop.f32.mrb[0].mxu0
        %v1889 = vadd.f32 %v1765, %v1888
        %v1890 = vpop.f32.mrb[0].mxu0
        %1891 = vmatprep.mubr.f32.mxu0 0.0
        %1892 = vmatmul.mubr.f32.gmra.mrb[0].mxu0 %v1724
        %v1893 = vpop.f32.mrb[0].mxu0
        %v1894 = vadd.f32 %v1765, %v1893
        %v1895 = vpop.f32.mrb[0].mxu0
        %1896 = vmatprep.mubr.f32.mxu0 0.0
        %1897 = vmatmul.mubr.f32.gmra.mrb[0].mxu0 %v1725
        %v1898 = vpop.f32.mrb[0].mxu0
        %v1899 = vadd.f32 %v1765, %v1898
        %v1900 = vpop.f32.mrb[0].mxu0
        %1901 = vmatprep.mubr.f32.mxu0 0.0
        %1902 = vmatmul.mubr.f32.gmra.mrb[0].mxu0 %v1726
        %v1903 = vpop.f32.mrb[0].mxu0
        %v1904 = vadd.f32 %v1765, %v1903
        %v1905 = vpop.f32.mrb[0].mxu0
        %1906 = vmatprep.mubr.f32.mxu0 0.0
        %1907 = vmatmul.mubr.f32.gmra.mrb[0].mxu0 %v1727
        %v1908 = vpop.f32.mrb[0].mxu0
        %v1909 = vadd.f32 %v1765, %v1908
        %v1910 = vpop.f32.mrb[0].mxu0
        %1911 = vmatprep.mubr.f32.mxu0 0.0
        %1912 = vmatmul.mubr.f32.gmra.mrb[0].mxu0 %v1728
        %v1913 = vpop.f32.mrb[0].mxu0
        %v1914 = vadd.f32 %v1765, %v1913
        %v1915 = vpop.f32.mrb[0].mxu0
        %1916 = vmatprep.mubr.f32.mxu0 0.0
        %1917 = vmatmul.mubr.f32.gmra.mrb[0].mxu0 %v1729
        %v1918 = vpop.f32.mrb[0].mxu0
        %v1919 = vadd.f32 %v1765, %v1918
        %v1920 = vpop.f32.mrb[0].mxu0
        %1921 = vmatprep.mubr.f32.mxu0 0.0
        %1922 = vmatmul.mubr.f32.gmra.mrb[0].mxu0 %v1730
        %v1923 = vpop.f32.mrb[0].mxu0
        %v1924 = vadd.f32 %v1765, %v1923
        %v1925 = vpop.f32.mrb[0].mxu0
        %1926 = vmatprep.mubr.f32.mxu0 0.0
        %1927 = vmatmul.mubr.f32.gmra.mrb[0].mxu0 %v1731
        %v1928 = vpop.f32.mrb[0].mxu0
        %v1929 = vadd.f32 %v1765, %v1928
        %v1930 = vpop.f32.mrb[0].mxu0
        %1931 = vmatprep.mubr.f32.mxu0 0.0
        %1932 = vmatmul.mubr.f32.gmra.mrb[0].mxu0 %v1732
        %v1933 = vpop.f32.mrb[0].mxu0
        %v1934 = vadd.f32 %v1765, %v1933
        %v1935 = vpop.f32.mrb[0].mxu0
        %1936 = vmatprep.mubr.f32.mxu0 0.0
        %1937 = vmatmul.mubr.f32.gmra.mrb[0].mxu0 %v1733
        %v1938 = vpop.f32.mrb[0].mxu0
        %v1939 = vadd.f32 %v1765, %v1938
        %v1940 = vpop.f32.mrb[0].mxu0
        %1941 = vmatprep.mubr.f32.mxu0 0.0
        %1942 = vmatmul.mubr.f32.gmra.mrb[0].mxu0 %v1734
        %v1943 = vpop.f32.mrb[0].mxu0
        %v1944 = vadd.f32 %v1765, %v1943
        %v1945 = vpop.f32.mrb[0].mxu0
        %1946 = vmatprep.mubr.f32.mxu0 0.0
        %1947 = vmatmul.mubr.f32.gmra.mrb[0].mxu0 %v1735
        %v1948 = vpop.f32.mrb[0].mxu0
        %v1949 = vadd.f32 %v1765, %v1948
        %v1950 = vpop.f32.mrb[0].mxu0
        %1951 = vmatprep.mubr.f32.mxu0 0.0
        %1952 = vmatmul.mubr.f32.gmra.mrb[0].mxu0 %v1736
        %v1953 = vpop.f32.mrb[0].mxu0
        %v1954 = vadd.f32 %v1765, %v1953
        %v1955 = vpop.f32.mrb[0].mxu0
        %1956 = vmatprep.mubr.f32.mxu0 0.0
        %1957 = vmatmul.mubr.f32.gmra.mrb[0].mxu0 %v1737
        %v1958 = vpop.f32.mrb[0].mxu0
        %v1959 = vadd.f32 %v1765, %v1958
        %v1960 = vpop.f32.mrb[0].mxu0
        %1961 = vmatprep.mubr.f32.mxu0 0.0
        %1962 = vmatmul.mubr.f32.gmra.mrb[0].mxu0 %v1738
        %v1963 = vpop.f32.mrb[0].mxu0
        %v1964 = vadd.f32 %v1765, %v1963
        %v1965 = vpop.f32.mrb[0].mxu0
        %1966 = vmatprep.mubr.f32.mxu0 0.0
        %1967 = vmatmul.mubr.f32.gmra.mrb[0].mxu0 %v1739
        %v1968 = vpop.f32.mrb[0].mxu0
        %v1969 = vadd.f32 %v1765, %v1968
        %v1970 = vpop.f32.mrb[0].mxu0
        %1971 = vmatprep.mubr.f32.mxu0 0.0
        %1972 = vmatmul.mubr.f32.gmra.mrb[0].mxu0 %v1740
        %v1973 = vpop.f32.mrb[0].mxu0
        %v1974 = vadd.f32 %v1765, %v1973
        %v1975 = vpop.f32.mrb[0].mxu0
        %1976 = vmatprep.mubr.f32.mxu0 0.0
        %1977 = vmatmul.mubr.f32.gmra.mrb[0].mxu0 %v1741
        %v1978 = vpop.f32.mrb[0].mxu0
        %v1979 = vadd.f32 %v1765, %v1978
        %v1980 = vpop.f32.mrb[0].mxu0
        %1981 = vmatprep.mubr.f32.mxu0 0.0
        %1982 = vmatmul.mubr.f32.gmra.mrb[0].mxu0 %v1742
        %v1983 = vpop.f32.mrb[0].mxu0
        %v1984 = vadd.f32 %v1765, %v1983
        %v1985 = vpop.f32.mrb[0].mxu0
        %1986 = vmatprep.mubr.f32.mxu0 0.0
        %1987 = vmatmul.mubr.f32.gmra.mrb[0].mxu0 %v1743
        %v1988 = vpop.f32.mrb[0].mxu0
        %v1989 = vadd.f32 %v1765, %v1988
        %v1990 = vpop.f32.mrb[0].mxu0
        %1991 = vdwg.mxu0
        %s1992 = sld [smem:[#allocation2 + $0x2]]
        %v1993 = vstv %s1992
        %v1994 = vmul.f32 %v1993, %v724
        %v1995 = vmul.f32 %v1993, %v725
        %v1996 = vmul.f32 %v1993, %v726
        %v1997 = vmul.f32 %v1993, %v727
        %v1998 = vmul.f32 %v1993, %v728
        %v1999 = vmul.f32 %v1993, %v729
        %v2000 = vmul.f32 %v1993, %v730
        %v2001 = vmul.f32 %v1993, %v731
        %v2002 = vmul.f32 %v1993, %v732
        %v2003 = vmul.f32 %v1993, %v733
        %v2004 = vmul.f32 %v1993, %v734
        %v2005 = vmul.f32 %v1993, %v735
        %v2006 = vmul.f32 %v1993, %v736
        %v2007 = vmul.f32 %v1993, %v737
        %v2008 = vmul.f32 %v1993, %v738
        %v2009 = vmul.f32 %v1993, %v739
        %v2010 = vmul.f32 %v1993, %v740
        %v2011 = vmul.f32 %v1993, %v741
        %v2012 = vmul.f32 %v1993, %v742
        %v2013 = vmul.f32 %v1993, %v743
        %v2014 = vmul.f32 %v1993, %v744
        %v2015 = vmul.f32 %v1993, %v745
        %v2016 = vmul.f32 %v1993, %v746
        %v2017 = vmul.f32 %v1993, %v747
        %v2018 = vmul.f32 %v1993, %v748
        %v2019 = vmul.f32 %v1993, %v749
        %v2020 = vmul.f32 %v1993, %v750
        %v2021 = vmul.f32 %v1993, %v751
        %v2022 = vmul.f32 %v1993, %v752
        %v2023 = vmul.f32 %v1993, %v753
        %v2024 = vmul.f32 %v1993, %v754
        %v2025 = vmul.f32 %v1993, %v755
        %s2026 = sld [smem:[#allocation2 + $0x3]]
        %v2027 = vstv %s2026
        %v2028 = vmul.f32 %v2027, %v1834
        %v2029 = vmul.f32 %v2027, %v1839
        %v2030 = vmul.f32 %v2027, %v1844
        %v2031 = vmul.f32 %v2027, %v1849
        %v2032 = vmul.f32 %v2027, %v1854
        %v2033 = vmul.f32 %v2027, %v1859
        %v2034 = vmul.f32 %v2027, %v1864
        %v2035 = vmul.f32 %v2027, %v1869
        %v2036 = vmul.f32 %v2027, %v1874
        %v2037 = vmul.f32 %v2027, %v1879
        %v2038 = vmul.f32 %v2027, %v1884
        %v2039 = vmul.f32 %v2027, %v1889
        %v2040 = vmul.f32 %v2027, %v1894
        %v2041 = vmul.f32 %v2027, %v1899
        %v2042 = vmul.f32 %v2027, %v1904
        %v2043 = vmul.f32 %v2027, %v1909
        %v2044 = vmul.f32 %v2027, %v1914
        %v2045 = vmul.f32 %v2027, %v1919
        %v2046 = vmul.f32 %v2027, %v1924
        %v2047 = vmul.f32 %v2027, %v1929
        %v2048 = vmul.f32 %v2027, %v1934
        %v2049 = vmul.f32 %v2027, %v1939
        %v2050 = vmul.f32 %v2027, %v1944
        %v2051 = vmul.f32 %v2027, %v1949
        %v2052 = vmul.f32 %v2027, %v1954
        %v2053 = vmul.f32 %v2027, %v1959
        %v2054 = vmul.f32 %v2027, %v1964
        %v2055 = vmul.f32 %v2027, %v1969
        %v2056 = vmul.f32 %v2027, %v1974
        %v2057 = vmul.f32 %v2027, %v1979
        %v2058 = vmul.f32 %v2027, %v1984
        %v2059 = vmul.f32 %v2027, %v1989
        %v2060 = vadd.f32 %v1994, %v2028
        %v2061 = vadd.f32 %v1995, %v2029
        %v2062 = vadd.f32 %v1996, %v2030
        %v2063 = vadd.f32 %v1997, %v2031
        %v2064 = vadd.f32 %v1998, %v2032
        %v2065 = vadd.f32 %v1999, %v2033
        %v2066 = vadd.f32 %v2000, %v2034
        %v2067 = vadd.f32 %v2001, %v2035
        %v2068 = vadd.f32 %v2002, %v2036
        %v2069 = vadd.f32 %v2003, %v2037
        %v2070 = vadd.f32 %v2004, %v2038
        %v2071 = vadd.f32 %v2005, %v2039
        %v2072 = vadd.f32 %v2006, %v2040
        %v2073 = vadd.f32 %v2007, %v2041
        %v2074 = vadd.f32 %v2008, %v2042
        %v2075 = vadd.f32 %v2009, %v2043
        %v2076 = vadd.f32 %v2010, %v2044
        %v2077 = vadd.f32 %v2011, %v2045
        %v2078 = vadd.f32 %v2012, %v2046
        %v2079 = vadd.f32 %v2013, %v2047
        %v2080 = vadd.f32 %v2014, %v2048
        %v2081 = vadd.f32 %v2015, %v2049
        %v2082 = vadd.f32 %v2016, %v2050
        %v2083 = vadd.f32 %v2017, %v2051
        %v2084 = vadd.f32 %v2018, %v2052
        %v2085 = vadd.f32 %v2019, %v2053
        %v2086 = vadd.f32 %v2020, %v2054
        %v2087 = vadd.f32 %v2021, %v2055
        %v2088 = vadd.f32 %v2022, %v2056
        %v2089 = vadd.f32 %v2023, %v2057
        %v2090 = vadd.f32 %v2024, %v2058
        %v2091 = vadd.f32 %v2025, %v2059
        %v2092 = vld [vmem:[%s8] sm:$0x1]
        %v2093 = vld [vmem:[%s9] sm:$0x1]
        %v2094 = vsel %vm758, %v2060, 0.0
        %2095 = vadd.xlane.f32.xlu0 %v2094
        %v2096 = vpop.xlane.xlu0 %2095
        %v2097 = vsel %vm758, %v2061, 0.0
        %2098 = vadd.xlane.f32.xlu0 %v2097
        %v2099 = vpop.xlane.xlu0 %2098
        %v2100 = vsel %vm758, %v2062, 0.0
        %2101 = vadd.xlane.f32.xlu0 %v2100
        %v2102 = vpop.xlane.xlu0 %2101
        %v2103 = vsel %vm758, %v2063, 0.0
        %2104 = vadd.xlane.f32.xlu0 %v2103
        %v2105 = vpop.xlane.xlu0 %2104
        %v2106 = vsel %vm758, %v2064, 0.0
        %2107 = vadd.xlane.f32.xlu0 %v2106
        %v2108 = vpop.xlane.xlu0 %2107
        %v2109 = vsel %vm758, %v2065, 0.0
        %2110 = vadd.xlane.f32.xlu0 %v2109
        %v2111 = vpop.xlane.xlu0 %2110
        %v2112 = vsel %vm758, %v2066, 0.0
        %2113 = vadd.xlane.f32.xlu0 %v2112
        %v2114 = vpop.xlane.xlu0 %2113
        %v2115 = vsel %vm758, %v2067, 0.0
        %2116 = vadd.xlane.f32.xlu0 %v2115
        %v2117 = vpop.xlane.xlu0 %2116
        %v2118 = vsel %vm758, %v2068, 0.0
        %2119 = vadd.xlane.f32.xlu0 %v2118
        %v2120 = vpop.xlane.xlu0 %2119
        %v2121 = vsel %vm758, %v2069, 0.0
        %2122 = vadd.xlane.f32.xlu0 %v2121
        %v2123 = vpop.xlane.xlu0 %2122
        %v2124 = vsel %vm758, %v2070, 0.0
        %2125 = vadd.xlane.f32.xlu0 %v2124
        %v2126 = vpop.xlane.xlu0 %2125
        %v2127 = vsel %vm758, %v2071, 0.0
        %2128 = vadd.xlane.f32.xlu0 %v2127
        %v2129 = vpop.xlane.xlu0 %2128
        %v2130 = vsel %vm758, %v2072, 0.0
        %2131 = vadd.xlane.f32.xlu0 %v2130
        %v2132 = vpop.xlane.xlu0 %2131
        %v2133 = vsel %vm758, %v2073, 0.0
        %2134 = vadd.xlane.f32.xlu0 %v2133
        %v2135 = vpop.xlane.xlu0 %2134
        %v2136 = vsel %vm758, %v2074, 0.0
        %2137 = vadd.xlane.f32.xlu0 %v2136
        %v2138 = vpop.xlane.xlu0 %2137
        %v2139 = vsel %vm758, %v2075, 0.0
        %2140 = vadd.xlane.f32.xlu0 %v2139
        %v2141 = vpop.xlane.xlu0 %2140
        %v2142 = vsel %vm758, %v2076, 0.0
        %2143 = vadd.xlane.f32.xlu0 %v2142
        %v2144 = vpop.xlane.xlu0 %2143
        %v2145 = vsel %vm758, %v2077, 0.0
        %2146 = vadd.xlane.f32.xlu0 %v2145
        %v2147 = vpop.xlane.xlu0 %2146
        %v2148 = vsel %vm758, %v2078, 0.0
        %2149 = vadd.xlane.f32.xlu0 %v2148
        %v2150 = vpop.xlane.xlu0 %2149
        %v2151 = vsel %vm758, %v2079, 0.0
        %2152 = vadd.xlane.f32.xlu0 %v2151
        %v2153 = vpop.xlane.xlu0 %2152
        %v2154 = vsel %vm758, %v2080, 0.0
        %2155 = vadd.xlane.f32.xlu0 %v2154
        %v2156 = vpop.xlane.xlu0 %2155
        %v2157 = vsel %vm758, %v2081, 0.0
        %2158 = vadd.xlane.f32.xlu0 %v2157
        %v2159 = vpop.xlane.xlu0 %2158
        %v2160 = vsel %vm758, %v2082, 0.0
        %2161 = vadd.xlane.f32.xlu0 %v2160
        %v2162 = vpop.xlane.xlu0 %2161
        %v2163 = vsel %vm758, %v2083, 0.0
        %2164 = vadd.xlane.f32.xlu0 %v2163
        %v2165 = vpop.xlane.xlu0 %2164
        %v2166 = vsel %vm758, %v2084, 0.0
        %2167 = vadd.xlane.f32.xlu0 %v2166
        %v2168 = vpop.xlane.xlu0 %2167
        %v2169 = vsel %vm758, %v2085, 0.0
        %2170 = vadd.xlane.f32.xlu0 %v2169
        %v2171 = vpop.xlane.xlu0 %2170
        %v2172 = vsel %vm758, %v2086, 0.0
        %2173 = vadd.xlane.f32.xlu0 %v2172
        %v2174 = vpop.xlane.xlu0 %2173
        %v2175 = vsel %vm758, %v2087, 0.0
        %2176 = vadd.xlane.f32.xlu0 %v2175
        %v2177 = vpop.xlane.xlu0 %2176
        %v2178 = vsel %vm758, %v2088, 0.0
        %2179 = vadd.xlane.f32.xlu0 %v2178
        %v2180 = vpop.xlane.xlu0 %2179
        %v2181 = vsel %vm758, %v2089, 0.0
        %2182 = vadd.xlane.f32.xlu0 %v2181
        %v2183 = vpop.xlane.xlu0 %2182
        %v2184 = vsel %vm758, %v2090, 0.0
        %2185 = vadd.xlane.f32.xlu0 %v2184
        %v2186 = vpop.xlane.xlu0 %2185
        %v2187 = vsel %vm758, %v2091, 0.0
        %2188 = vadd.xlane.f32.xlu0 %v2187
        %v2189 = vpop.xlane.xlu0 %2188
        %v2190 = vmul.f32 %v2096, %v855
        %v2191 = vmul.f32 %v2099, %v855
        %v2192 = vmul.f32 %v2102, %v855
        %v2193 = vmul.f32 %v2105, %v855
        %v2194 = vmul.f32 %v2108, %v855
        %v2195 = vmul.f32 %v2111, %v855
        %v2196 = vmul.f32 %v2114, %v855
        %v2197 = vmul.f32 %v2117, %v855
        %v2198 = vmul.f32 %v2120, %v855
        %v2199 = vmul.f32 %v2123, %v855
        %v2200 = vmul.f32 %v2126, %v855
        %v2201 = vmul.f32 %v2129, %v855
        %v2202 = vmul.f32 %v2132, %v855
        %v2203 = vmul.f32 %v2135, %v855
        %v2204 = vmul.f32 %v2138, %v855
        %v2205 = vmul.f32 %v2141, %v855
        %v2206 = vmul.f32 %v2144, %v855
        %v2207 = vmul.f32 %v2147, %v855
        %v2208 = vmul.f32 %v2150, %v855
        %v2209 = vmul.f32 %v2153, %v855
        %v2210 = vmul.f32 %v2156, %v855
        %v2211 = vmul.f32 %v2159, %v855
        %v2212 = vmul.f32 %v2162, %v855
        %v2213 = vmul.f32 %v2165, %v855
        %v2214 = vmul.f32 %v2168, %v855
        %v2215 = vmul.f32 %v2171, %v855
        %v2216 = vmul.f32 %v2174, %v855
        %v2217 = vmul.f32 %v2177, %v855
        %v2218 = vmul.f32 %v2180, %v855
        %v2219 = vmul.f32 %v2183, %v855
        %v2220 = vmul.f32 %v2186, %v855
        %v2221 = vmul.f32 %v2189, %v855
        %v2222 = vsub.f32 %v2060, %v2190
        %v2223 = vsub.f32 %v2061, %v2191
        %v2224 = vsub.f32 %v2062, %v2192
        %v2225 = vsub.f32 %v2063, %v2193
        %v2226 = vsub.f32 %v2064, %v2194
        %v2227 = vsub.f32 %v2065, %v2195
        %v2228 = vsub.f32 %v2066, %v2196
        %v2229 = vsub.f32 %v2067, %v2197
        %v2230 = vsub.f32 %v2068, %v2198
        %v2231 = vsub.f32 %v2069, %v2199
        %v2232 = vsub.f32 %v2070, %v2200
        %v2233 = vsub.f32 %v2071, %v2201
        %v2234 = vsub.f32 %v2072, %v2202
        %v2235 = vsub.f32 %v2073, %v2203
        %v2236 = vsub.f32 %v2074, %v2204
        %v2237 = vsub.f32 %v2075, %v2205
        %v2238 = vsub.f32 %v2076, %v2206
        %v2239 = vsub.f32 %v2077, %v2207
        %v2240 = vsub.f32 %v2078, %v2208
        %v2241 = vsub.f32 %v2079, %v2209
        %v2242 = vsub.f32 %v2080, %v2210
        %v2243 = vsub.f32 %v2081, %v2211
        %v2244 = vsub.f32 %v2082, %v2212
        %v2245 = vsub.f32 %v2083, %v2213
        %v2246 = vsub.f32 %v2084, %v2214
        %v2247 = vsub.f32 %v2085, %v2215
        %v2248 = vsub.f32 %v2086, %v2216
        %v2249 = vsub.f32 %v2087, %v2217
        %v2250 = vsub.f32 %v2088, %v2218
        %v2251 = vsub.f32 %v2089, %v2219
        %v2252 = vsub.f32 %v2090, %v2220
        %v2253 = vsub.f32 %v2091, %v2221
        %v2254 = vmul.f32 %v2222, %v2222
        %v2255 = vmul.f32 %v2223, %v2223
        %v2256 = vmul.f32 %v2224, %v2224
        %v2257 = vmul.f32 %v2225, %v2225
        %v2258 = vmul.f32 %v2226, %v2226
        %v2259 = vmul.f32 %v2227, %v2227
        %v2260 = vmul.f32 %v2228, %v2228
        %v2261 = vmul.f32 %v2229, %v2229
        %v2262 = vmul.f32 %v2230, %v2230
        %v2263 = vmul.f32 %v2231, %v2231
        %v2264 = vmul.f32 %v2232, %v2232
        %v2265 = vmul.f32 %v2233, %v2233
        %v2266 = vmul.f32 %v2234, %v2234
        %v2267 = vmul.f32 %v2235, %v2235
        %v2268 = vmul.f32 %v2236, %v2236
        %v2269 = vmul.f32 %v2237, %v2237
        %v2270 = vmul.f32 %v2238, %v2238
        %v2271 = vmul.f32 %v2239, %v2239
        %v2272 = vmul.f32 %v2240, %v2240
        %v2273 = vmul.f32 %v2241, %v2241
        %v2274 = vmul.f32 %v2242, %v2242
        %v2275 = vmul.f32 %v2243, %v2243
        %v2276 = vmul.f32 %v2244, %v2244
        %v2277 = vmul.f32 %v2245, %v2245
        %v2278 = vmul.f32 %v2246, %v2246
        %v2279 = vmul.f32 %v2247, %v2247
        %v2280 = vmul.f32 %v2248, %v2248
        %v2281 = vmul.f32 %v2249, %v2249
        %v2282 = vmul.f32 %v2250, %v2250
        %v2283 = vmul.f32 %v2251, %v2251
        %v2284 = vmul.f32 %v2252, %v2252
        %v2285 = vmul.f32 %v2253, %v2253
        %v2286 = vsel %vm758, %v2254, 0.0
        %2287 = vadd.xlane.f32.xlu0 %v2286
        %v2288 = vpop.xlane.xlu0 %2287
        %v2289 = vsel %vm758, %v2255, 0.0
        %2290 = vadd.xlane.f32.xlu0 %v2289
        %v2291 = vpop.xlane.xlu0 %2290
        %v2292 = vsel %vm758, %v2256, 0.0
        %2293 = vadd.xlane.f32.xlu0 %v2292
        %v2294 = vpop.xlane.xlu0 %2293
        %v2295 = vsel %vm758, %v2257, 0.0
        %2296 = vadd.xlane.f32.xlu0 %v2295
        %v2297 = vpop.xlane.xlu0 %2296
        %v2298 = vsel %vm758, %v2258, 0.0
        %2299 = vadd.xlane.f32.xlu0 %v2298
        %v2300 = vpop.xlane.xlu0 %2299
        %v2301 = vsel %vm758, %v2259, 0.0
        %2302 = vadd.xlane.f32.xlu0 %v2301
        %v2303 = vpop.xlane.xlu0 %2302
        %v2304 = vsel %vm758, %v2260, 0.0
        %2305 = vadd.xlane.f32.xlu0 %v2304
        %v2306 = vpop.xlane.xlu0 %2305
        %v2307 = vsel %vm758, %v2261, 0.0
        %2308 = vadd.xlane.f32.xlu0 %v2307
        %v2309 = vpop.xlane.xlu0 %2308
        %v2310 = vsel %vm758, %v2262, 0.0
        %2311 = vadd.xlane.f32.xlu0 %v2310
        %v2312 = vpop.xlane.xlu0 %2311
        %v2313 = vsel %vm758, %v2263, 0.0
        %2314 = vadd.xlane.f32.xlu0 %v2313
        %v2315 = vpop.xlane.xlu0 %2314
        %v2316 = vsel %vm758, %v2264, 0.0
        %2317 = vadd.xlane.f32.xlu0 %v2316
        %v2318 = vpop.xlane.xlu0 %2317
        %v2319 = vsel %vm758, %v2265, 0.0
        %2320 = vadd.xlane.f32.xlu0 %v2319
        %v2321 = vpop.xlane.xlu0 %2320
        %v2322 = vsel %vm758, %v2266, 0.0
        %2323 = vadd.xlane.f32.xlu0 %v2322
        %v2324 = vpop.xlane.xlu0 %2323
        %v2325 = vsel %vm758, %v2267, 0.0
        %2326 = vadd.xlane.f32.xlu0 %v2325
        %v2327 = vpop.xlane.xlu0 %2326
        %v2328 = vsel %vm758, %v2268, 0.0
        %2329 = vadd.xlane.f32.xlu0 %v2328
        %v2330 = vpop.xlane.xlu0 %2329
        %v2331 = vsel %vm758, %v2269, 0.0
        %2332 = vadd.xlane.f32.xlu0 %v2331
        %v2333 = vpop.xlane.xlu0 %2332
        %v2334 = vsel %vm758, %v2270, 0.0
        %2335 = vadd.xlane.f32.xlu0 %v2334
        %v2336 = vpop.xlane.xlu0 %2335
        %v2337 = vsel %vm758, %v2271, 0.0
        %2338 = vadd.xlane.f32.xlu0 %v2337
        %v2339 = vpop.xlane.xlu0 %2338
        %v2340 = vsel %vm758, %v2272, 0.0
        %2341 = vadd.xlane.f32.xlu0 %v2340
        %v2342 = vpop.xlane.xlu0 %2341
        %v2343 = vsel %vm758, %v2273, 0.0
        %2344 = vadd.xlane.f32.xlu0 %v2343
        %v2345 = vpop.xlane.xlu0 %2344
        %v2346 = vsel %vm758, %v2274, 0.0
        %2347 = vadd.xlane.f32.xlu0 %v2346
        %v2348 = vpop.xlane.xlu0 %2347
        %v2349 = vsel %vm758, %v2275, 0.0
        %2350 = vadd.xlane.f32.xlu0 %v2349
        %v2351 = vpop.xlane.xlu0 %2350
        %v2352 = vsel %vm758, %v2276, 0.0
        %2353 = vadd.xlane.f32.xlu0 %v2352
        %v2354 = vpop.xlane.xlu0 %2353
        %v2355 = vsel %vm758, %v2277, 0.0
        %2356 = vadd.xlane.f32.xlu0 %v2355
        %v2357 = vpop.xlane.xlu0 %2356
        %v2358 = vsel %vm758, %v2278, 0.0
        %2359 = vadd.xlane.f32.xlu0 %v2358
        %v2360 = vpop.xlane.xlu0 %2359
        %v2361 = vsel %vm758, %v2279, 0.0
        %2362 = vadd.xlane.f32.xlu0 %v2361
        %v2363 = vpop.xlane.xlu0 %2362
        %v2364 = vsel %vm758, %v2280, 0.0
        %2365 = vadd.xlane.f32.xlu0 %v2364
        %v2366 = vpop.xlane.xlu0 %2365
        %v2367 = vsel %vm758, %v2281, 0.0
        %2368 = vadd.xlane.f32.xlu0 %v2367
        %v2369 = vpop.xlane.xlu0 %2368
        %v2370 = vsel %vm758, %v2282, 0.0
        %2371 = vadd.xlane.f32.xlu0 %v2370
        %v2372 = vpop.xlane.xlu0 %2371
        %v2373 = vsel %vm758, %v2283, 0.0
        %2374 = vadd.xlane.f32.xlu0 %v2373
        %v2375 = vpop.xlane.xlu0 %2374
        %v2376 = vsel %vm758, %v2284, 0.0
        %2377 = vadd.xlane.f32.xlu0 %v2376
        %v2378 = vpop.xlane.xlu0 %2377
        %v2379 = vsel %vm758, %v2285, 0.0
        %2380 = vadd.xlane.f32.xlu0 %v2379
        %v2381 = vpop.xlane.xlu0 %2380
        %v2382 = vmul.f32 %v2288, %v855
        %v2383 = vmul.f32 %v2291, %v855
        %v2384 = vmul.f32 %v2294, %v855
        %v2385 = vmul.f32 %v2297, %v855
        %v2386 = vmul.f32 %v2300, %v855
        %v2387 = vmul.f32 %v2303, %v855
        %v2388 = vmul.f32 %v2306, %v855
        %v2389 = vmul.f32 %v2309, %v855
        %v2390 = vmul.f32 %v2312, %v855
        %v2391 = vmul.f32 %v2315, %v855
        %v2392 = vmul.f32 %v2318, %v855
        %v2393 = vmul.f32 %v2321, %v855
        %v2394 = vmul.f32 %v2324, %v855
        %v2395 = vmul.f32 %v2327, %v855
        %v2396 = vmul.f32 %v2330, %v855
        %v2397 = vmul.f32 %v2333, %v855
        %v2398 = vmul.f32 %v2336, %v855
        %v2399 = vmul.f32 %v2339, %v855
        %v2400 = vmul.f32 %v2342, %v855
        %v2401 = vmul.f32 %v2345, %v855
        %v2402 = vmul.f32 %v2348, %v855
        %v2403 = vmul.f32 %v2351, %v855
        %v2404 = vmul.f32 %v2354, %v855
        %v2405 = vmul.f32 %v2357, %v855
        %v2406 = vmul.f32 %v2360, %v855
        %v2407 = vmul.f32 %v2363, %v855
        %v2408 = vmul.f32 %v2366, %v855
        %v2409 = vmul.f32 %v2369, %v855
        %v2410 = vmul.f32 %v2372, %v855
        %v2411 = vmul.f32 %v2375, %v855
        %v2412 = vmul.f32 %v2378, %v855
        %v2413 = vmul.f32 %v2381, %v855
        %v2414 = vadd.f32 %v2382, 1e-06
        %v2415 = vadd.f32 %v2383, 1e-06
        %v2416 = vadd.f32 %v2384, 1e-06
        %v2417 = vadd.f32 %v2385, 1e-06
        %v2418 = vadd.f32 %v2386, 1e-06
        %v2419 = vadd.f32 %v2387, 1e-06
        %v2420 = vadd.f32 %v2388, 1e-06
        %v2421 = vadd.f32 %v2389, 1e-06
        %v2422 = vadd.f32 %v2390, 1e-06
        %v2423 = vadd.f32 %v2391, 1e-06
        %v2424 = vadd.f32 %v2392, 1e-06
        %v2425 = vadd.f32 %v2393, 1e-06
        %v2426 = vadd.f32 %v2394, 1e-06
        %v2427 = vadd.f32 %v2395, 1e-06
        %v2428 = vadd.f32 %v2396, 1e-06
        %v2429 = vadd.f32 %v2397, 1e-06
        %v2430 = vadd.f32 %v2398, 1e-06
        %v2431 = vadd.f32 %v2399, 1e-06
        %v2432 = vadd.f32 %v2400, 1e-06
        %v2433 = vadd.f32 %v2401, 1e-06
        %v2434 = vadd.f32 %v2402, 1e-06
        %v2435 = vadd.f32 %v2403, 1e-06
        %v2436 = vadd.f32 %v2404, 1e-06
        %v2437 = vadd.f32 %v2405, 1e-06
        %v2438 = vadd.f32 %v2406, 1e-06
        %v2439 = vadd.f32 %v2407, 1e-06
        %v2440 = vadd.f32 %v2408, 1e-06
        %v2441 = vadd.f32 %v2409, 1e-06
        %v2442 = vadd.f32 %v2410, 1e-06
        %v2443 = vadd.f32 %v2411, 1e-06
        %v2444 = vadd.f32 %v2412, 1e-06
        %v2445 = vadd.f32 %v2413, 1e-06
        %v2446 = vrsqrt.pop %v2414
        %v2447 = vrsqrt.pop %v2415
        %v2448 = vrsqrt.pop %v2416
        %v2449 = vrsqrt.pop %v2417
        %v2450 = vrsqrt.pop %v2418
        %v2451 = vrsqrt.pop %v2419
        %v2452 = vrsqrt.pop %v2420
        %v2453 = vrsqrt.pop %v2421
        %v2454 = vrsqrt.pop %v2422
        %v2455 = vrsqrt.pop %v2423
        %v2456 = vrsqrt.pop %v2424
        %v2457 = vrsqrt.pop %v2425
        %v2458 = vrsqrt.pop %v2426
        %v2459 = vrsqrt.pop %v2427
        %v2460 = vrsqrt.pop %v2428
        %v2461 = vrsqrt.pop %v2429
        %v2462 = vrsqrt.pop %v2430
        %v2463 = vrsqrt.pop %v2431
        %v2464 = vrsqrt.pop %v2432
        %v2465 = vrsqrt.pop %v2433
        %v2466 = vrsqrt.pop %v2434
        %v2467 = vrsqrt.pop %v2435
        %v2468 = vrsqrt.pop %v2436
        %v2469 = vrsqrt.pop %v2437
        %v2470 = vrsqrt.pop %v2438
        %v2471 = vrsqrt.pop %v2439
        %v2472 = vrsqrt.pop %v2440
        %v2473 = vrsqrt.pop %v2441
        %v2474 = vrsqrt.pop %v2442
        %v2475 = vrsqrt.pop %v2443
        %v2476 = vrsqrt.pop %v2444
        %v2477 = vrsqrt.pop %v2445
        %v2478 = vmul.f32 %v2222, %v2446
        %v2479 = vmul.f32 %v2223, %v2447
        %v2480 = vmul.f32 %v2224, %v2448
        %v2481 = vmul.f32 %v2225, %v2449
        %v2482 = vmul.f32 %v2226, %v2450
        %v2483 = vmul.f32 %v2227, %v2451
        %v2484 = vmul.f32 %v2228, %v2452
        %v2485 = vmul.f32 %v2229, %v2453
        %v2486 = vmul.f32 %v2230, %v2454
        %v2487 = vmul.f32 %v2231, %v2455
        %v2488 = vmul.f32 %v2232, %v2456
        %v2489 = vmul.f32 %v2233, %v2457
        %v2490 = vmul.f32 %v2234, %v2458
        %v2491 = vmul.f32 %v2235, %v2459
        %v2492 = vmul.f32 %v2236, %v2460
        %v2493 = vmul.f32 %v2237, %v2461
        %v2494 = vmul.f32 %v2238, %v2462
        %v2495 = vmul.f32 %v2239, %v2463
        %v2496 = vmul.f32 %v2240, %v2464
        %v2497 = vmul.f32 %v2241, %v2465
        %v2498 = vmul.f32 %v2242, %v2466
        %v2499 = vmul.f32 %v2243, %v2467
        %v2500 = vmul.f32 %v2244, %v2468
        %v2501 = vmul.f32 %v2245, %v2469
        %v2502 = vmul.f32 %v2246, %v2470
        %v2503 = vmul.f32 %v2247, %v2471
        %v2504 = vmul.f32 %v2248, %v2472
        %v2505 = vmul.f32 %v2249, %v2473
        %v2506 = vmul.f32 %v2250, %v2474
        %v2507 = vmul.f32 %v2251, %v2475
        %v2508 = vmul.f32 %v2252, %v2476
        %v2509 = vmul.f32 %v2253, %v2477
        %v2511 = vlaneseq
        %v2512 = vshrl.u32 %v2511, 7
        %v2513 = vsub.s32 0, %v2512
        %v2514 = vrot.slane %v2092, %v2513
        %v2516 = vmul.f32 %v2478, %v2514
        %v2517 = vmul.f32 %v2479, %v2514
        %v2518 = vmul.f32 %v2480, %v2514
        %v2519 = vmul.f32 %v2481, %v2514
        %v2520 = vmul.f32 %v2482, %v2514
        %v2521 = vmul.f32 %v2483, %v2514
        %v2522 = vmul.f32 %v2484, %v2514
        %v2523 = vmul.f32 %v2485, %v2514
        %v2524 = vmul.f32 %v2486, %v2514
        %v2525 = vmul.f32 %v2487, %v2514
        %v2526 = vmul.f32 %v2488, %v2514
        %v2527 = vmul.f32 %v2489, %v2514
        %v2528 = vmul.f32 %v2490, %v2514
        %v2529 = vmul.f32 %v2491, %v2514
        %v2530 = vmul.f32 %v2492, %v2514
        %v2531 = vmul.f32 %v2493, %v2514
        %v2532 = vmul.f32 %v2494, %v2514
        %v2533 = vmul.f32 %v2495, %v2514
        %v2534 = vmul.f32 %v2496, %v2514
        %v2535 = vmul.f32 %v2497, %v2514
        %v2536 = vmul.f32 %v2498, %v2514
        %v2537 = vmul.f32 %v2499, %v2514
        %v2538 = vmul.f32 %v2500, %v2514
        %v2539 = vmul.f32 %v2501, %v2514
        %v2540 = vmul.f32 %v2502, %v2514
        %v2541 = vmul.f32 %v2503, %v2514
        %v2542 = vmul.f32 %v2504, %v2514
        %v2543 = vmul.f32 %v2505, %v2514
        %v2544 = vmul.f32 %v2506, %v2514
        %v2545 = vmul.f32 %v2507, %v2514
        %v2546 = vmul.f32 %v2508, %v2514
        %v2547 = vmul.f32 %v2509, %v2514
        %v2549 = vlaneseq
        %v2550 = vshrl.u32 %v2549, 7
        %v2551 = vsub.s32 0, %v2550
        %v2552 = vrot.slane %v2093, %v2551
        %v2554 = vadd.f32 %v2516, %v2552
        %v2555 = vadd.f32 %v2517, %v2552
        %v2556 = vadd.f32 %v2518, %v2552
        %v2557 = vadd.f32 %v2519, %v2552
        %v2558 = vadd.f32 %v2520, %v2552
        %v2559 = vadd.f32 %v2521, %v2552
        %v2560 = vadd.f32 %v2522, %v2552
        %v2561 = vadd.f32 %v2523, %v2552
        %v2562 = vadd.f32 %v2524, %v2552
        %v2563 = vadd.f32 %v2525, %v2552
        %v2564 = vadd.f32 %v2526, %v2552
        %v2565 = vadd.f32 %v2527, %v2552
        %v2566 = vadd.f32 %v2528, %v2552
        %v2567 = vadd.f32 %v2529, %v2552
        %v2568 = vadd.f32 %v2530, %v2552
        %v2569 = vadd.f32 %v2531, %v2552
        %v2570 = vadd.f32 %v2532, %v2552
        %v2571 = vadd.f32 %v2533, %v2552
        %v2572 = vadd.f32 %v2534, %v2552
        %v2573 = vadd.f32 %v2535, %v2552
        %v2574 = vadd.f32 %v2536, %v2552
        %v2575 = vadd.f32 %v2537, %v2552
        %v2576 = vadd.f32 %v2538, %v2552
        %v2577 = vadd.f32 %v2539, %v2552
        %v2578 = vadd.f32 %v2540, %v2552
        %v2579 = vadd.f32 %v2541, %v2552
        %v2580 = vadd.f32 %v2542, %v2552
        %v2581 = vadd.f32 %v2543, %v2552
        %v2582 = vadd.f32 %v2544, %v2552
        %v2583 = vadd.f32 %v2545, %v2552
        %v2584 = vadd.f32 %v2546, %v2552
        %v2585 = vadd.f32 %v2547, %v2552
        %v2586 = vld [vmem:[%s10] sm:$0xff]
        %v2587 = vld [vmem:[%s10 + $0x8] sm:$0xff]
        %v2588 = vld [vmem:[%s10 + $0x10] sm:$0xff]
        %v2589 = vld [vmem:[%s10 + $0x18] sm:$0xff]
        %v2590 = vld [vmem:[%s11] sm:$0x1]
        %v2592 = vlaneseq
        %v2593 = vshrl.u32 %v2592, 7
        %v2594 = vsub.s32 0, %v2593
        %v2595 = vrot.slane %v2590, %v2594
        %v2598 = vsel %vm758, %v2554, 0
        %v2601 = vsel %vm758, %v2555, 0
        %v2604 = vsel %vm758, %v2556, 0
        %v2607 = vsel %vm758, %v2557, 0
        %v2610 = vsel %vm758, %v2558, 0
        %v2613 = vsel %vm758, %v2559, 0
        %v2616 = vsel %vm758, %v2560, 0
        %v2619 = vsel %vm758, %v2561, 0
        %v2622 = vsel %vm758, %v2562, 0
        %v2625 = vsel %vm758, %v2563, 0
        %v2628 = vsel %vm758, %v2564, 0
        %v2631 = vsel %vm758, %v2565, 0
        %v2634 = vsel %vm758, %v2566, 0
        %v2637 = vsel %vm758, %v2567, 0
        %v2640 = vsel %vm758, %v2568, 0
        %v2643 = vsel %vm758, %v2569, 0
        %v2646 = vsel %vm758, %v2570, 0
        %v2649 = vsel %vm758, %v2571, 0
        %v2652 = vsel %vm758, %v2572, 0
        %v2655 = vsel %vm758, %v2573, 0
        %v2658 = vsel %vm758, %v2574, 0
        %v2661 = vsel %vm758, %v2575, 0
        %v2664 = vsel %vm758, %v2576, 0
        %v2667 = vsel %vm758, %v2577, 0
        %v2670 = vsel %vm758, %v2578, 0
        %v2673 = vsel %vm758, %v2579, 0
        %v2676 = vsel %vm758, %v2580, 0
        %v2679 = vsel %vm758, %v2581, 0
        %v2682 = vsel %vm758, %v2582, 0
        %v2685 = vsel %vm758, %v2583, 0
        %v2688 = vsel %vm758, %v2584, 0
        %v2691 = vsel %vm758, %v2585, 0
        %2693 = vmatprep.subr.mxu0 0.0
        %2694 = vmatpush1.msra.mxu0 %v2586
        %2695 = vmatprep.subr.mxu0 0.0
        %2696 = vmatpush1.msra.mxu0 %v2587
        %2697 = vmatprep.subr.mxu0 0.0
        %2698 = vmatpush1.msra.mxu0 %v2588
        %2699 = vmatprep.subr.mxu0 0.0
        %2700 = vmatpush1.msra.mxu0 %v2589
        %2701 = vmatprep.subr.mxu0 0.0
        %2702 = vmatpush1.msra.mxu0 0.0
        %2703 = vmatprep.subr.mxu0 0.0
        %2704 = vmatpush1.msra.mxu0 0.0
        %2705 = vmatprep.subr.mxu0 0.0
        %2706 = vmatpush1.msra.mxu0 0.0
        %2707 = vmatprep.subr.mxu0 0.0
        %2708 = vmatpush1.msra.mxu0 0.0
        %2709 = vmatprep.subr.mxu0 0.0
        %2710 = vmatpush1.msra.mxu0 0.0
        %2711 = vmatprep.subr.mxu0 0.0
        %2712 = vmatpush1.msra.mxu0 0.0
        %2713 = vmatprep.subr.mxu0 0.0
        %2714 = vmatpush1.msra.mxu0 0.0
        %2715 = vmatprep.subr.mxu0 0.0
        %2716 = vmatpush1.msra.mxu0 0.0
        %2717 = vmatprep.subr.mxu0 0.0
        %2718 = vmatpush1.msra.mxu0 0.0
        %2719 = vmatprep.subr.mxu0 0.0
        %2720 = vmatpush1.msra.mxu0 0.0
        %2721 = vmatprep.subr.mxu0 0.0
        %2722 = vmatpush1.msra.mxu0 0.0
        %2723 = vmatprep.subr.mxu0 0.0
        %2724 = vmatpush1.msra.mxu0 0.0
        %2725 = vmatprep.subr.mxu0 0.0
        %2726 = vmatpush1.msra.mxu0 0.0
        %2727 = vmatprep.subr.mxu0 0.0
        %2728 = vmatpush1.msra.mxu0 0.0
        %2729 = vmatprep.subr.mxu0 0.0
        %2730 = vmatpush1.msra.mxu0 0.0
        %2731 = vmatprep.subr.mxu0 0.0
        %2732 = vmatpush1.msra.mxu0 0.0
        %2733 = vmatprep.subr.mxu0 0.0
        %2734 = vmatpush1.msra.mxu0 0.0
        %2735 = vmatprep.subr.mxu0 0.0
        %2736 = vmatpush1.msra.mxu0 0.0
        %2737 = vmatprep.subr.mxu0 0.0
        %2738 = vmatpush1.msra.mxu0 0.0
        %2739 = vmatprep.subr.mxu0 0.0
        %2740 = vmatpush1.msra.mxu0 0.0
        %2741 = vmatprep.subr.mxu0 0.0
        %2742 = vmatpush1.msra.mxu0 0.0
        %2743 = vmatprep.subr.mxu0 0.0
        %2744 = vmatpush1.msra.mxu0 0.0
        %2745 = vmatprep.subr.mxu0 0.0
        %2746 = vmatpush1.msra.mxu0 0.0
        %2747 = vmatprep.subr.mxu0 0.0
        %2748 = vmatpush1.msra.mxu0 0.0
        %2749 = vmatprep.subr.mxu0 0.0
        %2750 = vmatpush1.msra.mxu0 0.0
        %2751 = vmatprep.subr.mxu0 0.0
        %2752 = vmatpush1.msra.mxu0 0.0
        %2753 = vmatprep.subr.mxu0 0.0
        %2754 = vmatpush1.msra.mxu0 0.0
        %2755 = vmatprep.subr.mxu0 0.0
        %2756 = vmatpush1.msra.mxu0 0.0
        %2757 = vmatprep.mubr.f32.mxu0 0.0
        %2758 = vmatmul.mubr.f32.gmra.mrb[0].mxu0 %v2598
        %v2759 = vpop.f32.mrb[0].mxu0
        %v2760 = vadd.f32 %v2595, %v2759
        %v2761 = vpop.f32.mrb[0].mxu0
        %2762 = vmatprep.mubr.f32.mxu0 0.0
        %2763 = vmatmul.mubr.f32.gmra.mrb[0].mxu0 %v2601
        %v2764 = vpop.f32.mrb[0].mxu0
        %v2765 = vadd.f32 %v2595, %v2764
        %v2766 = vpop.f32.mrb[0].mxu0
        %2767 = vmatprep.mubr.f32.mxu0 0.0
        %2768 = vmatmul.mubr.f32.gmra.mrb[0].mxu0 %v2604
        %v2769 = vpop.f32.mrb[0].mxu0
        %v2770 = vadd.f32 %v2595, %v2769
        %v2771 = vpop.f32.mrb[0].mxu0
        %2772 = vmatprep.mubr.f32.mxu0 0.0
        %2773 = vmatmul.mubr.f32.gmra.mrb[0].mxu0 %v2607
        %v2774 = vpop.f32.mrb[0].mxu0
        %v2775 = vadd.f32 %v2595, %v2774
        %v2776 = vpop.f32.mrb[0].mxu0
        %2777 = vmatprep.mubr.f32.mxu0 0.0
        %2778 = vmatmul.mubr.f32.gmra.mrb[0].mxu0 %v2610
        %v2779 = vpop.f32.mrb[0].mxu0
        %v2780 = vadd.f32 %v2595, %v2779
        %v2781 = vpop.f32.mrb[0].mxu0
        %2782 = vmatprep.mubr.f32.mxu0 0.0
        %2783 = vmatmul.mubr.f32.gmra.mrb[0].mxu0 %v2613
        %v2784 = vpop.f32.mrb[0].mxu0
        %v2785 = vadd.f32 %v2595, %v2784
        %v2786 = vpop.f32.mrb[0].mxu0
        %2787 = vmatprep.mubr.f32.mxu0 0.0
        %2788 = vmatmul.mubr.f32.gmra.mrb[0].mxu0 %v2616
        %v2789 = vpop.f32.mrb[0].mxu0
        %v2790 = vadd.f32 %v2595, %v2789
        %v2791 = vpop.f32.mrb[0].mxu0
        %2792 = vmatprep.mubr.f32.mxu0 0.0
        %2793 = vmatmul.mubr.f32.gmra.mrb[0].mxu0 %v2619
        %v2794 = vpop.f32.mrb[0].mxu0
        %v2795 = vadd.f32 %v2595, %v2794
        %v2796 = vpop.f32.mrb[0].mxu0
        %2797 = vmatprep.mubr.f32.mxu0 0.0
        %2798 = vmatmul.mubr.f32.gmra.mrb[0].mxu0 %v2622
        %v2799 = vpop.f32.mrb[0].mxu0
        %v2800 = vadd.f32 %v2595, %v2799
        %v2801 = vpop.f32.mrb[0].mxu0
        %2802 = vmatprep.mubr.f32.mxu0 0.0
        %2803 = vmatmul.mubr.f32.gmra.mrb[0].mxu0 %v2625
        %v2804 = vpop.f32.mrb[0].mxu0
        %v2805 = vadd.f32 %v2595, %v2804
        %v2806 = vpop.f32.mrb[0].mxu0
        %2807 = vmatprep.mubr.f32.mxu0 0.0
        %2808 = vmatmul.mubr.f32.gmra.mrb[0].mxu0 %v2628
        %v2809 = vpop.f32.mrb[0].mxu0
        %v2810 = vadd.f32 %v2595, %v2809
        %v2811 = vpop.f32.mrb[0].mxu0
        %2812 = vmatprep.mubr.f32.mxu0 0.0
        %2813 = vmatmul.mubr.f32.gmra.mrb[0].mxu0 %v2631
        %v2814 = vpop.f32.mrb[0].mxu0
        %v2815 = vadd.f32 %v2595, %v2814
        %v2816 = vpop.f32.mrb[0].mxu0
        %2817 = vmatprep.mubr.f32.mxu0 0.0
        %2818 = vmatmul.mubr.f32.gmra.mrb[0].mxu0 %v2634
        %v2819 = vpop.f32.mrb[0].mxu0
        %v2820 = vadd.f32 %v2595, %v2819
        %v2821 = vpop.f32.mrb[0].mxu0
        %2822 = vmatprep.mubr.f32.mxu0 0.0
        %2823 = vmatmul.mubr.f32.gmra.mrb[0].mxu0 %v2637
        %v2824 = vpop.f32.mrb[0].mxu0
        %v2825 = vadd.f32 %v2595, %v2824
        %v2826 = vpop.f32.mrb[0].mxu0
        %2827 = vmatprep.mubr.f32.mxu0 0.0
        %2828 = vmatmul.mubr.f32.gmra.mrb[0].mxu0 %v2640
        %v2829 = vpop.f32.mrb[0].mxu0
        %v2830 = vadd.f32 %v2595, %v2829
        %v2831 = vpop.f32.mrb[0].mxu0
        %2832 = vmatprep.mubr.f32.mxu0 0.0
        %2833 = vmatmul.mubr.f32.gmra.mrb[0].mxu0 %v2643
        %v2834 = vpop.f32.mrb[0].mxu0
        %v2835 = vadd.f32 %v2595, %v2834
        %v2836 = vpop.f32.mrb[0].mxu0
        %2837 = vmatprep.mubr.f32.mxu0 0.0
        %2838 = vmatmul.mubr.f32.gmra.mrb[0].mxu0 %v2646
        %v2839 = vpop.f32.mrb[0].mxu0
        %v2840 = vadd.f32 %v2595, %v2839
        %v2841 = vpop.f32.mrb[0].mxu0
        %2842 = vmatprep.mubr.f32.mxu0 0.0
        %2843 = vmatmul.mubr.f32.gmra.mrb[0].mxu0 %v2649
        %v2844 = vpop.f32.mrb[0].mxu0
        %v2845 = vadd.f32 %v2595, %v2844
        %v2846 = vpop.f32.mrb[0].mxu0
        %2847 = vmatprep.mubr.f32.mxu0 0.0
        %2848 = vmatmul.mubr.f32.gmra.mrb[0].mxu0 %v2652
        %v2849 = vpop.f32.mrb[0].mxu0
        %v2850 = vadd.f32 %v2595, %v2849
        %v2851 = vpop.f32.mrb[0].mxu0
        %2852 = vmatprep.mubr.f32.mxu0 0.0
        %2853 = vmatmul.mubr.f32.gmra.mrb[0].mxu0 %v2655
        %v2854 = vpop.f32.mrb[0].mxu0
        %v2855 = vadd.f32 %v2595, %v2854
        %v2856 = vpop.f32.mrb[0].mxu0
        %2857 = vmatprep.mubr.f32.mxu0 0.0
        %2858 = vmatmul.mubr.f32.gmra.mrb[0].mxu0 %v2658
        %v2859 = vpop.f32.mrb[0].mxu0
        %v2860 = vadd.f32 %v2595, %v2859
        %v2861 = vpop.f32.mrb[0].mxu0
        %2862 = vmatprep.mubr.f32.mxu0 0.0
        %2863 = vmatmul.mubr.f32.gmra.mrb[0].mxu0 %v2661
        %v2864 = vpop.f32.mrb[0].mxu0
        %v2865 = vadd.f32 %v2595, %v2864
        %v2866 = vpop.f32.mrb[0].mxu0
        %2867 = vmatprep.mubr.f32.mxu0 0.0
        %2868 = vmatmul.mubr.f32.gmra.mrb[0].mxu0 %v2664
        %v2869 = vpop.f32.mrb[0].mxu0
        %v2870 = vadd.f32 %v2595, %v2869
        %v2871 = vpop.f32.mrb[0].mxu0
        %2872 = vmatprep.mubr.f32.mxu0 0.0
        %2873 = vmatmul.mubr.f32.gmra.mrb[0].mxu0 %v2667
        %v2874 = vpop.f32.mrb[0].mxu0
        %v2875 = vadd.f32 %v2595, %v2874
        %v2876 = vpop.f32.mrb[0].mxu0
        %2877 = vmatprep.mubr.f32.mxu0 0.0
        %2878 = vmatmul.mubr.f32.gmra.mrb[0].mxu0 %v2670
        %v2879 = vpop.f32.mrb[0].mxu0
        %v2880 = vadd.f32 %v2595, %v2879
        %v2881 = vpop.f32.mrb[0].mxu0
        %2882 = vmatprep.mubr.f32.mxu0 0.0
        %2883 = vmatmul.mubr.f32.gmra.mrb[0].mxu0 %v2673
        %v2884 = vpop.f32.mrb[0].mxu0
        %v2885 = vadd.f32 %v2595, %v2884
        %v2886 = vpop.f32.mrb[0].mxu0
        %2887 = vmatprep.mubr.f32.mxu0 0.0
        %2888 = vmatmul.mubr.f32.gmra.mrb[0].mxu0 %v2676
        %v2889 = vpop.f32.mrb[0].mxu0
        %v2890 = vadd.f32 %v2595, %v2889
        %v2891 = vpop.f32.mrb[0].mxu0
        %2892 = vmatprep.mubr.f32.mxu0 0.0
        %2893 = vmatmul.mubr.f32.gmra.mrb[0].mxu0 %v2679
        %v2894 = vpop.f32.mrb[0].mxu0
        %v2895 = vadd.f32 %v2595, %v2894
        %v2896 = vpop.f32.mrb[0].mxu0
        %2897 = vmatprep.mubr.f32.mxu0 0.0
        %2898 = vmatmul.mubr.f32.gmra.mrb[0].mxu0 %v2682
        %v2899 = vpop.f32.mrb[0].mxu0
        %v2900 = vadd.f32 %v2595, %v2899
        %v2901 = vpop.f32.mrb[0].mxu0
        %2902 = vmatprep.mubr.f32.mxu0 0.0
        %2903 = vmatmul.mubr.f32.gmra.mrb[0].mxu0 %v2685
        %v2904 = vpop.f32.mrb[0].mxu0
        %v2905 = vadd.f32 %v2595, %v2904
        %v2906 = vpop.f32.mrb[0].mxu0
        %2907 = vmatprep.mubr.f32.mxu0 0.0
        %2908 = vmatmul.mubr.f32.gmra.mrb[0].mxu0 %v2688
        %v2909 = vpop.f32.mrb[0].mxu0
        %v2910 = vadd.f32 %v2595, %v2909
        %v2911 = vpop.f32.mrb[0].mxu0
        %2912 = vmatprep.mubr.f32.mxu0 0.0
        %2913 = vmatmul.mubr.f32.gmra.mrb[0].mxu0 %v2691
        %v2914 = vpop.f32.mrb[0].mxu0
        %v2915 = vadd.f32 %v2595, %v2914
        %v2916 = vpop.f32.mrb[0].mxu0
        %2917 = vdwg.mxu0
        %v2918 = vmul.f32 %v2760, 0.5
        %v2919 = vmul.f32 %v2765, 0.5
        %v2920 = vmul.f32 %v2770, 0.5
        %v2921 = vmul.f32 %v2775, 0.5
        %v2922 = vmul.f32 %v2780, 0.5
        %v2923 = vmul.f32 %v2785, 0.5
        %v2924 = vmul.f32 %v2790, 0.5
        %v2925 = vmul.f32 %v2795, 0.5
        %v2926 = vmul.f32 %v2800, 0.5
        %v2927 = vmul.f32 %v2805, 0.5
        %v2928 = vmul.f32 %v2810, 0.5
        %v2929 = vmul.f32 %v2815, 0.5
        %v2930 = vmul.f32 %v2820, 0.5
        %v2931 = vmul.f32 %v2825, 0.5
        %v2932 = vmul.f32 %v2830, 0.5
        %v2933 = vmul.f32 %v2835, 0.5
        %v2934 = vmul.f32 %v2840, 0.5
        %v2935 = vmul.f32 %v2845, 0.5
        %v2936 = vmul.f32 %v2850, 0.5
        %v2937 = vmul.f32 %v2855, 0.5
        %v2938 = vmul.f32 %v2860, 0.5
        %v2939 = vmul.f32 %v2865, 0.5
        %v2940 = vmul.f32 %v2870, 0.5
        %v2941 = vmul.f32 %v2875, 0.5
        %v2942 = vmul.f32 %v2880, 0.5
        %v2943 = vmul.f32 %v2885, 0.5
        %v2944 = vmul.f32 %v2890, 0.5
        %v2945 = vmul.f32 %v2895, 0.5
        %v2946 = vmul.f32 %v2900, 0.5
        %v2947 = vmul.f32 %v2905, 0.5
        %v2948 = vmul.f32 %v2910, 0.5
        %v2949 = vmul.f32 %v2915, 0.5
        %v2950 = vmul.f32 %v2760, 0.70710677
        %v2951 = vmul.f32 %v2765, 0.70710677
        %v2952 = vmul.f32 %v2770, 0.70710677
        %v2953 = vmul.f32 %v2775, 0.70710677
        %v2954 = vmul.f32 %v2780, 0.70710677
        %v2955 = vmul.f32 %v2785, 0.70710677
        %v2956 = vmul.f32 %v2790, 0.70710677
        %v2957 = vmul.f32 %v2795, 0.70710677
        %v2958 = vmul.f32 %v2800, 0.70710677
        %v2959 = vmul.f32 %v2805, 0.70710677
        %v2960 = vmul.f32 %v2810, 0.70710677
        %v2961 = vmul.f32 %v2815, 0.70710677
        %v2962 = vmul.f32 %v2820, 0.70710677
        %v2963 = vmul.f32 %v2825, 0.70710677
        %v2964 = vmul.f32 %v2830, 0.70710677
        %v2965 = vmul.f32 %v2835, 0.70710677
        %v2966 = vmul.f32 %v2840, 0.70710677
        %v2967 = vmul.f32 %v2845, 0.70710677
        %v2968 = vmul.f32 %v2850, 0.70710677
        %v2969 = vmul.f32 %v2855, 0.70710677
        %v2970 = vmul.f32 %v2860, 0.70710677
        %v2971 = vmul.f32 %v2865, 0.70710677
        %v2972 = vmul.f32 %v2870, 0.70710677
        %v2973 = vmul.f32 %v2875, 0.70710677
        %v2974 = vmul.f32 %v2880, 0.70710677
        %v2975 = vmul.f32 %v2885, 0.70710677
        %v2976 = vmul.f32 %v2890, 0.70710677
        %v2977 = vmul.f32 %v2895, 0.70710677
        %v2978 = vmul.f32 %v2900, 0.70710677
        %v2979 = vmul.f32 %v2905, 0.70710677
        %v2980 = vmul.f32 %v2910, 0.70710677
        %v2981 = vmul.f32 %v2915, 0.70710677
        %v2982 = verf.f32.pop %v2950
        %v2983 = verf.f32.pop %v2951
        %v2984 = verf.f32.pop %v2952
        %v2985 = verf.f32.pop %v2953
        %v2986 = verf.f32.pop %v2954
        %v2987 = verf.f32.pop %v2955
        %v2988 = verf.f32.pop %v2956
        %v2989 = verf.f32.pop %v2957
        %v2990 = verf.f32.pop %v2958
        %v2991 = verf.f32.pop %v2959
        %v2992 = verf.f32.pop %v2960
        %v2993 = verf.f32.pop %v2961
        %v2994 = verf.f32.pop %v2962
        %v2995 = verf.f32.pop %v2963
        %v2996 = verf.f32.pop %v2964
        %v2997 = verf.f32.pop %v2965
        %v2998 = verf.f32.pop %v2966
        %v2999 = verf.f32.pop %v2967
        %v3000 = verf.f32.pop %v2968
        %v3001 = verf.f32.pop %v2969
        %v3002 = verf.f32.pop %v2970
        %v3003 = verf.f32.pop %v2971
        %v3004 = verf.f32.pop %v2972
        %v3005 = verf.f32.pop %v2973
        %v3006 = verf.f32.pop %v2974
        %v3007 = verf.f32.pop %v2975
        %v3008 = verf.f32.pop %v2976
        %v3009 = verf.f32.pop %v2977
        %v3010 = verf.f32.pop %v2978
        %v3011 = verf.f32.pop %v2979
        %v3012 = verf.f32.pop %v2980
        %v3013 = verf.f32.pop %v2981
        %v3014 = vadd.f32 %v2982, 1.0
        %v3015 = vadd.f32 %v2983, 1.0
        %v3016 = vadd.f32 %v2984, 1.0
        %v3017 = vadd.f32 %v2985, 1.0
        %v3018 = vadd.f32 %v2986, 1.0
        %v3019 = vadd.f32 %v2987, 1.0
        %v3020 = vadd.f32 %v2988, 1.0
        %v3021 = vadd.f32 %v2989, 1.0
        %v3022 = vadd.f32 %v2990, 1.0
        %v3023 = vadd.f32 %v2991, 1.0
        %v3024 = vadd.f32 %v2992, 1.0
        %v3025 = vadd.f32 %v2993, 1.0
        %v3026 = vadd.f32 %v2994, 1.0
        %v3027 = vadd.f32 %v2995, 1.0
        %v3028 = vadd.f32 %v2996, 1.0
        %v3029 = vadd.f32 %v2997, 1.0
        %v3030 = vadd.f32 %v2998, 1.0
        %v3031 = vadd.f32 %v2999, 1.0
        %v3032 = vadd.f32 %v3000, 1.0
        %v3033 = vadd.f32 %v3001, 1.0
        %v3034 = vadd.f32 %v3002, 1.0
        %v3035 = vadd.f32 %v3003, 1.0
        %v3036 = vadd.f32 %v3004, 1.0
        %v3037 = vadd.f32 %v3005, 1.0
        %v3038 = vadd.f32 %v3006, 1.0
        %v3039 = vadd.f32 %v3007, 1.0
        %v3040 = vadd.f32 %v3008, 1.0
        %v3041 = vadd.f32 %v3009, 1.0
        %v3042 = vadd.f32 %v3010, 1.0
        %v3043 = vadd.f32 %v3011, 1.0
        %v3044 = vadd.f32 %v3012, 1.0
        %v3045 = vadd.f32 %v3013, 1.0
        %v3046 = vmul.f32 %v2918, %v3014
        %v3047 = vmul.f32 %v2919, %v3015
        %v3048 = vmul.f32 %v2920, %v3016
        %v3049 = vmul.f32 %v2921, %v3017
        %v3050 = vmul.f32 %v2922, %v3018
        %v3051 = vmul.f32 %v2923, %v3019
        %v3052 = vmul.f32 %v2924, %v3020
        %v3053 = vmul.f32 %v2925, %v3021
        %v3054 = vmul.f32 %v2926, %v3022
        %v3055 = vmul.f32 %v2927, %v3023
        %v3056 = vmul.f32 %v2928, %v3024
        %v3057 = vmul.f32 %v2929, %v3025
        %v3058 = vmul.f32 %v2930, %v3026
        %v3059 = vmul.f32 %v2931, %v3027
        %v3060 = vmul.f32 %v2932, %v3028
        %v3061 = vmul.f32 %v2933, %v3029
        %v3062 = vmul.f32 %v2934, %v3030
        %v3063 = vmul.f32 %v2935, %v3031
        %v3064 = vmul.f32 %v2936, %v3032
        %v3065 = vmul.f32 %v2937, %v3033
        %v3066 = vmul.f32 %v2938, %v3034
        %v3067 = vmul.f32 %v2939, %v3035
        %v3068 = vmul.f32 %v2940, %v3036
        %v3069 = vmul.f32 %v2941, %v3037
        %v3070 = vmul.f32 %v2942, %v3038
        %v3071 = vmul.f32 %v2943, %v3039
        %v3072 = vmul.f32 %v2944, %v3040
        %v3073 = vmul.f32 %v2945, %v3041
        %v3074 = vmul.f32 %v2946, %v3042
        %v3075 = vmul.f32 %v2947, %v3043
        %v3076 = vmul.f32 %v2948, %v3044
        %v3077 = vmul.f32 %v2949, %v3045
        %v3078 = vld [vmem:[%s12] sm:$0xff]
        %v3079 = vld [vmem:[%s12 + $0x8] sm:$0xff]
        %v3080 = vld [vmem:[%s12 + $0x10] sm:$0xff]
        %v3081 = vld [vmem:[%s12 + $0x18] sm:$0xff]
        %v3082 = vld [vmem:[%s13] sm:$0x1]
        %v3084 = vlaneseq
        %v3085 = vshrl.u32 %v3084, 7
        %v3086 = vsub.s32 0, %v3085
        %v3087 = vrot.slane %v3082, %v3086
        %v3090 = vsel %vm758, %v3046, 0
        %v3093 = vsel %vm758, %v3047, 0
        %v3096 = vsel %vm758, %v3048, 0
        %v3099 = vsel %vm758, %v3049, 0
        %v3102 = vsel %vm758, %v3050, 0
        %v3105 = vsel %vm758, %v3051, 0
        %v3108 = vsel %vm758, %v3052, 0
        %v3111 = vsel %vm758, %v3053, 0
        %v3114 = vsel %vm758, %v3054, 0
        %v3117 = vsel %vm758, %v3055, 0
        %v3120 = vsel %vm758, %v3056, 0
        %v3123 = vsel %vm758, %v3057, 0
        %v3126 = vsel %vm758, %v3058, 0
        %v3129 = vsel %vm758, %v3059, 0
        %v3132 = vsel %vm758, %v3060, 0
        %v3135 = vsel %vm758, %v3061, 0
        %v3138 = vsel %vm758, %v3062, 0
        %v3141 = vsel %vm758, %v3063, 0
        %v3144 = vsel %vm758, %v3064, 0
        %v3147 = vsel %vm758, %v3065, 0
        %v3150 = vsel %vm758, %v3066, 0
        %v3153 = vsel %vm758, %v3067, 0
        %v3156 = vsel %vm758, %v3068, 0
        %v3159 = vsel %vm758, %v3069, 0
        %v3162 = vsel %vm758, %v3070, 0
        %v3165 = vsel %vm758, %v3071, 0
        %v3168 = vsel %vm758, %v3072, 0
        %v3171 = vsel %vm758, %v3073, 0
        %v3174 = vsel %vm758, %v3074, 0
        %v3177 = vsel %vm758, %v3075, 0
        %v3180 = vsel %vm758, %v3076, 0
        %v3183 = vsel %vm758, %v3077, 0
        %3185 = vmatprep.subr.mxu0 0.0
        %3186 = vmatpush1.msra.mxu0 %v3078
        %3187 = vmatprep.subr.mxu0 0.0
        %3188 = vmatpush1.msra.mxu0 %v3079
        %3189 = vmatprep.subr.mxu0 0.0
        %3190 = vmatpush1.msra.mxu0 %v3080
        %3191 = vmatprep.subr.mxu0 0.0
        %3192 = vmatpush1.msra.mxu0 %v3081
        %3193 = vmatprep.subr.mxu0 0.0
        %3194 = vmatpush1.msra.mxu0 0.0
        %3195 = vmatprep.subr.mxu0 0.0
        %3196 = vmatpush1.msra.mxu0 0.0
        %3197 = vmatprep.subr.mxu0 0.0
        %3198 = vmatpush1.msra.mxu0 0.0
        %3199 = vmatprep.subr.mxu0 0.0
        %3200 = vmatpush1.msra.mxu0 0.0
        %3201 = vmatprep.subr.mxu0 0.0
        %3202 = vmatpush1.msra.mxu0 0.0
        %3203 = vmatprep.subr.mxu0 0.0
        %3204 = vmatpush1.msra.mxu0 0.0
        %3205 = vmatprep.subr.mxu0 0.0
        %3206 = vmatpush1.msra.mxu0 0.0
        %3207 = vmatprep.subr.mxu0 0.0
        %3208 = vmatpush1.msra.mxu0 0.0
        %3209 = vmatprep.subr.mxu0 0.0
        %3210 = vmatpush1.msra.mxu0 0.0
        %3211 = vmatprep.subr.mxu0 0.0
        %3212 = vmatpush1.msra.mxu0 0.0
        %3213 = vmatprep.subr.mxu0 0.0
        %3214 = vmatpush1.msra.mxu0 0.0
        %3215 = vmatprep.subr.mxu0 0.0
        %3216 = vmatpush1.msra.mxu0 0.0
        %3217 = vmatprep.subr.mxu0 0.0
        %3218 = vmatpush1.msra.mxu0 0.0
        %3219 = vmatprep.subr.mxu0 0.0
        %3220 = vmatpush1.msra.mxu0 0.0
        %3221 = vmatprep.subr.mxu0 0.0
        %3222 = vmatpush1.msra.mxu0 0.0
        %3223 = vmatprep.subr.mxu0 0.0
        %3224 = vmatpush1.msra.mxu0 0.0
        %3225 = vmatprep.subr.mxu0 0.0
        %3226 = vmatpush1.msra.mxu0 0.0
        %3227 = vmatprep.subr.mxu0 0.0
        %3228 = vmatpush1.msra.mxu0 0.0
        %3229 = vmatprep.subr.mxu0 0.0
        %3230 = vmatpush1.msra.mxu0 0.0
        %3231 = vmatprep.subr.mxu0 0.0
        %3232 = vmatpush1.msra.mxu0 0.0
        %3233 = vmatprep.subr.mxu0 0.0
        %3234 = vmatpush1.msra.mxu0 0.0
        %3235 = vmatprep.subr.mxu0 0.0
        %3236 = vmatpush1.msra.mxu0 0.0
        %3237 = vmatprep.subr.mxu0 0.0
        %3238 = vmatpush1.msra.mxu0 0.0
        %3239 = vmatprep.subr.mxu0 0.0
        %3240 = vmatpush1.msra.mxu0 0.0
        %3241 = vmatprep.subr.mxu0 0.0
        %3242 = vmatpush1.msra.mxu0 0.0
        %3243 = vmatprep.subr.mxu0 0.0
        %3244 = vmatpush1.msra.mxu0 0.0
        %3245 = vmatprep.subr.mxu0 0.0
        %3246 = vmatpush1.msra.mxu0 0.0
        %3247 = vmatprep.subr.mxu0 0.0
        %3248 = vmatpush1.msra.mxu0 0.0
        %3249 = vmatprep.mubr.f32.mxu0 0.0
        %3250 = vmatmul.mubr.f32.gmra.mrb[0].mxu0 %v3090
        %v3251 = vpop.f32.mrb[0].mxu0
        %v3252 = vadd.f32 %v3087, %v3251
        %v3253 = vpop.f32.mrb[0].mxu0
        %3254 = vmatprep.mubr.f32.mxu0 0.0
        %3255 = vmatmul.mubr.f32.gmra.mrb[0].mxu0 %v3093
        %v3256 = vpop.f32.mrb[0].mxu0
        %v3257 = vadd.f32 %v3087, %v3256
        %v3258 = vpop.f32.mrb[0].mxu0
        %3259 = vmatprep.mubr.f32.mxu0 0.0
        %3260 = vmatmul.mubr.f32.gmra.mrb[0].mxu0 %v3096
        %v3261 = vpop.f32.mrb[0].mxu0
        %v3262 = vadd.f32 %v3087, %v3261
        %v3263 = vpop.f32.mrb[0].mxu0
        %3264 = vmatprep.mubr.f32.mxu0 0.0
        %3265 = vmatmul.mubr.f32.gmra.mrb[0].mxu0 %v3099
        %v3266 = vpop.f32.mrb[0].mxu0
        %v3267 = vadd.f32 %v3087, %v3266
        %v3268 = vpop.f32.mrb[0].mxu0
        %3269 = vmatprep.mubr.f32.mxu0 0.0
        %3270 = vmatmul.mubr.f32.gmra.mrb[0].mxu0 %v3102
        %v3271 = vpop.f32.mrb[0].mxu0
        %v3272 = vadd.f32 %v3087, %v3271
        %v3273 = vpop.f32.mrb[0].mxu0
        %3274 = vmatprep.mubr.f32.mxu0 0.0
        %3275 = vmatmul.mubr.f32.gmra.mrb[0].mxu0 %v3105
        %v3276 = vpop.f32.mrb[0].mxu0
        %v3277 = vadd.f32 %v3087, %v3276
        %v3278 = vpop.f32.mrb[0].mxu0
        %3279 = vmatprep.mubr.f32.mxu0 0.0
        %3280 = vmatmul.mubr.f32.gmra.mrb[0].mxu0 %v3108
        %v3281 = vpop.f32.mrb[0].mxu0
        %v3282 = vadd.f32 %v3087, %v3281
        %v3283 = vpop.f32.mrb[0].mxu0
        %3284 = vmatprep.mubr.f32.mxu0 0.0
        %3285 = vmatmul.mubr.f32.gmra.mrb[0].mxu0 %v3111
        %v3286 = vpop.f32.mrb[0].mxu0
        %v3287 = vadd.f32 %v3087, %v3286
        %v3288 = vpop.f32.mrb[0].mxu0
        %3289 = vmatprep.mubr.f32.mxu0 0.0
        %3290 = vmatmul.mubr.f32.gmra.mrb[0].mxu0 %v3114
        %v3291 = vpop.f32.mrb[0].mxu0
        %v3292 = vadd.f32 %v3087, %v3291
        %v3293 = vpop.f32.mrb[0].mxu0
        %3294 = vmatprep.mubr.f32.mxu0 0.0
        %3295 = vmatmul.mubr.f32.gmra.mrb[0].mxu0 %v3117
        %v3296 = vpop.f32.mrb[0].mxu0
        %v3297 = vadd.f32 %v3087, %v3296
        %v3298 = vpop.f32.mrb[0].mxu0
        %3299 = vmatprep.mubr.f32.mxu0 0.0
        %3300 = vmatmul.mubr.f32.gmra.mrb[0].mxu0 %v3120
        %v3301 = vpop.f32.mrb[0].mxu0
        %v3302 = vadd.f32 %v3087, %v3301
        %v3303 = vpop.f32.mrb[0].mxu0
        %3304 = vmatprep.mubr.f32.mxu0 0.0
        %3305 = vmatmul.mubr.f32.gmra.mrb[0].mxu0 %v3123
        %v3306 = vpop.f32.mrb[0].mxu0
        %v3307 = vadd.f32 %v3087, %v3306
        %v3308 = vpop.f32.mrb[0].mxu0
        %3309 = vmatprep.mubr.f32.mxu0 0.0
        %3310 = vmatmul.mubr.f32.gmra.mrb[0].mxu0 %v3126
        %v3311 = vpop.f32.mrb[0].mxu0
        %v3312 = vadd.f32 %v3087, %v3311
        %v3313 = vpop.f32.mrb[0].mxu0
        %3314 = vmatprep.mubr.f32.mxu0 0.0
        %3315 = vmatmul.mubr.f32.gmra.mrb[0].mxu0 %v3129
        %v3316 = vpop.f32.mrb[0].mxu0
        %v3317 = vadd.f32 %v3087, %v3316
        %v3318 = vpop.f32.mrb[0].mxu0
        %3319 = vmatprep.mubr.f32.mxu0 0.0
        %3320 = vmatmul.mubr.f32.gmra.mrb[0].mxu0 %v3132
        %v3321 = vpop.f32.mrb[0].mxu0
        %v3322 = vadd.f32 %v3087, %v3321
        %v3323 = vpop.f32.mrb[0].mxu0
        %3324 = vmatprep.mubr.f32.mxu0 0.0
        %3325 = vmatmul.mubr.f32.gmra.mrb[0].mxu0 %v3135
        %v3326 = vpop.f32.mrb[0].mxu0
        %v3327 = vadd.f32 %v3087, %v3326
        %v3328 = vpop.f32.mrb[0].mxu0
        %3329 = vmatprep.mubr.f32.mxu0 0.0
        %3330 = vmatmul.mubr.f32.gmra.mrb[0].mxu0 %v3138
        %v3331 = vpop.f32.mrb[0].mxu0
        %v3332 = vadd.f32 %v3087, %v3331
        %v3333 = vpop.f32.mrb[0].mxu0
        %3334 = vmatprep.mubr.f32.mxu0 0.0
        %3335 = vmatmul.mubr.f32.gmra.mrb[0].mxu0 %v3141
        %v3336 = vpop.f32.mrb[0].mxu0
        %v3337 = vadd.f32 %v3087, %v3336
        %v3338 = vpop.f32.mrb[0].mxu0
        %3339 = vmatprep.mubr.f32.mxu0 0.0
        %3340 = vmatmul.mubr.f32.gmra.mrb[0].mxu0 %v3144
        %v3341 = vpop.f32.mrb[0].mxu0
        %v3342 = vadd.f32 %v3087, %v3341
        %v3343 = vpop.f32.mrb[0].mxu0
        %3344 = vmatprep.mubr.f32.mxu0 0.0
        %3345 = vmatmul.mubr.f32.gmra.mrb[0].mxu0 %v3147
        %v3346 = vpop.f32.mrb[0].mxu0
        %v3347 = vadd.f32 %v3087, %v3346
        %v3348 = vpop.f32.mrb[0].mxu0
        %3349 = vmatprep.mubr.f32.mxu0 0.0
        %3350 = vmatmul.mubr.f32.gmra.mrb[0].mxu0 %v3150
        %v3351 = vpop.f32.mrb[0].mxu0
        %v3352 = vadd.f32 %v3087, %v3351
        %v3353 = vpop.f32.mrb[0].mxu0
        %3354 = vmatprep.mubr.f32.mxu0 0.0
        %3355 = vmatmul.mubr.f32.gmra.mrb[0].mxu0 %v3153
        %v3356 = vpop.f32.mrb[0].mxu0
        %v3357 = vadd.f32 %v3087, %v3356
        %v3358 = vpop.f32.mrb[0].mxu0
        %3359 = vmatprep.mubr.f32.mxu0 0.0
        %3360 = vmatmul.mubr.f32.gmra.mrb[0].mxu0 %v3156
        %v3361 = vpop.f32.mrb[0].mxu0
        %v3362 = vadd.f32 %v3087, %v3361
        %v3363 = vpop.f32.mrb[0].mxu0
        %3364 = vmatprep.mubr.f32.mxu0 0.0
        %3365 = vmatmul.mubr.f32.gmra.mrb[0].mxu0 %v3159
        %v3366 = vpop.f32.mrb[0].mxu0
        %v3367 = vadd.f32 %v3087, %v3366
        %v3368 = vpop.f32.mrb[0].mxu0
        %3369 = vmatprep.mubr.f32.mxu0 0.0
        %3370 = vmatmul.mubr.f32.gmra.mrb[0].mxu0 %v3162
        %v3371 = vpop.f32.mrb[0].mxu0
        %v3372 = vadd.f32 %v3087, %v3371
        %v3373 = vpop.f32.mrb[0].mxu0
        %3374 = vmatprep.mubr.f32.mxu0 0.0
        %3375 = vmatmul.mubr.f32.gmra.mrb[0].mxu0 %v3165
        %v3376 = vpop.f32.mrb[0].mxu0
        %v3377 = vadd.f32 %v3087, %v3376
        %v3378 = vpop.f32.mrb[0].mxu0
        %3379 = vmatprep.mubr.f32.mxu0 0.0
        %3380 = vmatmul.mubr.f32.gmra.mrb[0].mxu0 %v3168
        %v3381 = vpop.f32.mrb[0].mxu0
        %v3382 = vadd.f32 %v3087, %v3381
        %v3383 = vpop.f32.mrb[0].mxu0
        %3384 = vmatprep.mubr.f32.mxu0 0.0
        %3385 = vmatmul.mubr.f32.gmra.mrb[0].mxu0 %v3171
        %v3386 = vpop.f32.mrb[0].mxu0
        %v3387 = vadd.f32 %v3087, %v3386
        %v3388 = vpop.f32.mrb[0].mxu0
        %3389 = vmatprep.mubr.f32.mxu0 0.0
        %3390 = vmatmul.mubr.f32.gmra.mrb[0].mxu0 %v3174
        %v3391 = vpop.f32.mrb[0].mxu0
        %v3392 = vadd.f32 %v3087, %v3391
        %v3393 = vpop.f32.mrb[0].mxu0
        %3394 = vmatprep.mubr.f32.mxu0 0.0
        %3395 = vmatmul.mubr.f32.gmra.mrb[0].mxu0 %v3177
        %v3396 = vpop.f32.mrb[0].mxu0
        %v3397 = vadd.f32 %v3087, %v3396
        %v3398 = vpop.f32.mrb[0].mxu0
        %3399 = vmatprep.mubr.f32.mxu0 0.0
        %3400 = vmatmul.mubr.f32.gmra.mrb[0].mxu0 %v3180
        %v3401 = vpop.f32.mrb[0].mxu0
        %v3402 = vadd.f32 %v3087, %v3401
        %v3403 = vpop.f32.mrb[0].mxu0
        %3404 = vmatprep.mubr.f32.mxu0 0.0
        %3405 = vmatmul.mubr.f32.gmra.mrb[0].mxu0 %v3183
        %v3406 = vpop.f32.mrb[0].mxu0
        %v3407 = vadd.f32 %v3087, %v3406
        %v3408 = vpop.f32.mrb[0].mxu0
        %3409 = vdwg.mxu0
        %s3410 = sld [smem:[#allocation2 + $0x4]]
        %v3411 = vstv %s3410
        %v3412 = vmul.f32 %v3411, %v2060
        %v3413 = vmul.f32 %v3411, %v2061
        %v3414 = vmul.f32 %v3411, %v2062
        %v3415 = vmul.f32 %v3411, %v2063
        %v3416 = vmul.f32 %v3411, %v2064
        %v3417 = vmul.f32 %v3411, %v2065
        %v3418 = vmul.f32 %v3411, %v2066
        %v3419 = vmul.f32 %v3411, %v2067
        %v3420 = vmul.f32 %v3411, %v2068
        %v3421 = vmul.f32 %v3411, %v2069
        %v3422 = vmul.f32 %v3411, %v2070
        %v3423 = vmul.f32 %v3411, %v2071
        %v3424 = vmul.f32 %v3411, %v2072
        %v3425 = vmul.f32 %v3411, %v2073
        %v3426 = vmul.f32 %v3411, %v2074
        %v3427 = vmul.f32 %v3411, %v2075
        %v3428 = vmul.f32 %v3411, %v2076
        %v3429 = vmul.f32 %v3411, %v2077
        %v3430 = vmul.f32 %v3411, %v2078
        %v3431 = vmul.f32 %v3411, %v2079
        %v3432 = vmul.f32 %v3411, %v2080
        %v3433 = vmul.f32 %v3411, %v2081
        %v3434 = vmul.f32 %v3411, %v2082
        %v3435 = vmul.f32 %v3411, %v2083
        %v3436 = vmul.f32 %v3411, %v2084
        %v3437 = vmul.f32 %v3411, %v2085
        %v3438 = vmul.f32 %v3411, %v2086
        %v3439 = vmul.f32 %v3411, %v2087
        %v3440 = vmul.f32 %v3411, %v2088
        %v3441 = vmul.f32 %v3411, %v2089
        %v3442 = vmul.f32 %v3411, %v2090
        %v3443 = vmul.f32 %v3411, %v2091
        %s3444 = sld [smem:[#allocation2 + $0x5]]
        %v3445 = vstv %s3444
        %v3446 = vmul.f32 %v3445, %v3252
        %v3447 = vmul.f32 %v3445, %v3257
        %v3448 = vmul.f32 %v3445, %v3262
        %v3449 = vmul.f32 %v3445, %v3267
        %v3450 = vmul.f32 %v3445, %v3272
        %v3451 = vmul.f32 %v3445, %v3277
        %v3452 = vmul.f32 %v3445, %v3282
        %v3453 = vmul.f32 %v3445, %v3287
        %v3454 = vmul.f32 %v3445, %v3292
        %v3455 = vmul.f32 %v3445, %v3297
        %v3456 = vmul.f32 %v3445, %v3302
        %v3457 = vmul.f32 %v3445, %v3307
        %v3458 = vmul.f32 %v3445, %v3312
        %v3459 = vmul.f32 %v3445, %v3317
        %v3460 = vmul.f32 %v3445, %v3322
        %v3461 = vmul.f32 %v3445, %v3327
        %v3462 = vmul.f32 %v3445, %v3332
        %v3463 = vmul.f32 %v3445, %v3337
        %v3464 = vmul.f32 %v3445, %v3342
        %v3465 = vmul.f32 %v3445, %v3347
        %v3466 = vmul.f32 %v3445, %v3352
        %v3467 = vmul.f32 %v3445, %v3357
        %v3468 = vmul.f32 %v3445, %v3362
        %v3469 = vmul.f32 %v3445, %v3367
        %v3470 = vmul.f32 %v3445, %v3372
        %v3471 = vmul.f32 %v3445, %v3377
        %v3472 = vmul.f32 %v3445, %v3382
        %v3473 = vmul.f32 %v3445, %v3387
        %v3474 = vmul.f32 %v3445, %v3392
        %v3475 = vmul.f32 %v3445, %v3397
        %v3476 = vmul.f32 %v3445, %v3402
        %v3477 = vmul.f32 %v3445, %v3407
        %v3478 = vadd.f32 %v3412, %v3446
        %v3479 = vadd.f32 %v3413, %v3447
        %v3480 = vadd.f32 %v3414, %v3448
        %v3481 = vadd.f32 %v3415, %v3449
        %v3482 = vadd.f32 %v3416, %v3450
        %v3483 = vadd.f32 %v3417, %v3451
        %v3484 = vadd.f32 %v3418, %v3452
        %v3485 = vadd.f32 %v3419, %v3453
        %v3486 = vadd.f32 %v3420, %v3454
        %v3487 = vadd.f32 %v3421, %v3455
        %v3488 = vadd.f32 %v3422, %v3456
        %v3489 = vadd.f32 %v3423, %v3457
        %v3490 = vadd.f32 %v3424, %v3458
        %v3491 = vadd.f32 %v3425, %v3459
        %v3492 = vadd.f32 %v3426, %v3460
        %v3493 = vadd.f32 %v3427, %v3461
        %v3494 = vadd.f32 %v3428, %v3462
        %v3495 = vadd.f32 %v3429, %v3463
        %v3496 = vadd.f32 %v3430, %v3464
        %v3497 = vadd.f32 %v3431, %v3465
        %v3498 = vadd.f32 %v3432, %v3466
        %v3499 = vadd.f32 %v3433, %v3467
        %v3500 = vadd.f32 %v3434, %v3468
        %v3501 = vadd.f32 %v3435, %v3469
        %v3502 = vadd.f32 %v3436, %v3470
        %v3503 = vadd.f32 %v3437, %v3471
        %v3504 = vadd.f32 %v3438, %v3472
        %v3505 = vadd.f32 %v3439, %v3473
        %v3506 = vadd.f32 %v3440, %v3474
        %v3507 = vadd.f32 %v3441, %v3475
        %v3508 = vadd.f32 %v3442, %v3476
        %v3509 = vadd.f32 %v3443, %v3477
        %3510 = vst.msk [vmem:[%s560] sm:$0xff] %vm758, %v3478
        %3511 = vst.msk [vmem:[%s560 + $0x8] sm:$0xff] %vm758, %v3479
        %3512 = vst.msk [vmem:[%s560 + $0x10] sm:$0xff] %vm758, %v3480
        %3513 = vst.msk [vmem:[%s560 + $0x18] sm:$0xff] %vm758, %v3481
        %3514 = vst.msk [vmem:[%s560 + $0x20] sm:$0xff] %vm758, %v3482
        %3515 = vst.msk [vmem:[%s560 + $0x28] sm:$0xff] %vm758, %v3483
        %3516 = vst.msk [vmem:[%s560 + $0x30] sm:$0xff] %vm758, %v3484
        %3517 = vst.msk [vmem:[%s560 + $0x38] sm:$0xff] %vm758, %v3485
        %3518 = vst.msk [vmem:[%s560 + $0x40] sm:$0xff] %vm758, %v3486
        %3519 = vst.msk [vmem:[%s560 + $0x48] sm:$0xff] %vm758, %v3487
        %3520 = vst.msk [vmem:[%s560 + $0x50] sm:$0xff] %vm758, %v3488
        %3521 = vst.msk [vmem:[%s560 + $0x58] sm:$0xff] %vm758, %v3489
        %3522 = vst.msk [vmem:[%s560 + $0x60] sm:$0xff] %vm758, %v3490
        %3523 = vst.msk [vmem:[%s560 + $0x68] sm:$0xff] %vm758, %v3491
        %3524 = vst.msk [vmem:[%s560 + $0x70] sm:$0xff] %vm758, %v3492
        %3525 = vst.msk [vmem:[%s560 + $0x78] sm:$0xff] %vm758, %v3493
        %3526 = vst.msk [vmem:[%s560 + $0x80] sm:$0xff] %vm758, %v3494
        %3527 = vst.msk [vmem:[%s560 + $0x88] sm:$0xff] %vm758, %v3495
        %3528 = vst.msk [vmem:[%s560 + $0x90] sm:$0xff] %vm758, %v3496
        %3529 = vst.msk [vmem:[%s560 + $0x98] sm:$0xff] %vm758, %v3497
        %3530 = vst.msk [vmem:[%s560 + $0xa0] sm:$0xff] %vm758, %v3498
        %3531 = vst.msk [vmem:[%s560 + $0xa8] sm:$0xff] %vm758, %v3499
        %3532 = vst.msk [vmem:[%s560 + $0xb0] sm:$0xff] %vm758, %v3500
        %3533 = vst.msk [vmem:[%s560 + $0xb8] sm:$0xff] %vm758, %v3501
        %3534 = vst.msk [vmem:[%s560 + $0xc0] sm:$0xff] %vm758, %v3502
        %3535 = vst.msk [vmem:[%s560 + $0xc8] sm:$0xff] %vm758, %v3503
        %3536 = vst.msk [vmem:[%s560 + $0xd0] sm:$0xff] %vm758, %v3504
        %3537 = vst.msk [vmem:[%s560 + $0xd8] sm:$0xff] %vm758, %v3505
        %3538 = vst.msk [vmem:[%s560 + $0xe0] sm:$0xff] %vm758, %v3506
        %3539 = vst.msk [vmem:[%s560 + $0xe8] sm:$0xff] %vm758, %v3507
        %3540 = vst.msk [vmem:[%s560 + $0xf0] sm:$0xff] %vm758, %v3508
        %3541 = vst.msk [vmem:[%s560 + $0xf8] sm:$0xff] %vm758, %v3509
        %s3542 = sand.u32 %s378, 1
        %s3543 = sand.u32 %s378, 1
        %s3544 = smul.addr %s3543, 256
        %s3545 = scalar_lea.vmem [#allocation4], %s3544
        // Predicated region
        $region85: #{_lambda_.5} parent=79 // pred_check
          %p3546 = pneg %p388
        $region86: #{_lambda_.5} parent=79 // pred_check_branch
          %3548 = sbr.rel (%p3546) target = $region88
        $region87: #{_lambda_.5} parent=79 // pred_region
          %s3549 = smul.u32 32, %s32
          %s3550 = ssub.s32 2, %s3549
          %s3551 = smul.u32 128, %s3550
          %p3552 = scmp.ne.s32.totalorder 0, %s3551
          %s3553 = smul.addr %s31, 2
          %s3554 = sadd.s32 %s3549, %s3553
          %s3555 = smul.addr %s3554, 8
          %s3556 = scalar_lea.vmem %s15, %s3555
          // Predicated region
          $region89: #{_lambda_.5} parent=87 // pred_check
            %p3557 = pneg %p3552
          $region90: #{_lambda_.5} parent=87 // pred_check_branch
            %3559 = sbr.rel (%p3557) target = $region92
          $region91: #{_lambda_.5} parent=87 // pred_region
            // Predicated region
            $region93: #{_lambda_.5} parent=91 // pred_check
              _
            $region94: #{_lambda_.5} parent=91 // pred_check_branch
              %3561 = sbr.rel (0) target = $region96
            $region95: #{_lambda_.5} parent=91 // pred_region
              // Predicated region
              $region115: #{_lambda_.5} parent=95 // pred_check
                _
              $region116: #{_lambda_.5} parent=95 // pred_check_branch
                %3612 = sbr.rel (0) target = $region118
              $region117: #{_lambda_.5} parent=95 // pred_region
                %s3613 = sshrl.u32 %s3550, 1
                // While loop
                $region119: #{_lambda_.5} parent=117 // loop_pre_header
                  _
                $region120: #{_lambda_.5} parent=117 // loop_header
                  %s3615 = sphi 0, %s3617
                  %p3616 = scmp.ge.s32.totalorder %s3615, %s3613
                  %s3620 = sphi 0, %s3629
                  %s3621 = sphi %s3545, %s3632
                  %s3622 = sphi %s3556, %s3633
                $region121: #{_lambda_.5} parent=117 // loop_header_branch
                  %3619 = sbr.rel (%p3616) target = $region125
                $region122: #{_lambda_.5} parent=117 // loop_body
                  %v3623 = vld [vmem:[%s3621] sm:$0xff]
                  %3624 = vst [vmem:[%s3622] sm:$0xff] %v3623
                  %v3625 = vld [vmem:[%s3621 + $0x8] sm:$0xff]
                  %3626 = vst [vmem:[%s3622 + $0x8] sm:$0xff] %v3625
                  %s3627 = sadd.s32 1, %s3620
                  %p3628 = scmp.ge.s32.totalorder %s3627, %s3613
                  %s3629 = scalar_select %p3628, 0, %s3627
                  %s3630 = smul.u32 %s3629, 16
                  %s3631 = smul.u32 %s3629, 16
                  %s3632 = scalar_lea.vmem %s3545, %s3630 [#allocation4]
                  %s3633 = scalar_lea.vmem %s3556, %s3631
                $region123: #{_lambda_.5} parent=117 // loop_footer
                  %s3617 = sadd.s32 %s3615, 1
                $region124: #{_lambda_.5} parent=117 // loop_footer_branch
                  %3614 = sbr.rel target = $region120
                $region125: #{_lambda_.5} parent=117 // loop_exit
                  _
                %s3634 = sshrl.u32 %s3550, 1
                %s3635 = sand.u32 %s3550, 1
                %s3636 = smul.u32 %s3634, 2
                %s3637 = smul.u32 8, %s3636
                %s3638 = scalar_lea.vmem %s3545, %s3637 [#allocation4]
                %s3639 = smul.u32 8, %s3636
                %s3640 = scalar_lea.vmem %s3556, %s3639
                // While loop
                $region126: #{_lambda_.5} parent=117 // loop_pre_header
                  _
                $region127: #{_lambda_.5} parent=117 // loop_header
                  %s3642 = sphi 0, %s3644
                  %p3643 = scmp.ge.s32.totalorder %s3642, %s3635
                  %s3647 = sphi 0, %s3654
                  %s3648 = sphi %s3638, %s3657
                  %s3649 = sphi %s3640, %s3658
                $region128: #{_lambda_.5} parent=117 // loop_header_branch
                  %3646 = sbr.rel (%p3643) target = $region132
                $region129: #{_lambda_.5} parent=117 // loop_body
                  %v3650 = vld [vmem:[%s3648] sm:$0xff]
                  %3651 = vst [vmem:[%s3649] sm:$0xff] %v3650
                  %s3652 = sadd.s32 1, %s3647
                  %p3653 = scmp.ge.s32.totalorder %s3652, %s3635
                  %s3654 = scalar_select %p3653, 0, %s3652
                  %s3655 = smul.u32 %s3654, 8
                  %s3656 = smul.u32 %s3654, 8
                  %s3657 = scalar_lea.vmem %s3638, %s3655 [#allocation4]
                  %s3658 = scalar_lea.vmem %s3640, %s3656
                $region130: #{_lambda_.5} parent=117 // loop_footer
                  %s3644 = sadd.s32 %s3642, 1
                $region131: #{_lambda_.5} parent=117 // loop_footer_branch
                  %3641 = sbr.rel target = $region127
                $region132: #{_lambda_.5} parent=117 // loop_exit
                  _
              $region118: #{_lambda_.5} parent=95 // pred_fallthru
                _
              // Predicated region
              $region133: #{_lambda_.5} parent=95 // pred_check
                _
              $region134: #{_lambda_.5} parent=95 // pred_check_branch
                %3660 = sbr.rel target = $region136
              $region135: #{_lambda_.5} parent=95 // pred_region
                _
              $region136: #{_lambda_.5} parent=95 // pred_fallthru
                _
            $region96: #{_lambda_.5} parent=91 // pred_fallthru
              _
            // Predicated region
            $region97: #{_lambda_.5} parent=91 // pred_check
              _
            $region98: #{_lambda_.5} parent=91 // pred_check_branch
              %3563 = sbr.rel target = $region100
            $region99: #{_lambda_.5} parent=91 // pred_region
              %s3565 = sshrl.u32 %s3550, 1
              // While loop
              $region101: #{_lambda_.5} parent=99 // loop_pre_header
                _
              $region102: #{_lambda_.5} parent=99 // loop_header
                %s3567 = sphi 0, %s3569
                %p3568 = scmp.ge.s32.totalorder %s3567, %s3565
                %s3572 = sphi 0, %s3581
                %s3573 = sphi %s3545, %s3584
                %s3574 = sphi %s3556, %s3585
              $region103: #{_lambda_.5} parent=99 // loop_header_branch
                %3571 = sbr.rel (%p3568) target = $region107
              $region104: #{_lambda_.5} parent=99 // loop_body
                %v3575 = vld [vmem:[%s3573] sm:$0xff]
                %3576 = vst [vmem:[%s3574] sm:$0xff] %v3575
                %v3577 = vld [vmem:[%s3573 + $0x8] sm:$0xff]
                %3578 = vst [vmem:[%s3574 + $0x8] sm:$0xff] %v3577
                %s3579 = sadd.s32 1, %s3572
                %p3580 = scmp.ge.s32.totalorder %s3579, %s3565
                %s3581 = scalar_select %p3580, 0, %s3579
                %s3582 = smul.u32 %s3581, 16
                %s3583 = smul.u32 %s3581, 16
                %s3584 = scalar_lea.vmem %s3545, %s3582 [#allocation4]
                %s3585 = scalar_lea.vmem %s3556, %s3583
              $region105: #{_lambda_.5} parent=99 // loop_footer
                %s3569 = sadd.s32 %s3567, 1
              $region106: #{_lambda_.5} parent=99 // loop_footer_branch
                %3566 = sbr.rel target = $region102
              $region107: #{_lambda_.5} parent=99 // loop_exit
                _
              %s3586 = sshrl.u32 %s3550, 1
              %s3587 = sand.u32 %s3550, 1
              %s3588 = smul.u32 %s3586, 2
              %s3589 = smul.u32 8, %s3588
              %s3590 = scalar_lea.vmem %s3545, %s3589 [#allocation4]
              %s3591 = smul.u32 8, %s3588
              %s3592 = scalar_lea.vmem %s3556, %s3591
              // While loop
              $region108: #{_lambda_.5} parent=99 // loop_pre_header
                _
              $region109: #{_lambda_.5} parent=99 // loop_header
                %s3594 = sphi 0, %s3596
                %p3595 = scmp.ge.s32.totalorder %s3594, %s3587
                %s3599 = sphi 0, %s3606
                %s3600 = sphi %s3590, %s3609
                %s3601 = sphi %s3592, %s3610
              $region110: #{_lambda_.5} parent=99 // loop_header_branch
                %3598 = sbr.rel (%p3595) target = $region114
              $region111: #{_lambda_.5} parent=99 // loop_body
                %v3602 = vld [vmem:[%s3600] sm:$0xff]
                %3603 = vst [vmem:[%s3601] sm:$0xff] %v3602
                %s3604 = sadd.s32 1, %s3599
                %p3605 = scmp.ge.s32.totalorder %s3604, %s3587
                %s3606 = scalar_select %p3605, 0, %s3604
                %s3607 = smul.u32 %s3606, 8
                %s3608 = smul.u32 %s3606, 8
                %s3609 = scalar_lea.vmem %s3590, %s3607 [#allocation4]
                %s3610 = scalar_lea.vmem %s3592, %s3608
              $region112: #{_lambda_.5} parent=99 // loop_footer
                %s3596 = sadd.s32 %s3594, 1
              $region113: #{_lambda_.5} parent=99 // loop_footer_branch
                %3593 = sbr.rel target = $region109
              $region114: #{_lambda_.5} parent=99 // loop_exit
                _
            $region100: #{_lambda_.5} parent=91 // pred_fallthru
              _
          $region92: #{_lambda_.5} parent=87 // pred_fallthru
            _
          %3661 = vnop
        $region88: #{_lambda_.5} parent=79 // pred_fallthru
          _
      $region80: #{_lambda_.5} parent=5 // pred_fallthru
        _
      %p3662 = scmp.le.s32.totalorder 2, %s22
      // Predicated region
      $region137: #{_lambda_.5} parent=5 // pred_check
        %p3663 = pneg %p3662
      $region138: #{_lambda_.5} parent=5 // pred_check_branch
        %3665 = sbr.rel (%p3663) target = $region140
      $region139: #{_lambda_.5} parent=5 // pred_region
        %s3666 = ssub.s32 %s22, 2
        // Predicated region
        $region141: #{_lambda_.5} parent=139 // pred_check
          %p3667 = pneg %p394
        $region142: #{_lambda_.5} parent=139 // pred_check_branch
          %3669 = sbr.rel (%p3667) target = $region144
        $region143: #{_lambda_.5} parent=139 // pred_region
          %s3670 = sand.u32 %s379, 1
          %s3671 = sand.u32 %s379, 1
          %s3672 = smul.addr %s3671, 256
          %s3673 = scalar_lea.vmem [#allocation4], %s3672
        $region144: #{_lambda_.5} parent=139 // pred_fallthru
          _
      $region140: #{_lambda_.5} parent=5 // pred_fallthru
        _
    $region6: #{_lambda_.5} parent=1 // loop_footer
      %s26 = sadd.s32 1, %s22
    $region7: #{_lambda_.5} parent=1 // loop_footer_branch
      %21 = sbr.rel target = $region3
    $region8: #{_lambda_.5} parent=1 // loop_exit
      _
    %3674 = vsyncpa [#allocation3], 1
    %s3675 = scalar_lea.sflag [#allocation3], 1
    %3676 = vsyncpa %s3675, 1

// kernel: _lambda_.7
$region0: #{_lambda_.7}
  #allocation0 [shape = 'u32[]', space=smem, size = 0x4, offset = 0x4, fixed_abs, tag = 'smem constant byte address 0x4 - core index']
  #allocation1 [shape = 'u32[144,128]{1,0:T(1,128)}', space=vmem, size = 0x12000, scoped, tag = 'internal scratch']
  %s0 = inlined_call_operand.vmem [shape: f32[2,14,32], index: 0, kind: input, shape index: {}]
  %s1 = inlined_call_operand.vmem [shape: f32[2,14,32], index: 1, kind: input, shape index: {}]
  %s2 = inlined_call_operand.vmem [shape: f32[1,32], index: 2, kind: input, shape index: {}]
  %s3 = inlined_call_operand.vmem [shape: f32[1,32], index: 3, kind: input, shape index: {}]
  %s4 = inlined_call_operand.vmem [shape: f32[32,128], index: 4, kind: input, shape index: {}]
  %s5 = inlined_call_operand.vmem [shape: f32[1,128], index: 5, kind: input, shape index: {}]
  %s6 = inlined_call_operand.vmem [shape: f32[128,32], index: 6, kind: input, shape index: {}]
  %s7 = inlined_call_operand.vmem [shape: f32[1,32], index: 7, kind: input, shape index: {}]
  %s8 = inlined_call_operand.vmem [shape: f32[1,32], index: 8, kind: input, shape index: {}]
  %s9 = inlined_call_operand.vmem [shape: f32[1,32], index: 9, kind: input, shape index: {}]
  %s10 = inlined_call_operand.vmem [shape: f32[32,32], index: 10, kind: input, shape index: {}]
  %s11 = inlined_call_operand.vmem [shape: f32[1,32], index: 11, kind: input, shape index: {}]
  %s12 = inlined_call_operand.vmem [shape: f32[32,32], index: 12, kind: input, shape index: {}]
  %s13 = inlined_call_operand.vmem [shape: f32[1,32], index: 13, kind: input, shape index: {}]
  %s14 = inlined_call_operand.vmem [shape: f32[6], index: 14, kind: input, shape index: {}]
  %s15 = inlined_call_operand.vmem [shape: f32[2,14,32], index: 15, kind: output, shape index: {}]
  %s16 = sld [smem:[#allocation0]]
  $region145: #{_lambda_.7} parent=0
    _
  %s18 = ssub.s32 1, %s16
  %s19 = scalar_select 0, %s18, %s16
  $region1: #{_lambda_.7} parent=0
    #allocation2 [shape = 'u8[512]{0}', space=smem, size = 0x200, scoped, tag = 'input window, operand 14, single buffered']
    #allocation3 [shape = 's32[2]{0}', space=sflag, size = 0x8, scoped, tag = 'scoped memory for _lambda_.7']
    #allocation4 [shape = 'u8[262144]{0}', space=vmem, size = 0x40000, scoped, tag = 'output window, operand 0']
    %20 = vsyncpa [#allocation3], 0
    loop: start=0, step=1, limit=4
    $region2: #{_lambda_.7} parent=1 // loop_pre_header
      _
    $region3: #{_lambda_.7} parent=1 // loop_header
      %s22 = sphi 0, %s26
      %p23 = scmp.ge.s32.totalorder %s22, 4
      %s29 = sphi 0, %s41
      %s30 = sphi 0, %s37
      %s31 = sphi 0, %s29
      %s32 = sphi 0, %s30
      %s33 = sphi 0, %s31
      %s34 = sphi 0, %s32
      %s46 = sphi 0, %s48
      %s49 = sphi 0, %s46
      %s50 = sphi 0, %s49
      %s66 = sphi 0, %s50
      %s74 = sphi 0, %s76
      %s77 = sphi 0, %s74
      %s78 = sphi 0, %s77
      %s94 = sphi 0, %s78
      %s98 = sphi 0, %s98
      %s100 = sphi 0, %s98
      %s101 = sphi 0, %s100
      %s115 = sphi 0, %s101
      %s119 = sphi 0, %s119
      %s121 = sphi 0, %s119
      %s122 = sphi 0, %s121
      %s136 = sphi 0, %s122
      %s140 = sphi 0, %s140
      %s142 = sphi 0, %s140
      %s143 = sphi 0, %s142
      %s157 = sphi 0, %s143
      %s161 = sphi 0, %s161
      %s163 = sphi 0, %s161
      %s164 = sphi 0, %s163
      %s178 = sphi 0, %s164
      %s182 = sphi 0, %s182
      %s184 = sphi 0, %s182
      %s185 = sphi 0, %s184
      %s199 = sphi 0, %s185
      %s203 = sphi 0, %s203
      %s205 = sphi 0, %s203
      %s206 = sphi 0, %s205
      %s220 = sphi 0, %s206
      %s224 = sphi 0, %s224
      %s226 = sphi 0, %s224
      %s227 = sphi 0, %s226
      %s241 = sphi 0, %s227
      %s245 = sphi 0, %s245
      %s247 = sphi 0, %s245
      %s248 = sphi 0, %s247
      %s262 = sphi 0, %s248
      %s266 = sphi 0, %s266
      %s268 = sphi 0, %s266
      %s269 = sphi 0, %s268
      %s283 = sphi 0, %s269
      %s287 = sphi 0, %s287
      %s289 = sphi 0, %s287
      %s290 = sphi 0, %s289
      %s304 = sphi 0, %s290
      %s308 = sphi 0, %s308
      %s310 = sphi 0, %s308
      %s311 = sphi 0, %s310
      %s325 = sphi 0, %s311
      %s329 = sphi 0, %s329
      %s331 = sphi 0, %s329
      %s332 = sphi 0, %s331
      %s346 = sphi 0, %s332
      %s350 = sphi 0, %s350
      %s352 = sphi 0, %s350
      %s353 = sphi 0, %s352
      %s367 = sphi 0, %s353
      %s375 = sphi 0, %s377
      %s378 = sphi 0, %s375
      %s379 = sphi 0, %s378
      %s395 = sphi 0, %s379
    $region4: #{_lambda_.7} parent=1 // loop_header_branch
      %25 = sbr.rel (%p23) target = $region8
    $region5: #{_lambda_.7} parent=1 // loop_body
      %s27 = ssub.s32 %s22, 1
      %s28 = ssub.s32 %s22, 2
      %s35 = sadd.s32 1, %s30
      %p36 = scmp.ge.s32.totalorder %s35, 1
      %s37 = scalar_select %p36, 0, %s35
      %s38 = sadd.s32 1, %s29
      %s39 = scalar_select %p36, %s38, %s29
      %p40 = scmp.ge.s32.totalorder %s39, 2
      %s41 = scalar_select %p40, 0, %s39
      %s42 = ssub.s32 %s29, %s41
      %s43 = ssub.s32 %s30, %s37
      %s44 = sor.u32 %s42, %s43
      %p45 = scmp.eq.s32.totalorder %s44, 0
      %s47 = sadd.s32 %s46, 1
      %s48 = scalar_select %p45, %s46, %s47
      %p51 = pneg %p45
      %p52 = scmp.eq.s32.totalorder %s22, 1
      %p53 = por %p51, %p52
      %p54 = scmp.ne.s32.totalorder %s46, %s49
      %p55 = scmp.eq.s32.totalorder %s22, 0
      %p56 = por %p54, %p55
      %p57 = scmp.ne.s32.totalorder %s46, %s49
      %p58 = scmp.eq.s32.totalorder %s27, 1
      %p59 = por %p57, %p58
      %p60 = scmp.ne.s32.totalorder %s49, %s50
      %p61 = scmp.eq.s32.totalorder %s27, 0
      %p62 = por %p60, %p61
      %p63 = scmp.ne.s32.totalorder %s49, %s50
      %p64 = scmp.eq.s32.totalorder %s28, 1
      %p65 = por %p63, %p64
      %p67 = scmp.ne.s32.totalorder %s50, %s66
      %p68 = scmp.eq.s32.totalorder %s28, 0
      %p69 = por %p67, %p68
      %s70 = ssub.s32 %s29, %s41
      %s71 = ssub.s32 %s30, %s37
      %s72 = sor.u32 %s70, %s71
      %p73 = scmp.eq.s32.totalorder %s72, 0
      %s75 = sadd.s32 %s74, 1
      %s76 = scalar_select %p73, %s74, %s75
      %p79 = pneg %p73
      %p80 = scmp.eq.s32.totalorder %s22, 1
      %p81 = por %p79, %p80
      %p82 = scmp.ne.s32.totalorder %s74, %s77
      %p83 = scmp.eq.s32.totalorder %s22, 0
      %p84 = por %p82, %p83
      %p85 = scmp.ne.s32.totalorder %s74, %s77
      %p86 = scmp.eq.s32.totalorder %s27, 1
      %p87 = por %p85, %p86
      %p88 = scmp.ne.s32.totalorder %s77, %s78
      %p89 = scmp.eq.s32.totalorder %s27, 0
      %p90 = por %p88, %p89
      %p91 = scmp.ne.s32.totalorder %s77, %s78
      %p92 = scmp.eq.s32.totalorder %s28, 1
      %p93 = por %p91, %p92
      %p95 = scmp.ne.s32.totalorder %s78, %s94
      %p96 = scmp.eq.s32.totalorder %s28, 0
      %p97 = por %p95, %p96
      %s99 = sadd.s32 %s98, 1
      %p102 = scmp.eq.s32.totalorder %s22, 1
      %p103 = scmp.ne.s32.totalorder %s98, %s100
      %p104 = scmp.eq.s32.totalorder %s22, 0
      %p105 = por %p103, %p104
      %p106 = scmp.ne.s32.totalorder %s98, %s100
      %p107 = scmp.eq.s32.totalorder %s27, 1
      %p108 = por %p106, %p107
      %p109 = scmp.ne.s32.totalorder %s100, %s101
      %p110 = scmp.eq.s32.totalorder %s27, 0
      %p111 = por %p109, %p110
      %p112 = scmp.ne.s32.totalorder %s100, %s101
      %p113 = scmp.eq.s32.totalorder %s28, 1
      %p114 = por %p112, %p113
      %p116 = scmp.ne.s32.totalorder %s101, %s115
      %p117 = scmp.eq.s32.totalorder %s28, 0
      %p118 = por %p116, %p117
      %s120 = sadd.s32 %s119, 1
      %p123 = scmp.eq.s32.totalorder %s22, 1
      %p124 = scmp.ne.s32.totalorder %s119, %s121
      %p125 = scmp.eq.s32.totalorder %s22, 0
      %p126 = por %p124, %p125
      %p127 = scmp.ne.s32.totalorder %s119, %s121
      %p128 = scmp.eq.s32.totalorder %s27, 1
      %p129 = por %p127, %p128
      %p130 = scmp.ne.s32.totalorder %s121, %s122
      %p131 = scmp.eq.s32.totalorder %s27, 0
      %p132 = por %p130, %p131
      %p133 = scmp.ne.s32.totalorder %s121, %s122
      %p134 = scmp.eq.s32.totalorder %s28, 1
      %p135 = por %p133, %p134
      %p137 = scmp.ne.s32.totalorder %s122, %s136
      %p138 = scmp.eq.s32.totalorder %s28, 0
      %p139 = por %p137, %p138
      %s141 = sadd.s32 %s140, 1
      %p144 = scmp.eq.s32.totalorder %s22, 1
      %p145 = scmp.ne.s32.totalorder %s140, %s142
      %p146 = scmp.eq.s32.totalorder %s22, 0
      %p147 = por %p145, %p146
      %p148 = scmp.ne.s32.totalorder %s140, %s142
      %p149 = scmp.eq.s32.totalorder %s27, 1
      %p150 = por %p148, %p149
      %p151 = scmp.ne.s32.totalorder %s142, %s143
      %p152 = scmp.eq.s32.totalorder %s27, 0
      %p153 = por %p151, %p152
      %p154 = scmp.ne.s32.totalorder %s142, %s143
      %p155 = scmp.eq.s32.totalorder %s28, 1
      %p156 = por %p154, %p155
      %p158 = scmp.ne.s32.totalorder %s143, %s157
      %p159 = scmp.eq.s32.totalorder %s28, 0
      %p160 = por %p158, %p159
      %s162 = sadd.s32 %s161, 1
      %p165 = scmp.eq.s32.totalorder %s22, 1
      %p166 = scmp.ne.s32.totalorder %s161, %s163
      %p167 = scmp.eq.s32.totalorder %s22, 0
      %p168 = por %p166, %p167
      %p169 = scmp.ne.s32.totalorder %s161, %s163
      %p170 = scmp.eq.s32.totalorder %s27, 1
      %p171 = por %p169, %p170
      %p172 = scmp.ne.s32.totalorder %s163, %s164
      %p173 = scmp.eq.s32.totalorder %s27, 0
      %p174 = por %p172, %p173
      %p175 = scmp.ne.s32.totalorder %s163, %s164
      %p176 = scmp.eq.s32.totalorder %s28, 1
      %p177 = por %p175, %p176
      %p179 = scmp.ne.s32.totalorder %s164, %s178
      %p180 = scmp.eq.s32.totalorder %s28, 0
      %p181 = por %p179, %p180
      %s183 = sadd.s32 %s182, 1
      %p186 = scmp.eq.s32.totalorder %s22, 1
      %p187 = scmp.ne.s32.totalorder %s182, %s184
      %p188 = scmp.eq.s32.totalorder %s22, 0
      %p189 = por %p187, %p188
      %p190 = scmp.ne.s32.totalorder %s182, %s184
      %p191 = scmp.eq.s32.totalorder %s27, 1
      %p192 = por %p190, %p191
      %p193 = scmp.ne.s32.totalorder %s184, %s185
      %p194 = scmp.eq.s32.totalorder %s27, 0
      %p195 = por %p193, %p194
      %p196 = scmp.ne.s32.totalorder %s184, %s185
      %p197 = scmp.eq.s32.totalorder %s28, 1
      %p198 = por %p196, %p197
      %p200 = scmp.ne.s32.totalorder %s185, %s199
      %p201 = scmp.eq.s32.totalorder %s28, 0
      %p202 = por %p200, %p201
      %s204 = sadd.s32 %s203, 1
      %p207 = scmp.eq.s32.totalorder %s22, 1
      %p208 = scmp.ne.s32.totalorder %s203, %s205
      %p209 = scmp.eq.s32.totalorder %s22, 0
      %p210 = por %p208, %p209
      %p211 = scmp.ne.s32.totalorder %s203, %s205
      %p212 = scmp.eq.s32.totalorder %s27, 1
      %p213 = por %p211, %p212
      %p214 = scmp.ne.s32.totalorder %s205, %s206
      %p215 = scmp.eq.s32.totalorder %s27, 0
      %p216 = por %p214, %p215
      %p217 = scmp.ne.s32.totalorder %s205, %s206
      %p218 = scmp.eq.s32.totalorder %s28, 1
      %p219 = por %p217, %p218
      %p221 = scmp.ne.s32.totalorder %s206, %s220
      %p222 = scmp.eq.s32.totalorder %s28, 0
      %p223 = por %p221, %p222
      %s225 = sadd.s32 %s224, 1
      %p228 = scmp.eq.s32.totalorder %s22, 1
      %p229 = scmp.ne.s32.totalorder %s224, %s226
      %p230 = scmp.eq.s32.totalorder %s22, 0
      %p231 = por %p229, %p230
      %p232 = scmp.ne.s32.totalorder %s224, %s226
      %p233 = scmp.eq.s32.totalorder %s27, 1
      %p234 = por %p232, %p233
      %p235 = scmp.ne.s32.totalorder %s226, %s227
      %p236 = scmp.eq.s32.totalorder %s27, 0
      %p237 = por %p235, %p236
      %p238 = scmp.ne.s32.totalorder %s226, %s227
      %p239 = scmp.eq.s32.totalorder %s28, 1
      %p240 = por %p238, %p239
      %p242 = scmp.ne.s32.totalorder %s227, %s241
      %p243 = scmp.eq.s32.totalorder %s28, 0
      %p244 = por %p242, %p243
      %s246 = sadd.s32 %s245, 1
      %p249 = scmp.eq.s32.totalorder %s22, 1
      %p250 = scmp.ne.s32.totalorder %s245, %s247
      %p251 = scmp.eq.s32.totalorder %s22, 0
      %p252 = por %p250, %p251
      %p253 = scmp.ne.s32.totalorder %s245, %s247
      %p254 = scmp.eq.s32.totalorder %s27, 1
      %p255 = por %p253, %p254
      %p256 = scmp.ne.s32.totalorder %s247, %s248
      %p257 = scmp.eq.s32.totalorder %s27, 0
      %p258 = por %p256, %p257
      %p259 = scmp.ne.s32.totalorder %s247, %s248
      %p260 = scmp.eq.s32.totalorder %s28, 1
      %p261 = por %p259, %p260
      %p263 = scmp.ne.s32.totalorder %s248, %s262
      %p264 = scmp.eq.s32.totalorder %s28, 0
      %p265 = por %p263, %p264
      %s267 = sadd.s32 %s266, 1
      %p270 = scmp.eq.s32.totalorder %s22, 1
      %p271 = scmp.ne.s32.totalorder %s266, %s268
      %p272 = scmp.eq.s32.totalorder %s22, 0
      %p273 = por %p271, %p272
      %p274 = scmp.ne.s32.totalorder %s266, %s268
      %p275 = scmp.eq.s32.totalorder %s27, 1
      %p276 = por %p274, %p275
      %p277 = scmp.ne.s32.totalorder %s268, %s269
      %p278 = scmp.eq.s32.totalorder %s27, 0
      %p279 = por %p277, %p278
      %p280 = scmp.ne.s32.totalorder %s268, %s269
      %p281 = scmp.eq.s32.totalorder %s28, 1
      %p282 = por %p280, %p281
      %p284 = scmp.ne.s32.totalorder %s269, %s283
      %p285 = scmp.eq.s32.totalorder %s28, 0
      %p286 = por %p284, %p285
      %s288 = sadd.s32 %s287, 1
      %p291 = scmp.eq.s32.totalorder %s22, 1
      %p292 = scmp.ne.s32.totalorder %s287, %s289
      %p293 = scmp.eq.s32.totalorder %s22, 0
      %p294 = por %p292, %p293
      %p295 = scmp.ne.s32.totalorder %s287, %s289
      %p296 = scmp.eq.s32.totalorder %s27, 1
      %p297 = por %p295, %p296
      %p298 = scmp.ne.s32.totalorder %s289, %s290
      %p299 = scmp.eq.s32.totalorder %s27, 0
      %p300 = por %p298, %p299
      %p301 = scmp.ne.s32.totalorder %s289, %s290
      %p302 = scmp.eq.s32.totalorder %s28, 1
      %p303 = por %p301, %p302
      %p305 = scmp.ne.s32.totalorder %s290, %s304
      %p306 = scmp.eq.s32.totalorder %s28, 0
      %p307 = por %p305, %p306
      %s309 = sadd.s32 %s308, 1
      %p312 = scmp.eq.s32.totalorder %s22, 1
      %p313 = scmp.ne.s32.totalorder %s308, %s310
      %p314 = scmp.eq.s32.totalorder %s22, 0
      %p315 = por %p313, %p314
      %p316 = scmp.ne.s32.totalorder %s308, %s310
      %p317 = scmp.eq.s32.totalorder %s27, 1
      %p318 = por %p316, %p317
      %p319 = scmp.ne.s32.totalorder %s310, %s311
      %p320 = scmp.eq.s32.totalorder %s27, 0
      %p321 = por %p319, %p320
      %p322 = scmp.ne.s32.totalorder %s310, %s311
      %p323 = scmp.eq.s32.totalorder %s28, 1
      %p324 = por %p322, %p323
      %p326 = scmp.ne.s32.totalorder %s311, %s325
      %p327 = scmp.eq.s32.totalorder %s28, 0
      %p328 = por %p326, %p327
      %s330 = sadd.s32 %s329, 1
      %p333 = scmp.eq.s32.totalorder %s22, 1
      %p334 = scmp.ne.s32.totalorder %s329, %s331
      %p335 = scmp.eq.s32.totalorder %s22, 0
      %p336 = por %p334, %p335
      %p337 = scmp.ne.s32.totalorder %s329, %s331
      %p338 = scmp.eq.s32.totalorder %s27, 1
      %p339 = por %p337, %p338
      %p340 = scmp.ne.s32.totalorder %s331, %s332
      %p341 = scmp.eq.s32.totalorder %s27, 0
      %p342 = por %p340, %p341
      %p343 = scmp.ne.s32.totalorder %s331, %s332
      %p344 = scmp.eq.s32.totalorder %s28, 1
      %p345 = por %p343, %p344
      %p347 = scmp.ne.s32.totalorder %s332, %s346
      %p348 = scmp.eq.s32.totalorder %s28, 0
      %p349 = por %p347, %p348
      %s351 = sadd.s32 %s350, 1
      %p354 = scmp.eq.s32.totalorder %s22, 1
      %p355 = scmp.ne.s32.totalorder %s350, %s352
      %p356 = scmp.eq.s32.totalorder %s22, 0
      %p357 = por %p355, %p356
      %p358 = scmp.ne.s32.totalorder %s350, %s352
      %p359 = scmp.eq.s32.totalorder %s27, 1
      %p360 = por %p358, %p359
      %p361 = scmp.ne.s32.totalorder %s352, %s353
      %p362 = scmp.eq.s32.totalorder %s27, 0
      %p363 = por %p361, %p362
      %p364 = scmp.ne.s32.totalorder %s352, %s353
      %p365 = scmp.eq.s32.totalorder %s28, 1
      %p366 = por %p364, %p365
      %p368 = scmp.ne.s32.totalorder %s353, %s367
      %p369 = scmp.eq.s32.totalorder %s28, 0
      %p370 = por %p368, %p369
      %s371 = ssub.s32 %s29, %s41
      %s372 = ssub.s32 %s30, %s37
      %s373 = sor.u32 %s371, %s372
      %p374 = scmp.eq.s32.totalorder %s373, 0
      %s376 = sadd.s32 %s375, 1
      %s377 = scalar_select %p374, %s375, %s376
      %p380 = pneg %p374
      %p381 = scmp.eq.s32.totalorder %s22, 1
      %p382 = por %p380, %p381
      %p383 = scmp.ne.s32.totalorder %s375, %s378
      %p384 = scmp.eq.s32.totalorder %s22, 0
      %p385 = por %p383, %p384
      %p386 = scmp.ne.s32.totalorder %s375, %s378
      %p387 = scmp.eq.s32.totalorder %s27, 1
      %p388 = por %p386, %p387
      %p389 = scmp.ne.s32.totalorder %s378, %s379
      %p390 = scmp.eq.s32.totalorder %s27, 0
      %p391 = por %p389, %p390
      %p392 = scmp.ne.s32.totalorder %s378, %s379
      %p393 = scmp.eq.s32.totalorder %s28, 1
      %p394 = por %p392, %p393
      %p396 = scmp.ne.s32.totalorder %s379, %s395
      %p397 = scmp.eq.s32.totalorder %s28, 0
      %p398 = por %p396, %p397
      %p399 = scmp.le.s32.totalorder 1, %s22
      %p400 = scmp.lt.s32.totalorder %s22, 3
      %p401 = pnand %p399, %p400
      %p402 = pneg %p401
      // Predicated region
      $region9: #{_lambda_.7} parent=5 // pred_check
        _
      $region10: #{_lambda_.7} parent=5 // pred_check_branch
        %404 = sbr.rel (%p401) target = $region12
      $region11: #{_lambda_.7} parent=5 // pred_region
        %s405 = ssub.s32 %s22, 1
        // Predicated region
        $region13: #{_lambda_.7} parent=11 // pred_check
          %p406 = pneg %p111
        $region14: #{_lambda_.7} parent=11 // pred_check_branch
          %408 = sbr.rel (%p406) target = $region16
        $region15: #{_lambda_.7} parent=11 // pred_region
          _
        $region16: #{_lambda_.7} parent=11 // pred_fallthru
          _
        // Predicated region
        $region17: #{_lambda_.7} parent=11 // pred_check
          %p409 = pneg %p132
        $region18: #{_lambda_.7} parent=11 // pred_check_branch
          %411 = sbr.rel (%p409) target = $region20
        $region19: #{_lambda_.7} parent=11 // pred_region
          _
        $region20: #{_lambda_.7} parent=11 // pred_fallthru
          _
        // Predicated region
        $region21: #{_lambda_.7} parent=11 // pred_check
          %p412 = pneg %p153
        $region22: #{_lambda_.7} parent=11 // pred_check_branch
          %414 = sbr.rel (%p412) target = $region24
        $region23: #{_lambda_.7} parent=11 // pred_region
          _
        $region24: #{_lambda_.7} parent=11 // pred_fallthru
          _
        // Predicated region
        $region25: #{_lambda_.7} parent=11 // pred_check
          %p415 = pneg %p174
        $region26: #{_lambda_.7} parent=11 // pred_check_branch
          %417 = sbr.rel (%p415) target = $region28
        $region27: #{_lambda_.7} parent=11 // pred_region
          _
        $region28: #{_lambda_.7} parent=11 // pred_fallthru
          _
        // Predicated region
        $region29: #{_lambda_.7} parent=11 // pred_check
          %p418 = pneg %p195
        $region30: #{_lambda_.7} parent=11 // pred_check_branch
          %420 = sbr.rel (%p418) target = $region32
        $region31: #{_lambda_.7} parent=11 // pred_region
          _
        $region32: #{_lambda_.7} parent=11 // pred_fallthru
          _
        // Predicated region
        $region33: #{_lambda_.7} parent=11 // pred_check
          %p421 = pneg %p216
        $region34: #{_lambda_.7} parent=11 // pred_check_branch
          %423 = sbr.rel (%p421) target = $region36
        $region35: #{_lambda_.7} parent=11 // pred_region
          _
        $region36: #{_lambda_.7} parent=11 // pred_fallthru
          _
        // Predicated region
        $region37: #{_lambda_.7} parent=11 // pred_check
          %p424 = pneg %p237
        $region38: #{_lambda_.7} parent=11 // pred_check_branch
          %426 = sbr.rel (%p424) target = $region40
        $region39: #{_lambda_.7} parent=11 // pred_region
          _
        $region40: #{_lambda_.7} parent=11 // pred_fallthru
          _
        // Predicated region
        $region41: #{_lambda_.7} parent=11 // pred_check
          %p427 = pneg %p258
        $region42: #{_lambda_.7} parent=11 // pred_check_branch
          %429 = sbr.rel (%p427) target = $region44
        $region43: #{_lambda_.7} parent=11 // pred_region
          _
        $region44: #{_lambda_.7} parent=11 // pred_fallthru
          _
        // Predicated region
        $region45: #{_lambda_.7} parent=11 // pred_check
          %p430 = pneg %p279
        $region46: #{_lambda_.7} parent=11 // pred_check_branch
          %432 = sbr.rel (%p430) target = $region48
        $region47: #{_lambda_.7} parent=11 // pred_region
          _
        $region48: #{_lambda_.7} parent=11 // pred_fallthru
          _
        // Predicated region
        $region49: #{_lambda_.7} parent=11 // pred_check
          %p433 = pneg %p300
        $region50: #{_lambda_.7} parent=11 // pred_check_branch
          %435 = sbr.rel (%p433) target = $region52
        $region51: #{_lambda_.7} parent=11 // pred_region
          _
        $region52: #{_lambda_.7} parent=11 // pred_fallthru
          _
        // Predicated region
        $region53: #{_lambda_.7} parent=11 // pred_check
          %p436 = pneg %p321
        $region54: #{_lambda_.7} parent=11 // pred_check_branch
          %438 = sbr.rel (%p436) target = $region56
        $region55: #{_lambda_.7} parent=11 // pred_region
          _
        $region56: #{_lambda_.7} parent=11 // pred_fallthru
          _
        // Predicated region
        $region57: #{_lambda_.7} parent=11 // pred_check
          %p439 = pneg %p342
        $region58: #{_lambda_.7} parent=11 // pred_check_branch
          %441 = sbr.rel (%p439) target = $region60
        $region59: #{_lambda_.7} parent=11 // pred_region
          _
        $region60: #{_lambda_.7} parent=11 // pred_fallthru
          _
        // Predicated region
        $region61: #{_lambda_.7} parent=11 // pred_check
          %p442 = pneg %p363
        $region62: #{_lambda_.7} parent=11 // pred_check_branch
          %444 = sbr.rel (%p442) target = $region64
        $region63: #{_lambda_.7} parent=11 // pred_region
          %s446 = ssub.s32 16, 16
          %447 = vsyncadd [#allocation3], %s446
          %s449 = sshll.u32 %s14, 4
          %s450 = int_to_ptr.vmem [resolvable:$true] %s449
          %452 = dma.vmem_to_smem %s450, 16, [#allocation2], [#allocation3]
        $region64: #{_lambda_.7} parent=11 // pred_fallthru
          _
      $region12: #{_lambda_.7} parent=5 // pred_fallthru
        _
      %p453 = scmp.lt.s32.totalorder %s22, 2
      // Predicated region
      $region65: #{_lambda_.7} parent=5 // pred_check
        %p454 = pneg %p453
      $region66: #{_lambda_.7} parent=5 // pred_check_branch
        %456 = sbr.rel (%p454) target = $region68
      $region67: #{_lambda_.7} parent=5 // pred_region
        // Predicated region
        $region69: #{_lambda_.7} parent=67 // pred_check
          %p457 = pneg %p56
        $region70: #{_lambda_.7} parent=67 // pred_check_branch
          %459 = sbr.rel (%p457) target = $region72
        $region71: #{_lambda_.7} parent=67 // pred_region
          %s460 = smul.u32 32, %s30
          %s461 = ssub.s32 2, %s460
          %s462 = smul.u32 128, %s461
          %p463 = scmp.lt.s32.totalorder %s29, 1
          %s464 = scalar_select %p463, %s29, 1
          %p465 = scmp.lt.s32.totalorder %s460, 1
          %s466 = scalar_select %p465, %s460, 1
          %s467 = smul.addr %s464, 2
          %s468 = sadd.s32 %s466, %s467
          %s469 = smul.addr %s468, 8
          %s470 = scalar_lea.vmem %s0, %s469
          %s471 = smul.u32 32, %s30
          %s472 = ssub.s32 2, %s471
          %s473 = smul.u32 128, %s472
        $region72: #{_lambda_.7} parent=67 // pred_fallthru
          _
        // Predicated region
        $region73: #{_lambda_.7} parent=67 // pred_check
          %p474 = pneg %p84
        $region74: #{_lambda_.7} parent=67 // pred_check_branch
          %476 = sbr.rel (%p474) target = $region76
        $region75: #{_lambda_.7} parent=67 // pred_region
          %s477 = smul.u32 32, %s30
          %s478 = ssub.s32 2, %s477
          %s479 = smul.u32 128, %s478
          %p480 = scmp.lt.s32.totalorder %s29, 1
          %s481 = scalar_select %p480, %s29, 1
          %p482 = scmp.lt.s32.totalorder %s477, 1
          %s483 = scalar_select %p482, %s477, 1
          %s484 = smul.addr %s481, 2
          %s485 = sadd.s32 %s483, %s484
          %s486 = smul.addr %s485, 8
          %s487 = scalar_lea.vmem %s1, %s486
          %s488 = smul.u32 32, %s30
          %s489 = ssub.s32 2, %s488
          %s490 = smul.u32 128, %s489
        $region76: #{_lambda_.7} parent=67 // pred_fallthru
          _
      $region68: #{_lambda_.7} parent=5 // pred_fallthru
        _
      %p491 = scmp.le.s32.totalorder 1, %s22
      %p492 = scmp.lt.s32.totalorder %s22, 3
      %p493 = pnand %p491, %p492
      %p494 = pneg %p493
      // Predicated region
      $region77: #{_lambda_.7} parent=5 // pred_check
        _
      $region78: #{_lambda_.7} parent=5 // pred_check_branch
        %496 = sbr.rel (%p493) target = $region80
      $region79: #{_lambda_.7} parent=5 // pred_region
        %s497 = ssub.s32 %s22, 1
        // Predicated region
        $region81: #{_lambda_.7} parent=79 // pred_check
          %p498 = pneg %p363
        $region82: #{_lambda_.7} parent=79 // pred_check_branch
          %500 = sbr.rel (%p498) target = $region84
        $region83: #{_lambda_.7} parent=79 // pred_region
          %501 = dma.done [#allocation3], 16
        $region84: #{_lambda_.7} parent=79 // pred_fallthru
          _
        %502 = sfence
        %s503 = smul.u32 32, %s32
        %s504 = ssub.s32 2, %s503
        %s505 = smul.u32 128, %s504
        %p506 = scmp.lt.s32.totalorder %s31, 1
        %s507 = scalar_select %p506, %s31, 1
        %p508 = scmp.lt.s32.totalorder %s503, 1
        %s509 = scalar_select %p508, %s503, 1
        %s510 = smul.addr %s507, 2
        %s511 = sadd.s32 %s509, %s510
        %s512 = smul.addr %s511, 8
        %s513 = scalar_lea.vmem %s0, %s512
        %p514 = pneg %p62
        %p515 = pneg %p59
        %s516 = smul.u32 32, %s32
        %s517 = ssub.s32 2, %s516
        %s518 = smul.u32 128, %s517
        %p519 = scmp.lt.s32.totalorder %s31, 1
        %s520 = scalar_select %p519, %s31, 1
        %p521 = scmp.lt.s32.totalorder %s516, 1
        %s522 = scalar_select %p521, %s516, 1
        %s523 = smul.addr %s520, 2
        %s524 = sadd.s32 %s522, %s523
        %s525 = smul.addr %s524, 8
        %s526 = scalar_lea.vmem %s1, %s525
        %p527 = pneg %p90
        %p528 = pneg %p87
        %p529 = pneg %p111
        %p530 = pneg %p108
        %p531 = pneg %p132
        %p532 = pneg %p129
        %p533 = pneg %p153
        %p534 = pneg %p150
        %p535 = pneg %p174
        %p536 = pneg %p171
        %p537 = pneg %p195
        %p538 = pneg %p192
        %p539 = pneg %p216
        %p540 = pneg %p213
        %p541 = pneg %p237
        %p542 = pneg %p234
        %p543 = pneg %p258
        %p544 = pneg %p255
        %p545 = pneg %p279
        %p546 = pneg %p276
        %p547 = pneg %p300
        %p548 = pneg %p297
        %p549 = pneg %p321
        %p550 = pneg %p318
        %p551 = pneg %p342
        %p552 = pneg %p339
        %p553 = pneg %p363
        %p554 = pneg %p360
        %p555 = pneg %p391
        %p556 = pneg %p388
        %s557 = sand.u32 %s378, 1
        %s558 = sand.u32 %s378, 1
        %s559 = smul.addr %s558, 256
        %s560 = scalar_lea.vmem [#allocation4], %s559
        %s561 = smul.u32 32, %s32
        %s562 = ssub.s32 2, %s561
        %s563 = smul.u32 128, %s562
        %p564 = scmp.lt.s32.totalorder %s31, 1
        %s565 = scalar_select %p564, %s31, 1
        %p566 = scmp.lt.s32.totalorder %s561, 1
        %s567 = scalar_select %p566, %s561, 1
        %s568 = smul.addr %s565, 2
        %s569 = sadd.s32 %s567, %s568
        %s570 = smul.addr %s569, 8
        %s571 = scalar_lea.vmem %s0, %s570
        %s572 = smul.u32 32, %s32
        %s573 = ssub.s32 2, %s572
        %s574 = smul.u32 128, %s573
        %s575 = smul.u32 32, %s32
        %s576 = ssub.s32 2, %s575
        %s577 = smul.u32 128, %s576
        %p578 = scmp.lt.s32.totalorder %s31, 1
        %s579 = scalar_select %p578, %s31, 1
        %p580 = scmp.lt.s32.totalorder %s575, 1
        %s581 = scalar_select %p580, %s575, 1
        %s582 = smul.addr %s579, 2
        %s583 = sadd.s32 %s581, %s582
        %s584 = smul.addr %s583, 8
        %s585 = scalar_lea.vmem %s1, %s584
        %s586 = smul.u32 32, %s32
        %s587 = ssub.s32 2, %s586
        %s588 = smul.u32 128, %s587
        %s589 = smul.u32 32, %s32
        %s590 = ssub.s32 2, %s589
        %s591 = smul.u32 128, %s590
        %v592 = vld [vmem:[%s571] sm:$0xff]
        %v593 = vld [vmem:[%s571 + $0x8] sm:$0xff]
        %v594 = vld [vmem:[%s571 + $0x10] sm:$0xff]
        %v595 = vld [vmem:[%s571 + $0x18] sm:$0xff]
        %v596 = vld [vmem:[%s571 + $0x20] sm:$0xff]
        %v597 = vld [vmem:[%s571 + $0x28] sm:$0xff]
        %v598 = vld [vmem:[%s571 + $0x30] sm:$0xff]
        %v599 = vld [vmem:[%s571 + $0x38] sm:$0xff]
        %v600 = vld [vmem:[%s571 + $0x40] sm:$0xff]
        %v601 = vld [vmem:[%s571 + $0x48] sm:$0xff]
        %v602 = vld [vmem:[%s571 + $0x50] sm:$0xff]
        %v603 = vld [vmem:[%s571 + $0x58] sm:$0xff]
        %v604 = vld [vmem:[%s571 + $0x60] sm:$0xff]
        %v605 = vld [vmem:[%s571 + $0x68] sm:$0xff]
        %v606 = vld [vmem:[%s571 + $0x70] sm:$0xff]
        %v607 = vld [vmem:[%s571 + $0x78] sm:$0xff]
        %v608 = vld [vmem:[%s571 + $0x80] sm:$0xff]
        %v609 = vld [vmem:[%s571 + $0x88] sm:$0xff]
        %v610 = vld [vmem:[%s571 + $0x90] sm:$0xff]
        %v611 = vld [vmem:[%s571 + $0x98] sm:$0xff]
        %v612 = vld [vmem:[%s571 + $0xa0] sm:$0xff]
        %v613 = vld [vmem:[%s571 + $0xa8] sm:$0xff]
        %v614 = vld [vmem:[%s571 + $0xb0] sm:$0xff]
        %v615 = vld [vmem:[%s571 + $0xb8] sm:$0xff]
        %v616 = vld [vmem:[%s571 + $0xc0] sm:$0xff]
        %v617 = vld [vmem:[%s571 + $0xc8] sm:$0xff]
        %v618 = vld [vmem:[%s571 + $0xd0] sm:$0xff]
        %v619 = vld [vmem:[%s571 + $0xd8] sm:$0xff]
        %v620 = vld [vmem:[%s571 + $0xe0] sm:$0xff]
        %v621 = vld [vmem:[%s571 + $0xe8] sm:$0xff]
        %v622 = vld [vmem:[%s571 + $0xf0] sm:$0xff]
        %v623 = vld [vmem:[%s571 + $0xf8] sm:$0xff]
        %v624 = vld [vmem:[%s585] sm:$0xff]
        %v625 = vld [vmem:[%s585 + $0x8] sm:$0xff]
        %v626 = vld [vmem:[%s585 + $0x10] sm:$0xff]
        %v627 = vld [vmem:[%s585 + $0x18] sm:$0xff]
        %v628 = vld [vmem:[%s585 + $0x20] sm:$0xff]
        %v629 = vld [vmem:[%s585 + $0x28] sm:$0xff]
        %v630 = vld [vmem:[%s585 + $0x30] sm:$0xff]
        %v631 = vld [vmem:[%s585 + $0x38] sm:$0xff]
        %v632 = vld [vmem:[%s585 + $0x40] sm:$0xff]
        %v633 = vld [vmem:[%s585 + $0x48] sm:$0xff]
        %v634 = vld [vmem:[%s585 + $0x50] sm:$0xff]
        %v635 = vld [vmem:[%s585 + $0x58] sm:$0xff]
        %v636 = vld [vmem:[%s585 + $0x60] sm:$0xff]
        %v637 = vld [vmem:[%s585 + $0x68] sm:$0xff]
        %v638 = vld [vmem:[%s585 + $0x70] sm:$0xff]
        %v639 = vld [vmem:[%s585 + $0x78] sm:$0xff]
        %v640 = vld [vmem:[%s585 + $0x80] sm:$0xff]
        %v641 = vld [vmem:[%s585 + $0x88] sm:$0xff]
        %v642 = vld [vmem:[%s585 + $0x90] sm:$0xff]
        %v643 = vld [vmem:[%s585 + $0x98] sm:$0xff]
        %v644 = vld [vmem:[%s585 + $0xa0] sm:$0xff]
        %v645 = vld [vmem:[%s585 + $0xa8] sm:$0xff]
        %v646 = vld [vmem:[%s585 + $0xb0] sm:$0xff]
        %v647 = vld [vmem:[%s585 + $0xb8] sm:$0xff]
        %v648 = vld [vmem:[%s585 + $0xc0] sm:$0xff]
        %v649 = vld [vmem:[%s585 + $0xc8] sm:$0xff]
        %v650 = vld [vmem:[%s585 + $0xd0] sm:$0xff]
        %v651 = vld [vmem:[%s585 + $0xd8] sm:$0xff]
        %v652 = vld [vmem:[%s585 + $0xe0] sm:$0xff]
        %v653 = vld [vmem:[%s585 + $0xe8] sm:$0xff]
        %v654 = vld [vmem:[%s585 + $0xf0] sm:$0xff]
        %v655 = vld [vmem:[%s585 + $0xf8] sm:$0xff]
        %s656 = sld [smem:[#allocation2]]
        %v657 = vstv %s656
        %v658 = vmul.f32 %v657, %v592
        %v659 = vmul.f32 %v657, %v593
        %v660 = vmul.f32 %v657, %v594
        %v661 = vmul.f32 %v657, %v595
        %v662 = vmul.f32 %v657, %v596
        %v663 = vmul.f32 %v657, %v597
        %v664 = vmul.f32 %v657, %v598
        %v665 = vmul.f32 %v657, %v599
        %v666 = vmul.f32 %v657, %v600
        %v667 = vmul.f32 %v657, %v601
        %v668 = vmul.f32 %v657, %v602
        %v669 = vmul.f32 %v657, %v603
        %v670 = vmul.f32 %v657, %v604
        %v671 = vmul.f32 %v657, %v605
        %v672 = vmul.f32 %v657, %v606
        %v673 = vmul.f32 %v657, %v607
        %v674 = vmul.f32 %v657, %v608
        %v675 = vmul.f32 %v657, %v609
        %v676 = vmul.f32 %v657, %v610
        %v677 = vmul.f32 %v657, %v611
        %v678 = vmul.f32 %v657, %v612
        %v679 = vmul.f32 %v657, %v613
        %v680 = vmul.f32 %v657, %v614
        %v681 = vmul.f32 %v657, %v615
        %v682 = vmul.f32 %v657, %v616
        %v683 = vmul.f32 %v657, %v617
        %v684 = vmul.f32 %v657, %v618
        %v685 = vmul.f32 %v657, %v619
        %v686 = vmul.f32 %v657, %v620
        %v687 = vmul.f32 %v657, %v621
        %v688 = vmul.f32 %v657, %v622
        %v689 = vmul.f32 %v657, %v623
        %s690 = sld [smem:[#allocation2 + $0x1]]
        %v691 = vstv %s690
        %v692 = vmul.f32 %v691, %v624
        %v693 = vmul.f32 %v691, %v625
        %v694 = vmul.f32 %v691, %v626
        %v695 = vmul.f32 %v691, %v627
        %v696 = vmul.f32 %v691, %v628
        %v697 = vmul.f32 %v691, %v629
        %v698 = vmul.f32 %v691, %v630
        %v699 = vmul.f32 %v691, %v631
        %v700 = vmul.f32 %v691, %v632
        %v701 = vmul.f32 %v691, %v633
        %v702 = vmul.f32 %v691, %v634
        %v703 = vmul.f32 %v691, %v635
        %v704 = vmul.f32 %v691, %v636
        %v705 = vmul.f32 %v691, %v637
        %v706 = vmul.f32 %v691, %v638
        %v707 = vmul.f32 %v691, %v639
        %v708 = vmul.f32 %v691, %v640
        %v709 = vmul.f32 %v691, %v641
        %v710 = vmul.f32 %v691, %v642
        %v711 = vmul.f32 %v691, %v643
        %v712 = vmul.f32 %v691, %v644
        %v713 = vmul.f32 %v691, %v645
        %v714 = vmul.f32 %v691, %v646
        %v715 = vmul.f32 %v691, %v647
        %v716 = vmul.f32 %v691, %v648
        %v717 = vmul.f32 %v691, %v649
        %v718 = vmul.f32 %v691, %v650
        %v719 = vmul.f32 %v691, %v651
        %v720 = vmul.f32 %v691, %v652
        %v721 = vmul.f32 %v691, %v653
        %v722 = vmul.f32 %v691, %v654
        %v723 = vmul.f32 %v691, %v655
        %v724 = vadd.f32 %v658, %v692
        %v725 = vadd.f32 %v659, %v693
        %v726 = vadd.f32 %v660, %v694
        %v727 = vadd.f32 %v661, %v695
        %v728 = vadd.f32 %v662, %v696
        %v729 = vadd.f32 %v663, %v697
        %v730 = vadd.f32 %v664, %v698
        %v731 = vadd.f32 %v665, %v699
        %v732 = vadd.f32 %v666, %v700
        %v733 = vadd.f32 %v667, %v701
        %v734 = vadd.f32 %v668, %v702
        %v735 = vadd.f32 %v669, %v703
        %v736 = vadd.f32 %v670, %v704
        %v737 = vadd.f32 %v671, %v705
        %v738 = vadd.f32 %v672, %v706
        %v739 = vadd.f32 %v673, %v707
        %v740 = vadd.f32 %v674, %v708
        %v741 = vadd.f32 %v675, %v709
        %v742 = vadd.f32 %v676, %v710
        %v743 = vadd.f32 %v677, %v711
        %v744 = vadd.f32 %v678, %v712
        %v745 = vadd.f32 %v679, %v713
        %v746 = vadd.f32 %v680, %v714
        %v747 = vadd.f32 %v681, %v715
        %v748 = vadd.f32 %v682, %v716
        %v749 = vadd.f32 %v683, %v717
        %v750 = vadd.f32 %v684, %v718
        %v751 = vadd.f32 %v685, %v719
        %v752 = vadd.f32 %v686, %v720
        %v753 = vadd.f32 %v687, %v721
        %v754 = vadd.f32 %v688, %v722
        %v755 = vadd.f32 %v689, %v723
        %v756 = vld [vmem:[%s2] sm:$0x1]
        %v757 = vld [vmem:[%s3] sm:$0x1]
        %vm758 = vcmask 261120
        %v759 = vsel %vm758, %v724, 0.0
        %760 = vadd.xlane.f32.xlu0 %v759
        %v761 = vpop.xlane.xlu0 %760
        %v762 = vsel %vm758, %v725, 0.0
        %763 = vadd.xlane.f32.xlu0 %v762
        %v764 = vpop.xlane.xlu0 %763
        %v765 = vsel %vm758, %v726, 0.0
        %766 = vadd.xlane.f32.xlu0 %v765
        %v767 = vpop.xlane.xlu0 %766
        %v768 = vsel %vm758, %v727, 0.0
        %769 = vadd.xlane.f32.xlu0 %v768
        %v770 = vpop.xlane.xlu0 %769
        %v771 = vsel %vm758, %v728, 0.0
        %772 = vadd.xlane.f32.xlu0 %v771
        %v773 = vpop.xlane.xlu0 %772
        %v774 = vsel %vm758, %v729, 0.0
        %775 = vadd.xlane.f32.xlu0 %v774
        %v776 = vpop.xlane.xlu0 %775
        %v777 = vsel %vm758, %v730, 0.0
        %778 = vadd.xlane.f32.xlu0 %v777
        %v779 = vpop.xlane.xlu0 %778
        %v780 = vsel %vm758, %v731, 0.0
        %781 = vadd.xlane.f32.xlu0 %v780
        %v782 = vpop.xlane.xlu0 %781
        %v783 = vsel %vm758, %v732, 0.0
        %784 = vadd.xlane.f32.xlu0 %v783
        %v785 = vpop.xlane.xlu0 %784
        %v786 = vsel %vm758, %v733, 0.0
        %787 = vadd.xlane.f32.xlu0 %v786
        %v788 = vpop.xlane.xlu0 %787
        %v789 = vsel %vm758, %v734, 0.0
        %790 = vadd.xlane.f32.xlu0 %v789
        %v791 = vpop.xlane.xlu0 %790
        %v792 = vsel %vm758, %v735, 0.0
        %793 = vadd.xlane.f32.xlu0 %v792
        %v794 = vpop.xlane.xlu0 %793
        %v795 = vsel %vm758, %v736, 0.0
        %796 = vadd.xlane.f32.xlu0 %v795
        %v797 = vpop.xlane.xlu0 %796
        %v798 = vsel %vm758, %v737, 0.0
        %799 = vadd.xlane.f32.xlu0 %v798
        %v800 = vpop.xlane.xlu0 %799
        %v801 = vsel %vm758, %v738, 0.0
        %802 = vadd.xlane.f32.xlu0 %v801
        %v803 = vpop.xlane.xlu0 %802
        %v804 = vsel %vm758, %v739, 0.0
        %805 = vadd.xlane.f32.xlu0 %v804
        %v806 = vpop.xlane.xlu0 %805
        %v807 = vsel %vm758, %v740, 0.0
        %808 = vadd.xlane.f32.xlu0 %v807
        %v809 = vpop.xlane.xlu0 %808
        %v810 = vsel %vm758, %v741, 0.0
        %811 = vadd.xlane.f32.xlu0 %v810
        %v812 = vpop.xlane.xlu0 %811
        %v813 = vsel %vm758, %v742, 0.0
        %814 = vadd.xlane.f32.xlu0 %v813
        %v815 = vpop.xlane.xlu0 %814
        %v816 = vsel %vm758, %v743, 0.0
        %817 = vadd.xlane.f32.xlu0 %v816
        %v818 = vpop.xlane.xlu0 %817
        %v819 = vsel %vm758, %v744, 0.0
        %820 = vadd.xlane.f32.xlu0 %v819
        %v821 = vpop.xlane.xlu0 %820
        %v822 = vsel %vm758, %v745, 0.0
        %823 = vadd.xlane.f32.xlu0 %v822
        %v824 = vpop.xlane.xlu0 %823
        %v825 = vsel %vm758, %v746, 0.0
        %826 = vadd.xlane.f32.xlu0 %v825
        %v827 = vpop.xlane.xlu0 %826
        %v828 = vsel %vm758, %v747, 0.0
        %829 = vadd.xlane.f32.xlu0 %v828
        %v830 = vpop.xlane.xlu0 %829
        %v831 = vsel %vm758, %v748, 0.0
        %832 = vadd.xlane.f32.xlu0 %v831
        %v833 = vpop.xlane.xlu0 %832
        %v834 = vsel %vm758, %v749, 0.0
        %835 = vadd.xlane.f32.xlu0 %v834
        %v836 = vpop.xlane.xlu0 %835
        %v837 = vsel %vm758, %v750, 0.0
        %838 = vadd.xlane.f32.xlu0 %v837
        %v839 = vpop.xlane.xlu0 %838
        %v840 = vsel %vm758, %v751, 0.0
        %841 = vadd.xlane.f32.xlu0 %v840
        %v842 = vpop.xlane.xlu0 %841
        %v843 = vsel %vm758, %v752, 0.0
        %844 = vadd.xlane.f32.xlu0 %v843
        %v845 = vpop.xlane.xlu0 %844
        %v846 = vsel %vm758, %v753, 0.0
        %847 = vadd.xlane.f32.xlu0 %v846
        %v848 = vpop.xlane.xlu0 %847
        %v849 = vsel %vm758, %v754, 0.0
        %850 = vadd.xlane.f32.xlu0 %v849
        %v851 = vpop.xlane.xlu0 %850
        %v852 = vsel %vm758, %v755, 0.0
        %853 = vadd.xlane.f32.xlu0 %v852
        %v854 = vpop.xlane.xlu0 %853
        %v855 = vrcp.pop 32.0
        %v856 = vmul.f32 %v761, %v855
        %v857 = vmul.f32 %v764, %v855
        %v858 = vmul.f32 %v767, %v855
        %v859 = vmul.f32 %v770, %v855
        %v860 = vmul.f32 %v773, %v855
        %v861 = vmul.f32 %v776, %v855
        %v862 = vmul.f32 %v779, %v855
        %v863 = vmul.f32 %v782, %v855
        %v864 = vmul.f32 %v785, %v855
        %v865 = vmul.f32 %v788, %v855
        %v866 = vmul.f32 %v791, %v855
        %v867 = vmul.f32 %v794, %v855
        %v868 = vmul.f32 %v797, %v855
        %v869 = vmul.f32 %v800, %v855
        %v870 = vmul.f32 %v803, %v855
        %v871 = vmul.f32 %v806, %v855
        %v872 = vmul.f32 %v809, %v855
        %v873 = vmul.f32 %v812, %v855
        %v874 = vmul.f32 %v815, %v855
        %v875 = vmul.f32 %v818, %v855
        %v876 = vmul.f32 %v821, %v855
        %v877 = vmul.f32 %v824, %v855
        %v878 = vmul.f32 %v827, %v855
        %v879 = vmul.f32 %v830, %v855
        %v880 = vmul.f32 %v833, %v855
        %v881 = vmul.f32 %v836, %v855
        %v882 = vmul.f32 %v839, %v855
        %v883 = vmul.f32 %v842, %v855
        %v884 = vmul.f32 %v845, %v855
        %v885 = vmul.f32 %v848, %v855
        %v886 = vmul.f32 %v851, %v855
        %v887 = vmul.f32 %v854, %v855
        %v888 = vsub.f32 %v724, %v856
        %v889 = vsub.f32 %v725, %v857
        %v890 = vsub.f32 %v726, %v858
        %v891 = vsub.f32 %v727, %v859
        %v892 = vsub.f32 %v728, %v860
        %v893 = vsub.f32 %v729, %v861
        %v894 = vsub.f32 %v730, %v862
        %v895 = vsub.f32 %v731, %v863
        %v896 = vsub.f32 %v732, %v864
        %v897 = vsub.f32 %v733, %v865
        %v898 = vsub.f32 %v734, %v866
        %v899 = vsub.f32 %v735, %v867
        %v900 = vsub.f32 %v736, %v868
        %v901 = vsub.f32 %v737, %v869
        %v902 = vsub.f32 %v738, %v870
        %v903 = vsub.f32 %v739, %v871
        %v904 = vsub.f32 %v740, %v872
        %v905 = vsub.f32 %v741, %v873
        %v906 = vsub.f32 %v742, %v874
        %v907 = vsub.f32 %v743, %v875
        %v908 = vsub.f32 %v744, %v876
        %v909 = vsub.f32 %v745, %v877
        %v910 = vsub.f32 %v746, %v878
        %v911 = vsub.f32 %v747, %v879
        %v912 = vsub.f32 %v748, %v880
        %v913 = vsub.f32 %v749, %v881
        %v914 = vsub.f32 %v750, %v882
        %v915 = vsub.f32 %v751, %v883
        %v916 = vsub.f32 %v752, %v884
        %v917 = vsub.f32 %v753, %v885
        %v918 = vsub.f32 %v754, %v886
        %v919 = vsub.f32 %v755, %v887
        %v920 = vmul.f32 %v888, %v888
        %v921 = vmul.f32 %v889, %v889
        %v922 = vmul.f32 %v890, %v890
        %v923 = vmul.f32 %v891, %v891
        %v924 = vmul.f32 %v892, %v892
        %v925 = vmul.f32 %v893, %v893
        %v926 = vmul.f32 %v894, %v894
        %v927 = vmul.f32 %v895, %v895
        %v928 = vmul.f32 %v896, %v896
        %v929 = vmul.f32 %v897, %v897
        %v930 = vmul.f32 %v898, %v898
        %v931 = vmul.f32 %v899, %v899
        %v932 = vmul.f32 %v900, %v900
        %v933 = vmul.f32 %v901, %v901
        %v934 = vmul.f32 %v902, %v902
        %v935 = vmul.f32 %v903, %v903
        %v936 = vmul.f32 %v904, %v904
        %v937 = vmul.f32 %v905, %v905
        %v938 = vmul.f32 %v906, %v906
        %v939 = vmul.f32 %v907, %v907
        %v940 = vmul.f32 %v908, %v908
        %v941 = vmul.f32 %v909, %v909
        %v942 = vmul.f32 %v910, %v910
        %v943 = vmul.f32 %v911, %v911
        %v944 = vmul.f32 %v912, %v912
        %v945 = vmul.f32 %v913, %v913
        %v946 = vmul.f32 %v914, %v914
        %v947 = vmul.f32 %v915, %v915
        %v948 = vmul.f32 %v916, %v916
        %v949 = vmul.f32 %v917, %v917
        %v950 = vmul.f32 %v918, %v918
        %v951 = vmul.f32 %v919, %v919
        %v952 = vsel %vm758, %v920, 0.0
        %953 = vadd.xlane.f32.xlu0 %v952
        %v954 = vpop.xlane.xlu0 %953
        %v955 = vsel %vm758, %v921, 0.0
        %956 = vadd.xlane.f32.xlu0 %v955
        %v957 = vpop.xlane.xlu0 %956
        %v958 = vsel %vm758, %v922, 0.0
        %959 = vadd.xlane.f32.xlu0 %v958
        %v960 = vpop.xlane.xlu0 %959
        %v961 = vsel %vm758, %v923, 0.0
        %962 = vadd.xlane.f32.xlu0 %v961
        %v963 = vpop.xlane.xlu0 %962
        %v964 = vsel %vm758, %v924, 0.0
        %965 = vadd.xlane.f32.xlu0 %v964
        %v966 = vpop.xlane.xlu0 %965
        %v967 = vsel %vm758, %v925, 0.0
        %968 = vadd.xlane.f32.xlu0 %v967
        %v969 = vpop.xlane.xlu0 %968
        %v970 = vsel %vm758, %v926, 0.0
        %971 = vadd.xlane.f32.xlu0 %v970
        %v972 = vpop.xlane.xlu0 %971
        %v973 = vsel %vm758, %v927, 0.0
        %974 = vadd.xlane.f32.xlu0 %v973
        %v975 = vpop.xlane.xlu0 %974
        %v976 = vsel %vm758, %v928, 0.0
        %977 = vadd.xlane.f32.xlu0 %v976
        %v978 = vpop.xlane.xlu0 %977
        %v979 = vsel %vm758, %v929, 0.0
        %980 = vadd.xlane.f32.xlu0 %v979
        %v981 = vpop.xlane.xlu0 %980
        %v982 = vsel %vm758, %v930, 0.0
        %983 = vadd.xlane.f32.xlu0 %v982
        %v984 = vpop.xlane.xlu0 %983
        %v985 = vsel %vm758, %v931, 0.0
        %986 = vadd.xlane.f32.xlu0 %v985
        %v987 = vpop.xlane.xlu0 %986
        %v988 = vsel %vm758, %v932, 0.0
        %989 = vadd.xlane.f32.xlu0 %v988
        %v990 = vpop.xlane.xlu0 %989
        %v991 = vsel %vm758, %v933, 0.0
        %992 = vadd.xlane.f32.xlu0 %v991
        %v993 = vpop.xlane.xlu0 %992
        %v994 = vsel %vm758, %v934, 0.0
        %995 = vadd.xlane.f32.xlu0 %v994
        %v996 = vpop.xlane.xlu0 %995
        %v997 = vsel %vm758, %v935, 0.0
        %998 = vadd.xlane.f32.xlu0 %v997
        %v999 = vpop.xlane.xlu0 %998
        %v1000 = vsel %vm758, %v936, 0.0
        %1001 = vadd.xlane.f32.xlu0 %v1000
        %v1002 = vpop.xlane.xlu0 %1001
        %v1003 = vsel %vm758, %v937, 0.0
        %1004 = vadd.xlane.f32.xlu0 %v1003
        %v1005 = vpop.xlane.xlu0 %1004
        %v1006 = vsel %vm758, %v938, 0.0
        %1007 = vadd.xlane.f32.xlu0 %v1006
        %v1008 = vpop.xlane.xlu0 %1007
        %v1009 = vsel %vm758, %v939, 0.0
        %1010 = vadd.xlane.f32.xlu0 %v1009
        %v1011 = vpop.xlane.xlu0 %1010
        %v1012 = vsel %vm758, %v940, 0.0
        %1013 = vadd.xlane.f32.xlu0 %v1012
        %v1014 = vpop.xlane.xlu0 %1013
        %v1015 = vsel %vm758, %v941, 0.0
        %1016 = vadd.xlane.f32.xlu0 %v1015
        %v1017 = vpop.xlane.xlu0 %1016
        %v1018 = vsel %vm758, %v942, 0.0
        %1019 = vadd.xlane.f32.xlu0 %v1018
        %v1020 = vpop.xlane.xlu0 %1019
        %v1021 = vsel %vm758, %v943, 0.0
        %1022 = vadd.xlane.f32.xlu0 %v1021
        %v1023 = vpop.xlane.xlu0 %1022
        %v1024 = vsel %vm758, %v944, 0.0
        %1025 = vadd.xlane.f32.xlu0 %v1024
        %v1026 = vpop.xlane.xlu0 %1025
        %v1027 = vsel %vm758, %v945, 0.0
        %1028 = vadd.xlane.f32.xlu0 %v1027
        %v1029 = vpop.xlane.xlu0 %1028
        %v1030 = vsel %vm758, %v946, 0.0
        %1031 = vadd.xlane.f32.xlu0 %v1030
        %v1032 = vpop.xlane.xlu0 %1031
        %v1033 = vsel %vm758, %v947, 0.0
        %1034 = vadd.xlane.f32.xlu0 %v1033
        %v1035 = vpop.xlane.xlu0 %1034
        %v1036 = vsel %vm758, %v948, 0.0
        %1037 = vadd.xlane.f32.xlu0 %v1036
        %v1038 = vpop.xlane.xlu0 %1037
        %v1039 = vsel %vm758, %v949, 0.0
        %1040 = vadd.xlane.f32.xlu0 %v1039
        %v1041 = vpop.xlane.xlu0 %1040
        %v1042 = vsel %vm758, %v950, 0.0
        %1043 = vadd.xlane.f32.xlu0 %v1042
        %v1044 = vpop.xlane.xlu0 %1043
        %v1045 = vsel %vm758, %v951, 0.0
        %1046 = vadd.xlane.f32.xlu0 %v1045
        %v1047 = vpop.xlane.xlu0 %1046
        %v1048 = vmul.f32 %v954, %v855
        %v1049 = vmul.f32 %v957, %v855
        %v1050 = vmul.f32 %v960, %v855
        %v1051 = vmul.f32 %v963, %v855
        %v1052 = vmul.f32 %v966, %v855
        %v1053 = vmul.f32 %v969, %v855
        %v1054 = vmul.f32 %v972, %v855
        %v1055 = vmul.f32 %v975, %v855
        %v1056 = vmul.f32 %v978, %v855
        %v1057 = vmul.f32 %v981, %v855
        %v1058 = vmul.f32 %v984, %v855
        %v1059 = vmul.f32 %v987, %v855
        %v1060 = vmul.f32 %v990, %v855
        %v1061 = vmul.f32 %v993, %v855
        %v1062 = vmul.f32 %v996, %v855
        %v1063 = vmul.f32 %v999, %v855
        %v1064 = vmul.f32 %v1002, %v855
        %v1065 = vmul.f32 %v1005, %v855
        %v1066 = vmul.f32 %v1008, %v855
        %v1067 = vmul.f32 %v1011, %v855
        %v1068 = vmul.f32 %v1014, %v855
        %v1069 = vmul.f32 %v1017, %v855
        %v1070 = vmul.f32 %v1020, %v855
        %v1071 = vmul.f32 %v1023, %v855
        %v1072 = vmul.f32 %v1026, %v855
        %v1073 = vmul.f32 %v1029, %v855
        %v1074 = vmul.f32 %v1032, %v855
        %v1075 = vmul.f32 %v1035, %v855
        %v1076 = vmul.f32 %v1038, %v855
        %v1077 = vmul.f32 %v1041, %v855
        %v1078 = vmul.f32 %v1044, %v855
        %v1079 = vmul.f32 %v1047, %v855
        %v1080 = vadd.f32 %v1048, 1e-06
        %v1081 = vadd.f32 %v1049, 1e-06
        %v1082 = vadd.f32 %v1050, 1e-06
        %v1083 = vadd.f32 %v1051, 1e-06
        %v1084 = vadd.f32 %v1052, 1e-06
        %v1085 = vadd.f32 %v1053, 1e-06
        %v1086 = vadd.f32 %v1054, 1e-06
        %v1087 = vadd.f32 %v1055, 1e-06
        %v1088 = vadd.f32 %v1056, 1e-06
        %v1089 = vadd.f32 %v1057, 1e-06
        %v1090 = vadd.f32 %v1058, 1e-06
        %v1091 = vadd.f32 %v1059, 1e-06
        %v1092 = vadd.f32 %v1060, 1e-06
        %v1093 = vadd.f32 %v1061, 1e-06
        %v1094 = vadd.f32 %v1062, 1e-06
        %v1095 = vadd.f32 %v1063, 1e-06
        %v1096 = vadd.f32 %v1064, 1e-06
        %v1097 = vadd.f32 %v1065, 1e-06
        %v1098 = vadd.f32 %v1066, 1e-06
        %v1099 = vadd.f32 %v1067, 1e-06
        %v1100 = vadd.f32 %v1068, 1e-06
        %v1101 = vadd.f32 %v1069, 1e-06
        %v1102 = vadd.f32 %v1070, 1e-06
        %v1103 = vadd.f32 %v1071, 1e-06
        %v1104 = vadd.f32 %v1072, 1e-06
        %v1105 = vadd.f32 %v1073, 1e-06
        %v1106 = vadd.f32 %v1074, 1e-06
        %v1107 = vadd.f32 %v1075, 1e-06
        %v1108 = vadd.f32 %v1076, 1e-06
        %v1109 = vadd.f32 %v1077, 1e-06
        %v1110 = vadd.f32 %v1078, 1e-06
        %v1111 = vadd.f32 %v1079, 1e-06
        %v1112 = vrsqrt.pop %v1080
        %v1113 = vrsqrt.pop %v1081
        %v1114 = vrsqrt.pop %v1082
        %v1115 = vrsqrt.pop %v1083
        %v1116 = vrsqrt.pop %v1084
        %v1117 = vrsqrt.pop %v1085
        %v1118 = vrsqrt.pop %v1086
        %v1119 = vrsqrt.pop %v1087
        %v1120 = vrsqrt.pop %v1088
        %v1121 = vrsqrt.pop %v1089
        %v1122 = vrsqrt.pop %v1090
        %v1123 = vrsqrt.pop %v1091
        %v1124 = vrsqrt.pop %v1092
        %v1125 = vrsqrt.pop %v1093
        %v1126 = vrsqrt.pop %v1094
        %v1127 = vrsqrt.pop %v1095
        %v1128 = vrsqrt.pop %v1096
        %v1129 = vrsqrt.pop %v1097
        %v1130 = vrsqrt.pop %v1098
        %v1131 = vrsqrt.pop %v1099
        %v1132 = vrsqrt.pop %v1100
        %v1133 = vrsqrt.pop %v1101
        %v1134 = vrsqrt.pop %v1102
        %v1135 = vrsqrt.pop %v1103
        %v1136 = vrsqrt.pop %v1104
        %v1137 = vrsqrt.pop %v1105
        %v1138 = vrsqrt.pop %v1106
        %v1139 = vrsqrt.pop %v1107
        %v1140 = vrsqrt.pop %v1108
        %v1141 = vrsqrt.pop %v1109
        %v1142 = vrsqrt.pop %v1110
        %v1143 = vrsqrt.pop %v1111
        %v1144 = vmul.f32 %v888, %v1112
        %v1145 = vmul.f32 %v889, %v1113
        %v1146 = vmul.f32 %v890, %v1114
        %v1147 = vmul.f32 %v891, %v1115
        %v1148 = vmul.f32 %v892, %v1116
        %v1149 = vmul.f32 %v893, %v1117
        %v1150 = vmul.f32 %v894, %v1118
        %v1151 = vmul.f32 %v895, %v1119
        %v1152 = vmul.f32 %v896, %v1120
        %v1153 = vmul.f32 %v897, %v1121
        %v1154 = vmul.f32 %v898, %v1122
        %v1155 = vmul.f32 %v899, %v1123
        %v1156 = vmul.f32 %v900, %v1124
        %v1157 = vmul.f32 %v901, %v1125
        %v1158 = vmul.f32 %v902, %v1126
        %v1159 = vmul.f32 %v903, %v1127
        %v1160 = vmul.f32 %v904, %v1128
        %v1161 = vmul.f32 %v905, %v1129
        %v1162 = vmul.f32 %v906, %v1130
        %v1163 = vmul.f32 %v907, %v1131
        %v1164 = vmul.f32 %v908, %v1132
        %v1165 = vmul.f32 %v909, %v1133
        %v1166 = vmul.f32 %v910, %v1134
        %v1167 = vmul.f32 %v911, %v1135
        %v1168 = vmul.f32 %v912, %v1136
        %v1169 = vmul.f32 %v913, %v1137
        %v1170 = vmul.f32 %v914, %v1138
        %v1171 = vmul.f32 %v915, %v1139
        %v1172 = vmul.f32 %v916, %v1140
        %v1173 = vmul.f32 %v917, %v1141
        %v1174 = vmul.f32 %v918, %v1142
        %v1175 = vmul.f32 %v919, %v1143
        %v1177 = vlaneseq
        %v1178 = vshrl.u32 %v1177, 7
        %v1179 = vsub.s32 0, %v1178
        %v1180 = vrot.slane %v756, %v1179
        %v1182 = vmul.f32 %v1144, %v1180
        %v1183 = vmul.f32 %v1145, %v1180
        %v1184 = vmul.f32 %v1146, %v1180
        %v1185 = vmul.f32 %v1147, %v1180
        %v1186 = vmul.f32 %v1148, %v1180
        %v1187 = vmul.f32 %v1149, %v1180
        %v1188 = vmul.f32 %v1150, %v1180
        %v1189 = vmul.f32 %v1151, %v1180
        %v1190 = vmul.f32 %v1152, %v1180
        %v1191 = vmul.f32 %v1153, %v1180
        %v1192 = vmul.f32 %v1154, %v1180
        %v1193 = vmul.f32 %v1155, %v1180
        %v1194 = vmul.f32 %v1156, %v1180
        %v1195 = vmul.f32 %v1157, %v1180
        %v1196 = vmul.f32 %v1158, %v1180
        %v1197 = vmul.f32 %v1159, %v1180
        %v1198 = vmul.f32 %v1160, %v1180
        %v1199 = vmul.f32 %v1161, %v1180
        %v1200 = vmul.f32 %v1162, %v1180
        %v1201 = vmul.f32 %v1163, %v1180
        %v1202 = vmul.f32 %v1164, %v1180
        %v1203 = vmul.f32 %v1165, %v1180
        %v1204 = vmul.f32 %v1166, %v1180
        %v1205 = vmul.f32 %v1167, %v1180
        %v1206 = vmul.f32 %v1168, %v1180
        %v1207 = vmul.f32 %v1169, %v1180
        %v1208 = vmul.f32 %v1170, %v1180
        %v1209 = vmul.f32 %v1171, %v1180
        %v1210 = vmul.f32 %v1172, %v1180
        %v1211 = vmul.f32 %v1173, %v1180
        %v1212 = vmul.f32 %v1174, %v1180
        %v1213 = vmul.f32 %v1175, %v1180
        %v1215 = vlaneseq
        %v1216 = vshrl.u32 %v1215, 7
        %v1217 = vsub.s32 0, %v1216
        %v1218 = vrot.slane %v757, %v1217
        %v1220 = vadd.f32 %v1182, %v1218
        %v1221 = vadd.f32 %v1183, %v1218
        %v1222 = vadd.f32 %v1184, %v1218
        %v1223 = vadd.f32 %v1185, %v1218
        %v1224 = vadd.f32 %v1186, %v1218
        %v1225 = vadd.f32 %v1187, %v1218
        %v1226 = vadd.f32 %v1188, %v1218
        %v1227 = vadd.f32 %v1189, %v1218
        %v1228 = vadd.f32 %v1190, %v1218
        %v1229 = vadd.f32 %v1191, %v1218
        %v1230 = vadd.f32 %v1192, %v1218
        %v1231 = vadd.f32 %v1193, %v1218
        %v1232 = vadd.f32 %v1194, %v1218
        %v1233 = vadd.f32 %v1195, %v1218
        %v1234 = vadd.f32 %v1196, %v1218
        %v1235 = vadd.f32 %v1197, %v1218
        %v1236 = vadd.f32 %v1198, %v1218
        %v1237 = vadd.f32 %v1199, %v1218
        %v1238 = vadd.f32 %v1200, %v1218
        %v1239 = vadd.f32 %v1201, %v1218
        %v1240 = vadd.f32 %v1202, %v1218
        %v1241 = vadd.f32 %v1203, %v1218
        %v1242 = vadd.f32 %v1204, %v1218
        %v1243 = vadd.f32 %v1205, %v1218
        %v1244 = vadd.f32 %v1206, %v1218
        %v1245 = vadd.f32 %v1207, %v1218
        %v1246 = vadd.f32 %v1208, %v1218
        %v1247 = vadd.f32 %v1209, %v1218
        %v1248 = vadd.f32 %v1210, %v1218
        %v1249 = vadd.f32 %v1211, %v1218
        %v1250 = vadd.f32 %v1212, %v1218
        %v1251 = vadd.f32 %v1213, %v1218
        %v1252 = vld [vmem:[%s4] sm:$0xff]
        %v1253 = vld [vmem:[%s4 + $0x8] sm:$0xff]
        %v1254 = vld [vmem:[%s4 + $0x10] sm:$0xff]
        %v1255 = vld [vmem:[%s4 + $0x18] sm:$0xff]
        %v1256 = vld [vmem:[%s5] sm:$0x1]
        %v1258 = vlaneseq
        %v1259 = vshrl.u32 %v1258, 7
        %v1260 = vsub.s32 0, %v1259
        %v1261 = vrot.slane %v1256, %v1260
        %v1264 = vsel %vm758, %v1220, 0
        %v1267 = vsel %vm758, %v1221, 0
        %v1270 = vsel %vm758, %v1222, 0
        %v1273 = vsel %vm758, %v1223, 0
        %v1276 = vsel %vm758, %v1224, 0
        %v1279 = vsel %vm758, %v1225, 0
        %v1282 = vsel %vm758, %v1226, 0
        %v1285 = vsel %vm758, %v1227, 0
        %v1288 = vsel %vm758, %v1228, 0
        %v1291 = vsel %vm758, %v1229, 0
        %v1294 = vsel %vm758, %v1230, 0
        %v1297 = vsel %vm758, %v1231, 0
        %v1300 = vsel %vm758, %v1232, 0
        %v1303 = vsel %vm758, %v1233, 0
        %v1306 = vsel %vm758, %v1234, 0
        %v1309 = vsel %vm758, %v1235, 0
        %v1312 = vsel %vm758, %v1236, 0
        %v1315 = vsel %vm758, %v1237, 0
        %v1318 = vsel %vm758, %v1238, 0
        %v1321 = vsel %vm758, %v1239, 0
        %v1324 = vsel %vm758, %v1240, 0
        %v1327 = vsel %vm758, %v1241, 0
        %v1330 = vsel %vm758, %v1242, 0
        %v1333 = vsel %vm758, %v1243, 0
        %v1336 = vsel %vm758, %v1244, 0
        %v1339 = vsel %vm758, %v1245, 0
        %v1342 = vsel %vm758, %v1246, 0
        %v1345 = vsel %vm758, %v1247, 0
        %v1348 = vsel %vm758, %v1248, 0
        %v1351 = vsel %vm758, %v1249, 0
        %v1354 = vsel %vm758, %v1250, 0
        %v1357 = vsel %vm758, %v1251, 0
        %1359 = vmatprep.subr.mxu0 0.0
        %1360 = vmatpush1.msra.mxu0 %v1252
        %1361 = vmatprep.subr.mxu0 0.0
        %1362 = vmatpush1.msra.mxu0 %v1253
        %1363 = vmatprep.subr.mxu0 0.0
        %1364 = vmatpush1.msra.mxu0 %v1254
        %1365 = vmatprep.subr.mxu0 0.0
        %1366 = vmatpush1.msra.mxu0 %v1255
        %1367 = vmatprep.subr.mxu0 0.0
        %1368 = vmatpush1.msra.mxu0 0.0
        %1369 = vmatprep.subr.mxu0 0.0
        %1370 = vmatpush1.msra.mxu0 0.0
        %1371 = vmatprep.subr.mxu0 0.0
        %1372 = vmatpush1.msra.mxu0 0.0
        %1373 = vmatprep.subr.mxu0 0.0
        %1374 = vmatpush1.msra.mxu0 0.0
        %1375 = vmatprep.subr.mxu0 0.0
        %1376 = vmatpush1.msra.mxu0 0.0
        %1377 = vmatprep.subr.mxu0 0.0
        %1378 = vmatpush1.msra.mxu0 0.0
        %1379 = vmatprep.subr.mxu0 0.0
        %1380 = vmatpush1.msra.mxu0 0.0
        %1381 = vmatprep.subr.mxu0 0.0
        %1382 = vmatpush1.msra.mxu0 0.0
        %1383 = vmatprep.subr.mxu0 0.0
        %1384 = vmatpush1.msra.mxu0 0.0
        %1385 = vmatprep.subr.mxu0 0.0
        %1386 = vmatpush1.msra.mxu0 0.0
        %1387 = vmatprep.subr.mxu0 0.0
        %1388 = vmatpush1.msra.mxu0 0.0
        %1389 = vmatprep.subr.mxu0 0.0
        %1390 = vmatpush1.msra.mxu0 0.0
        %1391 = vmatprep.subr.mxu0 0.0
        %1392 = vmatpush1.msra.mxu0 0.0
        %1393 = vmatprep.subr.mxu0 0.0
        %1394 = vmatpush1.msra.mxu0 0.0
        %1395 = vmatprep.subr.mxu0 0.0
        %1396 = vmatpush1.msra.mxu0 0.0
        %1397 = vmatprep.subr.mxu0 0.0
        %1398 = vmatpush1.msra.mxu0 0.0
        %1399 = vmatprep.subr.mxu0 0.0
        %1400 = vmatpush1.msra.mxu0 0.0
        %1401 = vmatprep.subr.mxu0 0.0
        %1402 = vmatpush1.msra.mxu0 0.0
        %1403 = vmatprep.subr.mxu0 0.0
        %1404 = vmatpush1.msra.mxu0 0.0
        %1405 = vmatprep.subr.mxu0 0.0
        %1406 = vmatpush1.msra.mxu0 0.0
        %1407 = vmatprep.subr.mxu0 0.0
        %1408 = vmatpush1.msra.mxu0 0.0
        %1409 = vmatprep.subr.mxu0 0.0
        %1410 = vmatpush1.msra.mxu0 0.0
        %1411 = vmatprep.subr.mxu0 0.0
        %1412 = vmatpush1.msra.mxu0 0.0
        %1413 = vmatprep.subr.mxu0 0.0
        %1414 = vmatpush1.msra.mxu0 0.0
        %1415 = vmatprep.subr.mxu0 0.0
        %1416 = vmatpush1.msra.mxu0 0.0
        %1417 = vmatprep.subr.mxu0 0.0
        %1418 = vmatpush1.msra.mxu0 0.0
        %1419 = vmatprep.subr.mxu0 0.0
        %1420 = vmatpush1.msra.mxu0 0.0
        %1421 = vmatprep.subr.mxu0 0.0
        %1422 = vmatpush1.msra.mxu0 0.0
        %1423 = vmatprep.mubr.f32.mxu0 0.0
        %1424 = vmatmul.mubr.f32.gmra.mrb[0].mxu0 %v1264
        %v1425 = vpop.f32.mrb[0].mxu0
        %v1426 = vadd.f32 %v1261, %v1425
        %v1427 = vpop.f32.mrb[0].mxu0
        %1428 = vmatprep.mubr.f32.mxu0 0.0
        %1429 = vmatmul.mubr.f32.gmra.mrb[0].mxu0 %v1267
        %v1430 = vpop.f32.mrb[0].mxu0
        %v1431 = vadd.f32 %v1261, %v1430
        %v1432 = vpop.f32.mrb[0].mxu0
        %1433 = vmatprep.mubr.f32.mxu0 0.0
        %1434 = vmatmul.mubr.f32.gmra.mrb[0].mxu0 %v1270
        %v1435 = vpop.f32.mrb[0].mxu0
        %v1436 = vadd.f32 %v1261, %v1435
        %v1437 = vpop.f32.mrb[0].mxu0
        %1438 = vmatprep.mubr.f32.mxu0 0.0
        %1439 = vmatmul.mubr.f32.gmra.mrb[0].mxu0 %v1273
        %v1440 = vpop.f32.mrb[0].mxu0
        %v1441 = vadd.f32 %v1261, %v1440
        %v1442 = vpop.f32.mrb[0].mxu0
        %1443 = vmatprep.mubr.f32.mxu0 0.0
        %1444 = vmatmul.mubr.f32.gmra.mrb[0].mxu0 %v1276
        %v1445 = vpop.f32.mrb[0].mxu0
        %v1446 = vadd.f32 %v1261, %v1445
        %v1447 = vpop.f32.mrb[0].mxu0
        %1448 = vmatprep.mubr.f32.mxu0 0.0
        %1449 = vmatmul.mubr.f32.gmra.mrb[0].mxu0 %v1279
        %v1450 = vpop.f32.mrb[0].mxu0
        %v1451 = vadd.f32 %v1261, %v1450
        %v1452 = vpop.f32.mrb[0].mxu0
        %1453 = vmatprep.mubr.f32.mxu0 0.0
        %1454 = vmatmul.mubr.f32.gmra.mrb[0].mxu0 %v1282
        %v1455 = vpop.f32.mrb[0].mxu0
        %v1456 = vadd.f32 %v1261, %v1455
        %v1457 = vpop.f32.mrb[0].mxu0
        %1458 = vmatprep.mubr.f32.mxu0 0.0
        %1459 = vmatmul.mubr.f32.gmra.mrb[0].mxu0 %v1285
        %v1460 = vpop.f32.mrb[0].mxu0
        %v1461 = vadd.f32 %v1261, %v1460
        %v1462 = vpop.f32.mrb[0].mxu0
        %1463 = vmatprep.mubr.f32.mxu0 0.0
        %1464 = vmatmul.mubr.f32.gmra.mrb[0].mxu0 %v1288
        %v1465 = vpop.f32.mrb[0].mxu0
        %v1466 = vadd.f32 %v1261, %v1465
        %v1467 = vpop.f32.mrb[0].mxu0
        %1468 = vmatprep.mubr.f32.mxu0 0.0
        %1469 = vmatmul.mubr.f32.gmra.mrb[0].mxu0 %v1291
        %v1470 = vpop.f32.mrb[0].mxu0
        %v1471 = vadd.f32 %v1261, %v1470
        %v1472 = vpop.f32.mrb[0].mxu0
        %1473 = vmatprep.mubr.f32.mxu0 0.0
        %1474 = vmatmul.mubr.f32.gmra.mrb[0].mxu0 %v1294
        %v1475 = vpop.f32.mrb[0].mxu0
        %v1476 = vadd.f32 %v1261, %v1475
        %v1477 = vpop.f32.mrb[0].mxu0
        %1478 = vmatprep.mubr.f32.mxu0 0.0
        %1479 = vmatmul.mubr.f32.gmra.mrb[0].mxu0 %v1297
        %v1480 = vpop.f32.mrb[0].mxu0
        %v1481 = vadd.f32 %v1261, %v1480
        %v1482 = vpop.f32.mrb[0].mxu0
        %1483 = vmatprep.mubr.f32.mxu0 0.0
        %1484 = vmatmul.mubr.f32.gmra.mrb[0].mxu0 %v1300
        %v1485 = vpop.f32.mrb[0].mxu0
        %v1486 = vadd.f32 %v1261, %v1485
        %v1487 = vpop.f32.mrb[0].mxu0
        %1488 = vmatprep.mubr.f32.mxu0 0.0
        %1489 = vmatmul.mubr.f32.gmra.mrb[0].mxu0 %v1303
        %v1490 = vpop.f32.mrb[0].mxu0
        %v1491 = vadd.f32 %v1261, %v1490
        %v1492 = vpop.f32.mrb[0].mxu0
        %1493 = vmatprep.mubr.f32.mxu0 0.0
        %1494 = vmatmul.mubr.f32.gmra.mrb[0].mxu0 %v1306
        %v1495 = vpop.f32.mrb[0].mxu0
        %v1496 = vadd.f32 %v1261, %v1495
        %v1497 = vpop.f32.mrb[0].mxu0
        %1498 = vmatprep.mubr.f32.mxu0 0.0
        %1499 = vmatmul.mubr.f32.gmra.mrb[0].mxu0 %v1309
        %v1500 = vpop.f32.mrb[0].mxu0
        %v1501 = vadd.f32 %v1261, %v1500
        %v1502 = vpop.f32.mrb[0].mxu0
        %1503 = vmatprep.mubr.f32.mxu0 0.0
        %1504 = vmatmul.mubr.f32.gmra.mrb[0].mxu0 %v1312
        %v1505 = vpop.f32.mrb[0].mxu0
        %v1506 = vadd.f32 %v1261, %v1505
        %v1507 = vpop.f32.mrb[0].mxu0
        %1508 = vmatprep.mubr.f32.mxu0 0.0
        %1509 = vmatmul.mubr.f32.gmra.mrb[0].mxu0 %v1315
        %v1510 = vpop.f32.mrb[0].mxu0
        %v1511 = vadd.f32 %v1261, %v1510
        %v1512 = vpop.f32.mrb[0].mxu0
        %1513 = vmatprep.mubr.f32.mxu0 0.0
        %1514 = vmatmul.mubr.f32.gmra.mrb[0].mxu0 %v1318
        %v1515 = vpop.f32.mrb[0].mxu0
        %v1516 = vadd.f32 %v1261, %v1515
        %v1517 = vpop.f32.mrb[0].mxu0
        %1518 = vmatprep.mubr.f32.mxu0 0.0
        %1519 = vmatmul.mubr.f32.gmra.mrb[0].mxu0 %v1321
        %v1520 = vpop.f32.mrb[0].mxu0
        %v1521 = vadd.f32 %v1261, %v1520
        %v1522 = vpop.f32.mrb[0].mxu0
        %1523 = vmatprep.mubr.f32.mxu0 0.0
        %1524 = vmatmul.mubr.f32.gmra.mrb[0].mxu0 %v1324
        %v1525 = vpop.f32.mrb[0].mxu0
        %v1526 = vadd.f32 %v1261, %v1525
        %v1527 = vpop.f32.mrb[0].mxu0
        %1528 = vmatprep.mubr.f32.mxu0 0.0
        %1529 = vmatmul.mubr.f32.gmra.mrb[0].mxu0 %v1327
        %v1530 = vpop.f32.mrb[0].mxu0
        %v1531 = vadd.f32 %v1261, %v1530
        %v1532 = vpop.f32.mrb[0].mxu0
        %1533 = vmatprep.mubr.f32.mxu0 0.0
        %1534 = vmatmul.mubr.f32.gmra.mrb[0].mxu0 %v1330
        %v1535 = vpop.f32.mrb[0].mxu0
        %v1536 = vadd.f32 %v1261, %v1535
        %v1537 = vpop.f32.mrb[0].mxu0
        %1538 = vmatprep.mubr.f32.mxu0 0.0
        %1539 = vmatmul.mubr.f32.gmra.mrb[0].mxu0 %v1333
        %v1540 = vpop.f32.mrb[0].mxu0
        %v1541 = vadd.f32 %v1261, %v1540
        %v1542 = vpop.f32.mrb[0].mxu0
        %1543 = vmatprep.mubr.f32.mxu0 0.0
        %1544 = vmatmul.mubr.f32.gmra.mrb[0].mxu0 %v1336
        %v1545 = vpop.f32.mrb[0].mxu0
        %v1546 = vadd.f32 %v1261, %v1545
        %v1547 = vpop.f32.mrb[0].mxu0
        %1548 = vmatprep.mubr.f32.mxu0 0.0
        %1549 = vmatmul.mubr.f32.gmra.mrb[0].mxu0 %v1339
        %v1550 = vpop.f32.mrb[0].mxu0
        %v1551 = vadd.f32 %v1261, %v1550
        %v1552 = vpop.f32.mrb[0].mxu0
        %1553 = vmatprep.mubr.f32.mxu0 0.0
        %1554 = vmatmul.mubr.f32.gmra.mrb[0].mxu0 %v1342
        %v1555 = vpop.f32.mrb[0].mxu0
        %v1556 = vadd.f32 %v1261, %v1555
        %v1557 = vpop.f32.mrb[0].mxu0
        %1558 = vmatprep.mubr.f32.mxu0 0.0
        %1559 = vmatmul.mubr.f32.gmra.mrb[0].mxu0 %v1345
        %v1560 = vpop.f32.mrb[0].mxu0
        %v1561 = vadd.f32 %v1261, %v1560
        %v1562 = vpop.f32.mrb[0].mxu0
        %1563 = vmatprep.mubr.f32.mxu0 0.0
        %1564 = vmatmul.mubr.f32.gmra.mrb[0].mxu0 %v1348
        %v1565 = vpop.f32.mrb[0].mxu0
        %v1566 = vadd.f32 %v1261, %v1565
        %v1567 = vpop.f32.mrb[0].mxu0
        %1568 = vmatprep.mubr.f32.mxu0 0.0
        %1569 = vmatmul.mubr.f32.gmra.mrb[0].mxu0 %v1351
        %v1570 = vpop.f32.mrb[0].mxu0
        %v1571 = vadd.f32 %v1261, %v1570
        %v1572 = vpop.f32.mrb[0].mxu0
        %1573 = vmatprep.mubr.f32.mxu0 0.0
        %1574 = vmatmul.mubr.f32.gmra.mrb[0].mxu0 %v1354
        %v1575 = vpop.f32.mrb[0].mxu0
        %v1576 = vadd.f32 %v1261, %v1575
        %v1577 = vpop.f32.mrb[0].mxu0
        %1578 = vmatprep.mubr.f32.mxu0 0.0
        %1579 = vmatmul.mubr.f32.gmra.mrb[0].mxu0 %v1357
        %v1580 = vpop.f32.mrb[0].mxu0
        %v1581 = vadd.f32 %v1261, %v1580
        %v1582 = vpop.f32.mrb[0].mxu0
        %1583 = vdwg.mxu0
        %v1584 = vmul.f32 %v1426, 0.5
        %v1585 = vmul.f32 %v1431, 0.5
        %v1586 = vmul.f32 %v1436, 0.5
        %v1587 = vmul.f32 %v1441, 0.5
        %v1588 = vmul.f32 %v1446, 0.5
        %v1589 = vmul.f32 %v1451, 0.5
        %v1590 = vmul.f32 %v1456, 0.5
        %v1591 = vmul.f32 %v1461, 0.5
        %v1592 = vmul.f32 %v1466, 0.5
        %v1593 = vmul.f32 %v1471, 0.5
        %v1594 = vmul.f32 %v1476, 0.5
        %v1595 = vmul.f32 %v1481, 0.5
        %v1596 = vmul.f32 %v1486, 0.5
        %v1597 = vmul.f32 %v1491, 0.5
        %v1598 = vmul.f32 %v1496, 0.5
        %v1599 = vmul.f32 %v1501, 0.5
        %v1600 = vmul.f32 %v1506, 0.5
        %v1601 = vmul.f32 %v1511, 0.5
        %v1602 = vmul.f32 %v1516, 0.5
        %v1603 = vmul.f32 %v1521, 0.5
        %v1604 = vmul.f32 %v1526, 0.5
        %v1605 = vmul.f32 %v1531, 0.5
        %v1606 = vmul.f32 %v1536, 0.5
        %v1607 = vmul.f32 %v1541, 0.5
        %v1608 = vmul.f32 %v1546, 0.5
        %v1609 = vmul.f32 %v1551, 0.5
        %v1610 = vmul.f32 %v1556, 0.5
        %v1611 = vmul.f32 %v1561, 0.5
        %v1612 = vmul.f32 %v1566, 0.5
        %v1613 = vmul.f32 %v1571, 0.5
        %v1614 = vmul.f32 %v1576, 0.5
        %v1615 = vmul.f32 %v1581, 0.5
        %v1616 = vmul.f32 %v1426, 0.70710677
        %v1617 = vmul.f32 %v1431, 0.70710677
        %v1618 = vmul.f32 %v1436, 0.70710677
        %v1619 = vmul.f32 %v1441, 0.70710677
        %v1620 = vmul.f32 %v1446, 0.70710677
        %v1621 = vmul.f32 %v1451, 0.70710677
        %v1622 = vmul.f32 %v1456, 0.70710677
        %v1623 = vmul.f32 %v1461, 0.70710677
        %v1624 = vmul.f32 %v1466, 0.70710677
        %v1625 = vmul.f32 %v1471, 0.70710677
        %v1626 = vmul.f32 %v1476, 0.70710677
        %v1627 = vmul.f32 %v1481, 0.70710677
        %v1628 = vmul.f32 %v1486, 0.70710677
        %v1629 = vmul.f32 %v1491, 0.70710677
        %v1630 = vmul.f32 %v1496, 0.70710677
        %v1631 = vmul.f32 %v1501, 0.70710677
        %v1632 = vmul.f32 %v1506, 0.70710677
        %v1633 = vmul.f32 %v1511, 0.70710677
        %v1634 = vmul.f32 %v1516, 0.70710677
        %v1635 = vmul.f32 %v1521, 0.70710677
        %v1636 = vmul.f32 %v1526, 0.70710677
        %v1637 = vmul.f32 %v1531, 0.70710677
        %v1638 = vmul.f32 %v1536, 0.70710677
        %v1639 = vmul.f32 %v1541, 0.70710677
        %v1640 = vmul.f32 %v1546, 0.70710677
        %v1641 = vmul.f32 %v1551, 0.70710677
        %v1642 = vmul.f32 %v1556, 0.70710677
        %v1643 = vmul.f32 %v1561, 0.70710677
        %v1644 = vmul.f32 %v1566, 0.70710677
        %v1645 = vmul.f32 %v1571, 0.70710677
        %v1646 = vmul.f32 %v1576, 0.70710677
        %v1647 = vmul.f32 %v1581, 0.70710677
        %v1648 = verf.f32.pop %v1616
        %v1649 = verf.f32.pop %v1617
        %v1650 = verf.f32.pop %v1618
        %v1651 = verf.f32.pop %v1619
        %v1652 = verf.f32.pop %v1620
        %v1653 = verf.f32.pop %v1621
        %v1654 = verf.f32.pop %v1622
        %v1655 = verf.f32.pop %v1623
        %v1656 = verf.f32.pop %v1624
        %v1657 = verf.f32.pop %v1625
        %v1658 = verf.f32.pop %v1626
        %v1659 = verf.f32.pop %v1627
        %v1660 = verf.f32.pop %v1628
        %v1661 = verf.f32.pop %v1629
        %v1662 = verf.f32.pop %v1630
        %v1663 = verf.f32.pop %v1631
        %v1664 = verf.f32.pop %v1632
        %v1665 = verf.f32.pop %v1633
        %v1666 = verf.f32.pop %v1634
        %v1667 = verf.f32.pop %v1635
        %v1668 = verf.f32.pop %v1636
        %v1669 = verf.f32.pop %v1637
        %v1670 = verf.f32.pop %v1638
        %v1671 = verf.f32.pop %v1639
        %v1672 = verf.f32.pop %v1640
        %v1673 = verf.f32.pop %v1641
        %v1674 = verf.f32.pop %v1642
        %v1675 = verf.f32.pop %v1643
        %v1676 = verf.f32.pop %v1644
        %v1677 = verf.f32.pop %v1645
        %v1678 = verf.f32.pop %v1646
        %v1679 = verf.f32.pop %v1647
        %v1680 = vadd.f32 %v1648, 1.0
        %v1681 = vadd.f32 %v1649, 1.0
        %v1682 = vadd.f32 %v1650, 1.0
        %v1683 = vadd.f32 %v1651, 1.0
        %v1684 = vadd.f32 %v1652, 1.0
        %v1685 = vadd.f32 %v1653, 1.0
        %v1686 = vadd.f32 %v1654, 1.0
        %v1687 = vadd.f32 %v1655, 1.0
        %v1688 = vadd.f32 %v1656, 1.0
        %v1689 = vadd.f32 %v1657, 1.0
        %v1690 = vadd.f32 %v1658, 1.0
        %v1691 = vadd.f32 %v1659, 1.0
        %v1692 = vadd.f32 %v1660, 1.0
        %v1693 = vadd.f32 %v1661, 1.0
        %v1694 = vadd.f32 %v1662, 1.0
        %v1695 = vadd.f32 %v1663, 1.0
        %v1696 = vadd.f32 %v1664, 1.0
        %v1697 = vadd.f32 %v1665, 1.0
        %v1698 = vadd.f32 %v1666, 1.0
        %v1699 = vadd.f32 %v1667, 1.0
        %v1700 = vadd.f32 %v1668, 1.0
        %v1701 = vadd.f32 %v1669, 1.0
        %v1702 = vadd.f32 %v1670, 1.0
        %v1703 = vadd.f32 %v1671, 1.0
        %v1704 = vadd.f32 %v1672, 1.0
        %v1705 = vadd.f32 %v1673, 1.0
        %v1706 = vadd.f32 %v1674, 1.0
        %v1707 = vadd.f32 %v1675, 1.0
        %v1708 = vadd.f32 %v1676, 1.0
        %v1709 = vadd.f32 %v1677, 1.0
        %v1710 = vadd.f32 %v1678, 1.0
        %v1711 = vadd.f32 %v1679, 1.0
        %v1712 = vmul.f32 %v1584, %v1680
        %v1713 = vmul.f32 %v1585, %v1681
        %v1714 = vmul.f32 %v1586, %v1682
        %v1715 = vmul.f32 %v1587, %v1683
        %v1716 = vmul.f32 %v1588, %v1684
        %v1717 = vmul.f32 %v1589, %v1685
        %v1718 = vmul.f32 %v1590, %v1686
        %v1719 = vmul.f32 %v1591, %v1687
        %v1720 = vmul.f32 %v1592, %v1688
        %v1721 = vmul.f32 %v1593, %v1689
        %v1722 = vmul.f32 %v1594, %v1690
        %v1723 = vmul.f32 %v1595, %v1691
        %v1724 = vmul.f32 %v1596, %v1692
        %v1725 = vmul.f32 %v1597, %v1693
        %v1726 = vmul.f32 %v1598, %v1694
        %v1727 = vmul.f32 %v1599, %v1695
        %v1728 = vmul.f32 %v1600, %v1696
        %v1729 = vmul.f32 %v1601, %v1697
        %v1730 = vmul.f32 %v1602, %v1698
        %v1731 = vmul.f32 %v1603, %v1699
        %v1732 = vmul.f32 %v1604, %v1700
        %v1733 = vmul.f32 %v1605, %v1701
        %v1734 = vmul.f32 %v1606, %v1702
        %v1735 = vmul.f32 %v1607, %v1703
        %v1736 = vmul.f32 %v1608, %v1704
        %v1737 = vmul.f32 %v1609, %v1705
        %v1738 = vmul.f32 %v1610, %v1706
        %v1739 = vmul.f32 %v1611, %v1707
        %v1740 = vmul.f32 %v1612, %v1708
        %v1741 = vmul.f32 %v1613, %v1709
        %v1742 = vmul.f32 %v1614, %v1710
        %v1743 = vmul.f32 %v1615, %v1711
        %v1744 = vld [vmem:[%s6] sm:$0xff]
        %v1745 = vld [vmem:[%s6 + $0x8] sm:$0xff]
        %v1746 = vld [vmem:[%s6 + $0x10] sm:$0xff]
        %v1747 = vld [vmem:[%s6 + $0x18] sm:$0xff]
        %v1748 = vld [vmem:[%s6 + $0x20] sm:$0xff]
        %v1749 = vld [vmem:[%s6 + $0x28] sm:$0xff]
        %v1750 = vld [vmem:[%s6 + $0x30] sm:$0xff]
        %v1751 = vld [vmem:[%s6 + $0x38] sm:$0xff]
        %v1752 = vld [vmem:[%s6 + $0x40] sm:$0xff]
        %v1753 = vld [vmem:[%s6 + $0x48] sm:$0xff]
        %v1754 = vld [vmem:[%s6 + $0x50] sm:$0xff]
        %v1755 = vld [vmem:[%s6 + $0x58] sm:$0xff]
        %v1756 = vld [vmem:[%s6 + $0x60] sm:$0xff]
        %v1757 = vld [vmem:[%s6 + $0x68] sm:$0xff]
        %v1758 = vld [vmem:[%s6 + $0x70] sm:$0xff]
        %v1759 = vld [vmem:[%s6 + $0x78] sm:$0xff]
        %v1760 = vld [vmem:[%s7] sm:$0x1]
        %v1762 = vlaneseq
        %v1763 = vshrl.u32 %v1762, 7
        %v1764 = vsub.s32 0, %v1763
        %v1765 = vrot.slane %v1760, %v1764
        %1767 = vmatprep.subr.mxu0 0.0
        %1768 = vmatpush1.msra.mxu0 %v1744
        %1769 = vmatprep.subr.mxu0 0.0
        %1770 = vmatpush1.msra.mxu0 %v1745
        %1771 = vmatprep.subr.mxu0 0.0
        %1772 = vmatpush1.msra.mxu0 %v1746
        %1773 = vmatprep.subr.mxu0 0.0
        %1774 = vmatpush1.msra.mxu0 %v1747
        %1775 = vmatprep.subr.mxu0 0.0
        %1776 = vmatpush1.msra.mxu0 %v1748
        %1777 = vmatprep.subr.mxu0 0.0
        %1778 = vmatpush1.msra.mxu0 %v1749
        %1779 = vmatprep.subr.mxu0 0.0
        %1780 = vmatpush1.msra.mxu0 %v1750
        %1781 = vmatprep.subr.mxu0 0.0
        %1782 = vmatpush1.msra.mxu0 %v1751
        %1783 = vmatprep.subr.mxu0 0.0
        %1784 = vmatpush1.msra.mxu0 %v1752
        %1785 = vmatprep.subr.mxu0 0.0
        %1786 = vmatpush1.msra.mxu0 %v1753
        %1787 = vmatprep.subr.mxu0 0.0
        %1788 = vmatpush1.msra.mxu0 %v1754
        %1789 = vmatprep.subr.mxu0 0.0
        %1790 = vmatpush1.msra.mxu0 %v1755
        %1791 = vmatprep.subr.mxu0 0.0
        %1792 = vmatpush1.msra.mxu0 %v1756
        %1793 = vmatprep.subr.mxu0 0.0
        %1794 = vmatpush1.msra.mxu0 %v1757
        %1795 = vmatprep.subr.mxu0 0.0
        %1796 = vmatpush1.msra.mxu0 %v1758
        %1797 = vmatprep.subr.mxu0 0.0
        %1798 = vmatpush1.msra.mxu0 %v1759
        %1799 = vmatprep.subr.mxu0 0.0
        %1800 = vmatpush1.msra.mxu0 0.0
        %1801 = vmatprep.subr.mxu0 0.0
        %1802 = vmatpush1.msra.mxu0 0.0
        %1803 = vmatprep.subr.mxu0 0.0
        %1804 = vmatpush1.msra.mxu0 0.0
        %1805 = vmatprep.subr.mxu0 0.0
        %1806 = vmatpush1.msra.mxu0 0.0
        %1807 = vmatprep.subr.mxu0 0.0
        %1808 = vmatpush1.msra.mxu0 0.0
        %1809 = vmatprep.subr.mxu0 0.0
        %1810 = vmatpush1.msra.mxu0 0.0
        %1811 = vmatprep.subr.mxu0 0.0
        %1812 = vmatpush1.msra.mxu0 0.0
        %1813 = vmatprep.subr.mxu0 0.0
        %1814 = vmatpush1.msra.mxu0 0.0
        %1815 = vmatprep.subr.mxu0 0.0
        %1816 = vmatpush1.msra.mxu0 0.0
        %1817 = vmatprep.subr.mxu0 0.0
        %1818 = vmatpush1.msra.mxu0 0.0
        %1819 = vmatprep.subr.mxu0 0.0
        %1820 = vmatpush1.msra.mxu0 0.0
        %1821 = vmatprep.subr.mxu0 0.0
        %1822 = vmatpush1.msra.mxu0 0.0
        %1823 = vmatprep.subr.mxu0 0.0
        %1824 = vmatpush1.msra.mxu0 0.0
        %1825 = vmatprep.subr.mxu0 0.0
        %1826 = vmatpush1.msra.mxu0 0.0
        %1827 = vmatprep.subr.mxu0 0.0
        %1828 = vmatpush1.msra.mxu0 0.0
        %1829 = vmatprep.subr.mxu0 0.0
        %1830 = vmatpush1.msra.mxu0 0.0
        %1831 = vmatprep.mubr.f32.mxu0 0.0
        %1832 = vmatmul.mubr.f32.gmra.mrb[0].mxu0 %v1712
        %v1833 = vpop.f32.mrb[0].mxu0
        %v1834 = vadd.f32 %v1765, %v1833
        %v1835 = vpop.f32.mrb[0].mxu0
        %1836 = vmatprep.mubr.f32.mxu0 0.0
        %1837 = vmatmul.mubr.f32.gmra.mrb[0].mxu0 %v1713
        %v1838 = vpop.f32.mrb[0].mxu0
        %v1839 = vadd.f32 %v1765, %v1838
        %v1840 = vpop.f32.mrb[0].mxu0
        %1841 = vmatprep.mubr.f32.mxu0 0.0
        %1842 = vmatmul.mubr.f32.gmra.mrb[0].mxu0 %v1714
        %v1843 = vpop.f32.mrb[0].mxu0
        %v1844 = vadd.f32 %v1765, %v1843
        %v1845 = vpop.f32.mrb[0].mxu0
        %1846 = vmatprep.mubr.f32.mxu0 0.0
        %1847 = vmatmul.mubr.f32.gmra.mrb[0].mxu0 %v1715
        %v1848 = vpop.f32.mrb[0].mxu0
        %v1849 = vadd.f32 %v1765, %v1848
        %v1850 = vpop.f32.mrb[0].mxu0
        %1851 = vmatprep.mubr.f32.mxu0 0.0
        %1852 = vmatmul.mubr.f32.gmra.mrb[0].mxu0 %v1716
        %v1853 = vpop.f32.mrb[0].mxu0
        %v1854 = vadd.f32 %v1765, %v1853
        %v1855 = vpop.f32.mrb[0].mxu0
        %1856 = vmatprep.mubr.f32.mxu0 0.0
        %1857 = vmatmul.mubr.f32.gmra.mrb[0].mxu0 %v1717
        %v1858 = vpop.f32.mrb[0].mxu0
        %v1859 = vadd.f32 %v1765, %v1858
        %v1860 = vpop.f32.mrb[0].mxu0
        %1861 = vmatprep.mubr.f32.mxu0 0.0
        %1862 = vmatmul.mubr.f32.gmra.mrb[0].mxu0 %v1718
        %v1863 = vpop.f32.mrb[0].mxu0
        %v1864 = vadd.f32 %v1765, %v1863
        %v1865 = vpop.f32.mrb[0].mxu0
        %1866 = vmatprep.mubr.f32.mxu0 0.0
        %1867 = vmatmul.mubr.f32.gmra.mrb[0].mxu0 %v1719
        %v1868 = vpop.f32.mrb[0].mxu0
        %v1869 = vadd.f32 %v1765, %v1868
        %v1870 = vpop.f32.mrb[0].mxu0
        %1871 = vmatprep.mubr.f32.mxu0 0.0
        %1872 = vmatmul.mubr.f32.gmra.mrb[0].mxu0 %v1720
        %v1873 = vpop.f32.mrb[0].mxu0
        %v1874 = vadd.f32 %v1765, %v1873
        %v1875 = vpop.f32.mrb[0].mxu0
        %1876 = vmatprep.mubr.f32.mxu0 0.0
        %1877 = vmatmul.mubr.f32.gmra.mrb[0].mxu0 %v1721
        %v1878 = vpop.f32.mrb[0].mxu0
        %v1879 = vadd.f32 %v1765, %v1878
        %v1880 = vpop.f32.mrb[0].mxu0
        %1881 = vmatprep.mubr.f32.mxu0 0.0
        %1882 = vmatmul.mubr.f32.gmra.mrb[0].mxu0 %v1722
        %v1883 = vpop.f32.mrb[0].mxu0
        %v1884 = vadd.f32 %v1765, %v1883
        %v1885 = vpop.f32.mrb[0].mxu0
        %1886 = vmatprep.mubr.f32.mxu0 0.0
        %1887 = vmatmul.mubr.f32.gmra.mrb[0].mxu0 %v1723
        %v1888 = vpop.f32.mrb[0].mxu0
        %v1889 = vadd.f32 %v1765, %v1888
        %v1890 = vpop.f32.mrb[0].mxu0
        %1891 = vmatprep.mubr.f32.mxu0 0.0
        %1892 = vmatmul.mubr.f32.gmra.mrb[0].mxu0 %v1724
        %v1893 = vpop.f32.mrb[0].mxu0
        %v1894 = vadd.f32 %v1765, %v1893
        %v1895 = vpop.f32.mrb[0].mxu0
        %1896 = vmatprep.mubr.f32.mxu0 0.0
        %1897 = vmatmul.mubr.f32.gmra.mrb[0].mxu0 %v1725
        %v1898 = vpop.f32.mrb[0].mxu0
        %v1899 = vadd.f32 %v1765, %v1898
        %v1900 = vpop.f32.mrb[0].mxu0
        %1901 = vmatprep.mubr.f32.mxu0 0.0
        %1902 = vmatmul.mubr.f32.gmra.mrb[0].mxu0 %v1726
        %v1903 = vpop.f32.mrb[0].mxu0
        %v1904 = vadd.f32 %v1765, %v1903
        %v1905 = vpop.f32.mrb[0].mxu0
        %1906 = vmatprep.mubr.f32.mxu0 0.0
        %1907 = vmatmul.mubr.f32.gmra.mrb[0].mxu0 %v1727
        %v1908 = vpop.f32.mrb[0].mxu0
        %v1909 = vadd.f32 %v1765, %v1908
        %v1910 = vpop.f32.mrb[0].mxu0
        %1911 = vmatprep.mubr.f32.mxu0 0.0
        %1912 = vmatmul.mubr.f32.gmra.mrb[0].mxu0 %v1728
        %v1913 = vpop.f32.mrb[0].mxu0
        %v1914 = vadd.f32 %v1765, %v1913
        %v1915 = vpop.f32.mrb[0].mxu0
        %1916 = vmatprep.mubr.f32.mxu0 0.0
        %1917 = vmatmul.mubr.f32.gmra.mrb[0].mxu0 %v1729
        %v1918 = vpop.f32.mrb[0].mxu0
        %v1919 = vadd.f32 %v1765, %v1918
        %v1920 = vpop.f32.mrb[0].mxu0
        %1921 = vmatprep.mubr.f32.mxu0 0.0
        %1922 = vmatmul.mubr.f32.gmra.mrb[0].mxu0 %v1730
        %v1923 = vpop.f32.mrb[0].mxu0
        %v1924 = vadd.f32 %v1765, %v1923
        %v1925 = vpop.f32.mrb[0].mxu0
        %1926 = vmatprep.mubr.f32.mxu0 0.0
        %1927 = vmatmul.mubr.f32.gmra.mrb[0].mxu0 %v1731
        %v1928 = vpop.f32.mrb[0].mxu0
        %v1929 = vadd.f32 %v1765, %v1928
        %v1930 = vpop.f32.mrb[0].mxu0
        %1931 = vmatprep.mubr.f32.mxu0 0.0
        %1932 = vmatmul.mubr.f32.gmra.mrb[0].mxu0 %v1732
        %v1933 = vpop.f32.mrb[0].mxu0
        %v1934 = vadd.f32 %v1765, %v1933
        %v1935 = vpop.f32.mrb[0].mxu0
        %1936 = vmatprep.mubr.f32.mxu0 0.0
        %1937 = vmatmul.mubr.f32.gmra.mrb[0].mxu0 %v1733
        %v1938 = vpop.f32.mrb[0].mxu0
        %v1939 = vadd.f32 %v1765, %v1938
        %v1940 = vpop.f32.mrb[0].mxu0
        %1941 = vmatprep.mubr.f32.mxu0 0.0
        %1942 = vmatmul.mubr.f32.gmra.mrb[0].mxu0 %v1734
        %v1943 = vpop.f32.mrb[0].mxu0
        %v1944 = vadd.f32 %v1765, %v1943
        %v1945 = vpop.f32.mrb[0].mxu0
        %1946 = vmatprep.mubr.f32.mxu0 0.0
        %1947 = vmatmul.mubr.f32.gmra.mrb[0].mxu0 %v1735
        %v1948 = vpop.f32.mrb[0].mxu0
        %v1949 = vadd.f32 %v1765, %v1948
        %v1950 = vpop.f32.mrb[0].mxu0
        %1951 = vmatprep.mubr.f32.mxu0 0.0
        %1952 = vmatmul.mubr.f32.gmra.mrb[0].mxu0 %v1736
        %v1953 = vpop.f32.mrb[0].mxu0
        %v1954 = vadd.f32 %v1765, %v1953
        %v1955 = vpop.f32.mrb[0].mxu0
        %1956 = vmatprep.mubr.f32.mxu0 0.0
        %1957 = vmatmul.mubr.f32.gmra.mrb[0].mxu0 %v1737
        %v1958 = vpop.f32.mrb[0].mxu0
        %v1959 = vadd.f32 %v1765, %v1958
        %v1960 = vpop.f32.mrb[0].mxu0
        %1961 = vmatprep.mubr.f32.mxu0 0.0
        %1962 = vmatmul.mubr.f32.gmra.mrb[0].mxu0 %v1738
        %v1963 = vpop.f32.mrb[0].mxu0
        %v1964 = vadd.f32 %v1765, %v1963
        %v1965 = vpop.f32.mrb[0].mxu0
        %1966 = vmatprep.mubr.f32.mxu0 0.0
        %1967 = vmatmul.mubr.f32.gmra.mrb[0].mxu0 %v1739
        %v1968 = vpop.f32.mrb[0].mxu0
        %v1969 = vadd.f32 %v1765, %v1968
        %v1970 = vpop.f32.mrb[0].mxu0
        %1971 = vmatprep.mubr.f32.mxu0 0.0
        %1972 = vmatmul.mubr.f32.gmra.mrb[0].mxu0 %v1740
        %v1973 = vpop.f32.mrb[0].mxu0
        %v1974 = vadd.f32 %v1765, %v1973
        %v1975 = vpop.f32.mrb[0].mxu0
        %1976 = vmatprep.mubr.f32.mxu0 0.0
        %1977 = vmatmul.mubr.f32.gmra.mrb[0].mxu0 %v1741
        %v1978 = vpop.f32.mrb[0].mxu0
        %v1979 = vadd.f32 %v1765, %v1978
        %v1980 = vpop.f32.mrb[0].mxu0
        %1981 = vmatprep.mubr.f32.mxu0 0.0
        %1982 = vmatmul.mubr.f32.gmra.mrb[0].mxu0 %v1742
        %v1983 = vpop.f32.mrb[0].mxu0
        %v1984 = vadd.f32 %v1765, %v1983
        %v1985 = vpop.f32.mrb[0].mxu0
        %1986 = vmatprep.mubr.f32.mxu0 0.0
        %1987 = vmatmul.mubr.f32.gmra.mrb[0].mxu0 %v1743
        %v1988 = vpop.f32.mrb[0].mxu0
        %v1989 = vadd.f32 %v1765, %v1988
        %v1990 = vpop.f32.mrb[0].mxu0
        %1991 = vdwg.mxu0
        %s1992 = sld [smem:[#allocation2 + $0x2]]
        %v1993 = vstv %s1992
        %v1994 = vmul.f32 %v1993, %v724
        %v1995 = vmul.f32 %v1993, %v725
        %v1996 = vmul.f32 %v1993, %v726
        %v1997 = vmul.f32 %v1993, %v727
        %v1998 = vmul.f32 %v1993, %v728
        %v1999 = vmul.f32 %v1993, %v729
        %v2000 = vmul.f32 %v1993, %v730
        %v2001 = vmul.f32 %v1993, %v731
        %v2002 = vmul.f32 %v1993, %v732
        %v2003 = vmul.f32 %v1993, %v733
        %v2004 = vmul.f32 %v1993, %v734
        %v2005 = vmul.f32 %v1993, %v735
        %v2006 = vmul.f32 %v1993, %v736
        %v2007 = vmul.f32 %v1993, %v737
        %v2008 = vmul.f32 %v1993, %v738
        %v2009 = vmul.f32 %v1993, %v739
        %v2010 = vmul.f32 %v1993, %v740
        %v2011 = vmul.f32 %v1993, %v741
        %v2012 = vmul.f32 %v1993, %v742
        %v2013 = vmul.f32 %v1993, %v743
        %v2014 = vmul.f32 %v1993, %v744
        %v2015 = vmul.f32 %v1993, %v745
        %v2016 = vmul.f32 %v1993, %v746
        %v2017 = vmul.f32 %v1993, %v747
        %v2018 = vmul.f32 %v1993, %v748
        %v2019 = vmul.f32 %v1993, %v749
        %v2020 = vmul.f32 %v1993, %v750
        %v2021 = vmul.f32 %v1993, %v751
        %v2022 = vmul.f32 %v1993, %v752
        %v2023 = vmul.f32 %v1993, %v753
        %v2024 = vmul.f32 %v1993, %v754
        %v2025 = vmul.f32 %v1993, %v755
        %s2026 = sld [smem:[#allocation2 + $0x3]]
        %v2027 = vstv %s2026
        %v2028 = vmul.f32 %v2027, %v1834
        %v2029 = vmul.f32 %v2027, %v1839
        %v2030 = vmul.f32 %v2027, %v1844
        %v2031 = vmul.f32 %v2027, %v1849
        %v2032 = vmul.f32 %v2027, %v1854
        %v2033 = vmul.f32 %v2027, %v1859
        %v2034 = vmul.f32 %v2027, %v1864
        %v2035 = vmul.f32 %v2027, %v1869
        %v2036 = vmul.f32 %v2027, %v1874
        %v2037 = vmul.f32 %v2027, %v1879
        %v2038 = vmul.f32 %v2027, %v1884
        %v2039 = vmul.f32 %v2027, %v1889
        %v2040 = vmul.f32 %v2027, %v1894
        %v2041 = vmul.f32 %v2027, %v1899
        %v2042 = vmul.f32 %v2027, %v1904
        %v2043 = vmul.f32 %v2027, %v1909
        %v2044 = vmul.f32 %v2027, %v1914
        %v2045 = vmul.f32 %v2027, %v1919
        %v2046 = vmul.f32 %v2027, %v1924
        %v2047 = vmul.f32 %v2027, %v1929
        %v2048 = vmul.f32 %v2027, %v1934
        %v2049 = vmul.f32 %v2027, %v1939
        %v2050 = vmul.f32 %v2027, %v1944
        %v2051 = vmul.f32 %v2027, %v1949
        %v2052 = vmul.f32 %v2027, %v1954
        %v2053 = vmul.f32 %v2027, %v1959
        %v2054 = vmul.f32 %v2027, %v1964
        %v2055 = vmul.f32 %v2027, %v1969
        %v2056 = vmul.f32 %v2027, %v1974
        %v2057 = vmul.f32 %v2027, %v1979
        %v2058 = vmul.f32 %v2027, %v1984
        %v2059 = vmul.f32 %v2027, %v1989
        %v2060 = vadd.f32 %v1994, %v2028
        %v2061 = vadd.f32 %v1995, %v2029
        %v2062 = vadd.f32 %v1996, %v2030
        %v2063 = vadd.f32 %v1997, %v2031
        %v2064 = vadd.f32 %v1998, %v2032
        %v2065 = vadd.f32 %v1999, %v2033
        %v2066 = vadd.f32 %v2000, %v2034
        %v2067 = vadd.f32 %v2001, %v2035
        %v2068 = vadd.f32 %v2002, %v2036
        %v2069 = vadd.f32 %v2003, %v2037
        %v2070 = vadd.f32 %v2004, %v2038
        %v2071 = vadd.f32 %v2005, %v2039
        %v2072 = vadd.f32 %v2006, %v2040
        %v2073 = vadd.f32 %v2007, %v2041
        %v2074 = vadd.f32 %v2008, %v2042
        %v2075 = vadd.f32 %v2009, %v2043
        %v2076 = vadd.f32 %v2010, %v2044
        %v2077 = vadd.f32 %v2011, %v2045
        %v2078 = vadd.f32 %v2012, %v2046
        %v2079 = vadd.f32 %v2013, %v2047
        %v2080 = vadd.f32 %v2014, %v2048
        %v2081 = vadd.f32 %v2015, %v2049
        %v2082 = vadd.f32 %v2016, %v2050
        %v2083 = vadd.f32 %v2017, %v2051
        %v2084 = vadd.f32 %v2018, %v2052
        %v2085 = vadd.f32 %v2019, %v2053
        %v2086 = vadd.f32 %v2020, %v2054
        %v2087 = vadd.f32 %v2021, %v2055
        %v2088 = vadd.f32 %v2022, %v2056
        %v2089 = vadd.f32 %v2023, %v2057
        %v2090 = vadd.f32 %v2024, %v2058
        %v2091 = vadd.f32 %v2025, %v2059
        %v2092 = vld [vmem:[%s8] sm:$0x1]
        %v2093 = vld [vmem:[%s9] sm:$0x1]
        %v2094 = vsel %vm758, %v2060, 0.0
        %2095 = vadd.xlane.f32.xlu0 %v2094
        %v2096 = vpop.xlane.xlu0 %2095
        %v2097 = vsel %vm758, %v2061, 0.0
        %2098 = vadd.xlane.f32.xlu0 %v2097
        %v2099 = vpop.xlane.xlu0 %2098
        %v2100 = vsel %vm758, %v2062, 0.0
        %2101 = vadd.xlane.f32.xlu0 %v2100
        %v2102 = vpop.xlane.xlu0 %2101
        %v2103 = vsel %vm758, %v2063, 0.0
        %2104 = vadd.xlane.f32.xlu0 %v2103
        %v2105 = vpop.xlane.xlu0 %2104
        %v2106 = vsel %vm758, %v2064, 0.0
        %2107 = vadd.xlane.f32.xlu0 %v2106
        %v2108 = vpop.xlane.xlu0 %2107
        %v2109 = vsel %vm758, %v2065, 0.0
        %2110 = vadd.xlane.f32.xlu0 %v2109
        %v2111 = vpop.xlane.xlu0 %2110
        %v2112 = vsel %vm758, %v2066, 0.0
        %2113 = vadd.xlane.f32.xlu0 %v2112
        %v2114 = vpop.xlane.xlu0 %2113
        %v2115 = vsel %vm758, %v2067, 0.0
        %2116 = vadd.xlane.f32.xlu0 %v2115
        %v2117 = vpop.xlane.xlu0 %2116
        %v2118 = vsel %vm758, %v2068, 0.0
        %2119 = vadd.xlane.f32.xlu0 %v2118
        %v2120 = vpop.xlane.xlu0 %2119
        %v2121 = vsel %vm758, %v2069, 0.0
        %2122 = vadd.xlane.f32.xlu0 %v2121
        %v2123 = vpop.xlane.xlu0 %2122
        %v2124 = vsel %vm758, %v2070, 0.0
        %2125 = vadd.xlane.f32.xlu0 %v2124
        %v2126 = vpop.xlane.xlu0 %2125
        %v2127 = vsel %vm758, %v2071, 0.0
        %2128 = vadd.xlane.f32.xlu0 %v2127
        %v2129 = vpop.xlane.xlu0 %2128
        %v2130 = vsel %vm758, %v2072, 0.0
        %2131 = vadd.xlane.f32.xlu0 %v2130
        %v2132 = vpop.xlane.xlu0 %2131
        %v2133 = vsel %vm758, %v2073, 0.0
        %2134 = vadd.xlane.f32.xlu0 %v2133
        %v2135 = vpop.xlane.xlu0 %2134
        %v2136 = vsel %vm758, %v2074, 0.0
        %2137 = vadd.xlane.f32.xlu0 %v2136
        %v2138 = vpop.xlane.xlu0 %2137
        %v2139 = vsel %vm758, %v2075, 0.0
        %2140 = vadd.xlane.f32.xlu0 %v2139
        %v2141 = vpop.xlane.xlu0 %2140
        %v2142 = vsel %vm758, %v2076, 0.0
        %2143 = vadd.xlane.f32.xlu0 %v2142
        %v2144 = vpop.xlane.xlu0 %2143
        %v2145 = vsel %vm758, %v2077, 0.0
        %2146 = vadd.xlane.f32.xlu0 %v2145
        %v2147 = vpop.xlane.xlu0 %2146
        %v2148 = vsel %vm758, %v2078, 0.0
        %2149 = vadd.xlane.f32.xlu0 %v2148
        %v2150 = vpop.xlane.xlu0 %2149
        %v2151 = vsel %vm758, %v2079, 0.0
        %2152 = vadd.xlane.f32.xlu0 %v2151
        %v2153 = vpop.xlane.xlu0 %2152
        %v2154 = vsel %vm758, %v2080, 0.0
        %2155 = vadd.xlane.f32.xlu0 %v2154
        %v2156 = vpop.xlane.xlu0 %2155
        %v2157 = vsel %vm758, %v2081, 0.0
        %2158 = vadd.xlane.f32.xlu0 %v2157
        %v2159 = vpop.xlane.xlu0 %2158
        %v2160 = vsel %vm758, %v2082, 0.0
        %2161 = vadd.xlane.f32.xlu0 %v2160
        %v2162 = vpop.xlane.xlu0 %2161
        %v2163 = vsel %vm758, %v2083, 0.0
        %2164 = vadd.xlane.f32.xlu0 %v2163
        %v2165 = vpop.xlane.xlu0 %2164
        %v2166 = vsel %vm758, %v2084, 0.0
        %2167 = vadd.xlane.f32.xlu0 %v2166
        %v2168 = vpop.xlane.xlu0 %2167
        %v2169 = vsel %vm758, %v2085, 0.0
        %2170 = vadd.xlane.f32.xlu0 %v2169
        %v2171 = vpop.xlane.xlu0 %2170
        %v2172 = vsel %vm758, %v2086, 0.0
        %2173 = vadd.xlane.f32.xlu0 %v2172
        %v2174 = vpop.xlane.xlu0 %2173
        %v2175 = vsel %vm758, %v2087, 0.0
        %2176 = vadd.xlane.f32.xlu0 %v2175
        %v2177 = vpop.xlane.xlu0 %2176
        %v2178 = vsel %vm758, %v2088, 0.0
        %2179 = vadd.xlane.f32.xlu0 %v2178
        %v2180 = vpop.xlane.xlu0 %2179
        %v2181 = vsel %vm758, %v2089, 0.0
        %2182 = vadd.xlane.f32.xlu0 %v2181
        %v2183 = vpop.xlane.xlu0 %2182
        %v2184 = vsel %vm758, %v2090, 0.0
        %2185 = vadd.xlane.f32.xlu0 %v2184
        %v2186 = vpop.xlane.xlu0 %2185
        %v2187 = vsel %vm758, %v2091, 0.0
        %2188 = vadd.xlane.f32.xlu0 %v2187
        %v2189 = vpop.xlane.xlu0 %2188
        %v2190 = vmul.f32 %v2096, %v855
        %v2191 = vmul.f32 %v2099, %v855
        %v2192 = vmul.f32 %v2102, %v855
        %v2193 = vmul.f32 %v2105, %v855
        %v2194 = vmul.f32 %v2108, %v855
        %v2195 = vmul.f32 %v2111, %v855
        %v2196 = vmul.f32 %v2114, %v855
        %v2197 = vmul.f32 %v2117, %v855
        %v2198 = vmul.f32 %v2120, %v855
        %v2199 = vmul.f32 %v2123, %v855
        %v2200 = vmul.f32 %v2126, %v855
        %v2201 = vmul.f32 %v2129, %v855
        %v2202 = vmul.f32 %v2132, %v855
        %v2203 = vmul.f32 %v2135, %v855
        %v2204 = vmul.f32 %v2138, %v855
        %v2205 = vmul.f32 %v2141, %v855
        %v2206 = vmul.f32 %v2144, %v855
        %v2207 = vmul.f32 %v2147, %v855
        %v2208 = vmul.f32 %v2150, %v855
        %v2209 = vmul.f32 %v2153, %v855
        %v2210 = vmul.f32 %v2156, %v855
        %v2211 = vmul.f32 %v2159, %v855
        %v2212 = vmul.f32 %v2162, %v855
        %v2213 = vmul.f32 %v2165, %v855
        %v2214 = vmul.f32 %v2168, %v855
        %v2215 = vmul.f32 %v2171, %v855
        %v2216 = vmul.f32 %v2174, %v855
        %v2217 = vmul.f32 %v2177, %v855
        %v2218 = vmul.f32 %v2180, %v855
        %v2219 = vmul.f32 %v2183, %v855
        %v2220 = vmul.f32 %v2186, %v855
        %v2221 = vmul.f32 %v2189, %v855
        %v2222 = vsub.f32 %v2060, %v2190
        %v2223 = vsub.f32 %v2061, %v2191
        %v2224 = vsub.f32 %v2062, %v2192
        %v2225 = vsub.f32 %v2063, %v2193
        %v2226 = vsub.f32 %v2064, %v2194
        %v2227 = vsub.f32 %v2065, %v2195
        %v2228 = vsub.f32 %v2066, %v2196
        %v2229 = vsub.f32 %v2067, %v2197
        %v2230 = vsub.f32 %v2068, %v2198
        %v2231 = vsub.f32 %v2069, %v2199
        %v2232 = vsub.f32 %v2070, %v2200
        %v2233 = vsub.f32 %v2071, %v2201
        %v2234 = vsub.f32 %v2072, %v2202
        %v2235 = vsub.f32 %v2073, %v2203
        %v2236 = vsub.f32 %v2074, %v2204
        %v2237 = vsub.f32 %v2075, %v2205
        %v2238 = vsub.f32 %v2076, %v2206
        %v2239 = vsub.f32 %v2077, %v2207
        %v2240 = vsub.f32 %v2078, %v2208
        %v2241 = vsub.f32 %v2079, %v2209
        %v2242 = vsub.f32 %v2080, %v2210
        %v2243 = vsub.f32 %v2081, %v2211
        %v2244 = vsub.f32 %v2082, %v2212
        %v2245 = vsub.f32 %v2083, %v2213
        %v2246 = vsub.f32 %v2084, %v2214
        %v2247 = vsub.f32 %v2085, %v2215
        %v2248 = vsub.f32 %v2086, %v2216
        %v2249 = vsub.f32 %v2087, %v2217
        %v2250 = vsub.f32 %v2088, %v2218
        %v2251 = vsub.f32 %v2089, %v2219
        %v2252 = vsub.f32 %v2090, %v2220
        %v2253 = vsub.f32 %v2091, %v2221
        %v2254 = vmul.f32 %v2222, %v2222
        %v2255 = vmul.f32 %v2223, %v2223
        %v2256 = vmul.f32 %v2224, %v2224
        %v2257 = vmul.f32 %v2225, %v2225
        %v2258 = vmul.f32 %v2226, %v2226
        %v2259 = vmul.f32 %v2227, %v2227
        %v2260 = vmul.f32 %v2228, %v2228
        %v2261 = vmul.f32 %v2229, %v2229
        %v2262 = vmul.f32 %v2230, %v2230
        %v2263 = vmul.f32 %v2231, %v2231
        %v2264 = vmul.f32 %v2232, %v2232
        %v2265 = vmul.f32 %v2233, %v2233
        %v2266 = vmul.f32 %v2234, %v2234
        %v2267 = vmul.f32 %v2235, %v2235
        %v2268 = vmul.f32 %v2236, %v2236
        %v2269 = vmul.f32 %v2237, %v2237
        %v2270 = vmul.f32 %v2238, %v2238
        %v2271 = vmul.f32 %v2239, %v2239
        %v2272 = vmul.f32 %v2240, %v2240
        %v2273 = vmul.f32 %v2241, %v2241
        %v2274 = vmul.f32 %v2242, %v2242
        %v2275 = vmul.f32 %v2243, %v2243
        %v2276 = vmul.f32 %v2244, %v2244
        %v2277 = vmul.f32 %v2245, %v2245
        %v2278 = vmul.f32 %v2246, %v2246
        %v2279 = vmul.f32 %v2247, %v2247
        %v2280 = vmul.f32 %v2248, %v2248
        %v2281 = vmul.f32 %v2249, %v2249
        %v2282 = vmul.f32 %v2250, %v2250
        %v2283 = vmul.f32 %v2251, %v2251
        %v2284 = vmul.f32 %v2252, %v2252
        %v2285 = vmul.f32 %v2253, %v2253
        %v2286 = vsel %vm758, %v2254, 0.0
        %2287 = vadd.xlane.f32.xlu0 %v2286
        %v2288 = vpop.xlane.xlu0 %2287
        %v2289 = vsel %vm758, %v2255, 0.0
        %2290 = vadd.xlane.f32.xlu0 %v2289
        %v2291 = vpop.xlane.xlu0 %2290
        %v2292 = vsel %vm758, %v2256, 0.0
        %2293 = vadd.xlane.f32.xlu0 %v2292
        %v2294 = vpop.xlane.xlu0 %2293
        %v2295 = vsel %vm758, %v2257, 0.0
        %2296 = vadd.xlane.f32.xlu0 %v2295
        %v2297 = vpop.xlane.xlu0 %2296
        %v2298 = vsel %vm758, %v2258, 0.0
        %2299 = vadd.xlane.f32.xlu0 %v2298
        %v2300 = vpop.xlane.xlu0 %2299
        %v2301 = vsel %vm758, %v2259, 0.0
        %2302 = vadd.xlane.f32.xlu0 %v2301
        %v2303 = vpop.xlane.xlu0 %2302
        %v2304 = vsel %vm758, %v2260, 0.0
        %2305 = vadd.xlane.f32.xlu0 %v2304
        %v2306 = vpop.xlane.xlu0 %2305
        %v2307 = vsel %vm758, %v2261, 0.0
        %2308 = vadd.xlane.f32.xlu0 %v2307
        %v2309 = vpop.xlane.xlu0 %2308
        %v2310 = vsel %vm758, %v2262, 0.0
        %2311 = vadd.xlane.f32.xlu0 %v2310
        %v2312 = vpop.xlane.xlu0 %2311
        %v2313 = vsel %vm758, %v2263, 0.0
        %2314 = vadd.xlane.f32.xlu0 %v2313
        %v2315 = vpop.xlane.xlu0 %2314
        %v2316 = vsel %vm758, %v2264, 0.0
        %2317 = vadd.xlane.f32.xlu0 %v2316
        %v2318 = vpop.xlane.xlu0 %2317
        %v2319 = vsel %vm758, %v2265, 0.0
        %2320 = vadd.xlane.f32.xlu0 %v2319
        %v2321 = vpop.xlane.xlu0 %2320
        %v2322 = vsel %vm758, %v2266, 0.0
        %2323 = vadd.xlane.f32.xlu0 %v2322
        %v2324 = vpop.xlane.xlu0 %2323
        %v2325 = vsel %vm758, %v2267, 0.0
        %2326 = vadd.xlane.f32.xlu0 %v2325
        %v2327 = vpop.xlane.xlu0 %2326
        %v2328 = vsel %vm758, %v2268, 0.0
        %2329 = vadd.xlane.f32.xlu0 %v2328
        %v2330 = vpop.xlane.xlu0 %2329
        %v2331 = vsel %vm758, %v2269, 0.0
        %2332 = vadd.xlane.f32.xlu0 %v2331
        %v2333 = vpop.xlane.xlu0 %2332
        %v2334 = vsel %vm758, %v2270, 0.0
        %2335 = vadd.xlane.f32.xlu0 %v2334
        %v2336 = vpop.xlane.xlu0 %2335
        %v2337 = vsel %vm758, %v2271, 0.0
        %2338 = vadd.xlane.f32.xlu0 %v2337
        %v2339 = vpop.xlane.xlu0 %2338
        %v2340 = vsel %vm758, %v2272, 0.0
        %2341 = vadd.xlane.f32.xlu0 %v2340
        %v2342 = vpop.xlane.xlu0 %2341
        %v2343 = vsel %vm758, %v2273, 0.0
        %2344 = vadd.xlane.f32.xlu0 %v2343
        %v2345 = vpop.xlane.xlu0 %2344
        %v2346 = vsel %vm758, %v2274, 0.0
        %2347 = vadd.xlane.f32.xlu0 %v2346
        %v2348 = vpop.xlane.xlu0 %2347
        %v2349 = vsel %vm758, %v2275, 0.0
        %2350 = vadd.xlane.f32.xlu0 %v2349
        %v2351 = vpop.xlane.xlu0 %2350
        %v2352 = vsel %vm758, %v2276, 0.0
        %2353 = vadd.xlane.f32.xlu0 %v2352
        %v2354 = vpop.xlane.xlu0 %2353
        %v2355 = vsel %vm758, %v2277, 0.0
        %2356 = vadd.xlane.f32.xlu0 %v2355
        %v2357 = vpop.xlane.xlu0 %2356
        %v2358 = vsel %vm758, %v2278, 0.0
        %2359 = vadd.xlane.f32.xlu0 %v2358
        %v2360 = vpop.xlane.xlu0 %2359
        %v2361 = vsel %vm758, %v2279, 0.0
        %2362 = vadd.xlane.f32.xlu0 %v2361
        %v2363 = vpop.xlane.xlu0 %2362
        %v2364 = vsel %vm758, %v2280, 0.0
        %2365 = vadd.xlane.f32.xlu0 %v2364
        %v2366 = vpop.xlane.xlu0 %2365
        %v2367 = vsel %vm758, %v2281, 0.0
        %2368 = vadd.xlane.f32.xlu0 %v2367
        %v2369 = vpop.xlane.xlu0 %2368
        %v2370 = vsel %vm758, %v2282, 0.0
        %2371 = vadd.xlane.f32.xlu0 %v2370
        %v2372 = vpop.xlane.xlu0 %2371
        %v2373 = vsel %vm758, %v2283, 0.0
        %2374 = vadd.xlane.f32.xlu0 %v2373
        %v2375 = vpop.xlane.xlu0 %2374
        %v2376 = vsel %vm758, %v2284, 0.0
        %2377 = vadd.xlane.f32.xlu0 %v2376
        %v2378 = vpop.xlane.xlu0 %2377
        %v2379 = vsel %vm758, %v2285, 0.0
        %2380 = vadd.xlane.f32.xlu0 %v2379
        %v2381 = vpop.xlane.xlu0 %2380
        %v2382 = vmul.f32 %v2288, %v855
        %v2383 = vmul.f32 %v2291, %v855
        %v2384 = vmul.f32 %v2294, %v855
        %v2385 = vmul.f32 %v2297, %v855
        %v2386 = vmul.f32 %v2300, %v855
        %v2387 = vmul.f32 %v2303, %v855
        %v2388 = vmul.f32 %v2306, %v855
        %v2389 = vmul.f32 %v2309, %v855
        %v2390 = vmul.f32 %v2312, %v855
        %v2391 = vmul.f32 %v2315, %v855
        %v2392 = vmul.f32 %v2318, %v855
        %v2393 = vmul.f32 %v2321, %v855
        %v2394 = vmul.f32 %v2324, %v855
        %v2395 = vmul.f32 %v2327, %v855
        %v2396 = vmul.f32 %v2330, %v855
        %v2397 = vmul.f32 %v2333, %v855
        %v2398 = vmul.f32 %v2336, %v855
        %v2399 = vmul.f32 %v2339, %v855
        %v2400 = vmul.f32 %v2342, %v855
        %v2401 = vmul.f32 %v2345, %v855
        %v2402 = vmul.f32 %v2348, %v855
        %v2403 = vmul.f32 %v2351, %v855
        %v2404 = vmul.f32 %v2354, %v855
        %v2405 = vmul.f32 %v2357, %v855
        %v2406 = vmul.f32 %v2360, %v855
        %v2407 = vmul.f32 %v2363, %v855
        %v2408 = vmul.f32 %v2366, %v855
        %v2409 = vmul.f32 %v2369, %v855
        %v2410 = vmul.f32 %v2372, %v855
        %v2411 = vmul.f32 %v2375, %v855
        %v2412 = vmul.f32 %v2378, %v855
        %v2413 = vmul.f32 %v2381, %v855
        %v2414 = vadd.f32 %v2382, 1e-06
        %v2415 = vadd.f32 %v2383, 1e-06
        %v2416 = vadd.f32 %v2384, 1e-06
        %v2417 = vadd.f32 %v2385, 1e-06
        %v2418 = vadd.f32 %v2386, 1e-06
        %v2419 = vadd.f32 %v2387, 1e-06
        %v2420 = vadd.f32 %v2388, 1e-06
        %v2421 = vadd.f32 %v2389, 1e-06
        %v2422 = vadd.f32 %v2390, 1e-06
        %v2423 = vadd.f32 %v2391, 1e-06
        %v2424 = vadd.f32 %v2392, 1e-06
        %v2425 = vadd.f32 %v2393, 1e-06
        %v2426 = vadd.f32 %v2394, 1e-06
        %v2427 = vadd.f32 %v2395, 1e-06
        %v2428 = vadd.f32 %v2396, 1e-06
        %v2429 = vadd.f32 %v2397, 1e-06
        %v2430 = vadd.f32 %v2398, 1e-06
        %v2431 = vadd.f32 %v2399, 1e-06
        %v2432 = vadd.f32 %v2400, 1e-06
        %v2433 = vadd.f32 %v2401, 1e-06
        %v2434 = vadd.f32 %v2402, 1e-06
        %v2435 = vadd.f32 %v2403, 1e-06
        %v2436 = vadd.f32 %v2404, 1e-06
        %v2437 = vadd.f32 %v2405, 1e-06
        %v2438 = vadd.f32 %v2406, 1e-06
        %v2439 = vadd.f32 %v2407, 1e-06
        %v2440 = vadd.f32 %v2408, 1e-06
        %v2441 = vadd.f32 %v2409, 1e-06
        %v2442 = vadd.f32 %v2410, 1e-06
        %v2443 = vadd.f32 %v2411, 1e-06
        %v2444 = vadd.f32 %v2412, 1e-06
        %v2445 = vadd.f32 %v2413, 1e-06
        %v2446 = vrsqrt.pop %v2414
        %v2447 = vrsqrt.pop %v2415
        %v2448 = vrsqrt.pop %v2416
        %v2449 = vrsqrt.pop %v2417
        %v2450 = vrsqrt.pop %v2418
        %v2451 = vrsqrt.pop %v2419
        %v2452 = vrsqrt.pop %v2420
        %v2453 = vrsqrt.pop %v2421
        %v2454 = vrsqrt.pop %v2422
        %v2455 = vrsqrt.pop %v2423
        %v2456 = vrsqrt.pop %v2424
        %v2457 = vrsqrt.pop %v2425
        %v2458 = vrsqrt.pop %v2426
        %v2459 = vrsqrt.pop %v2427
        %v2460 = vrsqrt.pop %v2428
        %v2461 = vrsqrt.pop %v2429
        %v2462 = vrsqrt.pop %v2430
        %v2463 = vrsqrt.pop %v2431
        %v2464 = vrsqrt.pop %v2432
        %v2465 = vrsqrt.pop %v2433
        %v2466 = vrsqrt.pop %v2434
        %v2467 = vrsqrt.pop %v2435
        %v2468 = vrsqrt.pop %v2436
        %v2469 = vrsqrt.pop %v2437
        %v2470 = vrsqrt.pop %v2438
        %v2471 = vrsqrt.pop %v2439
        %v2472 = vrsqrt.pop %v2440
        %v2473 = vrsqrt.pop %v2441
        %v2474 = vrsqrt.pop %v2442
        %v2475 = vrsqrt.pop %v2443
        %v2476 = vrsqrt.pop %v2444
        %v2477 = vrsqrt.pop %v2445
        %v2478 = vmul.f32 %v2222, %v2446
        %v2479 = vmul.f32 %v2223, %v2447
        %v2480 = vmul.f32 %v2224, %v2448
        %v2481 = vmul.f32 %v2225, %v2449
        %v2482 = vmul.f32 %v2226, %v2450
        %v2483 = vmul.f32 %v2227, %v2451
        %v2484 = vmul.f32 %v2228, %v2452
        %v2485 = vmul.f32 %v2229, %v2453
        %v2486 = vmul.f32 %v2230, %v2454
        %v2487 = vmul.f32 %v2231, %v2455
        %v2488 = vmul.f32 %v2232, %v2456
        %v2489 = vmul.f32 %v2233, %v2457
        %v2490 = vmul.f32 %v2234, %v2458
        %v2491 = vmul.f32 %v2235, %v2459
        %v2492 = vmul.f32 %v2236, %v2460
        %v2493 = vmul.f32 %v2237, %v2461
        %v2494 = vmul.f32 %v2238, %v2462
        %v2495 = vmul.f32 %v2239, %v2463
        %v2496 = vmul.f32 %v2240, %v2464
        %v2497 = vmul.f32 %v2241, %v2465
        %v2498 = vmul.f32 %v2242, %v2466
        %v2499 = vmul.f32 %v2243, %v2467
        %v2500 = vmul.f32 %v2244, %v2468
        %v2501 = vmul.f32 %v2245, %v2469
        %v2502 = vmul.f32 %v2246, %v2470
        %v2503 = vmul.f32 %v2247, %v2471
        %v2504 = vmul.f32 %v2248, %v2472
        %v2505 = vmul.f32 %v2249, %v2473
        %v2506 = vmul.f32 %v2250, %v2474
        %v2507 = vmul.f32 %v2251, %v2475
        %v2508 = vmul.f32 %v2252, %v2476
        %v2509 = vmul.f32 %v2253, %v2477
        %v2511 = vlaneseq
        %v2512 = vshrl.u32 %v2511, 7
        %v2513 = vsub.s32 0, %v2512
        %v2514 = vrot.slane %v2092, %v2513
        %v2516 = vmul.f32 %v2478, %v2514
        %v2517 = vmul.f32 %v2479, %v2514
        %v2518 = vmul.f32 %v2480, %v2514
        %v2519 = vmul.f32 %v2481, %v2514
        %v2520 = vmul.f32 %v2482, %v2514
        %v2521 = vmul.f32 %v2483, %v2514
        %v2522 = vmul.f32 %v2484, %v2514
        %v2523 = vmul.f32 %v2485, %v2514
        %v2524 = vmul.f32 %v2486, %v2514
        %v2525 = vmul.f32 %v2487, %v2514
        %v2526 = vmul.f32 %v2488, %v2514
        %v2527 = vmul.f32 %v2489, %v2514
        %v2528 = vmul.f32 %v2490, %v2514
        %v2529 = vmul.f32 %v2491, %v2514
        %v2530 = vmul.f32 %v2492, %v2514
        %v2531 = vmul.f32 %v2493, %v2514
        %v2532 = vmul.f32 %v2494, %v2514
        %v2533 = vmul.f32 %v2495, %v2514
        %v2534 = vmul.f32 %v2496, %v2514
        %v2535 = vmul.f32 %v2497, %v2514
        %v2536 = vmul.f32 %v2498, %v2514
        %v2537 = vmul.f32 %v2499, %v2514
        %v2538 = vmul.f32 %v2500, %v2514
        %v2539 = vmul.f32 %v2501, %v2514
        %v2540 = vmul.f32 %v2502, %v2514
        %v2541 = vmul.f32 %v2503, %v2514
        %v2542 = vmul.f32 %v2504, %v2514
        %v2543 = vmul.f32 %v2505, %v2514
        %v2544 = vmul.f32 %v2506, %v2514
        %v2545 = vmul.f32 %v2507, %v2514
        %v2546 = vmul.f32 %v2508, %v2514
        %v2547 = vmul.f32 %v2509, %v2514
        %v2549 = vlaneseq
        %v2550 = vshrl.u32 %v2549, 7
        %v2551 = vsub.s32 0, %v2550
        %v2552 = vrot.slane %v2093, %v2551
        %v2554 = vadd.f32 %v2516, %v2552
        %v2555 = vadd.f32 %v2517, %v2552
        %v2556 = vadd.f32 %v2518, %v2552
        %v2557 = vadd.f32 %v2519, %v2552
        %v2558 = vadd.f32 %v2520, %v2552
        %v2559 = vadd.f32 %v2521, %v2552
        %v2560 = vadd.f32 %v2522, %v2552
        %v2561 = vadd.f32 %v2523, %v2552
        %v2562 = vadd.f32 %v2524, %v2552
        %v2563 = vadd.f32 %v2525, %v2552
        %v2564 = vadd.f32 %v2526, %v2552
        %v2565 = vadd.f32 %v2527, %v2552
        %v2566 = vadd.f32 %v2528, %v2552
        %v2567 = vadd.f32 %v2529, %v2552
        %v2568 = vadd.f32 %v2530, %v2552
        %v2569 = vadd.f32 %v2531, %v2552
        %v2570 = vadd.f32 %v2532, %v2552
        %v2571 = vadd.f32 %v2533, %v2552
        %v2572 = vadd.f32 %v2534, %v2552
        %v2573 = vadd.f32 %v2535, %v2552
        %v2574 = vadd.f32 %v2536, %v2552
        %v2575 = vadd.f32 %v2537, %v2552
        %v2576 = vadd.f32 %v2538, %v2552
        %v2577 = vadd.f32 %v2539, %v2552
        %v2578 = vadd.f32 %v2540, %v2552
        %v2579 = vadd.f32 %v2541, %v2552
        %v2580 = vadd.f32 %v2542, %v2552
        %v2581 = vadd.f32 %v2543, %v2552
        %v2582 = vadd.f32 %v2544, %v2552
        %v2583 = vadd.f32 %v2545, %v2552
        %v2584 = vadd.f32 %v2546, %v2552
        %v2585 = vadd.f32 %v2547, %v2552
        %v2586 = vld [vmem:[%s10] sm:$0xff]
        %v2587 = vld [vmem:[%s10 + $0x8] sm:$0xff]
        %v2588 = vld [vmem:[%s10 + $0x10] sm:$0xff]
        %v2589 = vld [vmem:[%s10 + $0x18] sm:$0xff]
        %v2590 = vld [vmem:[%s11] sm:$0x1]
        %v2592 = vlaneseq
        %v2593 = vshrl.u32 %v2592, 7
        %v2594 = vsub.s32 0, %v2593
        %v2595 = vrot.slane %v2590, %v2594
        %v2598 = vsel %vm758, %v2554, 0
        %v2601 = vsel %vm758, %v2555, 0
        %v2604 = vsel %vm758, %v2556, 0
        %v2607 = vsel %vm758, %v2557, 0
        %v2610 = vsel %vm758, %v2558, 0
        %v2613 = vsel %vm758, %v2559, 0
        %v2616 = vsel %vm758, %v2560, 0
        %v2619 = vsel %vm758, %v2561, 0
        %v2622 = vsel %vm758, %v2562, 0
        %v2625 = vsel %vm758, %v2563, 0
        %v2628 = vsel %vm758, %v2564, 0
        %v2631 = vsel %vm758, %v2565, 0
        %v2634 = vsel %vm758, %v2566, 0
        %v2637 = vsel %vm758, %v2567, 0
        %v2640 = vsel %vm758, %v2568, 0
        %v2643 = vsel %vm758, %v2569, 0
        %v2646 = vsel %vm758, %v2570, 0
        %v2649 = vsel %vm758, %v2571, 0
        %v2652 = vsel %vm758, %v2572, 0
        %v2655 = vsel %vm758, %v2573, 0
        %v2658 = vsel %vm758, %v2574, 0
        %v2661 = vsel %vm758, %v2575, 0
        %v2664 = vsel %vm758, %v2576, 0
        %v2667 = vsel %vm758, %v2577, 0
        %v2670 = vsel %vm758, %v2578, 0
        %v2673 = vsel %vm758, %v2579, 0
        %v2676 = vsel %vm758, %v2580, 0
        %v2679 = vsel %vm758, %v2581, 0
        %v2682 = vsel %vm758, %v2582, 0
        %v2685 = vsel %vm758, %v2583, 0
        %v2688 = vsel %vm758, %v2584, 0
        %v2691 = vsel %vm758, %v2585, 0
        %2693 = vmatprep.subr.mxu0 0.0
        %2694 = vmatpush1.msra.mxu0 %v2586
        %2695 = vmatprep.subr.mxu0 0.0
        %2696 = vmatpush1.msra.mxu0 %v2587
        %2697 = vmatprep.subr.mxu0 0.0
        %2698 = vmatpush1.msra.mxu0 %v2588
        %2699 = vmatprep.subr.mxu0 0.0
        %2700 = vmatpush1.msra.mxu0 %v2589
        %2701 = vmatprep.subr.mxu0 0.0
        %2702 = vmatpush1.msra.mxu0 0.0
        %2703 = vmatprep.subr.mxu0 0.0
        %2704 = vmatpush1.msra.mxu0 0.0
        %2705 = vmatprep.subr.mxu0 0.0
        %2706 = vmatpush1.msra.mxu0 0.0
        %2707 = vmatprep.subr.mxu0 0.0
        %2708 = vmatpush1.msra.mxu0 0.0
        %2709 = vmatprep.subr.mxu0 0.0
        %2710 = vmatpush1.msra.mxu0 0.0
        %2711 = vmatprep.subr.mxu0 0.0
        %2712 = vmatpush1.msra.mxu0 0.0
        %2713 = vmatprep.subr.mxu0 0.0
        %2714 = vmatpush1.msra.mxu0 0.0
        %2715 = vmatprep.subr.mxu0 0.0
        %2716 = vmatpush1.msra.mxu0 0.0
        %2717 = vmatprep.subr.mxu0 0.0
        %2718 = vmatpush1.msra.mxu0 0.0
        %2719 = vmatprep.subr.mxu0 0.0
        %2720 = vmatpush1.msra.mxu0 0.0
        %2721 = vmatprep.subr.mxu0 0.0
        %2722 = vmatpush1.msra.mxu0 0.0
        %2723 = vmatprep.subr.mxu0 0.0
        %2724 = vmatpush1.msra.mxu0 0.0
        %2725 = vmatprep.subr.mxu0 0.0
        %2726 = vmatpush1.msra.mxu0 0.0
        %2727 = vmatprep.subr.mxu0 0.0
        %2728 = vmatpush1.msra.mxu0 0.0
        %2729 = vmatprep.subr.mxu0 0.0
        %2730 = vmatpush1.msra.mxu0 0.0
        %2731 = vmatprep.subr.mxu0 0.0
        %2732 = vmatpush1.msra.mxu0 0.0
        %2733 = vmatprep.subr.mxu0 0.0
        %2734 = vmatpush1.msra.mxu0 0.0
        %2735 = vmatprep.subr.mxu0 0.0
        %2736 = vmatpush1.msra.mxu0 0.0
        %2737 = vmatprep.subr.mxu0 0.0
        %2738 = vmatpush1.msra.mxu0 0.0
        %2739 = vmatprep.subr.mxu0 0.0
        %2740 = vmatpush1.msra.mxu0 0.0
        %2741 = vmatprep.subr.mxu0 0.0
        %2742 = vmatpush1.msra.mxu0 0.0
        %2743 = vmatprep.subr.mxu0 0.0
        %2744 = vmatpush1.msra.mxu0 0.0
        %2745 = vmatprep.subr.mxu0 0.0
        %2746 = vmatpush1.msra.mxu0 0.0
        %2747 = vmatprep.subr.mxu0 0.0
        %2748 = vmatpush1.msra.mxu0 0.0
        %2749 = vmatprep.subr.mxu0 0.0
        %2750 = vmatpush1.msra.mxu0 0.0
        %2751 = vmatprep.subr.mxu0 0.0
        %2752 = vmatpush1.msra.mxu0 0.0
        %2753 = vmatprep.subr.mxu0 0.0
        %2754 = vmatpush1.msra.mxu0 0.0
        %2755 = vmatprep.subr.mxu0 0.0
        %2756 = vmatpush1.msra.mxu0 0.0
        %2757 = vmatprep.mubr.f32.mxu0 0.0
        %2758 = vmatmul.mubr.f32.gmra.mrb[0].mxu0 %v2598
        %v2759 = vpop.f32.mrb[0].mxu0
        %v2760 = vadd.f32 %v2595, %v2759
        %v2761 = vpop.f32.mrb[0].mxu0
        %2762 = vmatprep.mubr.f32.mxu0 0.0
        %2763 = vmatmul.mubr.f32.gmra.mrb[0].mxu0 %v2601
        %v2764 = vpop.f32.mrb[0].mxu0
        %v2765 = vadd.f32 %v2595, %v2764
        %v2766 = vpop.f32.mrb[0].mxu0
        %2767 = vmatprep.mubr.f32.mxu0 0.0
        %2768 = vmatmul.mubr.f32.gmra.mrb[0].mxu0 %v2604
        %v2769 = vpop.f32.mrb[0].mxu0
        %v2770 = vadd.f32 %v2595, %v2769
        %v2771 = vpop.f32.mrb[0].mxu0
        %2772 = vmatprep.mubr.f32.mxu0 0.0
        %2773 = vmatmul.mubr.f32.gmra.mrb[0].mxu0 %v2607
        %v2774 = vpop.f32.mrb[0].mxu0
        %v2775 = vadd.f32 %v2595, %v2774
        %v2776 = vpop.f32.mrb[0].mxu0
        %2777 = vmatprep.mubr.f32.mxu0 0.0
        %2778 = vmatmul.mubr.f32.gmra.mrb[0].mxu0 %v2610
        %v2779 = vpop.f32.mrb[0].mxu0
        %v2780 = vadd.f32 %v2595, %v2779
        %v2781 = vpop.f32.mrb[0].mxu0
        %2782 = vmatprep.mubr.f32.mxu0 0.0
        %2783 = vmatmul.mubr.f32.gmra.mrb[0].mxu0 %v2613
        %v2784 = vpop.f32.mrb[0].mxu0
        %v2785 = vadd.f32 %v2595, %v2784
        %v2786 = vpop.f32.mrb[0].mxu0
        %2787 = vmatprep.mubr.f32.mxu0 0.0
        %2788 = vmatmul.mubr.f32.gmra.mrb[0].mxu0 %v2616
        %v2789 = vpop.f32.mrb[0].mxu0
        %v2790 = vadd.f32 %v2595, %v2789
        %v2791 = vpop.f32.mrb[0].mxu0
        %2792 = vmatprep.mubr.f32.mxu0 0.0
        %2793 = vmatmul.mubr.f32.gmra.mrb[0].mxu0 %v2619
        %v2794 = vpop.f32.mrb[0].mxu0
        %v2795 = vadd.f32 %v2595, %v2794
        %v2796 = vpop.f32.mrb[0].mxu0
        %2797 = vmatprep.mubr.f32.mxu0 0.0
        %2798 = vmatmul.mubr.f32.gmra.mrb[0].mxu0 %v2622
        %v2799 = vpop.f32.mrb[0].mxu0
        %v2800 = vadd.f32 %v2595, %v2799
        %v2801 = vpop.f32.mrb[0].mxu0
        %2802 = vmatprep.mubr.f32.mxu0 0.0
        %2803 = vmatmul.mubr.f32.gmra.mrb[0].mxu0 %v2625
        %v2804 = vpop.f32.mrb[0].mxu0
        %v2805 = vadd.f32 %v2595, %v2804
        %v2806 = vpop.f32.mrb[0].mxu0
        %2807 = vmatprep.mubr.f32.mxu0 0.0
        %2808 = vmatmul.mubr.f32.gmra.mrb[0].mxu0 %v2628
        %v2809 = vpop.f32.mrb[0].mxu0
        %v2810 = vadd.f32 %v2595, %v2809
        %v2811 = vpop.f32.mrb[0].mxu0
        %2812 = vmatprep.mubr.f32.mxu0 0.0
        %2813 = vmatmul.mubr.f32.gmra.mrb[0].mxu0 %v2631
        %v2814 = vpop.f32.mrb[0].mxu0
        %v2815 = vadd.f32 %v2595, %v2814
        %v2816 = vpop.f32.mrb[0].mxu0
        %2817 = vmatprep.mubr.f32.mxu0 0.0
        %2818 = vmatmul.mubr.f32.gmra.mrb[0].mxu0 %v2634
        %v2819 = vpop.f32.mrb[0].mxu0
        %v2820 = vadd.f32 %v2595, %v2819
        %v2821 = vpop.f32.mrb[0].mxu0
        %2822 = vmatprep.mubr.f32.mxu0 0.0
        %2823 = vmatmul.mubr.f32.gmra.mrb[0].mxu0 %v2637
        %v2824 = vpop.f32.mrb[0].mxu0
        %v2825 = vadd.f32 %v2595, %v2824
        %v2826 = vpop.f32.mrb[0].mxu0
        %2827 = vmatprep.mubr.f32.mxu0 0.0
        %2828 = vmatmul.mubr.f32.gmra.mrb[0].mxu0 %v2640
        %v2829 = vpop.f32.mrb[0].mxu0
        %v2830 = vadd.f32 %v2595, %v2829
        %v2831 = vpop.f32.mrb[0].mxu0
        %2832 = vmatprep.mubr.f32.mxu0 0.0
        %2833 = vmatmul.mubr.f32.gmra.mrb[0].mxu0 %v2643
        %v2834 = vpop.f32.mrb[0].mxu0
        %v2835 = vadd.f32 %v2595, %v2834
        %v2836 = vpop.f32.mrb[0].mxu0
        %2837 = vmatprep.mubr.f32.mxu0 0.0
        %2838 = vmatmul.mubr.f32.gmra.mrb[0].mxu0 %v2646
        %v2839 = vpop.f32.mrb[0].mxu0
        %v2840 = vadd.f32 %v2595, %v2839
        %v2841 = vpop.f32.mrb[0].mxu0
        %2842 = vmatprep.mubr.f32.mxu0 0.0
        %2843 = vmatmul.mubr.f32.gmra.mrb[0].mxu0 %v2649
        %v2844 = vpop.f32.mrb[0].mxu0
        %v2845 = vadd.f32 %v2595, %v2844
        %v2846 = vpop.f32.mrb[0].mxu0
        %2847 = vmatprep.mubr.f32.mxu0 0.0
        %2848 = vmatmul.mubr.f32.gmra.mrb[0].mxu0 %v2652
        %v2849 = vpop.f32.mrb[0].mxu0
        %v2850 = vadd.f32 %v2595, %v2849
        %v2851 = vpop.f32.mrb[0].mxu0
        %2852 = vmatprep.mubr.f32.mxu0 0.0
        %2853 = vmatmul.mubr.f32.gmra.mrb[0].mxu0 %v2655
        %v2854 = vpop.f32.mrb[0].mxu0
        %v2855 = vadd.f32 %v2595, %v2854
        %v2856 = vpop.f32.mrb[0].mxu0
        %2857 = vmatprep.mubr.f32.mxu0 0.0
        %2858 = vmatmul.mubr.f32.gmra.mrb[0].mxu0 %v2658
        %v2859 = vpop.f32.mrb[0].mxu0
        %v2860 = vadd.f32 %v2595, %v2859
        %v2861 = vpop.f32.mrb[0].mxu0
        %2862 = vmatprep.mubr.f32.mxu0 0.0
        %2863 = vmatmul.mubr.f32.gmra.mrb[0].mxu0 %v2661
        %v2864 = vpop.f32.mrb[0].mxu0
        %v2865 = vadd.f32 %v2595, %v2864
        %v2866 = vpop.f32.mrb[0].mxu0
        %2867 = vmatprep.mubr.f32.mxu0 0.0
        %2868 = vmatmul.mubr.f32.gmra.mrb[0].mxu0 %v2664
        %v2869 = vpop.f32.mrb[0].mxu0
        %v2870 = vadd.f32 %v2595, %v2869
        %v2871 = vpop.f32.mrb[0].mxu0
        %2872 = vmatprep.mubr.f32.mxu0 0.0
        %2873 = vmatmul.mubr.f32.gmra.mrb[0].mxu0 %v2667
        %v2874 = vpop.f32.mrb[0].mxu0
        %v2875 = vadd.f32 %v2595, %v2874
        %v2876 = vpop.f32.mrb[0].mxu0
        %2877 = vmatprep.mubr.f32.mxu0 0.0
        %2878 = vmatmul.mubr.f32.gmra.mrb[0].mxu0 %v2670
        %v2879 = vpop.f32.mrb[0].mxu0
        %v2880 = vadd.f32 %v2595, %v2879
        %v2881 = vpop.f32.mrb[0].mxu0
        %2882 = vmatprep.mubr.f32.mxu0 0.0
        %2883 = vmatmul.mubr.f32.gmra.mrb[0].mxu0 %v2673
        %v2884 = vpop.f32.mrb[0].mxu0
        %v2885 = vadd.f32 %v2595, %v2884
        %v2886 = vpop.f32.mrb[0].mxu0
        %2887 = vmatprep.mubr.f32.mxu0 0.0
        %2888 = vmatmul.mubr.f32.gmra.mrb[0].mxu0 %v2676
        %v2889 = vpop.f32.mrb[0].mxu0
        %v2890 = vadd.f32 %v2595, %v2889
        %v2891 = vpop.f32.mrb[0].mxu0
        %2892 = vmatprep.mubr.f32.mxu0 0.0
        %2893 = vmatmul.mubr.f32.gmra.mrb[0].mxu0 %v2679
        %v2894 = vpop.f32.mrb[0].mxu0
        %v2895 = vadd.f32 %v2595, %v2894
        %v2896 = vpop.f32.mrb[0].mxu0
        %2897 = vmatprep.mubr.f32.mxu0 0.0
        %2898 = vmatmul.mubr.f32.gmra.mrb[0].mxu0 %v2682
        %v2899 = vpop.f32.mrb[0].mxu0
        %v2900 = vadd.f32 %v2595, %v2899
        %v2901 = vpop.f32.mrb[0].mxu0
        %2902 = vmatprep.mubr.f32.mxu0 0.0
        %2903 = vmatmul.mubr.f32.gmra.mrb[0].mxu0 %v2685
        %v2904 = vpop.f32.mrb[0].mxu0
        %v2905 = vadd.f32 %v2595, %v2904
        %v2906 = vpop.f32.mrb[0].mxu0
        %2907 = vmatprep.mubr.f32.mxu0 0.0
        %2908 = vmatmul.mubr.f32.gmra.mrb[0].mxu0 %v2688
        %v2909 = vpop.f32.mrb[0].mxu0
        %v2910 = vadd.f32 %v2595, %v2909
        %v2911 = vpop.f32.mrb[0].mxu0
        %2912 = vmatprep.mubr.f32.mxu0 0.0
        %2913 = vmatmul.mubr.f32.gmra.mrb[0].mxu0 %v2691
        %v2914 = vpop.f32.mrb[0].mxu0
        %v2915 = vadd.f32 %v2595, %v2914
        %v2916 = vpop.f32.mrb[0].mxu0
        %2917 = vdwg.mxu0
        %v2918 = vmul.f32 %v2760, 0.5
        %v2919 = vmul.f32 %v2765, 0.5
        %v2920 = vmul.f32 %v2770, 0.5
        %v2921 = vmul.f32 %v2775, 0.5
        %v2922 = vmul.f32 %v2780, 0.5
        %v2923 = vmul.f32 %v2785, 0.5
        %v2924 = vmul.f32 %v2790, 0.5
        %v2925 = vmul.f32 %v2795, 0.5
        %v2926 = vmul.f32 %v2800, 0.5
        %v2927 = vmul.f32 %v2805, 0.5
        %v2928 = vmul.f32 %v2810, 0.5
        %v2929 = vmul.f32 %v2815, 0.5
        %v2930 = vmul.f32 %v2820, 0.5
        %v2931 = vmul.f32 %v2825, 0.5
        %v2932 = vmul.f32 %v2830, 0.5
        %v2933 = vmul.f32 %v2835, 0.5
        %v2934 = vmul.f32 %v2840, 0.5
        %v2935 = vmul.f32 %v2845, 0.5
        %v2936 = vmul.f32 %v2850, 0.5
        %v2937 = vmul.f32 %v2855, 0.5
        %v2938 = vmul.f32 %v2860, 0.5
        %v2939 = vmul.f32 %v2865, 0.5
        %v2940 = vmul.f32 %v2870, 0.5
        %v2941 = vmul.f32 %v2875, 0.5
        %v2942 = vmul.f32 %v2880, 0.5
        %v2943 = vmul.f32 %v2885, 0.5
        %v2944 = vmul.f32 %v2890, 0.5
        %v2945 = vmul.f32 %v2895, 0.5
        %v2946 = vmul.f32 %v2900, 0.5
        %v2947 = vmul.f32 %v2905, 0.5
        %v2948 = vmul.f32 %v2910, 0.5
        %v2949 = vmul.f32 %v2915, 0.5
        %v2950 = vmul.f32 %v2760, 0.70710677
        %v2951 = vmul.f32 %v2765, 0.70710677
        %v2952 = vmul.f32 %v2770, 0.70710677
        %v2953 = vmul.f32 %v2775, 0.70710677
        %v2954 = vmul.f32 %v2780, 0.70710677
        %v2955 = vmul.f32 %v2785, 0.70710677
        %v2956 = vmul.f32 %v2790, 0.70710677
        %v2957 = vmul.f32 %v2795, 0.70710677
        %v2958 = vmul.f32 %v2800, 0.70710677
        %v2959 = vmul.f32 %v2805, 0.70710677
        %v2960 = vmul.f32 %v2810, 0.70710677
        %v2961 = vmul.f32 %v2815, 0.70710677
        %v2962 = vmul.f32 %v2820, 0.70710677
        %v2963 = vmul.f32 %v2825, 0.70710677
        %v2964 = vmul.f32 %v2830, 0.70710677
        %v2965 = vmul.f32 %v2835, 0.70710677
        %v2966 = vmul.f32 %v2840, 0.70710677
        %v2967 = vmul.f32 %v2845, 0.70710677
        %v2968 = vmul.f32 %v2850, 0.70710677
        %v2969 = vmul.f32 %v2855, 0.70710677
        %v2970 = vmul.f32 %v2860, 0.70710677
        %v2971 = vmul.f32 %v2865, 0.70710677
        %v2972 = vmul.f32 %v2870, 0.70710677
        %v2973 = vmul.f32 %v2875, 0.70710677
        %v2974 = vmul.f32 %v2880, 0.70710677
        %v2975 = vmul.f32 %v2885, 0.70710677
        %v2976 = vmul.f32 %v2890, 0.70710677
        %v2977 = vmul.f32 %v2895, 0.70710677
        %v2978 = vmul.f32 %v2900, 0.70710677
        %v2979 = vmul.f32 %v2905, 0.70710677
        %v2980 = vmul.f32 %v2910, 0.70710677
        %v2981 = vmul.f32 %v2915, 0.70710677
        %v2982 = verf.f32.pop %v2950
        %v2983 = verf.f32.pop %v2951
        %v2984 = verf.f32.pop %v2952
        %v2985 = verf.f32.pop %v2953
        %v2986 = verf.f32.pop %v2954
        %v2987 = verf.f32.pop %v2955
        %v2988 = verf.f32.pop %v2956
        %v2989 = verf.f32.pop %v2957
        %v2990 = verf.f32.pop %v2958
        %v2991 = verf.f32.pop %v2959
        %v2992 = verf.f32.pop %v2960
        %v2993 = verf.f32.pop %v2961
        %v2994 = verf.f32.pop %v2962
        %v2995 = verf.f32.pop %v2963
        %v2996 = verf.f32.pop %v2964
        %v2997 = verf.f32.pop %v2965
        %v2998 = verf.f32.pop %v2966
        %v2999 = verf.f32.pop %v2967
        %v3000 = verf.f32.pop %v2968
        %v3001 = verf.f32.pop %v2969
        %v3002 = verf.f32.pop %v2970
        %v3003 = verf.f32.pop %v2971
        %v3004 = verf.f32.pop %v2972
        %v3005 = verf.f32.pop %v2973
        %v3006 = verf.f32.pop %v2974
        %v3007 = verf.f32.pop %v2975
        %v3008 = verf.f32.pop %v2976
        %v3009 = verf.f32.pop %v2977
        %v3010 = verf.f32.pop %v2978
        %v3011 = verf.f32.pop %v2979
        %v3012 = verf.f32.pop %v2980
        %v3013 = verf.f32.pop %v2981
        %v3014 = vadd.f32 %v2982, 1.0
        %v3015 = vadd.f32 %v2983, 1.0
        %v3016 = vadd.f32 %v2984, 1.0
        %v3017 = vadd.f32 %v2985, 1.0
        %v3018 = vadd.f32 %v2986, 1.0
        %v3019 = vadd.f32 %v2987, 1.0
        %v3020 = vadd.f32 %v2988, 1.0
        %v3021 = vadd.f32 %v2989, 1.0
        %v3022 = vadd.f32 %v2990, 1.0
        %v3023 = vadd.f32 %v2991, 1.0
        %v3024 = vadd.f32 %v2992, 1.0
        %v3025 = vadd.f32 %v2993, 1.0
        %v3026 = vadd.f32 %v2994, 1.0
        %v3027 = vadd.f32 %v2995, 1.0
        %v3028 = vadd.f32 %v2996, 1.0
        %v3029 = vadd.f32 %v2997, 1.0
        %v3030 = vadd.f32 %v2998, 1.0
        %v3031 = vadd.f32 %v2999, 1.0
        %v3032 = vadd.f32 %v3000, 1.0
        %v3033 = vadd.f32 %v3001, 1.0
        %v3034 = vadd.f32 %v3002, 1.0
        %v3035 = vadd.f32 %v3003, 1.0
        %v3036 = vadd.f32 %v3004, 1.0
        %v3037 = vadd.f32 %v3005, 1.0
        %v3038 = vadd.f32 %v3006, 1.0
        %v3039 = vadd.f32 %v3007, 1.0
        %v3040 = vadd.f32 %v3008, 1.0
        %v3041 = vadd.f32 %v3009, 1.0
        %v3042 = vadd.f32 %v3010, 1.0
        %v3043 = vadd.f32 %v3011, 1.0
        %v3044 = vadd.f32 %v3012, 1.0
        %v3045 = vadd.f32 %v3013, 1.0
        %v3046 = vmul.f32 %v2918, %v3014
        %v3047 = vmul.f32 %v2919, %v3015
        %v3048 = vmul.f32 %v2920, %v3016
        %v3049 = vmul.f32 %v2921, %v3017
        %v3050 = vmul.f32 %v2922, %v3018
        %v3051 = vmul.f32 %v2923, %v3019
        %v3052 = vmul.f32 %v2924, %v3020
        %v3053 = vmul.f32 %v2925, %v3021
        %v3054 = vmul.f32 %v2926, %v3022
        %v3055 = vmul.f32 %v2927, %v3023
        %v3056 = vmul.f32 %v2928, %v3024
        %v3057 = vmul.f32 %v2929, %v3025
        %v3058 = vmul.f32 %v2930, %v3026
        %v3059 = vmul.f32 %v2931, %v3027
        %v3060 = vmul.f32 %v2932, %v3028
        %v3061 = vmul.f32 %v2933, %v3029
        %v3062 = vmul.f32 %v2934, %v3030
        %v3063 = vmul.f32 %v2935, %v3031
        %v3064 = vmul.f32 %v2936, %v3032
        %v3065 = vmul.f32 %v2937, %v3033
        %v3066 = vmul.f32 %v2938, %v3034
        %v3067 = vmul.f32 %v2939, %v3035
        %v3068 = vmul.f32 %v2940, %v3036
        %v3069 = vmul.f32 %v2941, %v3037
        %v3070 = vmul.f32 %v2942, %v3038
        %v3071 = vmul.f32 %v2943, %v3039
        %v3072 = vmul.f32 %v2944, %v3040
        %v3073 = vmul.f32 %v2945, %v3041
        %v3074 = vmul.f32 %v2946, %v3042
        %v3075 = vmul.f32 %v2947, %v3043
        %v3076 = vmul.f32 %v2948, %v3044
        %v3077 = vmul.f32 %v2949, %v3045
        %v3078 = vld [vmem:[%s12] sm:$0xff]
        %v3079 = vld [vmem:[%s12 + $0x8] sm:$0xff]
        %v3080 = vld [vmem:[%s12 + $0x10] sm:$0xff]
        %v3081 = vld [vmem:[%s12 + $0x18] sm:$0xff]
        %v3082 = vld [vmem:[%s13] sm:$0x1]
        %v3084 = vlaneseq
        %v3085 = vshrl.u32 %v3084, 7
        %v3086 = vsub.s32 0, %v3085
        %v3087 = vrot.slane %v3082, %v3086
        %v3090 = vsel %vm758, %v3046, 0
        %v3093 = vsel %vm758, %v3047, 0
        %v3096 = vsel %vm758, %v3048, 0
        %v3099 = vsel %vm758, %v3049, 0
        %v3102 = vsel %vm758, %v3050, 0
        %v3105 = vsel %vm758, %v3051, 0
        %v3108 = vsel %vm758, %v3052, 0
        %v3111 = vsel %vm758, %v3053, 0
        %v3114 = vsel %vm758, %v3054, 0
        %v3117 = vsel %vm758, %v3055, 0
        %v3120 = vsel %vm758, %v3056, 0
        %v3123 = vsel %vm758, %v3057, 0
        %v3126 = vsel %vm758, %v3058, 0
        %v3129 = vsel %vm758, %v3059, 0
        %v3132 = vsel %vm758, %v3060, 0
        %v3135 = vsel %vm758, %v3061, 0
        %v3138 = vsel %vm758, %v3062, 0
        %v3141 = vsel %vm758, %v3063, 0
        %v3144 = vsel %vm758, %v3064, 0
        %v3147 = vsel %vm758, %v3065, 0
        %v3150 = vsel %vm758, %v3066, 0
        %v3153 = vsel %vm758, %v3067, 0
        %v3156 = vsel %vm758, %v3068, 0
        %v3159 = vsel %vm758, %v3069, 0
        %v3162 = vsel %vm758, %v3070, 0
        %v3165 = vsel %vm758, %v3071, 0
        %v3168 = vsel %vm758, %v3072, 0
        %v3171 = vsel %vm758, %v3073, 0
        %v3174 = vsel %vm758, %v3074, 0
        %v3177 = vsel %vm758, %v3075, 0
        %v3180 = vsel %vm758, %v3076, 0
        %v3183 = vsel %vm758, %v3077, 0
        %3185 = vmatprep.subr.mxu0 0.0
        %3186 = vmatpush1.msra.mxu0 %v3078
        %3187 = vmatprep.subr.mxu0 0.0
        %3188 = vmatpush1.msra.mxu0 %v3079
        %3189 = vmatprep.subr.mxu0 0.0
        %3190 = vmatpush1.msra.mxu0 %v3080
        %3191 = vmatprep.subr.mxu0 0.0
        %3192 = vmatpush1.msra.mxu0 %v3081
        %3193 = vmatprep.subr.mxu0 0.0
        %3194 = vmatpush1.msra.mxu0 0.0
        %3195 = vmatprep.subr.mxu0 0.0
        %3196 = vmatpush1.msra.mxu0 0.0
        %3197 = vmatprep.subr.mxu0 0.0
        %3198 = vmatpush1.msra.mxu0 0.0
        %3199 = vmatprep.subr.mxu0 0.0
        %3200 = vmatpush1.msra.mxu0 0.0
        %3201 = vmatprep.subr.mxu0 0.0
        %3202 = vmatpush1.msra.mxu0 0.0
        %3203 = vmatprep.subr.mxu0 0.0
        %3204 = vmatpush1.msra.mxu0 0.0
        %3205 = vmatprep.subr.mxu0 0.0
        %3206 = vmatpush1.msra.mxu0 0.0
        %3207 = vmatprep.subr.mxu0 0.0
        %3208 = vmatpush1.msra.mxu0 0.0
        %3209 = vmatprep.subr.mxu0 0.0
        %3210 = vmatpush1.msra.mxu0 0.0
        %3211 = vmatprep.subr.mxu0 0.0
        %3212 = vmatpush1.msra.mxu0 0.0
        %3213 = vmatprep.subr.mxu0 0.0
        %3214 = vmatpush1.msra.mxu0 0.0
        %3215 = vmatprep.subr.mxu0 0.0
        %3216 = vmatpush1.msra.mxu0 0.0
        %3217 = vmatprep.subr.mxu0 0.0
        %3218 = vmatpush1.msra.mxu0 0.0
        %3219 = vmatprep.subr.mxu0 0.0
        %3220 = vmatpush1.msra.mxu0 0.0
        %3221 = vmatprep.subr.mxu0 0.0
        %3222 = vmatpush1.msra.mxu0 0.0
        %3223 = vmatprep.subr.mxu0 0.0
        %3224 = vmatpush1.msra.mxu0 0.0
        %3225 = vmatprep.subr.mxu0 0.0
        %3226 = vmatpush1.msra.mxu0 0.0
        %3227 = vmatprep.subr.mxu0 0.0
        %3228 = vmatpush1.msra.mxu0 0.0
        %3229 = vmatprep.subr.mxu0 0.0
        %3230 = vmatpush1.msra.mxu0 0.0
        %3231 = vmatprep.subr.mxu0 0.0
        %3232 = vmatpush1.msra.mxu0 0.0
        %3233 = vmatprep.subr.mxu0 0.0
        %3234 = vmatpush1.msra.mxu0 0.0
        %3235 = vmatprep.subr.mxu0 0.0
        %3236 = vmatpush1.msra.mxu0 0.0
        %3237 = vmatprep.subr.mxu0 0.0
        %3238 = vmatpush1.msra.mxu0 0.0
        %3239 = vmatprep.subr.mxu0 0.0
        %3240 = vmatpush1.msra.mxu0 0.0
        %3241 = vmatprep.subr.mxu0 0.0
        %3242 = vmatpush1.msra.mxu0 0.0
        %3243 = vmatprep.subr.mxu0 0.0
        %3244 = vmatpush1.msra.mxu0 0.0
        %3245 = vmatprep.subr.mxu0 0.0
        %3246 = vmatpush1.msra.mxu0 0.0
        %3247 = vmatprep.subr.mxu0 0.0
        %3248 = vmatpush1.msra.mxu0 0.0
        %3249 = vmatprep.mubr.f32.mxu0 0.0
        %3250 = vmatmul.mubr.f32.gmra.mrb[0].mxu0 %v3090
        %v3251 = vpop.f32.mrb[0].mxu0
        %v3252 = vadd.f32 %v3087, %v3251
        %v3253 = vpop.f32.mrb[0].mxu0
        %3254 = vmatprep.mubr.f32.mxu0 0.0
        %3255 = vmatmul.mubr.f32.gmra.mrb[0].mxu0 %v3093
        %v3256 = vpop.f32.mrb[0].mxu0
        %v3257 = vadd.f32 %v3087, %v3256
        %v3258 = vpop.f32.mrb[0].mxu0
        %3259 = vmatprep.mubr.f32.mxu0 0.0
        %3260 = vmatmul.mubr.f32.gmra.mrb[0].mxu0 %v3096
        %v3261 = vpop.f32.mrb[0].mxu0
        %v3262 = vadd.f32 %v3087, %v3261
        %v3263 = vpop.f32.mrb[0].mxu0
        %3264 = vmatprep.mubr.f32.mxu0 0.0
        %3265 = vmatmul.mubr.f32.gmra.mrb[0].mxu0 %v3099
        %v3266 = vpop.f32.mrb[0].mxu0
        %v3267 = vadd.f32 %v3087, %v3266
        %v3268 = vpop.f32.mrb[0].mxu0
        %3269 = vmatprep.mubr.f32.mxu0 0.0
        %3270 = vmatmul.mubr.f32.gmra.mrb[0].mxu0 %v3102
        %v3271 = vpop.f32.mrb[0].mxu0
        %v3272 = vadd.f32 %v3087, %v3271
        %v3273 = vpop.f32.mrb[0].mxu0
        %3274 = vmatprep.mubr.f32.mxu0 0.0
        %3275 = vmatmul.mubr.f32.gmra.mrb[0].mxu0 %v3105
        %v3276 = vpop.f32.mrb[0].mxu0
        %v3277 = vadd.f32 %v3087, %v3276
        %v3278 = vpop.f32.mrb[0].mxu0
        %3279 = vmatprep.mubr.f32.mxu0 0.0
        %3280 = vmatmul.mubr.f32.gmra.mrb[0].mxu0 %v3108
        %v3281 = vpop.f32.mrb[0].mxu0
        %v3282 = vadd.f32 %v3087, %v3281
        %v3283 = vpop.f32.mrb[0].mxu0
        %3284 = vmatprep.mubr.f32.mxu0 0.0
        %3285 = vmatmul.mubr.f32.gmra.mrb[0].mxu0 %v3111
        %v3286 = vpop.f32.mrb[0].mxu0
        %v3287 = vadd.f32 %v3087, %v3286
        %v3288 = vpop.f32.mrb[0].mxu0
        %3289 = vmatprep.mubr.f32.mxu0 0.0
        %3290 = vmatmul.mubr.f32.gmra.mrb[0].mxu0 %v3114
        %v3291 = vpop.f32.mrb[0].mxu0
        %v3292 = vadd.f32 %v3087, %v3291
        %v3293 = vpop.f32.mrb[0].mxu0
        %3294 = vmatprep.mubr.f32.mxu0 0.0
        %3295 = vmatmul.mubr.f32.gmra.mrb[0].mxu0 %v3117
        %v3296 = vpop.f32.mrb[0].mxu0
        %v3297 = vadd.f32 %v3087, %v3296
        %v3298 = vpop.f32.mrb[0].mxu0
        %3299 = vmatprep.mubr.f32.mxu0 0.0
        %3300 = vmatmul.mubr.f32.gmra.mrb[0].mxu0 %v3120
        %v3301 = vpop.f32.mrb[0].mxu0
        %v3302 = vadd.f32 %v3087, %v3301
        %v3303 = vpop.f32.mrb[0].mxu0
        %3304 = vmatprep.mubr.f32.mxu0 0.0
        %3305 = vmatmul.mubr.f32.gmra.mrb[0].mxu0 %v3123
        %v3306 = vpop.f32.mrb[0].mxu0
        %v3307 = vadd.f32 %v3087, %v3306
        %v3308 = vpop.f32.mrb[0].mxu0
        %3309 = vmatprep.mubr.f32.mxu0 0.0
        %3310 = vmatmul.mubr.f32.gmra.mrb[0].mxu0 %v3126
        %v3311 = vpop.f32.mrb[0].mxu0
        %v3312 = vadd.f32 %v3087, %v3311
        %v3313 = vpop.f32.mrb[0].mxu0
        %3314 = vmatprep.mubr.f32.mxu0 0.0
        %3315 = vmatmul.mubr.f32.gmra.mrb[0].mxu0 %v3129
        %v3316 = vpop.f32.mrb[0].mxu0
        %v3317 = vadd.f32 %v3087, %v3316
        %v3318 = vpop.f32.mrb[0].mxu0
        %3319 = vmatprep.mubr.f32.mxu0 0.0
        %3320 = vmatmul.mubr.f32.gmra.mrb[0].mxu0 %v3132
        %v3321 = vpop.f32.mrb[0].mxu0
        %v3322 = vadd.f32 %v3087, %v3321
        %v3323 = vpop.f32.mrb[0].mxu0
        %3324 = vmatprep.mubr.f32.mxu0 0.0
        %3325 = vmatmul.mubr.f32.gmra.mrb[0].mxu0 %v3135
        %v3326 = vpop.f32.mrb[0].mxu0
        %v3327 = vadd.f32 %v3087, %v3326
        %v3328 = vpop.f32.mrb[0].mxu0
        %3329 = vmatprep.mubr.f32.mxu0 0.0
        %3330 = vmatmul.mubr.f32.gmra.mrb[0].mxu0 %v3138
        %v3331 = vpop.f32.mrb[0].mxu0
        %v3332 = vadd.f32 %v3087, %v3331
        %v3333 = vpop.f32.mrb[0].mxu0
        %3334 = vmatprep.mubr.f32.mxu0 0.0
        %3335 = vmatmul.mubr.f32.gmra.mrb[0].mxu0 %v3141
        %v3336 = vpop.f32.mrb[0].mxu0
        %v3337 = vadd.f32 %v3087, %v3336
        %v3338 = vpop.f32.mrb[0].mxu0
        %3339 = vmatprep.mubr.f32.mxu0 0.0
        %3340 = vmatmul.mubr.f32.gmra.mrb[0].mxu0 %v3144
        %v3341 = vpop.f32.mrb[0].mxu0
        %v3342 = vadd.f32 %v3087, %v3341
        %v3343 = vpop.f32.mrb[0].mxu0
        %3344 = vmatprep.mubr.f32.mxu0 0.0
        %3345 = vmatmul.mubr.f32.gmra.mrb[0].mxu0 %v3147
        %v3346 = vpop.f32.mrb[0].mxu0
        %v3347 = vadd.f32 %v3087, %v3346
        %v3348 = vpop.f32.mrb[0].mxu0
        %3349 = vmatprep.mubr.f32.mxu0 0.0
        %3350 = vmatmul.mubr.f32.gmra.mrb[0].mxu0 %v3150
        %v3351 = vpop.f32.mrb[0].mxu0
        %v3352 = vadd.f32 %v3087, %v3351
        %v3353 = vpop.f32.mrb[0].mxu0
        %3354 = vmatprep.mubr.f32.mxu0 0.0
        %3355 = vmatmul.mubr.f32.gmra.mrb[0].mxu0 %v3153
        %v3356 = vpop.f32.mrb[0].mxu0
        %v3357 = vadd.f32 %v3087, %v3356
        %v3358 = vpop.f32.mrb[0].mxu0
        %3359 = vmatprep.mubr.f32.mxu0 0.0
        %3360 = vmatmul.mubr.f32.gmra.mrb[0].mxu0 %v3156
        %v3361 = vpop.f32.mrb[0].mxu0
        %v3362 = vadd.f32 %v3087, %v3361
        %v3363 = vpop.f32.mrb[0].mxu0
        %3364 = vmatprep.mubr.f32.mxu0 0.0
        %3365 = vmatmul.mubr.f32.gmra.mrb[0].mxu0 %v3159
        %v3366 = vpop.f32.mrb[0].mxu0
        %v3367 = vadd.f32 %v3087, %v3366
        %v3368 = vpop.f32.mrb[0].mxu0
        %3369 = vmatprep.mubr.f32.mxu0 0.0
        %3370 = vmatmul.mubr.f32.gmra.mrb[0].mxu0 %v3162
        %v3371 = vpop.f32.mrb[0].mxu0
        %v3372 = vadd.f32 %v3087, %v3371
        %v3373 = vpop.f32.mrb[0].mxu0
        %3374 = vmatprep.mubr.f32.mxu0 0.0
        %3375 = vmatmul.mubr.f32.gmra.mrb[0].mxu0 %v3165
        %v3376 = vpop.f32.mrb[0].mxu0
        %v3377 = vadd.f32 %v3087, %v3376
        %v3378 = vpop.f32.mrb[0].mxu0
        %3379 = vmatprep.mubr.f32.mxu0 0.0
        %3380 = vmatmul.mubr.f32.gmra.mrb[0].mxu0 %v3168
        %v3381 = vpop.f32.mrb[0].mxu0
        %v3382 = vadd.f32 %v3087, %v3381
        %v3383 = vpop.f32.mrb[0].mxu0
        %3384 = vmatprep.mubr.f32.mxu0 0.0
        %3385 = vmatmul.mubr.f32.gmra.mrb[0].mxu0 %v3171
        %v3386 = vpop.f32.mrb[0].mxu0
        %v3387 = vadd.f32 %v3087, %v3386
        %v3388 = vpop.f32.mrb[0].mxu0
        %3389 = vmatprep.mubr.f32.mxu0 0.0
        %3390 = vmatmul.mubr.f32.gmra.mrb[0].mxu0 %v3174
        %v3391 = vpop.f32.mrb[0].mxu0
        %v3392 = vadd.f32 %v3087, %v3391
        %v3393 = vpop.f32.mrb[0].mxu0
        %3394 = vmatprep.mubr.f32.mxu0 0.0
        %3395 = vmatmul.mubr.f32.gmra.mrb[0].mxu0 %v3177
        %v3396 = vpop.f32.mrb[0].mxu0
        %v3397 = vadd.f32 %v3087, %v3396
        %v3398 = vpop.f32.mrb[0].mxu0
        %3399 = vmatprep.mubr.f32.mxu0 0.0
        %3400 = vmatmul.mubr.f32.gmra.mrb[0].mxu0 %v3180
        %v3401 = vpop.f32.mrb[0].mxu0
        %v3402 = vadd.f32 %v3087, %v3401
        %v3403 = vpop.f32.mrb[0].mxu0
        %3404 = vmatprep.mubr.f32.mxu0 0.0
        %3405 = vmatmul.mubr.f32.gmra.mrb[0].mxu0 %v3183
        %v3406 = vpop.f32.mrb[0].mxu0
        %v3407 = vadd.f32 %v3087, %v3406
        %v3408 = vpop.f32.mrb[0].mxu0
        %3409 = vdwg.mxu0
        %s3410 = sld [smem:[#allocation2 + $0x4]]
        %v3411 = vstv %s3410
        %v3412 = vmul.f32 %v3411, %v2060
        %v3413 = vmul.f32 %v3411, %v2061
        %v3414 = vmul.f32 %v3411, %v2062
        %v3415 = vmul.f32 %v3411, %v2063
        %v3416 = vmul.f32 %v3411, %v2064
        %v3417 = vmul.f32 %v3411, %v2065
        %v3418 = vmul.f32 %v3411, %v2066
        %v3419 = vmul.f32 %v3411, %v2067
        %v3420 = vmul.f32 %v3411, %v2068
        %v3421 = vmul.f32 %v3411, %v2069
        %v3422 = vmul.f32 %v3411, %v2070
        %v3423 = vmul.f32 %v3411, %v2071
        %v3424 = vmul.f32 %v3411, %v2072
        %v3425 = vmul.f32 %v3411, %v2073
        %v3426 = vmul.f32 %v3411, %v2074
        %v3427 = vmul.f32 %v3411, %v2075
        %v3428 = vmul.f32 %v3411, %v2076
        %v3429 = vmul.f32 %v3411, %v2077
        %v3430 = vmul.f32 %v3411, %v2078
        %v3431 = vmul.f32 %v3411, %v2079
        %v3432 = vmul.f32 %v3411, %v2080
        %v3433 = vmul.f32 %v3411, %v2081
        %v3434 = vmul.f32 %v3411, %v2082
        %v3435 = vmul.f32 %v3411, %v2083
        %v3436 = vmul.f32 %v3411, %v2084
        %v3437 = vmul.f32 %v3411, %v2085
        %v3438 = vmul.f32 %v3411, %v2086
        %v3439 = vmul.f32 %v3411, %v2087
        %v3440 = vmul.f32 %v3411, %v2088
        %v3441 = vmul.f32 %v3411, %v2089
        %v3442 = vmul.f32 %v3411, %v2090
        %v3443 = vmul.f32 %v3411, %v2091
        %s3444 = sld [smem:[#allocation2 + $0x5]]
        %v3445 = vstv %s3444
        %v3446 = vmul.f32 %v3445, %v3252
        %v3447 = vmul.f32 %v3445, %v3257
        %v3448 = vmul.f32 %v3445, %v3262
        %v3449 = vmul.f32 %v3445, %v3267
        %v3450 = vmul.f32 %v3445, %v3272
        %v3451 = vmul.f32 %v3445, %v3277
        %v3452 = vmul.f32 %v3445, %v3282
        %v3453 = vmul.f32 %v3445, %v3287
        %v3454 = vmul.f32 %v3445, %v3292
        %v3455 = vmul.f32 %v3445, %v3297
        %v3456 = vmul.f32 %v3445, %v3302
        %v3457 = vmul.f32 %v3445, %v3307
        %v3458 = vmul.f32 %v3445, %v3312
        %v3459 = vmul.f32 %v3445, %v3317
        %v3460 = vmul.f32 %v3445, %v3322
        %v3461 = vmul.f32 %v3445, %v3327
        %v3462 = vmul.f32 %v3445, %v3332
        %v3463 = vmul.f32 %v3445, %v3337
        %v3464 = vmul.f32 %v3445, %v3342
        %v3465 = vmul.f32 %v3445, %v3347
        %v3466 = vmul.f32 %v3445, %v3352
        %v3467 = vmul.f32 %v3445, %v3357
        %v3468 = vmul.f32 %v3445, %v3362
        %v3469 = vmul.f32 %v3445, %v3367
        %v3470 = vmul.f32 %v3445, %v3372
        %v3471 = vmul.f32 %v3445, %v3377
        %v3472 = vmul.f32 %v3445, %v3382
        %v3473 = vmul.f32 %v3445, %v3387
        %v3474 = vmul.f32 %v3445, %v3392
        %v3475 = vmul.f32 %v3445, %v3397
        %v3476 = vmul.f32 %v3445, %v3402
        %v3477 = vmul.f32 %v3445, %v3407
        %v3478 = vadd.f32 %v3412, %v3446
        %v3479 = vadd.f32 %v3413, %v3447
        %v3480 = vadd.f32 %v3414, %v3448
        %v3481 = vadd.f32 %v3415, %v3449
        %v3482 = vadd.f32 %v3416, %v3450
        %v3483 = vadd.f32 %v3417, %v3451
        %v3484 = vadd.f32 %v3418, %v3452
        %v3485 = vadd.f32 %v3419, %v3453
        %v3486 = vadd.f32 %v3420, %v3454
        %v3487 = vadd.f32 %v3421, %v3455
        %v3488 = vadd.f32 %v3422, %v3456
        %v3489 = vadd.f32 %v3423, %v3457
        %v3490 = vadd.f32 %v3424, %v3458
        %v3491 = vadd.f32 %v3425, %v3459
        %v3492 = vadd.f32 %v3426, %v3460
        %v3493 = vadd.f32 %v3427, %v3461
        %v3494 = vadd.f32 %v3428, %v3462
        %v3495 = vadd.f32 %v3429, %v3463
        %v3496 = vadd.f32 %v3430, %v3464
        %v3497 = vadd.f32 %v3431, %v3465
        %v3498 = vadd.f32 %v3432, %v3466
        %v3499 = vadd.f32 %v3433, %v3467
        %v3500 = vadd.f32 %v3434, %v3468
        %v3501 = vadd.f32 %v3435, %v3469
        %v3502 = vadd.f32 %v3436, %v3470
        %v3503 = vadd.f32 %v3437, %v3471
        %v3504 = vadd.f32 %v3438, %v3472
        %v3505 = vadd.f32 %v3439, %v3473
        %v3506 = vadd.f32 %v3440, %v3474
        %v3507 = vadd.f32 %v3441, %v3475
        %v3508 = vadd.f32 %v3442, %v3476
        %v3509 = vadd.f32 %v3443, %v3477
        %3510 = vst.msk [vmem:[%s560] sm:$0xff] %vm758, %v3478
        %3511 = vst.msk [vmem:[%s560 + $0x8] sm:$0xff] %vm758, %v3479
        %3512 = vst.msk [vmem:[%s560 + $0x10] sm:$0xff] %vm758, %v3480
        %3513 = vst.msk [vmem:[%s560 + $0x18] sm:$0xff] %vm758, %v3481
        %3514 = vst.msk [vmem:[%s560 + $0x20] sm:$0xff] %vm758, %v3482
        %3515 = vst.msk [vmem:[%s560 + $0x28] sm:$0xff] %vm758, %v3483
        %3516 = vst.msk [vmem:[%s560 + $0x30] sm:$0xff] %vm758, %v3484
        %3517 = vst.msk [vmem:[%s560 + $0x38] sm:$0xff] %vm758, %v3485
        %3518 = vst.msk [vmem:[%s560 + $0x40] sm:$0xff] %vm758, %v3486
        %3519 = vst.msk [vmem:[%s560 + $0x48] sm:$0xff] %vm758, %v3487
        %3520 = vst.msk [vmem:[%s560 + $0x50] sm:$0xff] %vm758, %v3488
        %3521 = vst.msk [vmem:[%s560 + $0x58] sm:$0xff] %vm758, %v3489
        %3522 = vst.msk [vmem:[%s560 + $0x60] sm:$0xff] %vm758, %v3490
        %3523 = vst.msk [vmem:[%s560 + $0x68] sm:$0xff] %vm758, %v3491
        %3524 = vst.msk [vmem:[%s560 + $0x70] sm:$0xff] %vm758, %v3492
        %3525 = vst.msk [vmem:[%s560 + $0x78] sm:$0xff] %vm758, %v3493
        %3526 = vst.msk [vmem:[%s560 + $0x80] sm:$0xff] %vm758, %v3494
        %3527 = vst.msk [vmem:[%s560 + $0x88] sm:$0xff] %vm758, %v3495
        %3528 = vst.msk [vmem:[%s560 + $0x90] sm:$0xff] %vm758, %v3496
        %3529 = vst.msk [vmem:[%s560 + $0x98] sm:$0xff] %vm758, %v3497
        %3530 = vst.msk [vmem:[%s560 + $0xa0] sm:$0xff] %vm758, %v3498
        %3531 = vst.msk [vmem:[%s560 + $0xa8] sm:$0xff] %vm758, %v3499
        %3532 = vst.msk [vmem:[%s560 + $0xb0] sm:$0xff] %vm758, %v3500
        %3533 = vst.msk [vmem:[%s560 + $0xb8] sm:$0xff] %vm758, %v3501
        %3534 = vst.msk [vmem:[%s560 + $0xc0] sm:$0xff] %vm758, %v3502
        %3535 = vst.msk [vmem:[%s560 + $0xc8] sm:$0xff] %vm758, %v3503
        %3536 = vst.msk [vmem:[%s560 + $0xd0] sm:$0xff] %vm758, %v3504
        %3537 = vst.msk [vmem:[%s560 + $0xd8] sm:$0xff] %vm758, %v3505
        %3538 = vst.msk [vmem:[%s560 + $0xe0] sm:$0xff] %vm758, %v3506
        %3539 = vst.msk [vmem:[%s560 + $0xe8] sm:$0xff] %vm758, %v3507
        %3540 = vst.msk [vmem:[%s560 + $0xf0] sm:$0xff] %vm758, %v3508
        %3541 = vst.msk [vmem:[%s560 + $0xf8] sm:$0xff] %vm758, %v3509
        %s3542 = sand.u32 %s378, 1
        %s3543 = sand.u32 %s378, 1
        %s3544 = smul.addr %s3543, 256
        %s3545 = scalar_lea.vmem [#allocation4], %s3544
        // Predicated region
        $region85: #{_lambda_.7} parent=79 // pred_check
          %p3546 = pneg %p388
        $region86: #{_lambda_.7} parent=79 // pred_check_branch
          %3548 = sbr.rel (%p3546) target = $region88
        $region87: #{_lambda_.7} parent=79 // pred_region
          %s3549 = smul.u32 32, %s32
          %s3550 = ssub.s32 2, %s3549
          %s3551 = smul.u32 128, %s3550
          %p3552 = scmp.ne.s32.totalorder 0, %s3551
          %s3553 = smul.addr %s31, 2
          %s3554 = sadd.s32 %s3549, %s3553
          %s3555 = smul.addr %s3554, 8
          %s3556 = scalar_lea.vmem %s15, %s3555
          // Predicated region
          $region89: #{_lambda_.7} parent=87 // pred_check
            %p3557 = pneg %p3552
          $region90: #{_lambda_.7} parent=87 // pred_check_branch
            %3559 = sbr.rel (%p3557) target = $region92
          $region91: #{_lambda_.7} parent=87 // pred_region
            // Predicated region
            $region93: #{_lambda_.7} parent=91 // pred_check
              _
            $region94: #{_lambda_.7} parent=91 // pred_check_branch
              %3561 = sbr.rel (0) target = $region96
            $region95: #{_lambda_.7} parent=91 // pred_region
              // Predicated region
              $region115: #{_lambda_.7} parent=95 // pred_check
                _
              $region116: #{_lambda_.7} parent=95 // pred_check_branch
                %3612 = sbr.rel (0) target = $region118
              $region117: #{_lambda_.7} parent=95 // pred_region
                %s3613 = sshrl.u32 %s3550, 1
                // While loop
                $region119: #{_lambda_.7} parent=117 // loop_pre_header
                  _
                $region120: #{_lambda_.7} parent=117 // loop_header
                  %s3615 = sphi 0, %s3617
                  %p3616 = scmp.ge.s32.totalorder %s3615, %s3613
                  %s3620 = sphi 0, %s3629
                  %s3621 = sphi %s3545, %s3632
                  %s3622 = sphi %s3556, %s3633
                $region121: #{_lambda_.7} parent=117 // loop_header_branch
                  %3619 = sbr.rel (%p3616) target = $region125
                $region122: #{_lambda_.7} parent=117 // loop_body
                  %v3623 = vld [vmem:[%s3621] sm:$0xff]
                  %3624 = vst [vmem:[%s3622] sm:$0xff] %v3623
                  %v3625 = vld [vmem:[%s3621 + $0x8] sm:$0xff]
                  %3626 = vst [vmem:[%s3622 + $0x8] sm:$0xff] %v3625
                  %s3627 = sadd.s32 1, %s3620
                  %p3628 = scmp.ge.s32.totalorder %s3627, %s3613
                  %s3629 = scalar_select %p3628, 0, %s3627
                  %s3630 = smul.u32 %s3629, 16
                  %s3631 = smul.u32 %s3629, 16
                  %s3632 = scalar_lea.vmem %s3545, %s3630 [#allocation4]
                  %s3633 = scalar_lea.vmem %s3556, %s3631
                $region123: #{_lambda_.7} parent=117 // loop_footer
                  %s3617 = sadd.s32 %s3615, 1
                $region124: #{_lambda_.7} parent=117 // loop_footer_branch
                  %3614 = sbr.rel target = $region120
                $region125: #{_lambda_.7} parent=117 // loop_exit
                  _
                %s3634 = sshrl.u32 %s3550, 1
                %s3635 = sand.u32 %s3550, 1
                %s3636 = smul.u32 %s3634, 2
                %s3637 = smul.u32 8, %s3636
                %s3638 = scalar_lea.vmem %s3545, %s3637 [#allocation4]
                %s3639 = smul.u32 8, %s3636
                %s3640 = scalar_lea.vmem %s3556, %s3639
                // While loop
                $region126: #{_lambda_.7} parent=117 // loop_pre_header
                  _
                $region127: #{_lambda_.7} parent=117 // loop_header
                  %s3642 = sphi 0, %s3644
                  %p3643 = scmp.ge.s32.totalorder %s3642, %s3635
                  %s3647 = sphi 0, %s3654
                  %s3648 = sphi %s3638, %s3657
                  %s3649 = sphi %s3640, %s3658
                $region128: #{_lambda_.7} parent=117 // loop_header_branch
                  %3646 = sbr.rel (%p3643) target = $region132
                $region129: #{_lambda_.7} parent=117 // loop_body
                  %v3650 = vld [vmem:[%s3648] sm:$0xff]
                  %3651 = vst [vmem:[%s3649] sm:$0xff] %v3650
                  %s3652 = sadd.s32 1, %s3647
                  %p3653 = scmp.ge.s32.totalorder %s3652, %s3635
                  %s3654 = scalar_select %p3653, 0, %s3652
                  %s3655 = smul.u32 %s3654, 8
                  %s3656 = smul.u32 %s3654, 8
                  %s3657 = scalar_lea.vmem %s3638, %s3655 [#allocation4]
                  %s3658 = scalar_lea.vmem %s3640, %s3656
                $region130: #{_lambda_.7} parent=117 // loop_footer
                  %s3644 = sadd.s32 %s3642, 1
                $region131: #{_lambda_.7} parent=117 // loop_footer_branch
                  %3641 = sbr.rel target = $region127
                $region132: #{_lambda_.7} parent=117 // loop_exit
                  _
              $region118: #{_lambda_.7} parent=95 // pred_fallthru
                _
              // Predicated region
              $region133: #{_lambda_.7} parent=95 // pred_check
                _
              $region134: #{_lambda_.7} parent=95 // pred_check_branch
                %3660 = sbr.rel target = $region136
              $region135: #{_lambda_.7} parent=95 // pred_region
                _
              $region136: #{_lambda_.7} parent=95 // pred_fallthru
                _
            $region96: #{_lambda_.7} parent=91 // pred_fallthru
              _
            // Predicated region
            $region97: #{_lambda_.7} parent=91 // pred_check
              _
            $region98: #{_lambda_.7} parent=91 // pred_check_branch
              %3563 = sbr.rel target = $region100
            $region99: #{_lambda_.7} parent=91 // pred_region
              %s3565 = sshrl.u32 %s3550, 1
              // While loop
              $region101: #{_lambda_.7} parent=99 // loop_pre_header
                _
              $region102: #{_lambda_.7} parent=99 // loop_header
                %s3567 = sphi 0, %s3569
                %p3568 = scmp.ge.s32.totalorder %s3567, %s3565
                %s3572 = sphi 0, %s3581
                %s3573 = sphi %s3545, %s3584
                %s3574 = sphi %s3556, %s3585
              $region103: #{_lambda_.7} parent=99 // loop_header_branch
                %3571 = sbr.rel (%p3568) target = $region107
              $region104: #{_lambda_.7} parent=99 // loop_body
                %v3575 = vld [vmem:[%s3573] sm:$0xff]
                %3576 = vst [vmem:[%s3574] sm:$0xff] %v3575
                %v3577 = vld [vmem:[%s3573 + $0x8] sm:$0xff]
                %3578 = vst [vmem:[%s3574 + $0x8] sm:$0xff] %v3577
                %s3579 = sadd.s32 1, %s3572
                %p3580 = scmp.ge.s32.totalorder %s3579, %s3565
                %s3581 = scalar_select %p3580, 0, %s3579
                %s3582 = smul.u32 %s3581, 16
                %s3583 = smul.u32 %s3581, 16
                %s3584 = scalar_lea.vmem %s3545, %s3582 [#allocation4]
                %s3585 = scalar_lea.vmem %s3556, %s3583
              $region105: #{_lambda_.7} parent=99 // loop_footer
                %s3569 = sadd.s32 %s3567, 1
              $region106: #{_lambda_.7} parent=99 // loop_footer_branch
                %3566 = sbr.rel target = $region102
              $region107: #{_lambda_.7} parent=99 // loop_exit
                _
              %s3586 = sshrl.u32 %s3550, 1
              %s3587 = sand.u32 %s3550, 1
              %s3588 = smul.u32 %s3586, 2
              %s3589 = smul.u32 8, %s3588
              %s3590 = scalar_lea.vmem %s3545, %s3589 [#allocation4]
              %s3591 = smul.u32 8, %s3588
              %s3592 = scalar_lea.vmem %s3556, %s3591
              // While loop
              $region108: #{_lambda_.7} parent=99 // loop_pre_header
                _
              $region109: #{_lambda_.7} parent=99 // loop_header
                %s3594 = sphi 0, %s3596
                %p3595 = scmp.ge.s32.totalorder %s3594, %s3587
                %s3599 = sphi 0, %s3606
                %s3600 = sphi %s3590, %s3609
                %s3601 = sphi %s3592, %s3610
              $region110: #{_lambda_.7} parent=99 // loop_header_branch
                %3598 = sbr.rel (%p3595) target = $region114
              $region111: #{_lambda_.7} parent=99 // loop_body
                %v3602 = vld [vmem:[%s3600] sm:$0xff]
                %3603 = vst [vmem:[%s3601] sm:$0xff] %v3602
                %s3604 = sadd.s32 1, %s3599
                %p3605 = scmp.ge.s32.totalorder %s3604, %s3587
                %s3606 = scalar_select %p3605, 0, %s3604
                %s3607 = smul.u32 %s3606, 8
                %s3608 = smul.u32 %s3606, 8
                %s3609 = scalar_lea.vmem %s3590, %s3607 [#allocation4]
                %s3610 = scalar_lea.vmem %s3592, %s3608
              $region112: #{_lambda_.7} parent=99 // loop_footer
                %s3596 = sadd.s32 %s3594, 1
              $region113: #{_lambda_.7} parent=99 // loop_footer_branch
                %3593 = sbr.rel target = $region109
              $region114: #{_lambda_.7} parent=99 // loop_exit
                _
            $region100: #{_lambda_.7} parent=91 // pred_fallthru
              _
          $region92: #{_lambda_.7} parent=87 // pred_fallthru
            _
          %3661 = vnop
        $region88: #{_lambda_.7} parent=79 // pred_fallthru
          _
      $region80: #{_lambda_.7} parent=5 // pred_fallthru
        _
      %p3662 = scmp.le.s32.totalorder 2, %s22
      // Predicated region
      $region137: #{_lambda_.7} parent=5 // pred_check
        %p3663 = pneg %p3662
      $region138: #{_lambda_.7} parent=5 // pred_check_branch
        %3665 = sbr.rel (%p3663) target = $region140
      $region139: #{_lambda_.7} parent=5 // pred_region
        %s3666 = ssub.s32 %s22, 2
        // Predicated region
        $region141: #{_lambda_.7} parent=139 // pred_check
          %p3667 = pneg %p394
        $region142: #{_lambda_.7} parent=139 // pred_check_branch
          %3669 = sbr.rel (%p3667) target = $region144
        $region143: #{_lambda_.7} parent=139 // pred_region
          %s3670 = sand.u32 %s379, 1
          %s3671 = sand.u32 %s379, 1
          %s3672 = smul.addr %s3671, 256
          %s3673 = scalar_lea.vmem [#allocation4], %s3672
        $region144: #{_lambda_.7} parent=139 // pred_fallthru
          _
      $region140: #{_lambda_.7} parent=5 // pred_fallthru
        _
    $region6: #{_lambda_.7} parent=1 // loop_footer
      %s26 = sadd.s32 1, %s22
    $region7: #{_lambda_.7} parent=1 // loop_footer_branch
      %21 = sbr.rel target = $region3
    $region8: #{_lambda_.7} parent=1 // loop_exit
      _
    %3674 = vsyncpa [#allocation3], 1
    %s3675 = scalar_lea.sflag [#allocation3], 1
    %3676 = vsyncpa %s3675, 1

</llo_original>
